<compile_context>
chip_gen: v7x
topology: tpu7x:2x2x1
jax: 0.10.0
libtpu: 0.0.40
codegen_flags: <defaults>
</compile_context>

<pallas_src>
import functools

import jax
import jax.numpy as jnp
from jax.experimental import pallas as pl
from jax.experimental.pallas import tpu as pltpu


# ---------------------------------------------------------------------------
# Pallas kernel 1: out = relu(x @ w + b), single matmul per grid step,
# grid only over M (1-2 parallel blocks).
# ---------------------------------------------------------------------------
def _matmul_bias_relu_kernel(x_ref, w_ref, b_ref, o_ref):
    acc = jnp.dot(x_ref[...], w_ref[...], preferred_element_type=jnp.float32)
    o_ref[...] = jnp.maximum(acc + b_ref[...], 0.0).astype(o_ref.dtype)


def matmul_bias_relu(x, w, b):
    """relu(x @ w + b).  x:(M,K)  w:(K,N)  b:(1,N).  Full-K / full-N blocks;
    M split into two parallel blocks when that stays 8-aligned (v7x megacore)."""
    M, K = x.shape
    _, N = w.shape
    tm = M // 2 if (M >= 256 and M % 16 == 0) else M
    grid = (M // tm,)
    return pl.pallas_call(
        _matmul_bias_relu_kernel,
        out_shape=jax.ShapeDtypeStruct((M, N), x.dtype),
        grid_spec=pltpu.PrefetchScalarGridSpec(
            num_scalar_prefetch=0,
            grid=grid,
            in_specs=[
                pl.BlockSpec((tm, K), lambda i: (i, 0)),
                pl.BlockSpec((K, N), lambda i: (0, 0)),
                pl.BlockSpec((1, N), lambda i: (0, 0)),
            ],
            out_specs=pl.BlockSpec((tm, N), lambda i: (i, 0)),
        ),
        compiler_params=pltpu.CompilerParams(
            dimension_semantics=("parallel",)),
    )(x, w, b)


# ---------------------------------------------------------------------------
# Pallas kernel 2: fused fc1+fc2:  out = relu(x @ w1 + b1) @ w2 + b2
# The fc1 reduction (K) is the only grid axis; the fc1 hidden activation and
# the (128, 9) fc2 weight never leave VMEM.
# ---------------------------------------------------------------------------
def _fc_fused_kernel(x_ref, w1_ref, b1_ref, w2_ref, b2_ref, o_ref, acc_ref):
    k = pl.program_id(0)

    @pl.when(k == 0)
    def _():
        acc_ref[...] = jnp.zeros_like(acc_ref)

    acc_ref[...] += jnp.dot(x_ref[...], w1_ref[...],
                            preferred_element_type=jnp.float32)

    @pl.when(k == pl.num_programs(0) - 1)
    def _():
        h = jnp.maximum(acc_ref[...] + b1_ref[...], 0.0)
        o_ref[...] = (jnp.dot(h, w2_ref[...],
                              preferred_element_type=jnp.float32)
                      + b2_ref[...]).astype(o_ref.dtype)


def _pick_tk(K, H, budget_bytes=4 * 1024 * 1024):
    """Largest k-block that divides K, is lane-aligned, and whose f32 (tk, H)
    weight block fits the per-buffer budget (so double buffering still fits
    v5e's 16 MiB default scoped VMEM)."""
    for nk in range(1, max(K // 128, 1) + 1):
        if K % nk:
            continue
        tk = K // nk
        if tk != K and tk % 128:
            continue
        if tk * H * 4 <= budget_bytes:
            return tk
    return K


def fc_fused(x, w1, b1, w2, b2):
    """relu(x @ w1 + b1) @ w2 + b2 in a single pallas_call."""
    M, K = x.shape
    _, H = w1.shape
    _, O = w2.shape
    tk = _pick_tk(K, H)
    grid = (K // tk,)
    return pl.pallas_call(
        _fc_fused_kernel,
        out_shape=jax.ShapeDtypeStruct((M, O), x.dtype),
        grid_spec=pltpu.PrefetchScalarGridSpec(
            num_scalar_prefetch=0,
            grid=grid,
            in_specs=[
                pl.BlockSpec((M, tk), lambda k: (0, k)),
                pl.BlockSpec((tk, H), lambda k: (k, 0)),
                pl.BlockSpec((1, H), lambda k: (0, 0)),
                pl.BlockSpec((H, O), lambda k: (0, 0)),
                pl.BlockSpec((1, O), lambda k: (0, 0)),
            ],
            out_specs=pl.BlockSpec((M, O), lambda k: (0, 0)),
            scratch_shapes=[pltpu.VMEM((M, H), jnp.float32)],
        ),
        compiler_params=pltpu.CompilerParams(
            dimension_semantics=("arbitrary",)),
    )(x, w1, b1, w2, b2)


# ---------------------------------------------------------------------------
# Conv2d(+ReLU): NHWC patch extraction (no transposes) + one fused GEMM kernel.
# ---------------------------------------------------------------------------
def conv2d_relu(x_nhwc, w_mat, b, kh, kw, pad):
    """x_nhwc:(N,H,W,C), w_mat:(kh*kw*C, OC) rows ordered (ki,kj,c), b:(1,OC)."""
    N, H, W, C = x_nhwc.shape
    xp = jnp.pad(x_nhwc, ((0, 0), (pad, pad), (pad, pad), (0, 0)))
    OH = H + 2 * pad - kh + 1
    OW = W + 2 * pad - kw + 1
    # TODO(synk): the patch window gather stays as XLA slicing/concat glue (NHWC,
    # so no transposes); a fully in-kernel gather would need element-offset DMAs.
    cols = [xp[:, i:i + OH, j:j + OW, :] for i in range(kh) for j in range(kw)]
    patches = jnp.concatenate(cols, axis=-1)              # (N, OH, OW, kh*kw*C)
    patches = patches.reshape(N * OH * OW, kh * kw * C)   # contiguous -> free
    out = matmul_bias_relu(patches, w_mat, b)             # (N*OH*OW, OC)
    return out.reshape(N, OH, OW, w_mat.shape[1])


# ---------------------------------------------------------------------------
# DQN forward (takes prepared / pre-transposed params)
# ---------------------------------------------------------------------------
def dqn_forward(p, x_nchw):
    x = jnp.transpose(x_nchw, (0, 2, 3, 1))          # NCHW -> NHWC, once, tiny
    x = conv2d_relu(x, p["c1w"], p["c1b"], 5, 5, 1)
    x = conv2d_relu(x, p["c2w"], p["c2b"], 5, 5, 1)
    x = conv2d_relu(x, p["c3w"], p["c3b"], 3, 3, 1)
    n = x.shape[0]
    x = x.reshape(n, -1)       # NHWC flatten; fc1 weight rows were permuted to match
    return fc_fused(x, p["f1w"], p["f1b"], p["f2w"], p["f2b"])


def prepare_params(raw, input_shape):
    """One-time (outside jit) conversion of torch-layout params to kernel layouts."""
    C, H, W = input_shape
    OH, OW = H - 4, W - 4           # two k5/p1 convs shrink by 2 each; k3/p1 keeps size
    C3 = raw["c3w"].shape[0]

    def conv_w(w):                  # (OC, C, KH, KW) -> (KH*KW*C, OC), rows (ki,kj,c)
        return jnp.transpose(w, (2, 3, 1, 0)).reshape(-1, w.shape[0])

    # torch flattens conv output as (C, H, W); our activations flatten as (H, W, C):
    # permute fc1's input-feature axis once so results match exactly.
    f1 = raw["f1w"].reshape(-1, C3, OH, OW)
    f1 = jnp.transpose(f1, (2, 3, 1, 0)).reshape(OH * OW * C3, -1)
    return {
        "c1w": conv_w(raw["c1w"]), "c1b": raw["c1b"].reshape(1, -1),
        "c2w": conv_w(raw["c2w"]), "c2b": raw["c2b"].reshape(1, -1),
        "c3w": conv_w(raw["c3w"]), "c3b": raw["c3b"].reshape(1, -1),
        "f1w": f1,                 "f1b": raw["f1b"].reshape(1, -1),
        "f2w": raw["f2w"].T,       "f2b": raw["f2b"].reshape(1, -1),
    }


# ---------------------------------------------------------------------------
# Plain-JAX reference (torch layouts) for the correctness check
# ---------------------------------------------------------------------------
def dqn_reference(raw, x):
    def conv(x, w, b):
        y = jax.lax.conv_general_dilated(
            x, w, (1, 1), [(1, 1), (1, 1)],
            dimension_numbers=("NCHW", "OIHW", "NCHW"))
        return jnp.maximum(y + b[None, :, None, None], 0.0)

    x = conv(x, raw["c1w"], raw["c1b"])
    x = conv(x, raw["c2w"], raw["c2b"])
    x = conv(x, raw["c3w"], raw["c3b"])
    x = x.reshape(x.shape[0], -1)
    x = jnp.maximum(x @ raw["f1w"].T + raw["f1b"], 0.0)
    x = x @ raw["f2w"].T + raw["f2b"]
    return x


def init_params(key, input_shape):
    C, H, W = input_shape
    OH, OW = H - 4, W - 4
    conv_out = 128 * OH * OW
    keys = jax.random.split(key, 10)
    s = 0.05
    return {
        "c1w": s * jax.random.normal(keys[0], (64, C, 5, 5), jnp.float32),
        "c1b": s * jax.random.normal(keys[1], (64,), jnp.float32),
        "c2w": s * jax.random.normal(keys[2], (128, 64, 5, 5), jnp.float32),
        "c2b": s * jax.random.normal(keys[3], (128,), jnp.float32),
        "c3w": s * jax.random.normal(keys[4], (128, 128, 3, 3), jnp.float32),
        "c3b": s * jax.random.normal(keys[5], (128,), jnp.float32),
        # torch nn.Linear weight layout: (out_features, in_features)
        "f1w": s * jax.random.normal(keys[6], (128, conv_out), jnp.float32),
        "f1b": s * jax.random.normal(keys[7], (128,), jnp.float32),
        "f2w": s * jax.random.normal(keys[8], (9, 128), jnp.float32),
        "f2b": s * jax.random.normal(keys[9], (9,), jnp.float32),
    }


if __name__ == "__main__":
    key = jax.random.PRNGKey(0)
    input_shape = (4, 16, 16)          # (channels, height, width)
    batch = 2

    pkey, xkey = jax.random.split(key)
    raw = init_params(pkey, input_shape)
    x = jax.random.normal(xkey, (batch,) + input_shape, jnp.float32)

    params = prepare_params(raw, input_shape)   # one-time layout prep (outside jit)
    fwd = jax.jit(dqn_forward)
    out = jax.block_until_ready(fwd(params, x))

    ref = jax.block_until_ready(dqn_reference(raw, x))
    assert out.shape == (batch, 9), out.shape
    assert jnp.allclose(out, ref, rtol=1e-4, atol=1e-4), "mismatch vs reference"

    print("KERNEL_OK")
</pallas_src>

<mosaic_0001>
module attributes {stable_mosaic.version = 11 : i64} {
  func.func @_matmul_bias_relu_kernel(%arg0: i32, %arg1: memref<392x100xf32, #tpu.memory_space<vmem>>, %arg2: memref<100x64xf32, #tpu.memory_space<vmem>>, %arg3: memref<1x64xf32, #tpu.memory_space<vmem>>, %arg4: memref<392x64xf32, #tpu.memory_space<vmem>>) attributes {dimension_semantics = [#tpu.dimension_semantics<parallel>], iteration_bounds = array<i64: 1>, scalar_prefetch = 0 : i64, scratch_operands = 0 : i64, tpu.core_type = #tpu.core_type<tc>, window_params = [{transform_indices = @transform_0, window_bounds = array<i64: 392, 100>}, {pipeline_mode = #tpu.pipeline_mode<synchronous>, transform_indices = @transform_1, window_bounds = array<i64: 100, 64>}, {pipeline_mode = #tpu.pipeline_mode<synchronous>, transform_indices = @transform_2, window_bounds = array<i64: 1, 64>}, {transform_indices = @transform_3, window_bounds = array<i64: 392, 64>}]} {
    %c0 = arith.constant 0 : index
    %c0_0 = arith.constant 0 : index
    %0 = vector.load %arg1[%c0, %c0_0] : memref<392x100xf32, #tpu.memory_space<vmem>>, vector<392x100xf32>
    %c0_1 = arith.constant 0 : index
    %c0_2 = arith.constant 0 : index
    %1 = vector.load %arg2[%c0_1, %c0_2] : memref<100x64xf32, #tpu.memory_space<vmem>>, vector<100x64xf32>
    %cst = arith.constant dense<0.000000e+00> : vector<392x64xf32>
    %2 = tpu.matmul %0, %1, %cst {dimension_numbers = #tpu.dot_dimension_numbers<[1], [0], [0], [1], [0, 0, 1, 1], [], []>} : vector<392x100xf32>, vector<100x64xf32>, vector<392x64xf32> -> vector<392x64xf32>
    %c0_3 = arith.constant 0 : index
    %c0_4 = arith.constant 0 : index
    %3 = vector.load %arg3[%c0_3, %c0_4] : memref<1x64xf32, #tpu.memory_space<vmem>>, vector<1x64xf32>
    %4 = vector.broadcast %3 : vector<1x64xf32> to vector<392x64xf32>
    %5 = arith.addf %2, %4 : vector<392x64xf32>
    %cst_5 = arith.constant 0.000000e+00 : f32
    %6 = vector.broadcast %cst_5 : f32 to vector<392x64xf32>
    %7 = arith.maximumf %5, %6 : vector<392x64xf32>
    %c0_6 = arith.constant 0 : index
    %c0_7 = arith.constant 0 : index
    %8 = vector.load %arg4[%c0_6, %c0_7] : memref<392x64xf32, #tpu.memory_space<vmem>>, vector<392x64xf32>
    tpu.vector_store %arg4[%c0_6, %c0_7], %7 {strides = array<i32>} : memref<392x64xf32, #tpu.memory_space<vmem>>, vector<392x64xf32>,
    return
  }
  func.func @transform_0(%arg0: i32) -> (i32, i32) {
    %c0_i32 = arith.constant 0 : i32
    %c0_i32_0 = arith.constant 0 : i32
    return %arg0, %c0_i32 : i32, i32
  }
  func.func @transform_1(%arg0: i32) -> (i32, i32) {
    %c0_i32 = arith.constant 0 : i32
    %c0_i32_0 = arith.constant 0 : i32
    %c0_i32_1 = arith.constant 0 : i32
    return %c0_i32, %c0_i32_0 : i32, i32
  }
  func.func @transform_2(%arg0: i32) -> (i32, i32) {
    %c0_i32 = arith.constant 0 : i32
    %c0_i32_0 = arith.constant 0 : i32
    %c0_i32_1 = arith.constant 0 : i32
    return %c0_i32, %c0_i32_0 : i32, i32
  }
  func.func @transform_3(%arg0: i32) -> (i32, i32) {
    %c0_i32 = arith.constant 0 : i32
    %c0_i32_0 = arith.constant 0 : i32
    return %arg0, %c0_i32 : i32, i32
  }
}

module attributes {stable_mosaic.version = 11 : i64} {
  func.func @_matmul_bias_relu_kernel(%arg0: i32, %arg1: memref<144x1600xf32, #tpu.memory_space<vmem>>, %arg2: memref<1600x128xf32, #tpu.memory_space<vmem>>, %arg3: memref<1x128xf32, #tpu.memory_space<vmem>>, %arg4: memref<144x128xf32, #tpu.memory_space<vmem>>) attributes {dimension_semantics = [#tpu.dimension_semantics<parallel>], iteration_bounds = array<i64: 2>, scalar_prefetch = 0 : i64, scratch_operands = 0 : i64, tpu.core_type = #tpu.core_type<tc>, window_params = [{transform_indices = @transform_0, window_bounds = array<i64: 144, 1600>}, {pipeline_mode = #tpu.pipeline_mode<synchronous>, transform_indices = @transform_1, window_bounds = array<i64: 1600, 128>}, {pipeline_mode = #tpu.pipeline_mode<synchronous>, transform_indices = @transform_2, window_bounds = array<i64: 1, 128>}, {transform_indices = @transform_3, window_bounds = array<i64: 144, 128>}]} {
    %c0 = arith.constant 0 : index
    %c0_0 = arith.constant 0 : index
    %0 = vector.load %arg1[%c0, %c0_0] : memref<144x1600xf32, #tpu.memory_space<vmem>>, vector<144x1600xf32>
    %c0_1 = arith.constant 0 : index
    %c0_2 = arith.constant 0 : index
    %1 = vector.load %arg2[%c0_1, %c0_2] : memref<1600x128xf32, #tpu.memory_space<vmem>>, vector<1600x128xf32>
    %cst = arith.constant dense<0.000000e+00> : vector<144x128xf32>
    %2 = tpu.matmul %0, %1, %cst {dimension_numbers = #tpu.dot_dimension_numbers<[1], [0], [0], [1], [0, 0, 1, 1], [], []>} : vector<144x1600xf32>, vector<1600x128xf32>, vector<144x128xf32> -> vector<144x128xf32>
    %c0_3 = arith.constant 0 : index
    %c0_4 = arith.constant 0 : index
    %3 = vector.load %arg3[%c0_3, %c0_4] : memref<1x128xf32, #tpu.memory_space<vmem>>, vector<1x128xf32>
    %4 = vector.broadcast %3 : vector<1x128xf32> to vector<144x128xf32>
    %5 = arith.addf %2, %4 : vector<144x128xf32>
    %cst_5 = arith.constant 0.000000e+00 : f32
    %6 = vector.broadcast %cst_5 : f32 to vector<144x128xf32>
    %7 = arith.maximumf %5, %6 : vector<144x128xf32>
    %c0_6 = arith.constant 0 : index
    %c0_7 = arith.constant 0 : index
    %8 = vector.load %arg4[%c0_6, %c0_7] : memref<144x128xf32, #tpu.memory_space<vmem>>, vector<144x128xf32>
    tpu.vector_store %arg4[%c0_6, %c0_7], %7 {strides = array<i32>} : memref<144x128xf32, #tpu.memory_space<vmem>>, vector<144x128xf32>,
    return
  }
  func.func @transform_0(%arg0: i32) -> (i32, i32) {
    %c0_i32 = arith.constant 0 : i32
    %c0_i32_0 = arith.constant 0 : i32
    return %arg0, %c0_i32 : i32, i32
  }
  func.func @transform_1(%arg0: i32) -> (i32, i32) {
    %c0_i32 = arith.constant 0 : i32
    %c0_i32_0 = arith.constant 0 : i32
    %c0_i32_1 = arith.constant 0 : i32
    return %c0_i32, %c0_i32_0 : i32, i32
  }
  func.func @transform_2(%arg0: i32) -> (i32, i32) {
    %c0_i32 = arith.constant 0 : i32
    %c0_i32_0 = arith.constant 0 : i32
    %c0_i32_1 = arith.constant 0 : i32
    return %c0_i32, %c0_i32_0 : i32, i32
  }
  func.func @transform_3(%arg0: i32) -> (i32, i32) {
    %c0_i32 = arith.constant 0 : i32
    %c0_i32_0 = arith.constant 0 : i32
    return %arg0, %c0_i32 : i32, i32
  }
}

module attributes {stable_mosaic.version = 11 : i64} {
  func.func @_matmul_bias_relu_kernel(%arg0: i32, %arg1: memref<144x1152xf32, #tpu.memory_space<vmem>>, %arg2: memref<1152x128xf32, #tpu.memory_space<vmem>>, %arg3: memref<1x128xf32, #tpu.memory_space<vmem>>, %arg4: memref<144x128xf32, #tpu.memory_space<vmem>>) attributes {dimension_semantics = [#tpu.dimension_semantics<parallel>], iteration_bounds = array<i64: 2>, scalar_prefetch = 0 : i64, scratch_operands = 0 : i64, tpu.core_type = #tpu.core_type<tc>, window_params = [{transform_indices = @transform_0, window_bounds = array<i64: 144, 1152>}, {pipeline_mode = #tpu.pipeline_mode<synchronous>, transform_indices = @transform_1, window_bounds = array<i64: 1152, 128>}, {pipeline_mode = #tpu.pipeline_mode<synchronous>, transform_indices = @transform_2, window_bounds = array<i64: 1, 128>}, {transform_indices = @transform_3, window_bounds = array<i64: 144, 128>}]} {
    %c0 = arith.constant 0 : index
    %c0_0 = arith.constant 0 : index
    %0 = vector.load %arg1[%c0, %c0_0] : memref<144x1152xf32, #tpu.memory_space<vmem>>, vector<144x1152xf32>
    %c0_1 = arith.constant 0 : index
    %c0_2 = arith.constant 0 : index
    %1 = vector.load %arg2[%c0_1, %c0_2] : memref<1152x128xf32, #tpu.memory_space<vmem>>, vector<1152x128xf32>
    %cst = arith.constant dense<0.000000e+00> : vector<144x128xf32>
    %2 = tpu.matmul %0, %1, %cst {dimension_numbers = #tpu.dot_dimension_numbers<[1], [0], [0], [1], [0, 0, 1, 1], [], []>} : vector<144x1152xf32>, vector<1152x128xf32>, vector<144x128xf32> -> vector<144x128xf32>
    %c0_3 = arith.constant 0 : index
    %c0_4 = arith.constant 0 : index
    %3 = vector.load %arg3[%c0_3, %c0_4] : memref<1x128xf32, #tpu.memory_space<vmem>>, vector<1x128xf32>
    %4 = vector.broadcast %3 : vector<1x128xf32> to vector<144x128xf32>
    %5 = arith.addf %2, %4 : vector<144x128xf32>
    %cst_5 = arith.constant 0.000000e+00 : f32
    %6 = vector.broadcast %cst_5 : f32 to vector<144x128xf32>
    %7 = arith.maximumf %5, %6 : vector<144x128xf32>
    %c0_6 = arith.constant 0 : index
    %c0_7 = arith.constant 0 : index
    %8 = vector.load %arg4[%c0_6, %c0_7] : memref<144x128xf32, #tpu.memory_space<vmem>>, vector<144x128xf32>
    tpu.vector_store %arg4[%c0_6, %c0_7], %7 {strides = array<i32>} : memref<144x128xf32, #tpu.memory_space<vmem>>, vector<144x128xf32>,
    return
  }
  func.func @transform_0(%arg0: i32) -> (i32, i32) {
    %c0_i32 = arith.constant 0 : i32
    %c0_i32_0 = arith.constant 0 : i32
    return %arg0, %c0_i32 : i32, i32
  }
  func.func @transform_1(%arg0: i32) -> (i32, i32) {
    %c0_i32 = arith.constant 0 : i32
    %c0_i32_0 = arith.constant 0 : i32
    %c0_i32_1 = arith.constant 0 : i32
    return %c0_i32, %c0_i32_0 : i32, i32
  }
  func.func @transform_2(%arg0: i32) -> (i32, i32) {
    %c0_i32 = arith.constant 0 : i32
    %c0_i32_0 = arith.constant 0 : i32
    %c0_i32_1 = arith.constant 0 : i32
    return %c0_i32, %c0_i32_0 : i32, i32
  }
  func.func @transform_3(%arg0: i32) -> (i32, i32) {
    %c0_i32 = arith.constant 0 : i32
    %c0_i32_0 = arith.constant 0 : i32
    return %arg0, %c0_i32 : i32, i32
  }
}

module attributes {stable_mosaic.version = 11 : i64} {
  func.func @_fc_fused_kernel(%arg0: i32, %arg1: memref<2x6144xf32, #tpu.memory_space<vmem>>, %arg2: memref<6144x128xf32, #tpu.memory_space<vmem>>, %arg3: memref<1x128xf32, #tpu.memory_space<vmem>>, %arg4: memref<128x9xf32, #tpu.memory_space<vmem>>, %arg5: memref<1x9xf32, #tpu.memory_space<vmem>>, %arg6: memref<2x9xf32, #tpu.memory_space<vmem>>, %arg7: memref<2x128xf32, #tpu.memory_space<vmem>>) attributes {dimension_semantics = [#tpu.dimension_semantics<arbitrary>], iteration_bounds = array<i64: 3>, scalar_prefetch = 0 : i64, scratch_operands = 1 : i64, tpu.core_type = #tpu.core_type<tc>, window_params = [{transform_indices = @transform_0, window_bounds = array<i64: 2, 6144>}, {transform_indices = @transform_1, window_bounds = array<i64: 6144, 128>}, {pipeline_mode = #tpu.pipeline_mode<synchronous>, transform_indices = @transform_2, window_bounds = array<i64: 1, 128>}, {pipeline_mode = #tpu.pipeline_mode<synchronous>, transform_indices = @transform_3, window_bounds = array<i64: 128, 9>}, {pipeline_mode = #tpu.pipeline_mode<synchronous>, transform_indices = @transform_4, window_bounds = array<i64: 1, 9>}, {pipeline_mode = #tpu.pipeline_mode<synchronous>, transform_indices = @transform_5, window_bounds = array<i64: 2, 9>}]} {
    %c0_i32 = arith.constant 0 : i32
    %0 = arith.cmpi eq, %arg0, %c0_i32 : i32
    %1 = arith.extui %0 : i1 to i32
    %c0_i32_0 = arith.constant 0 : i32
    %2 = arith.cmpi ne, %1, %c0_i32_0 : i32
    scf.if %2 {
      %cst_9 = arith.constant 0.000000e+00 : f32
      %12 = vector.broadcast %cst_9 : f32 to vector<2x128xf32>
      %c0_10 = arith.constant 0 : index
      %c0_11 = arith.constant 0 : index
      %13 = vector.load %arg7[%c0_10, %c0_11] : memref<2x128xf32, #tpu.memory_space<vmem>>, vector<2x128xf32>
      tpu.vector_store %arg7[%c0_10, %c0_11], %12 {strides = array<i32>} : memref<2x128xf32, #tpu.memory_space<vmem>>, vector<2x128xf32>,
    } else {
    }
    %c0 = arith.constant 0 : index
    %c0_1 = arith.constant 0 : index
    %3 = vector.load %arg7[%c0, %c0_1] : memref<2x128xf32, #tpu.memory_space<vmem>>, vector<2x128xf32>
    %c0_2 = arith.constant 0 : index
    %c0_3 = arith.constant 0 : index
    %4 = vector.load %arg1[%c0_2, %c0_3] : memref<2x6144xf32, #tpu.memory_space<vmem>>, vector<2x6144xf32>
    %c0_4 = arith.constant 0 : index
    %c0_5 = arith.constant 0 : index
    %5 = vector.load %arg2[%c0_4, %c0_5] : memref<6144x128xf32, #tpu.memory_space<vmem>>, vector<6144x128xf32>
    %cst = arith.constant dense<0.000000e+00> : vector<2x128xf32>
    %6 = tpu.matmul %4, %5, %cst {dimension_numbers = #tpu.dot_dimension_numbers<[1], [0], [0], [1], [0, 0, 1, 1], [], []>} : vector<2x6144xf32>, vector<6144x128xf32>, vector<2x128xf32> -> vector<2x128xf32>
    %7 = arith.addf %3, %6 : vector<2x128xf32>
    %c0_6 = arith.constant 0 : index
    %c0_7 = arith.constant 0 : index
    %8 = vector.load %arg7[%c0_6, %c0_7] : memref<2x128xf32, #tpu.memory_space<vmem>>, vector<2x128xf32>
    tpu.vector_store %arg7[%c0_6, %c0_7], %7 {strides = array<i32>} : memref<2x128xf32, #tpu.memory_space<vmem>>, vector<2x128xf32>,
    %c2_i32 = arith.constant 2 : i32
    %9 = arith.cmpi eq, %arg0, %c2_i32 : i32
    %10 = arith.extui %9 : i1 to i32
    %c0_i32_8 = arith.constant 0 : i32
    %11 = arith.cmpi ne, %10, %c0_i32_8 : i32
    scf.if %11 {
      %c0_9 = arith.constant 0 : index
      %c0_10 = arith.constant 0 : index
      %12 = vector.load %arg7[%c0_9, %c0_10] : memref<2x128xf32, #tpu.memory_space<vmem>>, vector<2x128xf32>
      %c0_11 = arith.constant 0 : index
      %c0_12 = arith.constant 0 : index
      %13 = vector.load %arg3[%c0_11, %c0_12] : memref<1x128xf32, #tpu.memory_space<vmem>>, vector<1x128xf32>
      %14 = vector.broadcast %13 : vector<1x128xf32> to vector<2x128xf32>
      %15 = arith.addf %12, %14 : vector<2x128xf32>
      %cst_13 = arith.constant 0.000000e+00 : f32
      %16 = vector.broadcast %cst_13 : f32 to vector<2x128xf32>
      %17 = arith.maximumf %15, %16 : vector<2x128xf32>
      %c0_14 = arith.constant 0 : index
      %c0_15 = arith.constant 0 : index
      %18 = vector.load %arg4[%c0_14, %c0_15] : memref<128x9xf32, #tpu.memory_space<vmem>>, vector<128x9xf32>
      %cst_16 = arith.constant dense<0.000000e+00> : vector<2x9xf32>
      %19 = tpu.matmul %17, %18, %cst_16 {dimension_numbers = #tpu.dot_dimension_numbers<[1], [0], [0], [1], [0, 0, 1, 1], [], []>} : vector<2x128xf32>, vector<128x9xf32>, vector<2x9xf32> -> vector<2x9xf32>
      %c0_17 = arith.constant 0 : index
      %c0_18 = arith.constant 0 : index
      %20 = vector.load %arg5[%c0_17, %c0_18] : memref<1x9xf32, #tpu.memory_space<vmem>>, vector<1x9xf32>
      %21 = vector.broadcast %20 : vector<1x9xf32> to vector<2x9xf32>
      %22 = arith.addf %19, %21 : vector<2x9xf32>
      %c0_19 = arith.constant 0 : index
      %c0_20 = arith.constant 0 : index
      %23 = vector.load %arg6[%c0_19, %c0_20] : memref<2x9xf32, #tpu.memory_space<vmem>>, vector<2x9xf32>
      tpu.vector_store %arg6[%c0_19, %c0_20], %22 {strides = array<i32>} : memref<2x9xf32, #tpu.memory_space<vmem>>, vector<2x9xf32>,
    } else {
    }
    return
  }
  func.func @transform_0(%arg0: i32) -> (i32, i32) {
    %c0_i32 = arith.constant 0 : i32
    %c0_i32_0 = arith.constant 0 : i32
    return %c0_i32, %arg0 : i32, i32
  }
  func.func @transform_1(%arg0: i32) -> (i32, i32) {
    %c0_i32 = arith.constant 0 : i32
    %c0_i32_0 = arith.constant 0 : i32
    return %arg0, %c0_i32 : i32, i32
  }
  func.func @transform_2(%arg0: i32) -> (i32, i32) {
    %c0_i32 = arith.constant 0 : i32
    %c0_i32_0 = arith.constant 0 : i32
    %c0_i32_1 = arith.constant 0 : i32
    return %c0_i32, %c0_i32_0 : i32, i32
  }
  func.func @transform_3(%arg0: i32) -> (i32, i32) {
    %c0_i32 = arith.constant 0 : i32
    %c0_i32_0 = arith.constant 0 : i32
    %c0_i32_1 = arith.constant 0 : i32
    return %c0_i32, %c0_i32_0 : i32, i32
  }
  func.func @transform_4(%arg0: i32) -> (i32, i32) {
    %c0_i32 = arith.constant 0 : i32
    %c0_i32_0 = arith.constant 0 : i32
    %c0_i32_1 = arith.constant 0 : i32
    return %c0_i32, %c0_i32_0 : i32, i32
  }
  func.func @transform_5(%arg0: i32) -> (i32, i32) {
    %c0_i32 = arith.constant 0 : i32
    %c0_i32_0 = arith.constant 0 : i32
    %c0_i32_1 = arith.constant 0 : i32
    return %c0_i32, %c0_i32_0 : i32, i32
  }
}

</mosaic_0001>

<llo_original>
// kernel: dqn_forward.4
$region0: #{dqn_forward.4}
  #allocation0 [shape = 'u32[]', space=smem, size = 0x4, offset = 0x4, fixed_abs, tag = 'smem constant byte address 0x4 - core index']
  #allocation1 [shape = 'u32[144,128]{1,0:T(1,128)}', space=vmem, size = 0x12000, scoped, tag = 'internal scratch']
  %s0 = inlined_call_operand.vmem [shape: f32[392,100], index: 0, kind: input, shape index: {}]
  %s1 = inlined_call_operand.vmem [shape: f32[100,64], index: 1, kind: input, shape index: {}]
  %s2 = inlined_call_operand.vmem [shape: f32[1,64], index: 2, kind: input, shape index: {}]
  %s3 = inlined_call_operand.vmem [shape: f32[392,64], index: 3, kind: output, shape index: {}]
  %s4 = sld [smem:[#allocation0]]
  $region22: #{dqn_forward.4} parent=0
    _
  %s6 = ssub.s32 1, %s4
  %s7 = scalar_select 0, %s6, %s4
  // Predicated region
  $region2: #{dqn_forward.4} parent=0 // pred_check
    _
  $region3: #{dqn_forward.4} parent=0 // pred_check_branch
    %9 = sbr.rel (0) target = $region5
  $region4: #{dqn_forward.4} parent=0 // pred_region
    _
  $region5: #{dqn_forward.4} parent=0 // pred_fallthru
    _
  // Predicated region
  $region6: #{dqn_forward.4} parent=0 // pred_check
    _
  $region7: #{dqn_forward.4} parent=0 // pred_check_branch
    %11 = sbr.rel (0) target = $region9
  $region8: #{dqn_forward.4} parent=0 // pred_region
    _
  $region9: #{dqn_forward.4} parent=0 // pred_fallthru
    _
  // Predicated region
  $region10: #{dqn_forward.4} parent=0 // pred_check
    _
  $region11: #{dqn_forward.4} parent=0 // pred_check_branch
    %13 = sbr.rel (0) target = $region13
  $region12: #{dqn_forward.4} parent=0 // pred_region
    _
  $region13: #{dqn_forward.4} parent=0 // pred_fallthru
    _
  %v14 = vld [vmem:[%s0] sm:$0xff]
  %v15 = vld [vmem:[%s0 + $0x8] sm:$0xff]
  %v16 = vld [vmem:[%s0 + $0x10] sm:$0xff]
  %v17 = vld [vmem:[%s0 + $0x18] sm:$0xff]
  %v18 = vld [vmem:[%s0 + $0x20] sm:$0xff]
  %v19 = vld [vmem:[%s0 + $0x28] sm:$0xff]
  %v20 = vld [vmem:[%s0 + $0x30] sm:$0xff]
  %v21 = vld [vmem:[%s0 + $0x38] sm:$0xff]
  %v22 = vld [vmem:[%s0 + $0x40] sm:$0xff]
  %v23 = vld [vmem:[%s0 + $0x48] sm:$0xff]
  %v24 = vld [vmem:[%s0 + $0x50] sm:$0xff]
  %v25 = vld [vmem:[%s0 + $0x58] sm:$0xff]
  %v26 = vld [vmem:[%s0 + $0x60] sm:$0xff]
  %v27 = vld [vmem:[%s0 + $0x68] sm:$0xff]
  %v28 = vld [vmem:[%s0 + $0x70] sm:$0xff]
  %v29 = vld [vmem:[%s0 + $0x78] sm:$0xff]
  %v30 = vld [vmem:[%s0 + $0x80] sm:$0xff]
  %v31 = vld [vmem:[%s0 + $0x88] sm:$0xff]
  %v32 = vld [vmem:[%s0 + $0x90] sm:$0xff]
  %v33 = vld [vmem:[%s0 + $0x98] sm:$0xff]
  %v34 = vld [vmem:[%s0 + $0xa0] sm:$0xff]
  %v35 = vld [vmem:[%s0 + $0xa8] sm:$0xff]
  %v36 = vld [vmem:[%s0 + $0xb0] sm:$0xff]
  %v37 = vld [vmem:[%s0 + $0xb8] sm:$0xff]
  %v38 = vld [vmem:[%s0 + $0xc0] sm:$0xff]
  %v39 = vld [vmem:[%s0 + $0xc8] sm:$0xff]
  %v40 = vld [vmem:[%s0 + $0xd0] sm:$0xff]
  %v41 = vld [vmem:[%s0 + $0xd8] sm:$0xff]
  %v42 = vld [vmem:[%s0 + $0xe0] sm:$0xff]
  %v43 = vld [vmem:[%s0 + $0xe8] sm:$0xff]
  %v44 = vld [vmem:[%s0 + $0xf0] sm:$0xff]
  %v45 = vld [vmem:[%s0 + $0xf8] sm:$0xff]
  %v46 = vld [vmem:[%s0 + $0x100] sm:$0xff]
  %v47 = vld [vmem:[%s0 + $0x108] sm:$0xff]
  %v48 = vld [vmem:[%s0 + $0x110] sm:$0xff]
  %v49 = vld [vmem:[%s0 + $0x118] sm:$0xff]
  %v50 = vld [vmem:[%s0 + $0x120] sm:$0xff]
  %v51 = vld [vmem:[%s0 + $0x128] sm:$0xff]
  %v52 = vld [vmem:[%s0 + $0x130] sm:$0xff]
  %v53 = vld [vmem:[%s0 + $0x138] sm:$0xff]
  %v54 = vld [vmem:[%s0 + $0x140] sm:$0xff]
  %v55 = vld [vmem:[%s0 + $0x148] sm:$0xff]
  %v56 = vld [vmem:[%s0 + $0x150] sm:$0xff]
  %v57 = vld [vmem:[%s0 + $0x158] sm:$0xff]
  %v58 = vld [vmem:[%s0 + $0x160] sm:$0xff]
  %v59 = vld [vmem:[%s0 + $0x168] sm:$0xff]
  %v60 = vld [vmem:[%s0 + $0x170] sm:$0xff]
  %v61 = vld [vmem:[%s0 + $0x178] sm:$0xff]
  %v62 = vld [vmem:[%s0 + $0x180] sm:$0xff]
  %v63 = vld [vmem:[%s1] sm:$0xff]
  %v64 = vld [vmem:[%s1 + $0x8] sm:$0xff]
  %v65 = vld [vmem:[%s1 + $0x10] sm:$0xff]
  %v66 = vld [vmem:[%s1 + $0x18] sm:$0xff]
  %v67 = vld [vmem:[%s1 + $0x20] sm:$0xff]
  %v68 = vld [vmem:[%s1 + $0x28] sm:$0xff]
  %v69 = vld [vmem:[%s1 + $0x30] sm:$0xff]
  %v70 = vld [vmem:[%s1 + $0x38] sm:$0xff]
  %v71 = vld [vmem:[%s1 + $0x40] sm:$0xff]
  %v72 = vld [vmem:[%s1 + $0x48] sm:$0xff]
  %v73 = vld [vmem:[%s1 + $0x50] sm:$0xff]
  %v74 = vld [vmem:[%s1 + $0x58] sm:$0xff]
  %v75 = vld [vmem:[%s1 + $0x60] sm:$0xf]
  %v76 = vld [vmem:[%s2] sm:$0x1]
  %v78 = vlaneseq
  %v79 = vshrl.u32 %v78, 7
  %v80 = vsub.s32 0, %v79
  %v81 = vrot.slane %v76, %v80
  %vm83 = vcmask 818176
  %v85 = vsel %vm83, %v14, 0
  %v88 = vsel %vm83, %v15, 0
  %v91 = vsel %vm83, %v16, 0
  %v94 = vsel %vm83, %v17, 0
  %v97 = vsel %vm83, %v18, 0
  %v100 = vsel %vm83, %v19, 0
  %v103 = vsel %vm83, %v20, 0
  %v106 = vsel %vm83, %v21, 0
  %v109 = vsel %vm83, %v22, 0
  %v112 = vsel %vm83, %v23, 0
  %v115 = vsel %vm83, %v24, 0
  %v118 = vsel %vm83, %v25, 0
  %v121 = vsel %vm83, %v26, 0
  %v124 = vsel %vm83, %v27, 0
  %v127 = vsel %vm83, %v28, 0
  %v130 = vsel %vm83, %v29, 0
  %v133 = vsel %vm83, %v30, 0
  %v136 = vsel %vm83, %v31, 0
  %v139 = vsel %vm83, %v32, 0
  %v142 = vsel %vm83, %v33, 0
  %v145 = vsel %vm83, %v34, 0
  %v148 = vsel %vm83, %v35, 0
  %v151 = vsel %vm83, %v36, 0
  %v154 = vsel %vm83, %v37, 0
  %v157 = vsel %vm83, %v38, 0
  %v160 = vsel %vm83, %v39, 0
  %v163 = vsel %vm83, %v40, 0
  %v166 = vsel %vm83, %v41, 0
  %v169 = vsel %vm83, %v42, 0
  %v172 = vsel %vm83, %v43, 0
  %v175 = vsel %vm83, %v44, 0
  %v178 = vsel %vm83, %v45, 0
  %v181 = vsel %vm83, %v46, 0
  %v184 = vsel %vm83, %v47, 0
  %v187 = vsel %vm83, %v48, 0
  %v190 = vsel %vm83, %v49, 0
  %v193 = vsel %vm83, %v50, 0
  %v196 = vsel %vm83, %v51, 0
  %v199 = vsel %vm83, %v52, 0
  %v202 = vsel %vm83, %v53, 0
  %v205 = vsel %vm83, %v54, 0
  %v208 = vsel %vm83, %v55, 0
  %v211 = vsel %vm83, %v56, 0
  %v214 = vsel %vm83, %v57, 0
  %v217 = vsel %vm83, %v58, 0
  %v220 = vsel %vm83, %v59, 0
  %v223 = vsel %vm83, %v60, 0
  %v226 = vsel %vm83, %v61, 0
  %v229 = vsel %vm83, %v62, 0
  %vm231 = vcmask 1043456
  %v233 = vsel %vm231, %v75, 0
  %235 = vmatprep.subr.mxu0 0.0
  %236 = vmatpush1.msra.mxu0 %v63
  %237 = vmatprep.subr.mxu0 0.0
  %238 = vmatpush1.msra.mxu0 %v64
  %239 = vmatprep.subr.mxu0 0.0
  %240 = vmatpush1.msra.mxu0 %v65
  %241 = vmatprep.subr.mxu0 0.0
  %242 = vmatpush1.msra.mxu0 %v66
  %243 = vmatprep.subr.mxu0 0.0
  %244 = vmatpush1.msra.mxu0 %v67
  %245 = vmatprep.subr.mxu0 0.0
  %246 = vmatpush1.msra.mxu0 %v68
  %247 = vmatprep.subr.mxu0 0.0
  %248 = vmatpush1.msra.mxu0 %v69
  %249 = vmatprep.subr.mxu0 0.0
  %250 = vmatpush1.msra.mxu0 %v70
  %251 = vmatprep.subr.mxu0 0.0
  %252 = vmatpush1.msra.mxu0 %v71
  %253 = vmatprep.subr.mxu0 0.0
  %254 = vmatpush1.msra.mxu0 %v72
  %255 = vmatprep.subr.mxu0 0.0
  %256 = vmatpush1.msra.mxu0 %v73
  %257 = vmatprep.subr.mxu0 0.0
  %258 = vmatpush1.msra.mxu0 %v74
  %259 = vmatprep.subr.mxu0 0.0
  %260 = vmatpush1.msra.mxu0 %v233
  %261 = vmatprep.subr.mxu0 0.0
  %262 = vmatpush1.msra.mxu0 0.0
  %263 = vmatprep.subr.mxu0 0.0
  %264 = vmatpush1.msra.mxu0 0.0
  %265 = vmatprep.subr.mxu0 0.0
  %266 = vmatpush1.msra.mxu0 0.0
  %267 = vmatprep.subr.mxu0 0.0
  %268 = vmatpush1.msra.mxu0 0.0
  %269 = vmatprep.subr.mxu0 0.0
  %270 = vmatpush1.msra.mxu0 0.0
  %271 = vmatprep.subr.mxu0 0.0
  %272 = vmatpush1.msra.mxu0 0.0
  %273 = vmatprep.subr.mxu0 0.0
  %274 = vmatpush1.msra.mxu0 0.0
  %275 = vmatprep.subr.mxu0 0.0
  %276 = vmatpush1.msra.mxu0 0.0
  %277 = vmatprep.subr.mxu0 0.0
  %278 = vmatpush1.msra.mxu0 0.0
  %279 = vmatprep.subr.mxu0 0.0
  %280 = vmatpush1.msra.mxu0 0.0
  %281 = vmatprep.subr.mxu0 0.0
  %282 = vmatpush1.msra.mxu0 0.0
  %283 = vmatprep.subr.mxu0 0.0
  %284 = vmatpush1.msra.mxu0 0.0
  %285 = vmatprep.subr.mxu0 0.0
  %286 = vmatpush1.msra.mxu0 0.0
  %287 = vmatprep.subr.mxu0 0.0
  %288 = vmatpush1.msra.mxu0 0.0
  %289 = vmatprep.subr.mxu0 0.0
  %290 = vmatpush1.msra.mxu0 0.0
  %291 = vmatprep.subr.mxu0 0.0
  %292 = vmatpush1.msra.mxu0 0.0
  %293 = vmatprep.subr.mxu0 0.0
  %294 = vmatpush1.msra.mxu0 0.0
  %295 = vmatprep.subr.mxu0 0.0
  %296 = vmatpush1.msra.mxu0 0.0
  %297 = vmatprep.subr.mxu0 0.0
  %298 = vmatpush1.msra.mxu0 0.0
  %299 = vmatprep.mubr.f32.mxu0 0.0
  %300 = vmatmul.mubr.f32.gmra.mrb[0].mxu0 %v85
  %v301 = vpop.f32.mrb[0].mxu0
  %v302 = vadd.f32 %v81, %v301
  %v303 = vpop.f32.mrb[0].mxu0
  %304 = vmatprep.mubr.f32.mxu0 0.0
  %305 = vmatmul.mubr.f32.gmra.mrb[0].mxu0 %v88
  %v306 = vpop.f32.mrb[0].mxu0
  %v307 = vadd.f32 %v81, %v306
  %v308 = vpop.f32.mrb[0].mxu0
  %309 = vmatprep.mubr.f32.mxu0 0.0
  %310 = vmatmul.mubr.f32.gmra.mrb[0].mxu0 %v91
  %v311 = vpop.f32.mrb[0].mxu0
  %v312 = vadd.f32 %v81, %v311
  %v313 = vpop.f32.mrb[0].mxu0
  %314 = vmatprep.mubr.f32.mxu0 0.0
  %315 = vmatmul.mubr.f32.gmra.mrb[0].mxu0 %v94
  %v316 = vpop.f32.mrb[0].mxu0
  %v317 = vadd.f32 %v81, %v316
  %v318 = vpop.f32.mrb[0].mxu0
  %319 = vmatprep.mubr.f32.mxu0 0.0
  %320 = vmatmul.mubr.f32.gmra.mrb[0].mxu0 %v97
  %v321 = vpop.f32.mrb[0].mxu0
  %v322 = vadd.f32 %v81, %v321
  %v323 = vpop.f32.mrb[0].mxu0
  %324 = vmatprep.mubr.f32.mxu0 0.0
  %325 = vmatmul.mubr.f32.gmra.mrb[0].mxu0 %v100
  %v326 = vpop.f32.mrb[0].mxu0
  %v327 = vadd.f32 %v81, %v326
  %v328 = vpop.f32.mrb[0].mxu0
  %329 = vmatprep.mubr.f32.mxu0 0.0
  %330 = vmatmul.mubr.f32.gmra.mrb[0].mxu0 %v103
  %v331 = vpop.f32.mrb[0].mxu0
  %v332 = vadd.f32 %v81, %v331
  %v333 = vpop.f32.mrb[0].mxu0
  %334 = vmatprep.mubr.f32.mxu0 0.0
  %335 = vmatmul.mubr.f32.gmra.mrb[0].mxu0 %v106
  %v336 = vpop.f32.mrb[0].mxu0
  %v337 = vadd.f32 %v81, %v336
  %v338 = vpop.f32.mrb[0].mxu0
  %339 = vmatprep.mubr.f32.mxu0 0.0
  %340 = vmatmul.mubr.f32.gmra.mrb[0].mxu0 %v109
  %v341 = vpop.f32.mrb[0].mxu0
  %v342 = vadd.f32 %v81, %v341
  %v343 = vpop.f32.mrb[0].mxu0
  %344 = vmatprep.mubr.f32.mxu0 0.0
  %345 = vmatmul.mubr.f32.gmra.mrb[0].mxu0 %v112
  %v346 = vpop.f32.mrb[0].mxu0
  %v347 = vadd.f32 %v81, %v346
  %v348 = vpop.f32.mrb[0].mxu0
  %349 = vmatprep.mubr.f32.mxu0 0.0
  %350 = vmatmul.mubr.f32.gmra.mrb[0].mxu0 %v115
  %v351 = vpop.f32.mrb[0].mxu0
  %v352 = vadd.f32 %v81, %v351
  %v353 = vpop.f32.mrb[0].mxu0
  %354 = vmatprep.mubr.f32.mxu0 0.0
  %355 = vmatmul.mubr.f32.gmra.mrb[0].mxu0 %v118
  %v356 = vpop.f32.mrb[0].mxu0
  %v357 = vadd.f32 %v81, %v356
  %v358 = vpop.f32.mrb[0].mxu0
  %359 = vmatprep.mubr.f32.mxu0 0.0
  %360 = vmatmul.mubr.f32.gmra.mrb[0].mxu0 %v121
  %v361 = vpop.f32.mrb[0].mxu0
  %v362 = vadd.f32 %v81, %v361
  %v363 = vpop.f32.mrb[0].mxu0
  %364 = vmatprep.mubr.f32.mxu0 0.0
  %365 = vmatmul.mubr.f32.gmra.mrb[0].mxu0 %v124
  %v366 = vpop.f32.mrb[0].mxu0
  %v367 = vadd.f32 %v81, %v366
  %v368 = vpop.f32.mrb[0].mxu0
  %369 = vmatprep.mubr.f32.mxu0 0.0
  %370 = vmatmul.mubr.f32.gmra.mrb[0].mxu0 %v127
  %v371 = vpop.f32.mrb[0].mxu0
  %v372 = vadd.f32 %v81, %v371
  %v373 = vpop.f32.mrb[0].mxu0
  %374 = vmatprep.mubr.f32.mxu0 0.0
  %375 = vmatmul.mubr.f32.gmra.mrb[0].mxu0 %v130
  %v376 = vpop.f32.mrb[0].mxu0
  %v377 = vadd.f32 %v81, %v376
  %v378 = vpop.f32.mrb[0].mxu0
  %379 = vmatprep.mubr.f32.mxu0 0.0
  %380 = vmatmul.mubr.f32.gmra.mrb[0].mxu0 %v133
  %v381 = vpop.f32.mrb[0].mxu0
  %v382 = vadd.f32 %v81, %v381
  %v383 = vpop.f32.mrb[0].mxu0
  %384 = vmatprep.mubr.f32.mxu0 0.0
  %385 = vmatmul.mubr.f32.gmra.mrb[0].mxu0 %v136
  %v386 = vpop.f32.mrb[0].mxu0
  %v387 = vadd.f32 %v81, %v386
  %v388 = vpop.f32.mrb[0].mxu0
  %389 = vmatprep.mubr.f32.mxu0 0.0
  %390 = vmatmul.mubr.f32.gmra.mrb[0].mxu0 %v139
  %v391 = vpop.f32.mrb[0].mxu0
  %v392 = vadd.f32 %v81, %v391
  %v393 = vpop.f32.mrb[0].mxu0
  %394 = vmatprep.mubr.f32.mxu0 0.0
  %395 = vmatmul.mubr.f32.gmra.mrb[0].mxu0 %v142
  %v396 = vpop.f32.mrb[0].mxu0
  %v397 = vadd.f32 %v81, %v396
  %v398 = vpop.f32.mrb[0].mxu0
  %399 = vmatprep.mubr.f32.mxu0 0.0
  %400 = vmatmul.mubr.f32.gmra.mrb[0].mxu0 %v145
  %v401 = vpop.f32.mrb[0].mxu0
  %v402 = vadd.f32 %v81, %v401
  %v403 = vpop.f32.mrb[0].mxu0
  %404 = vmatprep.mubr.f32.mxu0 0.0
  %405 = vmatmul.mubr.f32.gmra.mrb[0].mxu0 %v148
  %v406 = vpop.f32.mrb[0].mxu0
  %v407 = vadd.f32 %v81, %v406
  %v408 = vpop.f32.mrb[0].mxu0
  %409 = vmatprep.mubr.f32.mxu0 0.0
  %410 = vmatmul.mubr.f32.gmra.mrb[0].mxu0 %v151
  %v411 = vpop.f32.mrb[0].mxu0
  %v412 = vadd.f32 %v81, %v411
  %v413 = vpop.f32.mrb[0].mxu0
  %414 = vmatprep.mubr.f32.mxu0 0.0
  %415 = vmatmul.mubr.f32.gmra.mrb[0].mxu0 %v154
  %v416 = vpop.f32.mrb[0].mxu0
  %v417 = vadd.f32 %v81, %v416
  %v418 = vpop.f32.mrb[0].mxu0
  %419 = vmatprep.mubr.f32.mxu0 0.0
  %420 = vmatmul.mubr.f32.gmra.mrb[0].mxu0 %v157
  %v421 = vpop.f32.mrb[0].mxu0
  %v422 = vadd.f32 %v81, %v421
  %v423 = vpop.f32.mrb[0].mxu0
  %424 = vmatprep.mubr.f32.mxu0 0.0
  %425 = vmatmul.mubr.f32.gmra.mrb[0].mxu0 %v160
  %v426 = vpop.f32.mrb[0].mxu0
  %v427 = vadd.f32 %v81, %v426
  %v428 = vpop.f32.mrb[0].mxu0
  %429 = vmatprep.mubr.f32.mxu0 0.0
  %430 = vmatmul.mubr.f32.gmra.mrb[0].mxu0 %v163
  %v431 = vpop.f32.mrb[0].mxu0
  %v432 = vadd.f32 %v81, %v431
  %v433 = vpop.f32.mrb[0].mxu0
  %434 = vmatprep.mubr.f32.mxu0 0.0
  %435 = vmatmul.mubr.f32.gmra.mrb[0].mxu0 %v166
  %v436 = vpop.f32.mrb[0].mxu0
  %v437 = vadd.f32 %v81, %v436
  %v438 = vpop.f32.mrb[0].mxu0
  %439 = vmatprep.mubr.f32.mxu0 0.0
  %440 = vmatmul.mubr.f32.gmra.mrb[0].mxu0 %v169
  %v441 = vpop.f32.mrb[0].mxu0
  %v442 = vadd.f32 %v81, %v441
  %v443 = vpop.f32.mrb[0].mxu0
  %444 = vmatprep.mubr.f32.mxu0 0.0
  %445 = vmatmul.mubr.f32.gmra.mrb[0].mxu0 %v172
  %v446 = vpop.f32.mrb[0].mxu0
  %v447 = vadd.f32 %v81, %v446
  %v448 = vpop.f32.mrb[0].mxu0
  %449 = vmatprep.mubr.f32.mxu0 0.0
  %450 = vmatmul.mubr.f32.gmra.mrb[0].mxu0 %v175
  %v451 = vpop.f32.mrb[0].mxu0
  %v452 = vadd.f32 %v81, %v451
  %v453 = vpop.f32.mrb[0].mxu0
  %454 = vmatprep.mubr.f32.mxu0 0.0
  %455 = vmatmul.mubr.f32.gmra.mrb[0].mxu0 %v178
  %v456 = vpop.f32.mrb[0].mxu0
  %v457 = vadd.f32 %v81, %v456
  %v458 = vpop.f32.mrb[0].mxu0
  %459 = vmatprep.mubr.f32.mxu0 0.0
  %460 = vmatmul.mubr.f32.gmra.mrb[0].mxu0 %v181
  %v461 = vpop.f32.mrb[0].mxu0
  %v462 = vadd.f32 %v81, %v461
  %v463 = vpop.f32.mrb[0].mxu0
  %464 = vmatprep.mubr.f32.mxu0 0.0
  %465 = vmatmul.mubr.f32.gmra.mrb[0].mxu0 %v184
  %v466 = vpop.f32.mrb[0].mxu0
  %v467 = vadd.f32 %v81, %v466
  %v468 = vpop.f32.mrb[0].mxu0
  %469 = vmatprep.mubr.f32.mxu0 0.0
  %470 = vmatmul.mubr.f32.gmra.mrb[0].mxu0 %v187
  %v471 = vpop.f32.mrb[0].mxu0
  %v472 = vadd.f32 %v81, %v471
  %v473 = vpop.f32.mrb[0].mxu0
  %474 = vmatprep.mubr.f32.mxu0 0.0
  %475 = vmatmul.mubr.f32.gmra.mrb[0].mxu0 %v190
  %v476 = vpop.f32.mrb[0].mxu0
  %v477 = vadd.f32 %v81, %v476
  %v478 = vpop.f32.mrb[0].mxu0
  %479 = vmatprep.mubr.f32.mxu0 0.0
  %480 = vmatmul.mubr.f32.gmra.mrb[0].mxu0 %v193
  %v481 = vpop.f32.mrb[0].mxu0
  %v482 = vadd.f32 %v81, %v481
  %v483 = vpop.f32.mrb[0].mxu0
  %484 = vmatprep.mubr.f32.mxu0 0.0
  %485 = vmatmul.mubr.f32.gmra.mrb[0].mxu0 %v196
  %v486 = vpop.f32.mrb[0].mxu0
  %v487 = vadd.f32 %v81, %v486
  %v488 = vpop.f32.mrb[0].mxu0
  %489 = vmatprep.mubr.f32.mxu0 0.0
  %490 = vmatmul.mubr.f32.gmra.mrb[0].mxu0 %v199
  %v491 = vpop.f32.mrb[0].mxu0
  %v492 = vadd.f32 %v81, %v491
  %v493 = vpop.f32.mrb[0].mxu0
  %494 = vmatprep.mubr.f32.mxu0 0.0
  %495 = vmatmul.mubr.f32.gmra.mrb[0].mxu0 %v202
  %v496 = vpop.f32.mrb[0].mxu0
  %v497 = vadd.f32 %v81, %v496
  %v498 = vpop.f32.mrb[0].mxu0
  %499 = vmatprep.mubr.f32.mxu0 0.0
  %500 = vmatmul.mubr.f32.gmra.mrb[0].mxu0 %v205
  %v501 = vpop.f32.mrb[0].mxu0
  %v502 = vadd.f32 %v81, %v501
  %v503 = vpop.f32.mrb[0].mxu0
  %504 = vmatprep.mubr.f32.mxu0 0.0
  %505 = vmatmul.mubr.f32.gmra.mrb[0].mxu0 %v208
  %v506 = vpop.f32.mrb[0].mxu0
  %v507 = vadd.f32 %v81, %v506
  %v508 = vpop.f32.mrb[0].mxu0
  %509 = vmatprep.mubr.f32.mxu0 0.0
  %510 = vmatmul.mubr.f32.gmra.mrb[0].mxu0 %v211
  %v511 = vpop.f32.mrb[0].mxu0
  %v512 = vadd.f32 %v81, %v511
  %v513 = vpop.f32.mrb[0].mxu0
  %514 = vmatprep.mubr.f32.mxu0 0.0
  %515 = vmatmul.mubr.f32.gmra.mrb[0].mxu0 %v214
  %v516 = vpop.f32.mrb[0].mxu0
  %v517 = vadd.f32 %v81, %v516
  %v518 = vpop.f32.mrb[0].mxu0
  %519 = vmatprep.mubr.f32.mxu0 0.0
  %520 = vmatmul.mubr.f32.gmra.mrb[0].mxu0 %v217
  %v521 = vpop.f32.mrb[0].mxu0
  %v522 = vadd.f32 %v81, %v521
  %v523 = vpop.f32.mrb[0].mxu0
  %524 = vmatprep.mubr.f32.mxu0 0.0
  %525 = vmatmul.mubr.f32.gmra.mrb[0].mxu0 %v220
  %v526 = vpop.f32.mrb[0].mxu0
  %v527 = vadd.f32 %v81, %v526
  %v528 = vpop.f32.mrb[0].mxu0
  %529 = vmatprep.mubr.f32.mxu0 0.0
  %530 = vmatmul.mubr.f32.gmra.mrb[0].mxu0 %v223
  %v531 = vpop.f32.mrb[0].mxu0
  %v532 = vadd.f32 %v81, %v531
  %v533 = vpop.f32.mrb[0].mxu0
  %534 = vmatprep.mubr.f32.mxu0 0.0
  %535 = vmatmul.mubr.f32.gmra.mrb[0].mxu0 %v226
  %v536 = vpop.f32.mrb[0].mxu0
  %v537 = vadd.f32 %v81, %v536
  %v538 = vpop.f32.mrb[0].mxu0
  %539 = vmatprep.mubr.f32.mxu0 0.0
  %540 = vmatmul.mubr.f32.gmra.mrb[0].mxu0 %v229
  %v541 = vpop.f32.mrb[0].mxu0
  %v542 = vadd.f32 %v81, %v541
  %v543 = vpop.f32.mrb[0].mxu0
  %544 = vdwg.mxu0
  %v545 = vmax.f32 %v302, 0.0
  %v546 = vmax.f32 %v307, 0.0
  %v547 = vmax.f32 %v312, 0.0
  %v548 = vmax.f32 %v317, 0.0
  %v549 = vmax.f32 %v322, 0.0
  %v550 = vmax.f32 %v327, 0.0
  %v551 = vmax.f32 %v332, 0.0
  %v552 = vmax.f32 %v337, 0.0
  %v553 = vmax.f32 %v342, 0.0
  %v554 = vmax.f32 %v347, 0.0
  %v555 = vmax.f32 %v352, 0.0
  %v556 = vmax.f32 %v357, 0.0
  %v557 = vmax.f32 %v362, 0.0
  %v558 = vmax.f32 %v367, 0.0
  %v559 = vmax.f32 %v372, 0.0
  %v560 = vmax.f32 %v377, 0.0
  %v561 = vmax.f32 %v382, 0.0
  %v562 = vmax.f32 %v387, 0.0
  %v563 = vmax.f32 %v392, 0.0
  %v564 = vmax.f32 %v397, 0.0
  %v565 = vmax.f32 %v402, 0.0
  %v566 = vmax.f32 %v407, 0.0
  %v567 = vmax.f32 %v412, 0.0
  %v568 = vmax.f32 %v417, 0.0
  %v569 = vmax.f32 %v422, 0.0
  %v570 = vmax.f32 %v427, 0.0
  %v571 = vmax.f32 %v432, 0.0
  %v572 = vmax.f32 %v437, 0.0
  %v573 = vmax.f32 %v442, 0.0
  %v574 = vmax.f32 %v447, 0.0
  %v575 = vmax.f32 %v452, 0.0
  %v576 = vmax.f32 %v457, 0.0
  %v577 = vmax.f32 %v462, 0.0
  %v578 = vmax.f32 %v467, 0.0
  %v579 = vmax.f32 %v472, 0.0
  %v580 = vmax.f32 %v477, 0.0
  %v581 = vmax.f32 %v482, 0.0
  %v582 = vmax.f32 %v487, 0.0
  %v583 = vmax.f32 %v492, 0.0
  %v584 = vmax.f32 %v497, 0.0
  %v585 = vmax.f32 %v502, 0.0
  %v586 = vmax.f32 %v507, 0.0
  %v587 = vmax.f32 %v512, 0.0
  %v588 = vmax.f32 %v517, 0.0
  %v589 = vmax.f32 %v522, 0.0
  %v590 = vmax.f32 %v527, 0.0
  %v591 = vmax.f32 %v532, 0.0
  %v592 = vmax.f32 %v537, 0.0
  %v593 = vmax.f32 %v542, 0.0
  %vm594 = vcmask 523264
  %595 = vst.msk [vmem:[%s3] sm:$0xff] %vm594, %v545
  %596 = vst.msk [vmem:[%s3 + $0x8] sm:$0xff] %vm594, %v546
  %597 = vst.msk [vmem:[%s3 + $0x10] sm:$0xff] %vm594, %v547
  %598 = vst.msk [vmem:[%s3 + $0x18] sm:$0xff] %vm594, %v548
  %599 = vst.msk [vmem:[%s3 + $0x20] sm:$0xff] %vm594, %v549
  %600 = vst.msk [vmem:[%s3 + $0x28] sm:$0xff] %vm594, %v550
  %601 = vst.msk [vmem:[%s3 + $0x30] sm:$0xff] %vm594, %v551
  %602 = vst.msk [vmem:[%s3 + $0x38] sm:$0xff] %vm594, %v552
  %603 = vst.msk [vmem:[%s3 + $0x40] sm:$0xff] %vm594, %v553
  %604 = vst.msk [vmem:[%s3 + $0x48] sm:$0xff] %vm594, %v554
  %605 = vst.msk [vmem:[%s3 + $0x50] sm:$0xff] %vm594, %v555
  %606 = vst.msk [vmem:[%s3 + $0x58] sm:$0xff] %vm594, %v556
  %607 = vst.msk [vmem:[%s3 + $0x60] sm:$0xff] %vm594, %v557
  %608 = vst.msk [vmem:[%s3 + $0x68] sm:$0xff] %vm594, %v558
  %609 = vst.msk [vmem:[%s3 + $0x70] sm:$0xff] %vm594, %v559
  %610 = vst.msk [vmem:[%s3 + $0x78] sm:$0xff] %vm594, %v560
  %611 = vst.msk [vmem:[%s3 + $0x80] sm:$0xff] %vm594, %v561
  %612 = vst.msk [vmem:[%s3 + $0x88] sm:$0xff] %vm594, %v562
  %613 = vst.msk [vmem:[%s3 + $0x90] sm:$0xff] %vm594, %v563
  %614 = vst.msk [vmem:[%s3 + $0x98] sm:$0xff] %vm594, %v564
  %615 = vst.msk [vmem:[%s3 + $0xa0] sm:$0xff] %vm594, %v565
  %616 = vst.msk [vmem:[%s3 + $0xa8] sm:$0xff] %vm594, %v566
  %617 = vst.msk [vmem:[%s3 + $0xb0] sm:$0xff] %vm594, %v567
  %618 = vst.msk [vmem:[%s3 + $0xb8] sm:$0xff] %vm594, %v568
  %619 = vst.msk [vmem:[%s3 + $0xc0] sm:$0xff] %vm594, %v569
  %620 = vst.msk [vmem:[%s3 + $0xc8] sm:$0xff] %vm594, %v570
  %621 = vst.msk [vmem:[%s3 + $0xd0] sm:$0xff] %vm594, %v571
  %622 = vst.msk [vmem:[%s3 + $0xd8] sm:$0xff] %vm594, %v572
  %623 = vst.msk [vmem:[%s3 + $0xe0] sm:$0xff] %vm594, %v573
  %624 = vst.msk [vmem:[%s3 + $0xe8] sm:$0xff] %vm594, %v574
  %625 = vst.msk [vmem:[%s3 + $0xf0] sm:$0xff] %vm594, %v575
  %626 = vst.msk [vmem:[%s3 + $0xf8] sm:$0xff] %vm594, %v576
  %627 = vst.msk [vmem:[%s3 + $0x100] sm:$0xff] %vm594, %v577
  %628 = vst.msk [vmem:[%s3 + $0x108] sm:$0xff] %vm594, %v578
  %629 = vst.msk [vmem:[%s3 + $0x110] sm:$0xff] %vm594, %v579
  %630 = vst.msk [vmem:[%s3 + $0x118] sm:$0xff] %vm594, %v580
  %631 = vst.msk [vmem:[%s3 + $0x120] sm:$0xff] %vm594, %v581
  %632 = vst.msk [vmem:[%s3 + $0x128] sm:$0xff] %vm594, %v582
  %633 = vst.msk [vmem:[%s3 + $0x130] sm:$0xff] %vm594, %v583
  %634 = vst.msk [vmem:[%s3 + $0x138] sm:$0xff] %vm594, %v584
  %635 = vst.msk [vmem:[%s3 + $0x140] sm:$0xff] %vm594, %v585
  %636 = vst.msk [vmem:[%s3 + $0x148] sm:$0xff] %vm594, %v586
  %637 = vst.msk [vmem:[%s3 + $0x150] sm:$0xff] %vm594, %v587
  %638 = vst.msk [vmem:[%s3 + $0x158] sm:$0xff] %vm594, %v588
  %639 = vst.msk [vmem:[%s3 + $0x160] sm:$0xff] %vm594, %v589
  %640 = vst.msk [vmem:[%s3 + $0x168] sm:$0xff] %vm594, %v590
  %641 = vst.msk [vmem:[%s3 + $0x170] sm:$0xff] %vm594, %v591
  %642 = vst.msk [vmem:[%s3 + $0x178] sm:$0xff] %vm594, %v592
  %643 = vst.msk [vmem:[%s3 + $0x180] sm:$0xff] %vm594, %v593
  // Predicated region
  $region14: #{dqn_forward.4} parent=0 // pred_check
    _
  $region15: #{dqn_forward.4} parent=0 // pred_check_branch
    %645 = sbr.rel (0) target = $region17
  $region16: #{dqn_forward.4} parent=0 // pred_region
    _
  $region17: #{dqn_forward.4} parent=0 // pred_fallthru
    _
  // Predicated region
  $region18: #{dqn_forward.4} parent=0 // pred_check
    _
  $region19: #{dqn_forward.4} parent=0 // pred_check_branch
    %647 = sbr.rel (0) target = $region21
  $region20: #{dqn_forward.4} parent=0 // pred_region
    _
  $region21: #{dqn_forward.4} parent=0 // pred_fallthru
    _

// kernel: dqn_forward.5
$region0: #{dqn_forward.5}
  #allocation0 [shape = 'u32[]', space=smem, size = 0x4, offset = 0x4, fixed_abs, tag = 'smem constant byte address 0x4 - core index']
  #allocation1 [shape = 'u32[144,128]{1,0:T(1,128)}', space=vmem, size = 0x12000, scoped, tag = 'internal scratch']
  %s0 = inlined_call_operand.vmem [shape: f32[288,1600], index: 0, kind: input, shape index: {}]
  %s1 = inlined_call_operand.vmem [shape: f32[1600,128], index: 1, kind: input, shape index: {}]
  %s2 = inlined_call_operand.vmem [shape: f32[1,128], index: 2, kind: input, shape index: {}]
  %s3 = inlined_call_operand.vmem [shape: f32[288,128], index: 3, kind: output, shape index: {}]
  %s4 = sld [smem:[#allocation0]]
  $region45: #{dqn_forward.5} parent=0
    _
  %s6 = ssub.s32 1, %s4
  %s7 = scalar_select 0, %s6, %s4
  loop: start=0, step=1, limit=4
  $region2: #{dqn_forward.5} parent=0 // loop_pre_header
    _
  $region3: #{dqn_forward.5} parent=0 // loop_header
    %s9 = sphi 0, %s13
    %p10 = scmp.ge.s32.totalorder %s9, 4
    %s19 = sphi 0, %s21
    %s22 = sphi 0, %s19
    %s23 = sphi 0, %s22
    %s39 = sphi 0, %s23
    %s43 = sphi 0, %s43
    %s45 = sphi 0, %s43
    %s46 = sphi 0, %s45
    %s60 = sphi 0, %s46
    %s64 = sphi 0, %s64
    %s66 = sphi 0, %s64
    %s67 = sphi 0, %s66
    %s81 = sphi 0, %s67
    %s87 = sphi 0, %s89
    %s90 = sphi 0, %s87
    %s91 = sphi 0, %s90
    %s107 = sphi 0, %s91
  $region4: #{dqn_forward.5} parent=0 // loop_header_branch
    %12 = sbr.rel (%p10) target = $region8
  $region5: #{dqn_forward.5} parent=0 // loop_body
    %s14 = ssub.s32 %s9, 1
    %s15 = ssub.s32 %s9, 2
    %s16 = sadd.s32 %s9, 1
    %s17 = ssub.s32 %s9, %s16
    %p18 = scmp.eq.s32.totalorder %s17, 0
    %s20 = sadd.s32 %s19, 1
    %s21 = scalar_select %p18, %s19, %s20
    %p24 = pneg %p18
    %p25 = scmp.eq.s32.totalorder %s9, 1
    %p26 = por %p24, %p25
    %p27 = scmp.ne.s32.totalorder %s19, %s22
    %p28 = scmp.eq.s32.totalorder %s9, 0
    %p29 = por %p27, %p28
    %p30 = scmp.ne.s32.totalorder %s19, %s22
    %p31 = scmp.eq.s32.totalorder %s14, 1
    %p32 = por %p30, %p31
    %p33 = scmp.ne.s32.totalorder %s22, %s23
    %p34 = scmp.eq.s32.totalorder %s14, 0
    %p35 = por %p33, %p34
    %p36 = scmp.ne.s32.totalorder %s22, %s23
    %p37 = scmp.eq.s32.totalorder %s15, 1
    %p38 = por %p36, %p37
    %p40 = scmp.ne.s32.totalorder %s23, %s39
    %p41 = scmp.eq.s32.totalorder %s15, 0
    %p42 = por %p40, %p41
    %s44 = sadd.s32 %s43, 1
    %p47 = scmp.eq.s32.totalorder %s9, 1
    %p48 = scmp.ne.s32.totalorder %s43, %s45
    %p49 = scmp.eq.s32.totalorder %s9, 0
    %p50 = por %p48, %p49
    %p51 = scmp.ne.s32.totalorder %s43, %s45
    %p52 = scmp.eq.s32.totalorder %s14, 1
    %p53 = por %p51, %p52
    %p54 = scmp.ne.s32.totalorder %s45, %s46
    %p55 = scmp.eq.s32.totalorder %s14, 0
    %p56 = por %p54, %p55
    %p57 = scmp.ne.s32.totalorder %s45, %s46
    %p58 = scmp.eq.s32.totalorder %s15, 1
    %p59 = por %p57, %p58
    %p61 = scmp.ne.s32.totalorder %s46, %s60
    %p62 = scmp.eq.s32.totalorder %s15, 0
    %p63 = por %p61, %p62
    %s65 = sadd.s32 %s64, 1
    %p68 = scmp.eq.s32.totalorder %s9, 1
    %p69 = scmp.ne.s32.totalorder %s64, %s66
    %p70 = scmp.eq.s32.totalorder %s9, 0
    %p71 = por %p69, %p70
    %p72 = scmp.ne.s32.totalorder %s64, %s66
    %p73 = scmp.eq.s32.totalorder %s14, 1
    %p74 = por %p72, %p73
    %p75 = scmp.ne.s32.totalorder %s66, %s67
    %p76 = scmp.eq.s32.totalorder %s14, 0
    %p77 = por %p75, %p76
    %p78 = scmp.ne.s32.totalorder %s66, %s67
    %p79 = scmp.eq.s32.totalorder %s15, 1
    %p80 = por %p78, %p79
    %p82 = scmp.ne.s32.totalorder %s67, %s81
    %p83 = scmp.eq.s32.totalorder %s15, 0
    %p84 = por %p82, %p83
    %s85 = ssub.s32 %s9, %s16
    %p86 = scmp.eq.s32.totalorder %s85, 0
    %s88 = sadd.s32 %s87, 1
    %s89 = scalar_select %p86, %s87, %s88
    %p92 = pneg %p86
    %p93 = scmp.eq.s32.totalorder %s9, 1
    %p94 = por %p92, %p93
    %p95 = scmp.ne.s32.totalorder %s87, %s90
    %p96 = scmp.eq.s32.totalorder %s9, 0
    %p97 = por %p95, %p96
    %p98 = scmp.ne.s32.totalorder %s87, %s90
    %p99 = scmp.eq.s32.totalorder %s14, 1
    %p100 = por %p98, %p99
    %p101 = scmp.ne.s32.totalorder %s90, %s91
    %p102 = scmp.eq.s32.totalorder %s14, 0
    %p103 = por %p101, %p102
    %p104 = scmp.ne.s32.totalorder %s90, %s91
    %p105 = scmp.eq.s32.totalorder %s15, 1
    %p106 = por %p104, %p105
    %p108 = scmp.ne.s32.totalorder %s91, %s107
    %p109 = scmp.eq.s32.totalorder %s15, 0
    %p110 = por %p108, %p109
    %p111 = scmp.le.s32.totalorder 1, %s9
    %p112 = scmp.lt.s32.totalorder %s9, 3
    %p113 = pnand %p111, %p112
    %p114 = pneg %p113
    // Predicated region
    $region9: #{dqn_forward.5} parent=5 // pred_check
      _
    $region10: #{dqn_forward.5} parent=5 // pred_check_branch
      %116 = sbr.rel (%p113) target = $region12
    $region11: #{dqn_forward.5} parent=5 // pred_region
      %s117 = ssub.s32 %s9, 1
      // Predicated region
      $region13: #{dqn_forward.5} parent=11 // pred_check
        %p118 = pneg %p56
      $region14: #{dqn_forward.5} parent=11 // pred_check_branch
        %120 = sbr.rel (%p118) target = $region16
      $region15: #{dqn_forward.5} parent=11 // pred_region
        _
      $region16: #{dqn_forward.5} parent=11 // pred_fallthru
        _
      // Predicated region
      $region17: #{dqn_forward.5} parent=11 // pred_check
        %p121 = pneg %p77
      $region18: #{dqn_forward.5} parent=11 // pred_check_branch
        %123 = sbr.rel (%p121) target = $region20
      $region19: #{dqn_forward.5} parent=11 // pred_region
        _
      $region20: #{dqn_forward.5} parent=11 // pred_fallthru
        _
    $region12: #{dqn_forward.5} parent=5 // pred_fallthru
      _
    %p124 = scmp.lt.s32.totalorder %s9, 2
    // Predicated region
    $region21: #{dqn_forward.5} parent=5 // pred_check
      %p125 = pneg %p124
    $region22: #{dqn_forward.5} parent=5 // pred_check_branch
      %127 = sbr.rel (%p125) target = $region24
    $region23: #{dqn_forward.5} parent=5 // pred_region
      // Predicated region
      $region25: #{dqn_forward.5} parent=23 // pred_check
        %p128 = pneg %p29
      $region26: #{dqn_forward.5} parent=23 // pred_check_branch
        %130 = sbr.rel (%p128) target = $region28
      $region27: #{dqn_forward.5} parent=23 // pred_region
        %s131 = smul.u32 18, %s9
        %p132 = scmp.lt.s32.totalorder %s131, 35
        %s133 = scalar_select %p132, %s131, 35
        %s134 = smul.addr %s133, 13
        %s135 = smul.addr %s134, 8
        %s136 = scalar_lea.vmem %s0, %s135
        %s137 = smul.u32 18, %s9
      $region28: #{dqn_forward.5} parent=23 // pred_fallthru
        _
    $region24: #{dqn_forward.5} parent=5 // pred_fallthru
      _
    %p138 = scmp.le.s32.totalorder 1, %s9
    %p139 = scmp.lt.s32.totalorder %s9, 3
    %p140 = pnand %p138, %p139
    %p141 = pneg %p140
    // Predicated region
    $region29: #{dqn_forward.5} parent=5 // pred_check
      _
    $region30: #{dqn_forward.5} parent=5 // pred_check_branch
      %143 = sbr.rel (%p140) target = $region32
    $region31: #{dqn_forward.5} parent=5 // pred_region
      %s144 = ssub.s32 %s9, 1
      %s145 = smul.u32 18, %s14
      %p146 = scmp.lt.s32.totalorder %s145, 35
      %s147 = scalar_select %p146, %s145, 35
      %s148 = smul.addr %s147, 13
      %s149 = smul.addr %s148, 8
      %s150 = scalar_lea.vmem %s0, %s149
      %p151 = pneg %p35
      %p152 = pneg %p32
      %p153 = pneg %p56
      %p154 = pneg %p53
      %p155 = pneg %p77
      %p156 = pneg %p74
      %p157 = pneg %p103
      %p158 = pneg %p100
      %s159 = smul.u32 18, %s14
      %p160 = scmp.lt.s32.totalorder %s159, 35
      %s161 = scalar_select %p160, %s159, 35
      %s162 = smul.addr %s161, 8
      %s163 = scalar_lea.vmem %s3, %s162
      %s164 = smul.u32 18, %s14
      %p165 = scmp.lt.s32.totalorder %s164, 35
      %s166 = scalar_select %p165, %s164, 35
      %s167 = smul.addr %s166, 13
      %s168 = smul.addr %s167, 8
      %s169 = scalar_lea.vmem %s0, %s168
      %s170 = smul.u32 18, %s14
      %s171 = smul.u32 18, %s14
      %p172 = scmp.lt.s32.totalorder %s171, 35
      %s173 = scalar_select %p172, %s171, 35
      %s174 = smul.addr %s173, 8
      %s175 = scalar_lea.vmem %s3, %s174
      %s176 = smul.u32 18, %s14
      %v177 = vld [vmem:[%s169] sm:$0xff]
      %v178 = vld [vmem:[%s169 + $0x8] sm:$0xff]
      %v179 = vld [vmem:[%s169 + $0x10] sm:$0xff]
      %v180 = vld [vmem:[%s169 + $0x18] sm:$0xff]
      %v181 = vld [vmem:[%s169 + $0x20] sm:$0xff]
      %v182 = vld [vmem:[%s169 + $0x28] sm:$0xff]
      %v183 = vld [vmem:[%s169 + $0x30] sm:$0xff]
      %v184 = vld [vmem:[%s169 + $0x38] sm:$0xff]
      %v185 = vld [vmem:[%s169 + $0x40] sm:$0xff]
      %v186 = vld [vmem:[%s169 + $0x48] sm:$0xff]
      %v187 = vld [vmem:[%s169 + $0x50] sm:$0xff]
      %v188 = vld [vmem:[%s169 + $0x58] sm:$0xff]
      %v189 = vld [vmem:[%s169 + $0x60] sm:$0xff]
      %v190 = vld [vmem:[%s169 + $0x68] sm:$0xff]
      %v191 = vld [vmem:[%s169 + $0x70] sm:$0xff]
      %v192 = vld [vmem:[%s169 + $0x78] sm:$0xff]
      %v193 = vld [vmem:[%s169 + $0x80] sm:$0xff]
      %v194 = vld [vmem:[%s169 + $0x88] sm:$0xff]
      %v195 = vld [vmem:[%s169 + $0x90] sm:$0xff]
      %v196 = vld [vmem:[%s169 + $0x98] sm:$0xff]
      %v197 = vld [vmem:[%s169 + $0xa0] sm:$0xff]
      %v198 = vld [vmem:[%s169 + $0xa8] sm:$0xff]
      %v199 = vld [vmem:[%s169 + $0xb0] sm:$0xff]
      %v200 = vld [vmem:[%s169 + $0xb8] sm:$0xff]
      %v201 = vld [vmem:[%s169 + $0xc0] sm:$0xff]
      %v202 = vld [vmem:[%s169 + $0xc8] sm:$0xff]
      %v203 = vld [vmem:[%s169 + $0xd0] sm:$0xff]
      %v204 = vld [vmem:[%s169 + $0xd8] sm:$0xff]
      %v205 = vld [vmem:[%s169 + $0xe0] sm:$0xff]
      %v206 = vld [vmem:[%s169 + $0xe8] sm:$0xff]
      %v207 = vld [vmem:[%s169 + $0xf0] sm:$0xff]
      %v208 = vld [vmem:[%s169 + $0xf8] sm:$0xff]
      %v209 = vld [vmem:[%s169 + $0x100] sm:$0xff]
      %v210 = vld [vmem:[%s169 + $0x108] sm:$0xff]
      %v211 = vld [vmem:[%s169 + $0x110] sm:$0xff]
      %v212 = vld [vmem:[%s169 + $0x118] sm:$0xff]
      %v213 = vld [vmem:[%s169 + $0x120] sm:$0xff]
      %v214 = vld [vmem:[%s169 + $0x128] sm:$0xff]
      %v215 = vld [vmem:[%s169 + $0x130] sm:$0xff]
      %v216 = vld [vmem:[%s169 + $0x138] sm:$0xff]
      %v217 = vld [vmem:[%s169 + $0x140] sm:$0xff]
      %v218 = vld [vmem:[%s169 + $0x148] sm:$0xff]
      %v219 = vld [vmem:[%s169 + $0x150] sm:$0xff]
      %v220 = vld [vmem:[%s169 + $0x158] sm:$0xff]
      %v221 = vld [vmem:[%s169 + $0x160] sm:$0xff]
      %v222 = vld [vmem:[%s169 + $0x168] sm:$0xff]
      %v223 = vld [vmem:[%s169 + $0x170] sm:$0xff]
      %v224 = vld [vmem:[%s169 + $0x178] sm:$0xff]
      %v225 = vld [vmem:[%s169 + $0x180] sm:$0xff]
      %v226 = vld [vmem:[%s169 + $0x188] sm:$0xff]
      %v227 = vld [vmem:[%s169 + $0x190] sm:$0xff]
      %v228 = vld [vmem:[%s169 + $0x198] sm:$0xff]
      %v229 = vld [vmem:[%s169 + $0x1a0] sm:$0xff]
      %v230 = vld [vmem:[%s169 + $0x1a8] sm:$0xff]
      %v231 = vld [vmem:[%s169 + $0x1b0] sm:$0xff]
      %v232 = vld [vmem:[%s169 + $0x1b8] sm:$0xff]
      %v233 = vld [vmem:[%s169 + $0x1c0] sm:$0xff]
      %v234 = vld [vmem:[%s169 + $0x1c8] sm:$0xff]
      %v235 = vld [vmem:[%s169 + $0x1d0] sm:$0xff]
      %v236 = vld [vmem:[%s169 + $0x1d8] sm:$0xff]
      %v237 = vld [vmem:[%s169 + $0x1e0] sm:$0xff]
      %v238 = vld [vmem:[%s169 + $0x1e8] sm:$0xff]
      %v239 = vld [vmem:[%s169 + $0x1f0] sm:$0xff]
      %v240 = vld [vmem:[%s169 + $0x1f8] sm:$0xff]
      %v241 = vld [vmem:[%s169 + $0x200] sm:$0xff]
      %v242 = vld [vmem:[%s169 + $0x208] sm:$0xff]
      %v243 = vld [vmem:[%s169 + $0x210] sm:$0xff]
      %v244 = vld [vmem:[%s169 + $0x218] sm:$0xff]
      %v245 = vld [vmem:[%s169 + $0x220] sm:$0xff]
      %v246 = vld [vmem:[%s169 + $0x228] sm:$0xff]
      %v247 = vld [vmem:[%s169 + $0x230] sm:$0xff]
      %v248 = vld [vmem:[%s169 + $0x238] sm:$0xff]
      %v249 = vld [vmem:[%s169 + $0x240] sm:$0xff]
      %v250 = vld [vmem:[%s169 + $0x248] sm:$0xff]
      %v251 = vld [vmem:[%s169 + $0x250] sm:$0xff]
      %v252 = vld [vmem:[%s169 + $0x258] sm:$0xff]
      %v253 = vld [vmem:[%s169 + $0x260] sm:$0xff]
      %v254 = vld [vmem:[%s169 + $0x268] sm:$0xff]
      %v255 = vld [vmem:[%s169 + $0x270] sm:$0xff]
      %v256 = vld [vmem:[%s169 + $0x278] sm:$0xff]
      %v257 = vld [vmem:[%s169 + $0x280] sm:$0xff]
      %v258 = vld [vmem:[%s169 + $0x288] sm:$0xff]
      %v259 = vld [vmem:[%s169 + $0x290] sm:$0xff]
      %v260 = vld [vmem:[%s169 + $0x298] sm:$0xff]
      %v261 = vld [vmem:[%s169 + $0x2a0] sm:$0xff]
      %v262 = vld [vmem:[%s169 + $0x2a8] sm:$0xff]
      %v263 = vld [vmem:[%s169 + $0x2b0] sm:$0xff]
      %v264 = vld [vmem:[%s169 + $0x2b8] sm:$0xff]
      %v265 = vld [vmem:[%s169 + $0x2c0] sm:$0xff]
      %v266 = vld [vmem:[%s169 + $0x2c8] sm:$0xff]
      %v267 = vld [vmem:[%s169 + $0x2d0] sm:$0xff]
      %v268 = vld [vmem:[%s169 + $0x2d8] sm:$0xff]
      %v269 = vld [vmem:[%s169 + $0x2e0] sm:$0xff]
      %v270 = vld [vmem:[%s169 + $0x2e8] sm:$0xff]
      %v271 = vld [vmem:[%s169 + $0x2f0] sm:$0xff]
      %v272 = vld [vmem:[%s169 + $0x2f8] sm:$0xff]
      %v273 = vld [vmem:[%s169 + $0x300] sm:$0xff]
      %v274 = vld [vmem:[%s169 + $0x308] sm:$0xff]
      %v275 = vld [vmem:[%s169 + $0x310] sm:$0xff]
      %v276 = vld [vmem:[%s169 + $0x318] sm:$0xff]
      %v277 = vld [vmem:[%s169 + $0x320] sm:$0xff]
      %v278 = vld [vmem:[%s169 + $0x328] sm:$0xff]
      %v279 = vld [vmem:[%s169 + $0x330] sm:$0xff]
      %v280 = vld [vmem:[%s169 + $0x338] sm:$0xff]
      %v281 = vld [vmem:[%s169 + $0x340] sm:$0xff]
      %v282 = vld [vmem:[%s169 + $0x348] sm:$0xff]
      %v283 = vld [vmem:[%s169 + $0x350] sm:$0xff]
      %v284 = vld [vmem:[%s169 + $0x358] sm:$0xff]
      %v285 = vld [vmem:[%s169 + $0x360] sm:$0xff]
      %v286 = vld [vmem:[%s169 + $0x368] sm:$0xff]
      %v287 = vld [vmem:[%s169 + $0x370] sm:$0xff]
      %v288 = vld [vmem:[%s169 + $0x378] sm:$0xff]
      %v289 = vld [vmem:[%s169 + $0x380] sm:$0xff]
      %v290 = vld [vmem:[%s169 + $0x388] sm:$0xff]
      %v291 = vld [vmem:[%s169 + $0x390] sm:$0xff]
      %v292 = vld [vmem:[%s169 + $0x398] sm:$0xff]
      %v293 = vld [vmem:[%s169 + $0x3a0] sm:$0xff]
      %v294 = vld [vmem:[%s169 + $0x3a8] sm:$0xff]
      %v295 = vld [vmem:[%s169 + $0x3b0] sm:$0xff]
      %v296 = vld [vmem:[%s169 + $0x3b8] sm:$0xff]
      %v297 = vld [vmem:[%s169 + $0x3c0] sm:$0xff]
      %v298 = vld [vmem:[%s169 + $0x3c8] sm:$0xff]
      %v299 = vld [vmem:[%s169 + $0x3d0] sm:$0xff]
      %v300 = vld [vmem:[%s169 + $0x3d8] sm:$0xff]
      %v301 = vld [vmem:[%s169 + $0x3e0] sm:$0xff]
      %v302 = vld [vmem:[%s169 + $0x3e8] sm:$0xff]
      %v303 = vld [vmem:[%s169 + $0x3f0] sm:$0xff]
      %v304 = vld [vmem:[%s169 + $0x3f8] sm:$0xff]
      %v305 = vld [vmem:[%s169 + $0x400] sm:$0xff]
      %v306 = vld [vmem:[%s169 + $0x408] sm:$0xff]
      %v307 = vld [vmem:[%s169 + $0x410] sm:$0xff]
      %v308 = vld [vmem:[%s169 + $0x418] sm:$0xff]
      %v309 = vld [vmem:[%s169 + $0x420] sm:$0xff]
      %v310 = vld [vmem:[%s169 + $0x428] sm:$0xff]
      %v311 = vld [vmem:[%s169 + $0x430] sm:$0xff]
      %v312 = vld [vmem:[%s169 + $0x438] sm:$0xff]
      %v313 = vld [vmem:[%s169 + $0x440] sm:$0xff]
      %v314 = vld [vmem:[%s169 + $0x448] sm:$0xff]
      %v315 = vld [vmem:[%s169 + $0x450] sm:$0xff]
      %v316 = vld [vmem:[%s169 + $0x458] sm:$0xff]
      %v317 = vld [vmem:[%s169 + $0x460] sm:$0xff]
      %v318 = vld [vmem:[%s169 + $0x468] sm:$0xff]
      %v319 = vld [vmem:[%s169 + $0x470] sm:$0xff]
      %v320 = vld [vmem:[%s169 + $0x478] sm:$0xff]
      %v321 = vld [vmem:[%s169 + $0x480] sm:$0xff]
      %v322 = vld [vmem:[%s169 + $0x488] sm:$0xff]
      %v323 = vld [vmem:[%s169 + $0x490] sm:$0xff]
      %v324 = vld [vmem:[%s169 + $0x498] sm:$0xff]
      %v325 = vld [vmem:[%s169 + $0x4a0] sm:$0xff]
      %v326 = vld [vmem:[%s169 + $0x4a8] sm:$0xff]
      %v327 = vld [vmem:[%s169 + $0x4b0] sm:$0xff]
      %v328 = vld [vmem:[%s169 + $0x4b8] sm:$0xff]
      %v329 = vld [vmem:[%s169 + $0x4c0] sm:$0xff]
      %v330 = vld [vmem:[%s169 + $0x4c8] sm:$0xff]
      %v331 = vld [vmem:[%s169 + $0x4d0] sm:$0xff]
      %v332 = vld [vmem:[%s169 + $0x4d8] sm:$0xff]
      %v333 = vld [vmem:[%s169 + $0x4e0] sm:$0xff]
      %v334 = vld [vmem:[%s169 + $0x4e8] sm:$0xff]
      %v335 = vld [vmem:[%s169 + $0x4f0] sm:$0xff]
      %v336 = vld [vmem:[%s169 + $0x4f8] sm:$0xff]
      %v337 = vld [vmem:[%s169 + $0x500] sm:$0xff]
      %v338 = vld [vmem:[%s169 + $0x508] sm:$0xff]
      %v339 = vld [vmem:[%s169 + $0x510] sm:$0xff]
      %v340 = vld [vmem:[%s169 + $0x518] sm:$0xff]
      %v341 = vld [vmem:[%s169 + $0x520] sm:$0xff]
      %v342 = vld [vmem:[%s169 + $0x528] sm:$0xff]
      %v343 = vld [vmem:[%s169 + $0x530] sm:$0xff]
      %v344 = vld [vmem:[%s169 + $0x538] sm:$0xff]
      %v345 = vld [vmem:[%s169 + $0x540] sm:$0xff]
      %v346 = vld [vmem:[%s169 + $0x548] sm:$0xff]
      %v347 = vld [vmem:[%s169 + $0x550] sm:$0xff]
      %v348 = vld [vmem:[%s169 + $0x558] sm:$0xff]
      %v349 = vld [vmem:[%s169 + $0x560] sm:$0xff]
      %v350 = vld [vmem:[%s169 + $0x568] sm:$0xff]
      %v351 = vld [vmem:[%s169 + $0x570] sm:$0xff]
      %v352 = vld [vmem:[%s169 + $0x578] sm:$0xff]
      %v353 = vld [vmem:[%s169 + $0x580] sm:$0xff]
      %v354 = vld [vmem:[%s169 + $0x588] sm:$0xff]
      %v355 = vld [vmem:[%s169 + $0x590] sm:$0xff]
      %v356 = vld [vmem:[%s169 + $0x598] sm:$0xff]
      %v357 = vld [vmem:[%s169 + $0x5a0] sm:$0xff]
      %v358 = vld [vmem:[%s169 + $0x5a8] sm:$0xff]
      %v359 = vld [vmem:[%s169 + $0x5b0] sm:$0xff]
      %v360 = vld [vmem:[%s169 + $0x5b8] sm:$0xff]
      %v361 = vld [vmem:[%s169 + $0x5c0] sm:$0xff]
      %v362 = vld [vmem:[%s169 + $0x5c8] sm:$0xff]
      %v363 = vld [vmem:[%s169 + $0x5d0] sm:$0xff]
      %v364 = vld [vmem:[%s169 + $0x5d8] sm:$0xff]
      %v365 = vld [vmem:[%s169 + $0x5e0] sm:$0xff]
      %v366 = vld [vmem:[%s169 + $0x5e8] sm:$0xff]
      %v367 = vld [vmem:[%s169 + $0x5f0] sm:$0xff]
      %v368 = vld [vmem:[%s169 + $0x5f8] sm:$0xff]
      %v369 = vld [vmem:[%s169 + $0x600] sm:$0xff]
      %v370 = vld [vmem:[%s169 + $0x608] sm:$0xff]
      %v371 = vld [vmem:[%s169 + $0x610] sm:$0xff]
      %v372 = vld [vmem:[%s169 + $0x618] sm:$0xff]
      %v373 = vld [vmem:[%s169 + $0x620] sm:$0xff]
      %v374 = vld [vmem:[%s169 + $0x628] sm:$0xff]
      %v375 = vld [vmem:[%s169 + $0x630] sm:$0xff]
      %v376 = vld [vmem:[%s169 + $0x638] sm:$0xff]
      %v377 = vld [vmem:[%s169 + $0x640] sm:$0xff]
      %v378 = vld [vmem:[%s169 + $0x648] sm:$0xff]
      %v379 = vld [vmem:[%s169 + $0x650] sm:$0xff]
      %v380 = vld [vmem:[%s169 + $0x658] sm:$0xff]
      %v381 = vld [vmem:[%s169 + $0x660] sm:$0xff]
      %v382 = vld [vmem:[%s169 + $0x668] sm:$0xff]
      %v383 = vld [vmem:[%s169 + $0x670] sm:$0xff]
      %v384 = vld [vmem:[%s169 + $0x678] sm:$0xff]
      %v385 = vld [vmem:[%s169 + $0x680] sm:$0xff]
      %v386 = vld [vmem:[%s169 + $0x688] sm:$0xff]
      %v387 = vld [vmem:[%s169 + $0x690] sm:$0xff]
      %v388 = vld [vmem:[%s169 + $0x698] sm:$0xff]
      %v389 = vld [vmem:[%s169 + $0x6a0] sm:$0xff]
      %v390 = vld [vmem:[%s169 + $0x6a8] sm:$0xff]
      %v391 = vld [vmem:[%s169 + $0x6b0] sm:$0xff]
      %v392 = vld [vmem:[%s169 + $0x6b8] sm:$0xff]
      %v393 = vld [vmem:[%s169 + $0x6c0] sm:$0xff]
      %v394 = vld [vmem:[%s169 + $0x6c8] sm:$0xff]
      %v395 = vld [vmem:[%s169 + $0x6d0] sm:$0xff]
      %v396 = vld [vmem:[%s169 + $0x6d8] sm:$0xff]
      %v397 = vld [vmem:[%s169 + $0x6e0] sm:$0xff]
      %v398 = vld [vmem:[%s169 + $0x6e8] sm:$0xff]
      %v399 = vld [vmem:[%s169 + $0x6f0] sm:$0xff]
      %v400 = vld [vmem:[%s169 + $0x6f8] sm:$0xff]
      %v401 = vld [vmem:[%s169 + $0x700] sm:$0xff]
      %v402 = vld [vmem:[%s169 + $0x708] sm:$0xff]
      %v403 = vld [vmem:[%s169 + $0x710] sm:$0xff]
      %v404 = vld [vmem:[%s169 + $0x718] sm:$0xff]
      %v405 = vld [vmem:[%s169 + $0x720] sm:$0xff]
      %v406 = vld [vmem:[%s169 + $0x728] sm:$0xff]
      %v407 = vld [vmem:[%s169 + $0x730] sm:$0xff]
      %v408 = vld [vmem:[%s169 + $0x738] sm:$0xff]
      %v409 = vld [vmem:[%s169 + $0x740] sm:$0xff]
      %v410 = vld [vmem:[%s169 + $0x748] sm:$0xff]
      %v411 = vld [vmem:[%s1] sm:$0xff]
      %v412 = vld [vmem:[%s1 + $0x8] sm:$0xff]
      %v413 = vld [vmem:[%s1 + $0x10] sm:$0xff]
      %v414 = vld [vmem:[%s1 + $0x18] sm:$0xff]
      %v415 = vld [vmem:[%s1 + $0x20] sm:$0xff]
      %v416 = vld [vmem:[%s1 + $0x28] sm:$0xff]
      %v417 = vld [vmem:[%s1 + $0x30] sm:$0xff]
      %v418 = vld [vmem:[%s1 + $0x38] sm:$0xff]
      %v419 = vld [vmem:[%s1 + $0x40] sm:$0xff]
      %v420 = vld [vmem:[%s1 + $0x48] sm:$0xff]
      %v421 = vld [vmem:[%s1 + $0x50] sm:$0xff]
      %v422 = vld [vmem:[%s1 + $0x58] sm:$0xff]
      %v423 = vld [vmem:[%s1 + $0x60] sm:$0xff]
      %v424 = vld [vmem:[%s1 + $0x68] sm:$0xff]
      %v425 = vld [vmem:[%s1 + $0x70] sm:$0xff]
      %v426 = vld [vmem:[%s1 + $0x78] sm:$0xff]
      %v427 = vld [vmem:[%s1 + $0x80] sm:$0xff]
      %v428 = vld [vmem:[%s1 + $0x88] sm:$0xff]
      %v429 = vld [vmem:[%s1 + $0x90] sm:$0xff]
      %v430 = vld [vmem:[%s1 + $0x98] sm:$0xff]
      %v431 = vld [vmem:[%s1 + $0xa0] sm:$0xff]
      %v432 = vld [vmem:[%s1 + $0xa8] sm:$0xff]
      %v433 = vld [vmem:[%s1 + $0xb0] sm:$0xff]
      %v434 = vld [vmem:[%s1 + $0xb8] sm:$0xff]
      %v435 = vld [vmem:[%s1 + $0xc0] sm:$0xff]
      %v436 = vld [vmem:[%s1 + $0xc8] sm:$0xff]
      %v437 = vld [vmem:[%s1 + $0xd0] sm:$0xff]
      %v438 = vld [vmem:[%s1 + $0xd8] sm:$0xff]
      %v439 = vld [vmem:[%s1 + $0xe0] sm:$0xff]
      %v440 = vld [vmem:[%s1 + $0xe8] sm:$0xff]
      %v441 = vld [vmem:[%s1 + $0xf0] sm:$0xff]
      %v442 = vld [vmem:[%s1 + $0xf8] sm:$0xff]
      %v443 = vld [vmem:[%s1 + $0x100] sm:$0xff]
      %v444 = vld [vmem:[%s1 + $0x108] sm:$0xff]
      %v445 = vld [vmem:[%s1 + $0x110] sm:$0xff]
      %v446 = vld [vmem:[%s1 + $0x118] sm:$0xff]
      %v447 = vld [vmem:[%s1 + $0x120] sm:$0xff]
      %v448 = vld [vmem:[%s1 + $0x128] sm:$0xff]
      %v449 = vld [vmem:[%s1 + $0x130] sm:$0xff]
      %v450 = vld [vmem:[%s1 + $0x138] sm:$0xff]
      %v451 = vld [vmem:[%s1 + $0x140] sm:$0xff]
      %v452 = vld [vmem:[%s1 + $0x148] sm:$0xff]
      %v453 = vld [vmem:[%s1 + $0x150] sm:$0xff]
      %v454 = vld [vmem:[%s1 + $0x158] sm:$0xff]
      %v455 = vld [vmem:[%s1 + $0x160] sm:$0xff]
      %v456 = vld [vmem:[%s1 + $0x168] sm:$0xff]
      %v457 = vld [vmem:[%s1 + $0x170] sm:$0xff]
      %v458 = vld [vmem:[%s1 + $0x178] sm:$0xff]
      %v459 = vld [vmem:[%s1 + $0x180] sm:$0xff]
      %v460 = vld [vmem:[%s1 + $0x188] sm:$0xff]
      %v461 = vld [vmem:[%s1 + $0x190] sm:$0xff]
      %v462 = vld [vmem:[%s1 + $0x198] sm:$0xff]
      %v463 = vld [vmem:[%s1 + $0x1a0] sm:$0xff]
      %v464 = vld [vmem:[%s1 + $0x1a8] sm:$0xff]
      %v465 = vld [vmem:[%s1 + $0x1b0] sm:$0xff]
      %v466 = vld [vmem:[%s1 + $0x1b8] sm:$0xff]
      %v467 = vld [vmem:[%s1 + $0x1c0] sm:$0xff]
      %v468 = vld [vmem:[%s1 + $0x1c8] sm:$0xff]
      %v469 = vld [vmem:[%s1 + $0x1d0] sm:$0xff]
      %v470 = vld [vmem:[%s1 + $0x1d8] sm:$0xff]
      %v471 = vld [vmem:[%s1 + $0x1e0] sm:$0xff]
      %v472 = vld [vmem:[%s1 + $0x1e8] sm:$0xff]
      %v473 = vld [vmem:[%s1 + $0x1f0] sm:$0xff]
      %v474 = vld [vmem:[%s1 + $0x1f8] sm:$0xff]
      %v475 = vld [vmem:[%s1 + $0x200] sm:$0xff]
      %v476 = vld [vmem:[%s1 + $0x208] sm:$0xff]
      %v477 = vld [vmem:[%s1 + $0x210] sm:$0xff]
      %v478 = vld [vmem:[%s1 + $0x218] sm:$0xff]
      %v479 = vld [vmem:[%s1 + $0x220] sm:$0xff]
      %v480 = vld [vmem:[%s1 + $0x228] sm:$0xff]
      %v481 = vld [vmem:[%s1 + $0x230] sm:$0xff]
      %v482 = vld [vmem:[%s1 + $0x238] sm:$0xff]
      %v483 = vld [vmem:[%s1 + $0x240] sm:$0xff]
      %v484 = vld [vmem:[%s1 + $0x248] sm:$0xff]
      %v485 = vld [vmem:[%s1 + $0x250] sm:$0xff]
      %v486 = vld [vmem:[%s1 + $0x258] sm:$0xff]
      %v487 = vld [vmem:[%s1 + $0x260] sm:$0xff]
      %v488 = vld [vmem:[%s1 + $0x268] sm:$0xff]
      %v489 = vld [vmem:[%s1 + $0x270] sm:$0xff]
      %v490 = vld [vmem:[%s1 + $0x278] sm:$0xff]
      %v491 = vld [vmem:[%s1 + $0x280] sm:$0xff]
      %v492 = vld [vmem:[%s1 + $0x288] sm:$0xff]
      %v493 = vld [vmem:[%s1 + $0x290] sm:$0xff]
      %v494 = vld [vmem:[%s1 + $0x298] sm:$0xff]
      %v495 = vld [vmem:[%s1 + $0x2a0] sm:$0xff]
      %v496 = vld [vmem:[%s1 + $0x2a8] sm:$0xff]
      %v497 = vld [vmem:[%s1 + $0x2b0] sm:$0xff]
      %v498 = vld [vmem:[%s1 + $0x2b8] sm:$0xff]
      %v499 = vld [vmem:[%s1 + $0x2c0] sm:$0xff]
      %v500 = vld [vmem:[%s1 + $0x2c8] sm:$0xff]
      %v501 = vld [vmem:[%s1 + $0x2d0] sm:$0xff]
      %v502 = vld [vmem:[%s1 + $0x2d8] sm:$0xff]
      %v503 = vld [vmem:[%s1 + $0x2e0] sm:$0xff]
      %v504 = vld [vmem:[%s1 + $0x2e8] sm:$0xff]
      %v505 = vld [vmem:[%s1 + $0x2f0] sm:$0xff]
      %v506 = vld [vmem:[%s1 + $0x2f8] sm:$0xff]
      %v507 = vld [vmem:[%s1 + $0x300] sm:$0xff]
      %v508 = vld [vmem:[%s1 + $0x308] sm:$0xff]
      %v509 = vld [vmem:[%s1 + $0x310] sm:$0xff]
      %v510 = vld [vmem:[%s1 + $0x318] sm:$0xff]
      %v511 = vld [vmem:[%s1 + $0x320] sm:$0xff]
      %v512 = vld [vmem:[%s1 + $0x328] sm:$0xff]
      %v513 = vld [vmem:[%s1 + $0x330] sm:$0xff]
      %v514 = vld [vmem:[%s1 + $0x338] sm:$0xff]
      %v515 = vld [vmem:[%s1 + $0x340] sm:$0xff]
      %v516 = vld [vmem:[%s1 + $0x348] sm:$0xff]
      %v517 = vld [vmem:[%s1 + $0x350] sm:$0xff]
      %v518 = vld [vmem:[%s1 + $0x358] sm:$0xff]
      %v519 = vld [vmem:[%s1 + $0x360] sm:$0xff]
      %v520 = vld [vmem:[%s1 + $0x368] sm:$0xff]
      %v521 = vld [vmem:[%s1 + $0x370] sm:$0xff]
      %v522 = vld [vmem:[%s1 + $0x378] sm:$0xff]
      %v523 = vld [vmem:[%s1 + $0x380] sm:$0xff]
      %v524 = vld [vmem:[%s1 + $0x388] sm:$0xff]
      %v525 = vld [vmem:[%s1 + $0x390] sm:$0xff]
      %v526 = vld [vmem:[%s1 + $0x398] sm:$0xff]
      %v527 = vld [vmem:[%s1 + $0x3a0] sm:$0xff]
      %v528 = vld [vmem:[%s1 + $0x3a8] sm:$0xff]
      %v529 = vld [vmem:[%s1 + $0x3b0] sm:$0xff]
      %v530 = vld [vmem:[%s1 + $0x3b8] sm:$0xff]
      %v531 = vld [vmem:[%s1 + $0x3c0] sm:$0xff]
      %v532 = vld [vmem:[%s1 + $0x3c8] sm:$0xff]
      %v533 = vld [vmem:[%s1 + $0x3d0] sm:$0xff]
      %v534 = vld [vmem:[%s1 + $0x3d8] sm:$0xff]
      %v535 = vld [vmem:[%s1 + $0x3e0] sm:$0xff]
      %v536 = vld [vmem:[%s1 + $0x3e8] sm:$0xff]
      %v537 = vld [vmem:[%s1 + $0x3f0] sm:$0xff]
      %v538 = vld [vmem:[%s1 + $0x3f8] sm:$0xff]
      %v539 = vld [vmem:[%s1 + $0x400] sm:$0xff]
      %v540 = vld [vmem:[%s1 + $0x408] sm:$0xff]
      %v541 = vld [vmem:[%s1 + $0x410] sm:$0xff]
      %v542 = vld [vmem:[%s1 + $0x418] sm:$0xff]
      %v543 = vld [vmem:[%s1 + $0x420] sm:$0xff]
      %v544 = vld [vmem:[%s1 + $0x428] sm:$0xff]
      %v545 = vld [vmem:[%s1 + $0x430] sm:$0xff]
      %v546 = vld [vmem:[%s1 + $0x438] sm:$0xff]
      %v547 = vld [vmem:[%s1 + $0x440] sm:$0xff]
      %v548 = vld [vmem:[%s1 + $0x448] sm:$0xff]
      %v549 = vld [vmem:[%s1 + $0x450] sm:$0xff]
      %v550 = vld [vmem:[%s1 + $0x458] sm:$0xff]
      %v551 = vld [vmem:[%s1 + $0x460] sm:$0xff]
      %v552 = vld [vmem:[%s1 + $0x468] sm:$0xff]
      %v553 = vld [vmem:[%s1 + $0x470] sm:$0xff]
      %v554 = vld [vmem:[%s1 + $0x478] sm:$0xff]
      %v555 = vld [vmem:[%s1 + $0x480] sm:$0xff]
      %v556 = vld [vmem:[%s1 + $0x488] sm:$0xff]
      %v557 = vld [vmem:[%s1 + $0x490] sm:$0xff]
      %v558 = vld [vmem:[%s1 + $0x498] sm:$0xff]
      %v559 = vld [vmem:[%s1 + $0x4a0] sm:$0xff]
      %v560 = vld [vmem:[%s1 + $0x4a8] sm:$0xff]
      %v561 = vld [vmem:[%s1 + $0x4b0] sm:$0xff]
      %v562 = vld [vmem:[%s1 + $0x4b8] sm:$0xff]
      %v563 = vld [vmem:[%s1 + $0x4c0] sm:$0xff]
      %v564 = vld [vmem:[%s1 + $0x4c8] sm:$0xff]
      %v565 = vld [vmem:[%s1 + $0x4d0] sm:$0xff]
      %v566 = vld [vmem:[%s1 + $0x4d8] sm:$0xff]
      %v567 = vld [vmem:[%s1 + $0x4e0] sm:$0xff]
      %v568 = vld [vmem:[%s1 + $0x4e8] sm:$0xff]
      %v569 = vld [vmem:[%s1 + $0x4f0] sm:$0xff]
      %v570 = vld [vmem:[%s1 + $0x4f8] sm:$0xff]
      %v571 = vld [vmem:[%s1 + $0x500] sm:$0xff]
      %v572 = vld [vmem:[%s1 + $0x508] sm:$0xff]
      %v573 = vld [vmem:[%s1 + $0x510] sm:$0xff]
      %v574 = vld [vmem:[%s1 + $0x518] sm:$0xff]
      %v575 = vld [vmem:[%s1 + $0x520] sm:$0xff]
      %v576 = vld [vmem:[%s1 + $0x528] sm:$0xff]
      %v577 = vld [vmem:[%s1 + $0x530] sm:$0xff]
      %v578 = vld [vmem:[%s1 + $0x538] sm:$0xff]
      %v579 = vld [vmem:[%s1 + $0x540] sm:$0xff]
      %v580 = vld [vmem:[%s1 + $0x548] sm:$0xff]
      %v581 = vld [vmem:[%s1 + $0x550] sm:$0xff]
      %v582 = vld [vmem:[%s1 + $0x558] sm:$0xff]
      %v583 = vld [vmem:[%s1 + $0x560] sm:$0xff]
      %v584 = vld [vmem:[%s1 + $0x568] sm:$0xff]
      %v585 = vld [vmem:[%s1 + $0x570] sm:$0xff]
      %v586 = vld [vmem:[%s1 + $0x578] sm:$0xff]
      %v587 = vld [vmem:[%s1 + $0x580] sm:$0xff]
      %v588 = vld [vmem:[%s1 + $0x588] sm:$0xff]
      %v589 = vld [vmem:[%s1 + $0x590] sm:$0xff]
      %v590 = vld [vmem:[%s1 + $0x598] sm:$0xff]
      %v591 = vld [vmem:[%s1 + $0x5a0] sm:$0xff]
      %v592 = vld [vmem:[%s1 + $0x5a8] sm:$0xff]
      %v593 = vld [vmem:[%s1 + $0x5b0] sm:$0xff]
      %v594 = vld [vmem:[%s1 + $0x5b8] sm:$0xff]
      %v595 = vld [vmem:[%s1 + $0x5c0] sm:$0xff]
      %v596 = vld [vmem:[%s1 + $0x5c8] sm:$0xff]
      %v597 = vld [vmem:[%s1 + $0x5d0] sm:$0xff]
      %v598 = vld [vmem:[%s1 + $0x5d8] sm:$0xff]
      %v599 = vld [vmem:[%s1 + $0x5e0] sm:$0xff]
      %v600 = vld [vmem:[%s1 + $0x5e8] sm:$0xff]
      %v601 = vld [vmem:[%s1 + $0x5f0] sm:$0xff]
      %v602 = vld [vmem:[%s1 + $0x5f8] sm:$0xff]
      %v603 = vld [vmem:[%s1 + $0x600] sm:$0xff]
      %v604 = vld [vmem:[%s1 + $0x608] sm:$0xff]
      %v605 = vld [vmem:[%s1 + $0x610] sm:$0xff]
      %v606 = vld [vmem:[%s1 + $0x618] sm:$0xff]
      %v607 = vld [vmem:[%s1 + $0x620] sm:$0xff]
      %v608 = vld [vmem:[%s1 + $0x628] sm:$0xff]
      %v609 = vld [vmem:[%s1 + $0x630] sm:$0xff]
      %v610 = vld [vmem:[%s1 + $0x638] sm:$0xff]
      %v611 = vld [vmem:[%s2] sm:$0x1]
      %v613 = vlaneseq
      %v614 = vshrl.u32 %v613, 7
      %v615 = vsub.s32 0, %v614
      %v616 = vrot.slane %v611, %v615
      %vm618 = vcmask 523264
      %v620 = vsel %vm618, %v189, 0
      %v623 = vsel %vm618, %v202, 0
      %v626 = vsel %vm618, %v215, 0
      %v629 = vsel %vm618, %v228, 0
      %v632 = vsel %vm618, %v241, 0
      %v635 = vsel %vm618, %v254, 0
      %v638 = vsel %vm618, %v267, 0
      %v641 = vsel %vm618, %v280, 0
      %v644 = vsel %vm618, %v293, 0
      %v647 = vsel %vm618, %v306, 0
      %v650 = vsel %vm618, %v319, 0
      %v653 = vsel %vm618, %v332, 0
      %v656 = vsel %vm618, %v345, 0
      %v659 = vsel %vm618, %v358, 0
      %v662 = vsel %vm618, %v371, 0
      %v665 = vsel %vm618, %v384, 0
      %v668 = vsel %vm618, %v397, 0
      %v671 = vsel %vm618, %v410, 0
      %673 = vmatprep.subr.mxu0 0.0
      %674 = vmatpush1.msra.mxu0 %v411
      %675 = vmatprep.subr.mxu0 0.0
      %676 = vmatpush1.msra.mxu0 %v412
      %677 = vmatprep.subr.mxu0 0.0
      %678 = vmatpush1.msra.mxu0 %v413
      %679 = vmatprep.subr.mxu0 0.0
      %680 = vmatpush1.msra.mxu0 %v414
      %681 = vmatprep.subr.mxu0 0.0
      %682 = vmatpush1.msra.mxu0 %v415
      %683 = vmatprep.subr.mxu0 0.0
      %684 = vmatpush1.msra.mxu0 %v416
      %685 = vmatprep.subr.mxu0 0.0
      %686 = vmatpush1.msra.mxu0 %v417
      %687 = vmatprep.subr.mxu0 0.0
      %688 = vmatpush1.msra.mxu0 %v418
      %689 = vmatprep.subr.mxu0 0.0
      %690 = vmatpush1.msra.mxu0 %v419
      %691 = vmatprep.subr.mxu0 0.0
      %692 = vmatpush1.msra.mxu0 %v420
      %693 = vmatprep.subr.mxu0 0.0
      %694 = vmatpush1.msra.mxu0 %v421
      %695 = vmatprep.subr.mxu0 0.0
      %696 = vmatpush1.msra.mxu0 %v422
      %697 = vmatprep.subr.mxu0 0.0
      %698 = vmatpush1.msra.mxu0 %v423
      %699 = vmatprep.subr.mxu0 0.0
      %700 = vmatpush1.msra.mxu0 %v424
      %701 = vmatprep.subr.mxu0 0.0
      %702 = vmatpush1.msra.mxu0 %v425
      %703 = vmatprep.subr.mxu0 0.0
      %704 = vmatpush1.msra.mxu0 %v426
      %705 = vmatprep.subr.mxu0 0.0
      %706 = vmatpush1.msra.mxu0 %v427
      %707 = vmatprep.subr.mxu0 0.0
      %708 = vmatpush1.msra.mxu0 %v428
      %709 = vmatprep.subr.mxu0 0.0
      %710 = vmatpush1.msra.mxu0 %v429
      %711 = vmatprep.subr.mxu0 0.0
      %712 = vmatpush1.msra.mxu0 %v430
      %713 = vmatprep.subr.mxu0 0.0
      %714 = vmatpush1.msra.mxu0 %v431
      %715 = vmatprep.subr.mxu0 0.0
      %716 = vmatpush1.msra.mxu0 %v432
      %717 = vmatprep.subr.mxu0 0.0
      %718 = vmatpush1.msra.mxu0 %v433
      %719 = vmatprep.subr.mxu0 0.0
      %720 = vmatpush1.msra.mxu0 %v434
      %721 = vmatprep.subr.mxu0 0.0
      %722 = vmatpush1.msra.mxu0 %v435
      %723 = vmatprep.subr.mxu0 0.0
      %724 = vmatpush1.msra.mxu0 %v436
      %725 = vmatprep.subr.mxu0 0.0
      %726 = vmatpush1.msra.mxu0 %v437
      %727 = vmatprep.subr.mxu0 0.0
      %728 = vmatpush1.msra.mxu0 %v438
      %729 = vmatprep.subr.mxu0 0.0
      %730 = vmatpush1.msra.mxu0 %v439
      %731 = vmatprep.subr.mxu0 0.0
      %732 = vmatpush1.msra.mxu0 %v440
      %733 = vmatprep.subr.mxu0 0.0
      %734 = vmatpush1.msra.mxu0 %v441
      %735 = vmatprep.subr.mxu0 0.0
      %736 = vmatpush1.msra.mxu0 %v442
      %737 = vmatprep.mubr.f32.mxu0 %v178
      %738 = vmatmul.mubr.f32.gmra.mrb[0].mxu0 %v177
      %v739 = vpop.f32.mrb[0].mxu0
      %v740 = vadd.f32 %v616, %v739
      %v741 = vpop.f32.mrb[0].mxu0
      %742 = vmatprep.mubr.f32.mxu0 %v191
      %743 = vmatmul.mubr.f32.gmra.mrb[0].mxu0 %v190
      %v744 = vpop.f32.mrb[0].mxu0
      %v745 = vadd.f32 %v616, %v744
      %v746 = vpop.f32.mrb[0].mxu0
      %747 = vmatprep.mubr.f32.mxu0 %v204
      %748 = vmatmul.mubr.f32.gmra.mrb[0].mxu0 %v203
      %v749 = vpop.f32.mrb[0].mxu0
      %v750 = vadd.f32 %v616, %v749
      %v751 = vpop.f32.mrb[0].mxu0
      %752 = vmatprep.mubr.f32.mxu0 %v217
      %753 = vmatmul.mubr.f32.gmra.mrb[0].mxu0 %v216
      %v754 = vpop.f32.mrb[0].mxu0
      %v755 = vadd.f32 %v616, %v754
      %v756 = vpop.f32.mrb[0].mxu0
      %757 = vmatprep.mubr.f32.mxu0 %v230
      %758 = vmatmul.mubr.f32.gmra.mrb[0].mxu0 %v229
      %v759 = vpop.f32.mrb[0].mxu0
      %v760 = vadd.f32 %v616, %v759
      %v761 = vpop.f32.mrb[0].mxu0
      %762 = vmatprep.mubr.f32.mxu0 %v243
      %763 = vmatmul.mubr.f32.gmra.mrb[0].mxu0 %v242
      %v764 = vpop.f32.mrb[0].mxu0
      %v765 = vadd.f32 %v616, %v764
      %v766 = vpop.f32.mrb[0].mxu0
      %767 = vmatprep.mubr.f32.mxu0 %v256
      %768 = vmatmul.mubr.f32.gmra.mrb[0].mxu0 %v255
      %v769 = vpop.f32.mrb[0].mxu0
      %v770 = vadd.f32 %v616, %v769
      %v771 = vpop.f32.mrb[0].mxu0
      %772 = vmatprep.mubr.f32.mxu0 %v269
      %773 = vmatmul.mubr.f32.gmra.mrb[0].mxu0 %v268
      %v774 = vpop.f32.mrb[0].mxu0
      %v775 = vadd.f32 %v616, %v774
      %v776 = vpop.f32.mrb[0].mxu0
      %777 = vmatprep.mubr.f32.mxu0 %v282
      %778 = vmatmul.mubr.f32.gmra.mrb[0].mxu0 %v281
      %v779 = vpop.f32.mrb[0].mxu0
      %v780 = vadd.f32 %v616, %v779
      %v781 = vpop.f32.mrb[0].mxu0
      %782 = vmatprep.mubr.f32.mxu0 %v295
      %783 = vmatmul.mubr.f32.gmra.mrb[0].mxu0 %v294
      %v784 = vpop.f32.mrb[0].mxu0
      %v785 = vadd.f32 %v616, %v784
      %v786 = vpop.f32.mrb[0].mxu0
      %787 = vmatprep.mubr.f32.mxu0 %v308
      %788 = vmatmul.mubr.f32.gmra.mrb[0].mxu0 %v307
      %v789 = vpop.f32.mrb[0].mxu0
      %v790 = vadd.f32 %v616, %v789
      %v791 = vpop.f32.mrb[0].mxu0
      %792 = vmatprep.mubr.f32.mxu0 %v321
      %793 = vmatmul.mubr.f32.gmra.mrb[0].mxu0 %v320
      %v794 = vpop.f32.mrb[0].mxu0
      %v795 = vadd.f32 %v616, %v794
      %v796 = vpop.f32.mrb[0].mxu0
      %797 = vmatprep.mubr.f32.mxu0 %v334
      %798 = vmatmul.mubr.f32.gmra.mrb[0].mxu0 %v333
      %v799 = vpop.f32.mrb[0].mxu0
      %v800 = vadd.f32 %v616, %v799
      %v801 = vpop.f32.mrb[0].mxu0
      %802 = vmatprep.mubr.f32.mxu0 %v347
      %803 = vmatmul.mubr.f32.gmra.mrb[0].mxu0 %v346
      %v804 = vpop.f32.mrb[0].mxu0
      %v805 = vadd.f32 %v616, %v804
      %v806 = vpop.f32.mrb[0].mxu0
      %807 = vmatprep.mubr.f32.mxu0 %v360
      %808 = vmatmul.mubr.f32.gmra.mrb[0].mxu0 %v359
      %v809 = vpop.f32.mrb[0].mxu0
      %v810 = vadd.f32 %v616, %v809
      %v811 = vpop.f32.mrb[0].mxu0
      %812 = vmatprep.mubr.f32.mxu0 %v373
      %813 = vmatmul.mubr.f32.gmra.mrb[0].mxu0 %v372
      %v814 = vpop.f32.mrb[0].mxu0
      %v815 = vadd.f32 %v616, %v814
      %v816 = vpop.f32.mrb[0].mxu0
      %817 = vmatprep.mubr.f32.mxu0 %v386
      %818 = vmatmul.mubr.f32.gmra.mrb[0].mxu0 %v385
      %v819 = vpop.f32.mrb[0].mxu0
      %v820 = vadd.f32 %v616, %v819
      %v821 = vpop.f32.mrb[0].mxu0
      %822 = vmatprep.mubr.f32.mxu0 %v399
      %823 = vmatmul.mubr.f32.gmra.mrb[0].mxu0 %v398
      %v824 = vpop.f32.mrb[0].mxu0
      %v825 = vadd.f32 %v616, %v824
      %v826 = vpop.f32.mrb[0].mxu0
      %827 = vdwg.mxu0
      %828 = vmatprep.subr.mxu0 0.0
      %829 = vmatpush1.msra.mxu0 %v443
      %830 = vmatprep.subr.mxu0 0.0
      %831 = vmatpush1.msra.mxu0 %v444
      %832 = vmatprep.subr.mxu0 0.0
      %833 = vmatpush1.msra.mxu0 %v445
      %834 = vmatprep.subr.mxu0 0.0
      %835 = vmatpush1.msra.mxu0 %v446
      %836 = vmatprep.subr.mxu0 0.0
      %837 = vmatpush1.msra.mxu0 %v447
      %838 = vmatprep.subr.mxu0 0.0
      %839 = vmatpush1.msra.mxu0 %v448
      %840 = vmatprep.subr.mxu0 0.0
      %841 = vmatpush1.msra.mxu0 %v449
      %842 = vmatprep.subr.mxu0 0.0
      %843 = vmatpush1.msra.mxu0 %v450
      %844 = vmatprep.subr.mxu0 0.0
      %845 = vmatpush1.msra.mxu0 %v451
      %846 = vmatprep.subr.mxu0 0.0
      %847 = vmatpush1.msra.mxu0 %v452
      %848 = vmatprep.subr.mxu0 0.0
      %849 = vmatpush1.msra.mxu0 %v453
      %850 = vmatprep.subr.mxu0 0.0
      %851 = vmatpush1.msra.mxu0 %v454
      %852 = vmatprep.subr.mxu0 0.0
      %853 = vmatpush1.msra.mxu0 %v455
      %854 = vmatprep.subr.mxu0 0.0
      %855 = vmatpush1.msra.mxu0 %v456
      %856 = vmatprep.subr.mxu0 0.0
      %857 = vmatpush1.msra.mxu0 %v457
      %858 = vmatprep.subr.mxu0 0.0
      %859 = vmatpush1.msra.mxu0 %v458
      %860 = vmatprep.subr.mxu0 0.0
      %861 = vmatpush1.msra.mxu0 %v459
      %862 = vmatprep.subr.mxu0 0.0
      %863 = vmatpush1.msra.mxu0 %v460
      %864 = vmatprep.subr.mxu0 0.0
      %865 = vmatpush1.msra.mxu0 %v461
      %866 = vmatprep.subr.mxu0 0.0
      %867 = vmatpush1.msra.mxu0 %v462
      %868 = vmatprep.subr.mxu0 0.0
      %869 = vmatpush1.msra.mxu0 %v463
      %870 = vmatprep.subr.mxu0 0.0
      %871 = vmatpush1.msra.mxu0 %v464
      %872 = vmatprep.subr.mxu0 0.0
      %873 = vmatpush1.msra.mxu0 %v465
      %874 = vmatprep.subr.mxu0 0.0
      %875 = vmatpush1.msra.mxu0 %v466
      %876 = vmatprep.subr.mxu0 0.0
      %877 = vmatpush1.msra.mxu0 %v467
      %878 = vmatprep.subr.mxu0 0.0
      %879 = vmatpush1.msra.mxu0 %v468
      %880 = vmatprep.subr.mxu0 0.0
      %881 = vmatpush1.msra.mxu0 %v469
      %882 = vmatprep.subr.mxu0 0.0
      %883 = vmatpush1.msra.mxu0 %v470
      %884 = vmatprep.subr.mxu0 0.0
      %885 = vmatpush1.msra.mxu0 %v471
      %886 = vmatprep.subr.mxu0 0.0
      %887 = vmatpush1.msra.mxu0 %v472
      %888 = vmatprep.subr.mxu0 0.0
      %889 = vmatpush1.msra.mxu0 %v473
      %890 = vmatprep.subr.mxu0 0.0
      %891 = vmatpush1.msra.mxu0 %v474
      %892 = vmatprep.mubr.f32.mxu0 %v180
      %893 = vmatmul.mubr.f32.gmra.mrb[0].mxu0 %v179
      %v894 = vpop.f32.mrb[0].mxu0
      %v895 = vadd.f32 %v740, %v894
      %v896 = vpop.f32.mrb[0].mxu0
      %897 = vmatprep.mubr.f32.mxu0 %v193
      %898 = vmatmul.mubr.f32.gmra.mrb[0].mxu0 %v192
      %v899 = vpop.f32.mrb[0].mxu0
      %v900 = vadd.f32 %v745, %v899
      %v901 = vpop.f32.mrb[0].mxu0
      %902 = vmatprep.mubr.f32.mxu0 %v206
      %903 = vmatmul.mubr.f32.gmra.mrb[0].mxu0 %v205
      %v904 = vpop.f32.mrb[0].mxu0
      %v905 = vadd.f32 %v750, %v904
      %v906 = vpop.f32.mrb[0].mxu0
      %907 = vmatprep.mubr.f32.mxu0 %v219
      %908 = vmatmul.mubr.f32.gmra.mrb[0].mxu0 %v218
      %v909 = vpop.f32.mrb[0].mxu0
      %v910 = vadd.f32 %v755, %v909
      %v911 = vpop.f32.mrb[0].mxu0
      %912 = vmatprep.mubr.f32.mxu0 %v232
      %913 = vmatmul.mubr.f32.gmra.mrb[0].mxu0 %v231
      %v914 = vpop.f32.mrb[0].mxu0
      %v915 = vadd.f32 %v760, %v914
      %v916 = vpop.f32.mrb[0].mxu0
      %917 = vmatprep.mubr.f32.mxu0 %v245
      %918 = vmatmul.mubr.f32.gmra.mrb[0].mxu0 %v244
      %v919 = vpop.f32.mrb[0].mxu0
      %v920 = vadd.f32 %v765, %v919
      %v921 = vpop.f32.mrb[0].mxu0
      %922 = vmatprep.mubr.f32.mxu0 %v258
      %923 = vmatmul.mubr.f32.gmra.mrb[0].mxu0 %v257
      %v924 = vpop.f32.mrb[0].mxu0
      %v925 = vadd.f32 %v770, %v924
      %v926 = vpop.f32.mrb[0].mxu0
      %927 = vmatprep.mubr.f32.mxu0 %v271
      %928 = vmatmul.mubr.f32.gmra.mrb[0].mxu0 %v270
      %v929 = vpop.f32.mrb[0].mxu0
      %v930 = vadd.f32 %v775, %v929
      %v931 = vpop.f32.mrb[0].mxu0
      %932 = vmatprep.mubr.f32.mxu0 %v284
      %933 = vmatmul.mubr.f32.gmra.mrb[0].mxu0 %v283
      %v934 = vpop.f32.mrb[0].mxu0
      %v935 = vadd.f32 %v780, %v934
      %v936 = vpop.f32.mrb[0].mxu0
      %937 = vmatprep.mubr.f32.mxu0 %v297
      %938 = vmatmul.mubr.f32.gmra.mrb[0].mxu0 %v296
      %v939 = vpop.f32.mrb[0].mxu0
      %v940 = vadd.f32 %v785, %v939
      %v941 = vpop.f32.mrb[0].mxu0
      %942 = vmatprep.mubr.f32.mxu0 %v310
      %943 = vmatmul.mubr.f32.gmra.mrb[0].mxu0 %v309
      %v944 = vpop.f32.mrb[0].mxu0
      %v945 = vadd.f32 %v790, %v944
      %v946 = vpop.f32.mrb[0].mxu0
      %947 = vmatprep.mubr.f32.mxu0 %v323
      %948 = vmatmul.mubr.f32.gmra.mrb[0].mxu0 %v322
      %v949 = vpop.f32.mrb[0].mxu0
      %v950 = vadd.f32 %v795, %v949
      %v951 = vpop.f32.mrb[0].mxu0
      %952 = vmatprep.mubr.f32.mxu0 %v336
      %953 = vmatmul.mubr.f32.gmra.mrb[0].mxu0 %v335
      %v954 = vpop.f32.mrb[0].mxu0
      %v955 = vadd.f32 %v800, %v954
      %v956 = vpop.f32.mrb[0].mxu0
      %957 = vmatprep.mubr.f32.mxu0 %v349
      %958 = vmatmul.mubr.f32.gmra.mrb[0].mxu0 %v348
      %v959 = vpop.f32.mrb[0].mxu0
      %v960 = vadd.f32 %v805, %v959
      %v961 = vpop.f32.mrb[0].mxu0
      %962 = vmatprep.mubr.f32.mxu0 %v362
      %963 = vmatmul.mubr.f32.gmra.mrb[0].mxu0 %v361
      %v964 = vpop.f32.mrb[0].mxu0
      %v965 = vadd.f32 %v810, %v964
      %v966 = vpop.f32.mrb[0].mxu0
      %967 = vmatprep.mubr.f32.mxu0 %v375
      %968 = vmatmul.mubr.f32.gmra.mrb[0].mxu0 %v374
      %v969 = vpop.f32.mrb[0].mxu0
      %v970 = vadd.f32 %v815, %v969
      %v971 = vpop.f32.mrb[0].mxu0
      %972 = vmatprep.mubr.f32.mxu0 %v388
      %973 = vmatmul.mubr.f32.gmra.mrb[0].mxu0 %v387
      %v974 = vpop.f32.mrb[0].mxu0
      %v975 = vadd.f32 %v820, %v974
      %v976 = vpop.f32.mrb[0].mxu0
      %977 = vmatprep.mubr.f32.mxu0 %v401
      %978 = vmatmul.mubr.f32.gmra.mrb[0].mxu0 %v400
      %v979 = vpop.f32.mrb[0].mxu0
      %v980 = vadd.f32 %v825, %v979
      %v981 = vpop.f32.mrb[0].mxu0
      %982 = vdwg.mxu0
      %983 = vmatprep.subr.mxu0 0.0
      %984 = vmatpush1.msra.mxu0 %v475
      %985 = vmatprep.subr.mxu0 0.0
      %986 = vmatpush1.msra.mxu0 %v476
      %987 = vmatprep.subr.mxu0 0.0
      %988 = vmatpush1.msra.mxu0 %v477
      %989 = vmatprep.subr.mxu0 0.0
      %990 = vmatpush1.msra.mxu0 %v478
      %991 = vmatprep.subr.mxu0 0.0
      %992 = vmatpush1.msra.mxu0 %v479
      %993 = vmatprep.subr.mxu0 0.0
      %994 = vmatpush1.msra.mxu0 %v480
      %995 = vmatprep.subr.mxu0 0.0
      %996 = vmatpush1.msra.mxu0 %v481
      %997 = vmatprep.subr.mxu0 0.0
      %998 = vmatpush1.msra.mxu0 %v482
      %999 = vmatprep.subr.mxu0 0.0
      %1000 = vmatpush1.msra.mxu0 %v483
      %1001 = vmatprep.subr.mxu0 0.0
      %1002 = vmatpush1.msra.mxu0 %v484
      %1003 = vmatprep.subr.mxu0 0.0
      %1004 = vmatpush1.msra.mxu0 %v485
      %1005 = vmatprep.subr.mxu0 0.0
      %1006 = vmatpush1.msra.mxu0 %v486
      %1007 = vmatprep.subr.mxu0 0.0
      %1008 = vmatpush1.msra.mxu0 %v487
      %1009 = vmatprep.subr.mxu0 0.0
      %1010 = vmatpush1.msra.mxu0 %v488
      %1011 = vmatprep.subr.mxu0 0.0
      %1012 = vmatpush1.msra.mxu0 %v489
      %1013 = vmatprep.subr.mxu0 0.0
      %1014 = vmatpush1.msra.mxu0 %v490
      %1015 = vmatprep.subr.mxu0 0.0
      %1016 = vmatpush1.msra.mxu0 %v491
      %1017 = vmatprep.subr.mxu0 0.0
      %1018 = vmatpush1.msra.mxu0 %v492
      %1019 = vmatprep.subr.mxu0 0.0
      %1020 = vmatpush1.msra.mxu0 %v493
      %1021 = vmatprep.subr.mxu0 0.0
      %1022 = vmatpush1.msra.mxu0 %v494
      %1023 = vmatprep.subr.mxu0 0.0
      %1024 = vmatpush1.msra.mxu0 %v495
      %1025 = vmatprep.subr.mxu0 0.0
      %1026 = vmatpush1.msra.mxu0 %v496
      %1027 = vmatprep.subr.mxu0 0.0
      %1028 = vmatpush1.msra.mxu0 %v497
      %1029 = vmatprep.subr.mxu0 0.0
      %1030 = vmatpush1.msra.mxu0 %v498
      %1031 = vmatprep.subr.mxu0 0.0
      %1032 = vmatpush1.msra.mxu0 %v499
      %1033 = vmatprep.subr.mxu0 0.0
      %1034 = vmatpush1.msra.mxu0 %v500
      %1035 = vmatprep.subr.mxu0 0.0
      %1036 = vmatpush1.msra.mxu0 %v501
      %1037 = vmatprep.subr.mxu0 0.0
      %1038 = vmatpush1.msra.mxu0 %v502
      %1039 = vmatprep.subr.mxu0 0.0
      %1040 = vmatpush1.msra.mxu0 %v503
      %1041 = vmatprep.subr.mxu0 0.0
      %1042 = vmatpush1.msra.mxu0 %v504
      %1043 = vmatprep.subr.mxu0 0.0
      %1044 = vmatpush1.msra.mxu0 %v505
      %1045 = vmatprep.subr.mxu0 0.0
      %1046 = vmatpush1.msra.mxu0 %v506
      %1047 = vmatprep.mubr.f32.mxu0 %v182
      %1048 = vmatmul.mubr.f32.gmra.mrb[0].mxu0 %v181
      %v1049 = vpop.f32.mrb[0].mxu0
      %v1050 = vadd.f32 %v895, %v1049
      %v1051 = vpop.f32.mrb[0].mxu0
      %1052 = vmatprep.mubr.f32.mxu0 %v195
      %1053 = vmatmul.mubr.f32.gmra.mrb[0].mxu0 %v194
      %v1054 = vpop.f32.mrb[0].mxu0
      %v1055 = vadd.f32 %v900, %v1054
      %v1056 = vpop.f32.mrb[0].mxu0
      %1057 = vmatprep.mubr.f32.mxu0 %v208
      %1058 = vmatmul.mubr.f32.gmra.mrb[0].mxu0 %v207
      %v1059 = vpop.f32.mrb[0].mxu0
      %v1060 = vadd.f32 %v905, %v1059
      %v1061 = vpop.f32.mrb[0].mxu0
      %1062 = vmatprep.mubr.f32.mxu0 %v221
      %1063 = vmatmul.mubr.f32.gmra.mrb[0].mxu0 %v220
      %v1064 = vpop.f32.mrb[0].mxu0
      %v1065 = vadd.f32 %v910, %v1064
      %v1066 = vpop.f32.mrb[0].mxu0
      %1067 = vmatprep.mubr.f32.mxu0 %v234
      %1068 = vmatmul.mubr.f32.gmra.mrb[0].mxu0 %v233
      %v1069 = vpop.f32.mrb[0].mxu0
      %v1070 = vadd.f32 %v915, %v1069
      %v1071 = vpop.f32.mrb[0].mxu0
      %1072 = vmatprep.mubr.f32.mxu0 %v247
      %1073 = vmatmul.mubr.f32.gmra.mrb[0].mxu0 %v246
      %v1074 = vpop.f32.mrb[0].mxu0
      %v1075 = vadd.f32 %v920, %v1074
      %v1076 = vpop.f32.mrb[0].mxu0
      %1077 = vmatprep.mubr.f32.mxu0 %v260
      %1078 = vmatmul.mubr.f32.gmra.mrb[0].mxu0 %v259
      %v1079 = vpop.f32.mrb[0].mxu0
      %v1080 = vadd.f32 %v925, %v1079
      %v1081 = vpop.f32.mrb[0].mxu0
      %1082 = vmatprep.mubr.f32.mxu0 %v273
      %1083 = vmatmul.mubr.f32.gmra.mrb[0].mxu0 %v272
      %v1084 = vpop.f32.mrb[0].mxu0
      %v1085 = vadd.f32 %v930, %v1084
      %v1086 = vpop.f32.mrb[0].mxu0
      %1087 = vmatprep.mubr.f32.mxu0 %v286
      %1088 = vmatmul.mubr.f32.gmra.mrb[0].mxu0 %v285
      %v1089 = vpop.f32.mrb[0].mxu0
      %v1090 = vadd.f32 %v935, %v1089
      %v1091 = vpop.f32.mrb[0].mxu0
      %1092 = vmatprep.mubr.f32.mxu0 %v299
      %1093 = vmatmul.mubr.f32.gmra.mrb[0].mxu0 %v298
      %v1094 = vpop.f32.mrb[0].mxu0
      %v1095 = vadd.f32 %v940, %v1094
      %v1096 = vpop.f32.mrb[0].mxu0
      %1097 = vmatprep.mubr.f32.mxu0 %v312
      %1098 = vmatmul.mubr.f32.gmra.mrb[0].mxu0 %v311
      %v1099 = vpop.f32.mrb[0].mxu0
      %v1100 = vadd.f32 %v945, %v1099
      %v1101 = vpop.f32.mrb[0].mxu0
      %1102 = vmatprep.mubr.f32.mxu0 %v325
      %1103 = vmatmul.mubr.f32.gmra.mrb[0].mxu0 %v324
      %v1104 = vpop.f32.mrb[0].mxu0
      %v1105 = vadd.f32 %v950, %v1104
      %v1106 = vpop.f32.mrb[0].mxu0
      %1107 = vmatprep.mubr.f32.mxu0 %v338
      %1108 = vmatmul.mubr.f32.gmra.mrb[0].mxu0 %v337
      %v1109 = vpop.f32.mrb[0].mxu0
      %v1110 = vadd.f32 %v955, %v1109
      %v1111 = vpop.f32.mrb[0].mxu0
      %1112 = vmatprep.mubr.f32.mxu0 %v351
      %1113 = vmatmul.mubr.f32.gmra.mrb[0].mxu0 %v350
      %v1114 = vpop.f32.mrb[0].mxu0
      %v1115 = vadd.f32 %v960, %v1114
      %v1116 = vpop.f32.mrb[0].mxu0
      %1117 = vmatprep.mubr.f32.mxu0 %v364
      %1118 = vmatmul.mubr.f32.gmra.mrb[0].mxu0 %v363
      %v1119 = vpop.f32.mrb[0].mxu0
      %v1120 = vadd.f32 %v965, %v1119
      %v1121 = vpop.f32.mrb[0].mxu0
      %1122 = vmatprep.mubr.f32.mxu0 %v377
      %1123 = vmatmul.mubr.f32.gmra.mrb[0].mxu0 %v376
      %v1124 = vpop.f32.mrb[0].mxu0
      %v1125 = vadd.f32 %v970, %v1124
      %v1126 = vpop.f32.mrb[0].mxu0
      %1127 = vmatprep.mubr.f32.mxu0 %v390
      %1128 = vmatmul.mubr.f32.gmra.mrb[0].mxu0 %v389
      %v1129 = vpop.f32.mrb[0].mxu0
      %v1130 = vadd.f32 %v975, %v1129
      %v1131 = vpop.f32.mrb[0].mxu0
      %1132 = vmatprep.mubr.f32.mxu0 %v403
      %1133 = vmatmul.mubr.f32.gmra.mrb[0].mxu0 %v402
      %v1134 = vpop.f32.mrb[0].mxu0
      %v1135 = vadd.f32 %v980, %v1134
      %v1136 = vpop.f32.mrb[0].mxu0
      %1137 = vdwg.mxu0
      %1138 = vmatprep.subr.mxu0 0.0
      %1139 = vmatpush1.msra.mxu0 %v507
      %1140 = vmatprep.subr.mxu0 0.0
      %1141 = vmatpush1.msra.mxu0 %v508
      %1142 = vmatprep.subr.mxu0 0.0
      %1143 = vmatpush1.msra.mxu0 %v509
      %1144 = vmatprep.subr.mxu0 0.0
      %1145 = vmatpush1.msra.mxu0 %v510
      %1146 = vmatprep.subr.mxu0 0.0
      %1147 = vmatpush1.msra.mxu0 %v511
      %1148 = vmatprep.subr.mxu0 0.0
      %1149 = vmatpush1.msra.mxu0 %v512
      %1150 = vmatprep.subr.mxu0 0.0
      %1151 = vmatpush1.msra.mxu0 %v513
      %1152 = vmatprep.subr.mxu0 0.0
      %1153 = vmatpush1.msra.mxu0 %v514
      %1154 = vmatprep.subr.mxu0 0.0
      %1155 = vmatpush1.msra.mxu0 %v515
      %1156 = vmatprep.subr.mxu0 0.0
      %1157 = vmatpush1.msra.mxu0 %v516
      %1158 = vmatprep.subr.mxu0 0.0
      %1159 = vmatpush1.msra.mxu0 %v517
      %1160 = vmatprep.subr.mxu0 0.0
      %1161 = vmatpush1.msra.mxu0 %v518
      %1162 = vmatprep.subr.mxu0 0.0
      %1163 = vmatpush1.msra.mxu0 %v519
      %1164 = vmatprep.subr.mxu0 0.0
      %1165 = vmatpush1.msra.mxu0 %v520
      %1166 = vmatprep.subr.mxu0 0.0
      %1167 = vmatpush1.msra.mxu0 %v521
      %1168 = vmatprep.subr.mxu0 0.0
      %1169 = vmatpush1.msra.mxu0 %v522
      %1170 = vmatprep.subr.mxu0 0.0
      %1171 = vmatpush1.msra.mxu0 %v523
      %1172 = vmatprep.subr.mxu0 0.0
      %1173 = vmatpush1.msra.mxu0 %v524
      %1174 = vmatprep.subr.mxu0 0.0
      %1175 = vmatpush1.msra.mxu0 %v525
      %1176 = vmatprep.subr.mxu0 0.0
      %1177 = vmatpush1.msra.mxu0 %v526
      %1178 = vmatprep.subr.mxu0 0.0
      %1179 = vmatpush1.msra.mxu0 %v527
      %1180 = vmatprep.subr.mxu0 0.0
      %1181 = vmatpush1.msra.mxu0 %v528
      %1182 = vmatprep.subr.mxu0 0.0
      %1183 = vmatpush1.msra.mxu0 %v529
      %1184 = vmatprep.subr.mxu0 0.0
      %1185 = vmatpush1.msra.mxu0 %v530
      %1186 = vmatprep.subr.mxu0 0.0
      %1187 = vmatpush1.msra.mxu0 %v531
      %1188 = vmatprep.subr.mxu0 0.0
      %1189 = vmatpush1.msra.mxu0 %v532
      %1190 = vmatprep.subr.mxu0 0.0
      %1191 = vmatpush1.msra.mxu0 %v533
      %1192 = vmatprep.subr.mxu0 0.0
      %1193 = vmatpush1.msra.mxu0 %v534
      %1194 = vmatprep.subr.mxu0 0.0
      %1195 = vmatpush1.msra.mxu0 %v535
      %1196 = vmatprep.subr.mxu0 0.0
      %1197 = vmatpush1.msra.mxu0 %v536
      %1198 = vmatprep.subr.mxu0 0.0
      %1199 = vmatpush1.msra.mxu0 %v537
      %1200 = vmatprep.subr.mxu0 0.0
      %1201 = vmatpush1.msra.mxu0 %v538
      %1202 = vmatprep.mubr.f32.mxu0 %v184
      %1203 = vmatmul.mubr.f32.gmra.mrb[0].mxu0 %v183
      %v1204 = vpop.f32.mrb[0].mxu0
      %v1205 = vadd.f32 %v1050, %v1204
      %v1206 = vpop.f32.mrb[0].mxu0
      %1207 = vmatprep.mubr.f32.mxu0 %v197
      %1208 = vmatmul.mubr.f32.gmra.mrb[0].mxu0 %v196
      %v1209 = vpop.f32.mrb[0].mxu0
      %v1210 = vadd.f32 %v1055, %v1209
      %v1211 = vpop.f32.mrb[0].mxu0
      %1212 = vmatprep.mubr.f32.mxu0 %v210
      %1213 = vmatmul.mubr.f32.gmra.mrb[0].mxu0 %v209
      %v1214 = vpop.f32.mrb[0].mxu0
      %v1215 = vadd.f32 %v1060, %v1214
      %v1216 = vpop.f32.mrb[0].mxu0
      %1217 = vmatprep.mubr.f32.mxu0 %v223
      %1218 = vmatmul.mubr.f32.gmra.mrb[0].mxu0 %v222
      %v1219 = vpop.f32.mrb[0].mxu0
      %v1220 = vadd.f32 %v1065, %v1219
      %v1221 = vpop.f32.mrb[0].mxu0
      %1222 = vmatprep.mubr.f32.mxu0 %v236
      %1223 = vmatmul.mubr.f32.gmra.mrb[0].mxu0 %v235
      %v1224 = vpop.f32.mrb[0].mxu0
      %v1225 = vadd.f32 %v1070, %v1224
      %v1226 = vpop.f32.mrb[0].mxu0
      %1227 = vmatprep.mubr.f32.mxu0 %v249
      %1228 = vmatmul.mubr.f32.gmra.mrb[0].mxu0 %v248
      %v1229 = vpop.f32.mrb[0].mxu0
      %v1230 = vadd.f32 %v1075, %v1229
      %v1231 = vpop.f32.mrb[0].mxu0
      %1232 = vmatprep.mubr.f32.mxu0 %v262
      %1233 = vmatmul.mubr.f32.gmra.mrb[0].mxu0 %v261
      %v1234 = vpop.f32.mrb[0].mxu0
      %v1235 = vadd.f32 %v1080, %v1234
      %v1236 = vpop.f32.mrb[0].mxu0
      %1237 = vmatprep.mubr.f32.mxu0 %v275
      %1238 = vmatmul.mubr.f32.gmra.mrb[0].mxu0 %v274
      %v1239 = vpop.f32.mrb[0].mxu0
      %v1240 = vadd.f32 %v1085, %v1239
      %v1241 = vpop.f32.mrb[0].mxu0
      %1242 = vmatprep.mubr.f32.mxu0 %v288
      %1243 = vmatmul.mubr.f32.gmra.mrb[0].mxu0 %v287
      %v1244 = vpop.f32.mrb[0].mxu0
      %v1245 = vadd.f32 %v1090, %v1244
      %v1246 = vpop.f32.mrb[0].mxu0
      %1247 = vmatprep.mubr.f32.mxu0 %v301
      %1248 = vmatmul.mubr.f32.gmra.mrb[0].mxu0 %v300
      %v1249 = vpop.f32.mrb[0].mxu0
      %v1250 = vadd.f32 %v1095, %v1249
      %v1251 = vpop.f32.mrb[0].mxu0
      %1252 = vmatprep.mubr.f32.mxu0 %v314
      %1253 = vmatmul.mubr.f32.gmra.mrb[0].mxu0 %v313
      %v1254 = vpop.f32.mrb[0].mxu0
      %v1255 = vadd.f32 %v1100, %v1254
      %v1256 = vpop.f32.mrb[0].mxu0
      %1257 = vmatprep.mubr.f32.mxu0 %v327
      %1258 = vmatmul.mubr.f32.gmra.mrb[0].mxu0 %v326
      %v1259 = vpop.f32.mrb[0].mxu0
      %v1260 = vadd.f32 %v1105, %v1259
      %v1261 = vpop.f32.mrb[0].mxu0
      %1262 = vmatprep.mubr.f32.mxu0 %v340
      %1263 = vmatmul.mubr.f32.gmra.mrb[0].mxu0 %v339
      %v1264 = vpop.f32.mrb[0].mxu0
      %v1265 = vadd.f32 %v1110, %v1264
      %v1266 = vpop.f32.mrb[0].mxu0
      %1267 = vmatprep.mubr.f32.mxu0 %v353
      %1268 = vmatmul.mubr.f32.gmra.mrb[0].mxu0 %v352
      %v1269 = vpop.f32.mrb[0].mxu0
      %v1270 = vadd.f32 %v1115, %v1269
      %v1271 = vpop.f32.mrb[0].mxu0
      %1272 = vmatprep.mubr.f32.mxu0 %v366
      %1273 = vmatmul.mubr.f32.gmra.mrb[0].mxu0 %v365
      %v1274 = vpop.f32.mrb[0].mxu0
      %v1275 = vadd.f32 %v1120, %v1274
      %v1276 = vpop.f32.mrb[0].mxu0
      %1277 = vmatprep.mubr.f32.mxu0 %v379
      %1278 = vmatmul.mubr.f32.gmra.mrb[0].mxu0 %v378
      %v1279 = vpop.f32.mrb[0].mxu0
      %v1280 = vadd.f32 %v1125, %v1279
      %v1281 = vpop.f32.mrb[0].mxu0
      %1282 = vmatprep.mubr.f32.mxu0 %v392
      %1283 = vmatmul.mubr.f32.gmra.mrb[0].mxu0 %v391
      %v1284 = vpop.f32.mrb[0].mxu0
      %v1285 = vadd.f32 %v1130, %v1284
      %v1286 = vpop.f32.mrb[0].mxu0
      %1287 = vmatprep.mubr.f32.mxu0 %v405
      %1288 = vmatmul.mubr.f32.gmra.mrb[0].mxu0 %v404
      %v1289 = vpop.f32.mrb[0].mxu0
      %v1290 = vadd.f32 %v1135, %v1289
      %v1291 = vpop.f32.mrb[0].mxu0
      %1292 = vdwg.mxu0
      %1293 = vmatprep.subr.mxu0 0.0
      %1294 = vmatpush1.msra.mxu0 %v539
      %1295 = vmatprep.subr.mxu0 0.0
      %1296 = vmatpush1.msra.mxu0 %v540
      %1297 = vmatprep.subr.mxu0 0.0
      %1298 = vmatpush1.msra.mxu0 %v541
      %1299 = vmatprep.subr.mxu0 0.0
      %1300 = vmatpush1.msra.mxu0 %v542
      %1301 = vmatprep.subr.mxu0 0.0
      %1302 = vmatpush1.msra.mxu0 %v543
      %1303 = vmatprep.subr.mxu0 0.0
      %1304 = vmatpush1.msra.mxu0 %v544
      %1305 = vmatprep.subr.mxu0 0.0
      %1306 = vmatpush1.msra.mxu0 %v545
      %1307 = vmatprep.subr.mxu0 0.0
      %1308 = vmatpush1.msra.mxu0 %v546
      %1309 = vmatprep.subr.mxu0 0.0
      %1310 = vmatpush1.msra.mxu0 %v547
      %1311 = vmatprep.subr.mxu0 0.0
      %1312 = vmatpush1.msra.mxu0 %v548
      %1313 = vmatprep.subr.mxu0 0.0
      %1314 = vmatpush1.msra.mxu0 %v549
      %1315 = vmatprep.subr.mxu0 0.0
      %1316 = vmatpush1.msra.mxu0 %v550
      %1317 = vmatprep.subr.mxu0 0.0
      %1318 = vmatpush1.msra.mxu0 %v551
      %1319 = vmatprep.subr.mxu0 0.0
      %1320 = vmatpush1.msra.mxu0 %v552
      %1321 = vmatprep.subr.mxu0 0.0
      %1322 = vmatpush1.msra.mxu0 %v553
      %1323 = vmatprep.subr.mxu0 0.0
      %1324 = vmatpush1.msra.mxu0 %v554
      %1325 = vmatprep.subr.mxu0 0.0
      %1326 = vmatpush1.msra.mxu0 %v555
      %1327 = vmatprep.subr.mxu0 0.0
      %1328 = vmatpush1.msra.mxu0 %v556
      %1329 = vmatprep.subr.mxu0 0.0
      %1330 = vmatpush1.msra.mxu0 %v557
      %1331 = vmatprep.subr.mxu0 0.0
      %1332 = vmatpush1.msra.mxu0 %v558
      %1333 = vmatprep.subr.mxu0 0.0
      %1334 = vmatpush1.msra.mxu0 %v559
      %1335 = vmatprep.subr.mxu0 0.0
      %1336 = vmatpush1.msra.mxu0 %v560
      %1337 = vmatprep.subr.mxu0 0.0
      %1338 = vmatpush1.msra.mxu0 %v561
      %1339 = vmatprep.subr.mxu0 0.0
      %1340 = vmatpush1.msra.mxu0 %v562
      %1341 = vmatprep.subr.mxu0 0.0
      %1342 = vmatpush1.msra.mxu0 %v563
      %1343 = vmatprep.subr.mxu0 0.0
      %1344 = vmatpush1.msra.mxu0 %v564
      %1345 = vmatprep.subr.mxu0 0.0
      %1346 = vmatpush1.msra.mxu0 %v565
      %1347 = vmatprep.subr.mxu0 0.0
      %1348 = vmatpush1.msra.mxu0 %v566
      %1349 = vmatprep.subr.mxu0 0.0
      %1350 = vmatpush1.msra.mxu0 %v567
      %1351 = vmatprep.subr.mxu0 0.0
      %1352 = vmatpush1.msra.mxu0 %v568
      %1353 = vmatprep.subr.mxu0 0.0
      %1354 = vmatpush1.msra.mxu0 %v569
      %1355 = vmatprep.subr.mxu0 0.0
      %1356 = vmatpush1.msra.mxu0 %v570
      %1357 = vmatprep.mubr.f32.mxu0 %v186
      %1358 = vmatmul.mubr.f32.gmra.mrb[0].mxu0 %v185
      %v1359 = vpop.f32.mrb[0].mxu0
      %v1360 = vadd.f32 %v1205, %v1359
      %v1361 = vpop.f32.mrb[0].mxu0
      %1362 = vmatprep.mubr.f32.mxu0 %v199
      %1363 = vmatmul.mubr.f32.gmra.mrb[0].mxu0 %v198
      %v1364 = vpop.f32.mrb[0].mxu0
      %v1365 = vadd.f32 %v1210, %v1364
      %v1366 = vpop.f32.mrb[0].mxu0
      %1367 = vmatprep.mubr.f32.mxu0 %v212
      %1368 = vmatmul.mubr.f32.gmra.mrb[0].mxu0 %v211
      %v1369 = vpop.f32.mrb[0].mxu0
      %v1370 = vadd.f32 %v1215, %v1369
      %v1371 = vpop.f32.mrb[0].mxu0
      %1372 = vmatprep.mubr.f32.mxu0 %v225
      %1373 = vmatmul.mubr.f32.gmra.mrb[0].mxu0 %v224
      %v1374 = vpop.f32.mrb[0].mxu0
      %v1375 = vadd.f32 %v1220, %v1374
      %v1376 = vpop.f32.mrb[0].mxu0
      %1377 = vmatprep.mubr.f32.mxu0 %v238
      %1378 = vmatmul.mubr.f32.gmra.mrb[0].mxu0 %v237
      %v1379 = vpop.f32.mrb[0].mxu0
      %v1380 = vadd.f32 %v1225, %v1379
      %v1381 = vpop.f32.mrb[0].mxu0
      %1382 = vmatprep.mubr.f32.mxu0 %v251
      %1383 = vmatmul.mubr.f32.gmra.mrb[0].mxu0 %v250
      %v1384 = vpop.f32.mrb[0].mxu0
      %v1385 = vadd.f32 %v1230, %v1384
      %v1386 = vpop.f32.mrb[0].mxu0
      %1387 = vmatprep.mubr.f32.mxu0 %v264
      %1388 = vmatmul.mubr.f32.gmra.mrb[0].mxu0 %v263
      %v1389 = vpop.f32.mrb[0].mxu0
      %v1390 = vadd.f32 %v1235, %v1389
      %v1391 = vpop.f32.mrb[0].mxu0
      %1392 = vmatprep.mubr.f32.mxu0 %v277
      %1393 = vmatmul.mubr.f32.gmra.mrb[0].mxu0 %v276
      %v1394 = vpop.f32.mrb[0].mxu0
      %v1395 = vadd.f32 %v1240, %v1394
      %v1396 = vpop.f32.mrb[0].mxu0
      %1397 = vmatprep.mubr.f32.mxu0 %v290
      %1398 = vmatmul.mubr.f32.gmra.mrb[0].mxu0 %v289
      %v1399 = vpop.f32.mrb[0].mxu0
      %v1400 = vadd.f32 %v1245, %v1399
      %v1401 = vpop.f32.mrb[0].mxu0
      %1402 = vmatprep.mubr.f32.mxu0 %v303
      %1403 = vmatmul.mubr.f32.gmra.mrb[0].mxu0 %v302
      %v1404 = vpop.f32.mrb[0].mxu0
      %v1405 = vadd.f32 %v1250, %v1404
      %v1406 = vpop.f32.mrb[0].mxu0
      %1407 = vmatprep.mubr.f32.mxu0 %v316
      %1408 = vmatmul.mubr.f32.gmra.mrb[0].mxu0 %v315
      %v1409 = vpop.f32.mrb[0].mxu0
      %v1410 = vadd.f32 %v1255, %v1409
      %v1411 = vpop.f32.mrb[0].mxu0
      %1412 = vmatprep.mubr.f32.mxu0 %v329
      %1413 = vmatmul.mubr.f32.gmra.mrb[0].mxu0 %v328
      %v1414 = vpop.f32.mrb[0].mxu0
      %v1415 = vadd.f32 %v1260, %v1414
      %v1416 = vpop.f32.mrb[0].mxu0
      %1417 = vmatprep.mubr.f32.mxu0 %v342
      %1418 = vmatmul.mubr.f32.gmra.mrb[0].mxu0 %v341
      %v1419 = vpop.f32.mrb[0].mxu0
      %v1420 = vadd.f32 %v1265, %v1419
      %v1421 = vpop.f32.mrb[0].mxu0
      %1422 = vmatprep.mubr.f32.mxu0 %v355
      %1423 = vmatmul.mubr.f32.gmra.mrb[0].mxu0 %v354
      %v1424 = vpop.f32.mrb[0].mxu0
      %v1425 = vadd.f32 %v1270, %v1424
      %v1426 = vpop.f32.mrb[0].mxu0
      %1427 = vmatprep.mubr.f32.mxu0 %v368
      %1428 = vmatmul.mubr.f32.gmra.mrb[0].mxu0 %v367
      %v1429 = vpop.f32.mrb[0].mxu0
      %v1430 = vadd.f32 %v1275, %v1429
      %v1431 = vpop.f32.mrb[0].mxu0
      %1432 = vmatprep.mubr.f32.mxu0 %v381
      %1433 = vmatmul.mubr.f32.gmra.mrb[0].mxu0 %v380
      %v1434 = vpop.f32.mrb[0].mxu0
      %v1435 = vadd.f32 %v1280, %v1434
      %v1436 = vpop.f32.mrb[0].mxu0
      %1437 = vmatprep.mubr.f32.mxu0 %v394
      %1438 = vmatmul.mubr.f32.gmra.mrb[0].mxu0 %v393
      %v1439 = vpop.f32.mrb[0].mxu0
      %v1440 = vadd.f32 %v1285, %v1439
      %v1441 = vpop.f32.mrb[0].mxu0
      %1442 = vmatprep.mubr.f32.mxu0 %v407
      %1443 = vmatmul.mubr.f32.gmra.mrb[0].mxu0 %v406
      %v1444 = vpop.f32.mrb[0].mxu0
      %v1445 = vadd.f32 %v1290, %v1444
      %v1446 = vpop.f32.mrb[0].mxu0
      %1447 = vdwg.mxu0
      %1448 = vmatprep.subr.mxu0 0.0
      %1449 = vmatpush1.msra.mxu0 %v571
      %1450 = vmatprep.subr.mxu0 0.0
      %1451 = vmatpush1.msra.mxu0 %v572
      %1452 = vmatprep.subr.mxu0 0.0
      %1453 = vmatpush1.msra.mxu0 %v573
      %1454 = vmatprep.subr.mxu0 0.0
      %1455 = vmatpush1.msra.mxu0 %v574
      %1456 = vmatprep.subr.mxu0 0.0
      %1457 = vmatpush1.msra.mxu0 %v575
      %1458 = vmatprep.subr.mxu0 0.0
      %1459 = vmatpush1.msra.mxu0 %v576
      %1460 = vmatprep.subr.mxu0 0.0
      %1461 = vmatpush1.msra.mxu0 %v577
      %1462 = vmatprep.subr.mxu0 0.0
      %1463 = vmatpush1.msra.mxu0 %v578
      %1464 = vmatprep.subr.mxu0 0.0
      %1465 = vmatpush1.msra.mxu0 %v579
      %1466 = vmatprep.subr.mxu0 0.0
      %1467 = vmatpush1.msra.mxu0 %v580
      %1468 = vmatprep.subr.mxu0 0.0
      %1469 = vmatpush1.msra.mxu0 %v581
      %1470 = vmatprep.subr.mxu0 0.0
      %1471 = vmatpush1.msra.mxu0 %v582
      %1472 = vmatprep.subr.mxu0 0.0
      %1473 = vmatpush1.msra.mxu0 %v583
      %1474 = vmatprep.subr.mxu0 0.0
      %1475 = vmatpush1.msra.mxu0 %v584
      %1476 = vmatprep.subr.mxu0 0.0
      %1477 = vmatpush1.msra.mxu0 %v585
      %1478 = vmatprep.subr.mxu0 0.0
      %1479 = vmatpush1.msra.mxu0 %v586
      %1480 = vmatprep.subr.mxu0 0.0
      %1481 = vmatpush1.msra.mxu0 %v587
      %1482 = vmatprep.subr.mxu0 0.0
      %1483 = vmatpush1.msra.mxu0 %v588
      %1484 = vmatprep.subr.mxu0 0.0
      %1485 = vmatpush1.msra.mxu0 %v589
      %1486 = vmatprep.subr.mxu0 0.0
      %1487 = vmatpush1.msra.mxu0 %v590
      %1488 = vmatprep.subr.mxu0 0.0
      %1489 = vmatpush1.msra.mxu0 %v591
      %1490 = vmatprep.subr.mxu0 0.0
      %1491 = vmatpush1.msra.mxu0 %v592
      %1492 = vmatprep.subr.mxu0 0.0
      %1493 = vmatpush1.msra.mxu0 %v593
      %1494 = vmatprep.subr.mxu0 0.0
      %1495 = vmatpush1.msra.mxu0 %v594
      %1496 = vmatprep.subr.mxu0 0.0
      %1497 = vmatpush1.msra.mxu0 %v595
      %1498 = vmatprep.subr.mxu0 0.0
      %1499 = vmatpush1.msra.mxu0 %v596
      %1500 = vmatprep.subr.mxu0 0.0
      %1501 = vmatpush1.msra.mxu0 %v597
      %1502 = vmatprep.subr.mxu0 0.0
      %1503 = vmatpush1.msra.mxu0 %v598
      %1504 = vmatprep.subr.mxu0 0.0
      %1505 = vmatpush1.msra.mxu0 %v599
      %1506 = vmatprep.subr.mxu0 0.0
      %1507 = vmatpush1.msra.mxu0 %v600
      %1508 = vmatprep.subr.mxu0 0.0
      %1509 = vmatpush1.msra.mxu0 %v601
      %1510 = vmatprep.subr.mxu0 0.0
      %1511 = vmatpush1.msra.mxu0 %v602
      %1512 = vmatprep.mubr.f32.mxu0 %v188
      %1513 = vmatmul.mubr.f32.gmra.mrb[0].mxu0 %v187
      %v1514 = vpop.f32.mrb[0].mxu0
      %v1515 = vadd.f32 %v1360, %v1514
      %v1516 = vpop.f32.mrb[0].mxu0
      %1517 = vmatprep.mubr.f32.mxu0 %v201
      %1518 = vmatmul.mubr.f32.gmra.mrb[0].mxu0 %v200
      %v1519 = vpop.f32.mrb[0].mxu0
      %v1520 = vadd.f32 %v1365, %v1519
      %v1521 = vpop.f32.mrb[0].mxu0
      %1522 = vmatprep.mubr.f32.mxu0 %v214
      %1523 = vmatmul.mubr.f32.gmra.mrb[0].mxu0 %v213
      %v1524 = vpop.f32.mrb[0].mxu0
      %v1525 = vadd.f32 %v1370, %v1524
      %v1526 = vpop.f32.mrb[0].mxu0
      %1527 = vmatprep.mubr.f32.mxu0 %v227
      %1528 = vmatmul.mubr.f32.gmra.mrb[0].mxu0 %v226
      %v1529 = vpop.f32.mrb[0].mxu0
      %v1530 = vadd.f32 %v1375, %v1529
      %v1531 = vpop.f32.mrb[0].mxu0
      %1532 = vmatprep.mubr.f32.mxu0 %v240
      %1533 = vmatmul.mubr.f32.gmra.mrb[0].mxu0 %v239
      %v1534 = vpop.f32.mrb[0].mxu0
      %v1535 = vadd.f32 %v1380, %v1534
      %v1536 = vpop.f32.mrb[0].mxu0
      %1537 = vmatprep.mubr.f32.mxu0 %v253
      %1538 = vmatmul.mubr.f32.gmra.mrb[0].mxu0 %v252
      %v1539 = vpop.f32.mrb[0].mxu0
      %v1540 = vadd.f32 %v1385, %v1539
      %v1541 = vpop.f32.mrb[0].mxu0
      %1542 = vmatprep.mubr.f32.mxu0 %v266
      %1543 = vmatmul.mubr.f32.gmra.mrb[0].mxu0 %v265
      %v1544 = vpop.f32.mrb[0].mxu0
      %v1545 = vadd.f32 %v1390, %v1544
      %v1546 = vpop.f32.mrb[0].mxu0
      %1547 = vmatprep.mubr.f32.mxu0 %v279
      %1548 = vmatmul.mubr.f32.gmra.mrb[0].mxu0 %v278
      %v1549 = vpop.f32.mrb[0].mxu0
      %v1550 = vadd.f32 %v1395, %v1549
      %v1551 = vpop.f32.mrb[0].mxu0
      %1552 = vmatprep.mubr.f32.mxu0 %v292
      %1553 = vmatmul.mubr.f32.gmra.mrb[0].mxu0 %v291
      %v1554 = vpop.f32.mrb[0].mxu0
      %v1555 = vadd.f32 %v1400, %v1554
      %v1556 = vpop.f32.mrb[0].mxu0
      %1557 = vmatprep.mubr.f32.mxu0 %v305
      %1558 = vmatmul.mubr.f32.gmra.mrb[0].mxu0 %v304
      %v1559 = vpop.f32.mrb[0].mxu0
      %v1560 = vadd.f32 %v1405, %v1559
      %v1561 = vpop.f32.mrb[0].mxu0
      %1562 = vmatprep.mubr.f32.mxu0 %v318
      %1563 = vmatmul.mubr.f32.gmra.mrb[0].mxu0 %v317
      %v1564 = vpop.f32.mrb[0].mxu0
      %v1565 = vadd.f32 %v1410, %v1564
      %v1566 = vpop.f32.mrb[0].mxu0
      %1567 = vmatprep.mubr.f32.mxu0 %v331
      %1568 = vmatmul.mubr.f32.gmra.mrb[0].mxu0 %v330
      %v1569 = vpop.f32.mrb[0].mxu0
      %v1570 = vadd.f32 %v1415, %v1569
      %v1571 = vpop.f32.mrb[0].mxu0
      %1572 = vmatprep.mubr.f32.mxu0 %v344
      %1573 = vmatmul.mubr.f32.gmra.mrb[0].mxu0 %v343
      %v1574 = vpop.f32.mrb[0].mxu0
      %v1575 = vadd.f32 %v1420, %v1574
      %v1576 = vpop.f32.mrb[0].mxu0
      %1577 = vmatprep.mubr.f32.mxu0 %v357
      %1578 = vmatmul.mubr.f32.gmra.mrb[0].mxu0 %v356
      %v1579 = vpop.f32.mrb[0].mxu0
      %v1580 = vadd.f32 %v1425, %v1579
      %v1581 = vpop.f32.mrb[0].mxu0
      %1582 = vmatprep.mubr.f32.mxu0 %v370
      %1583 = vmatmul.mubr.f32.gmra.mrb[0].mxu0 %v369
      %v1584 = vpop.f32.mrb[0].mxu0
      %v1585 = vadd.f32 %v1430, %v1584
      %v1586 = vpop.f32.mrb[0].mxu0
      %1587 = vmatprep.mubr.f32.mxu0 %v383
      %1588 = vmatmul.mubr.f32.gmra.mrb[0].mxu0 %v382
      %v1589 = vpop.f32.mrb[0].mxu0
      %v1590 = vadd.f32 %v1435, %v1589
      %v1591 = vpop.f32.mrb[0].mxu0
      %1592 = vmatprep.mubr.f32.mxu0 %v396
      %1593 = vmatmul.mubr.f32.gmra.mrb[0].mxu0 %v395
      %v1594 = vpop.f32.mrb[0].mxu0
      %v1595 = vadd.f32 %v1440, %v1594
      %v1596 = vpop.f32.mrb[0].mxu0
      %1597 = vmatprep.mubr.f32.mxu0 %v409
      %1598 = vmatmul.mubr.f32.gmra.mrb[0].mxu0 %v408
      %v1599 = vpop.f32.mrb[0].mxu0
      %v1600 = vadd.f32 %v1445, %v1599
      %v1601 = vpop.f32.mrb[0].mxu0
      %1602 = vdwg.mxu0
      %1603 = vmatprep.subr.mxu0 0.0
      %1604 = vmatpush1.msra.mxu0 %v603
      %1605 = vmatprep.subr.mxu0 0.0
      %1606 = vmatpush1.msra.mxu0 %v604
      %1607 = vmatprep.subr.mxu0 0.0
      %1608 = vmatpush1.msra.mxu0 %v605
      %1609 = vmatprep.subr.mxu0 0.0
      %1610 = vmatpush1.msra.mxu0 %v606
      %1611 = vmatprep.subr.mxu0 0.0
      %1612 = vmatpush1.msra.mxu0 %v607
      %1613 = vmatprep.subr.mxu0 0.0
      %1614 = vmatpush1.msra.mxu0 %v608
      %1615 = vmatprep.subr.mxu0 0.0
      %1616 = vmatpush1.msra.mxu0 %v609
      %1617 = vmatprep.subr.mxu0 0.0
      %1618 = vmatpush1.msra.mxu0 %v610
      %1619 = vmatprep.subr.mxu0 0.0
      %1620 = vmatpush1.msra.mxu0 0.0
      %1621 = vmatprep.subr.mxu0 0.0
      %1622 = vmatpush1.msra.mxu0 0.0
      %1623 = vmatprep.subr.mxu0 0.0
      %1624 = vmatpush1.msra.mxu0 0.0
      %1625 = vmatprep.subr.mxu0 0.0
      %1626 = vmatpush1.msra.mxu0 0.0
      %1627 = vmatprep.subr.mxu0 0.0
      %1628 = vmatpush1.msra.mxu0 0.0
      %1629 = vmatprep.subr.mxu0 0.0
      %1630 = vmatpush1.msra.mxu0 0.0
      %1631 = vmatprep.subr.mxu0 0.0
      %1632 = vmatpush1.msra.mxu0 0.0
      %1633 = vmatprep.subr.mxu0 0.0
      %1634 = vmatpush1.msra.mxu0 0.0
      %1635 = vmatprep.subr.mxu0 0.0
      %1636 = vmatpush1.msra.mxu0 0.0
      %1637 = vmatprep.subr.mxu0 0.0
      %1638 = vmatpush1.msra.mxu0 0.0
      %1639 = vmatprep.subr.mxu0 0.0
      %1640 = vmatpush1.msra.mxu0 0.0
      %1641 = vmatprep.subr.mxu0 0.0
      %1642 = vmatpush1.msra.mxu0 0.0
      %1643 = vmatprep.subr.mxu0 0.0
      %1644 = vmatpush1.msra.mxu0 0.0
      %1645 = vmatprep.subr.mxu0 0.0
      %1646 = vmatpush1.msra.mxu0 0.0
      %1647 = vmatprep.subr.mxu0 0.0
      %1648 = vmatpush1.msra.mxu0 0.0
      %1649 = vmatprep.subr.mxu0 0.0
      %1650 = vmatpush1.msra.mxu0 0.0
      %1651 = vmatprep.subr.mxu0 0.0
      %1652 = vmatpush1.msra.mxu0 0.0
      %1653 = vmatprep.subr.mxu0 0.0
      %1654 = vmatpush1.msra.mxu0 0.0
      %1655 = vmatprep.subr.mxu0 0.0
      %1656 = vmatpush1.msra.mxu0 0.0
      %1657 = vmatprep.subr.mxu0 0.0
      %1658 = vmatpush1.msra.mxu0 0.0
      %1659 = vmatprep.subr.mxu0 0.0
      %1660 = vmatpush1.msra.mxu0 0.0
      %1661 = vmatprep.subr.mxu0 0.0
      %1662 = vmatpush1.msra.mxu0 0.0
      %1663 = vmatprep.subr.mxu0 0.0
      %1664 = vmatpush1.msra.mxu0 0.0
      %1665 = vmatprep.subr.mxu0 0.0
      %1666 = vmatpush1.msra.mxu0 0.0
      %1667 = vmatprep.mubr.f32.mxu0 0.0
      %1668 = vmatmul.mubr.f32.gmra.mrb[0].mxu0 %v620
      %v1669 = vpop.f32.mrb[0].mxu0
      %v1670 = vadd.f32 %v1515, %v1669
      %v1671 = vpop.f32.mrb[0].mxu0
      %1672 = vmatprep.mubr.f32.mxu0 0.0
      %1673 = vmatmul.mubr.f32.gmra.mrb[0].mxu0 %v623
      %v1674 = vpop.f32.mrb[0].mxu0
      %v1675 = vadd.f32 %v1520, %v1674
      %v1676 = vpop.f32.mrb[0].mxu0
      %1677 = vmatprep.mubr.f32.mxu0 0.0
      %1678 = vmatmul.mubr.f32.gmra.mrb[0].mxu0 %v626
      %v1679 = vpop.f32.mrb[0].mxu0
      %v1680 = vadd.f32 %v1525, %v1679
      %v1681 = vpop.f32.mrb[0].mxu0
      %1682 = vmatprep.mubr.f32.mxu0 0.0
      %1683 = vmatmul.mubr.f32.gmra.mrb[0].mxu0 %v629
      %v1684 = vpop.f32.mrb[0].mxu0
      %v1685 = vadd.f32 %v1530, %v1684
      %v1686 = vpop.f32.mrb[0].mxu0
      %1687 = vmatprep.mubr.f32.mxu0 0.0
      %1688 = vmatmul.mubr.f32.gmra.mrb[0].mxu0 %v632
      %v1689 = vpop.f32.mrb[0].mxu0
      %v1690 = vadd.f32 %v1535, %v1689
      %v1691 = vpop.f32.mrb[0].mxu0
      %1692 = vmatprep.mubr.f32.mxu0 0.0
      %1693 = vmatmul.mubr.f32.gmra.mrb[0].mxu0 %v635
      %v1694 = vpop.f32.mrb[0].mxu0
      %v1695 = vadd.f32 %v1540, %v1694
      %v1696 = vpop.f32.mrb[0].mxu0
      %1697 = vmatprep.mubr.f32.mxu0 0.0
      %1698 = vmatmul.mubr.f32.gmra.mrb[0].mxu0 %v638
      %v1699 = vpop.f32.mrb[0].mxu0
      %v1700 = vadd.f32 %v1545, %v1699
      %v1701 = vpop.f32.mrb[0].mxu0
      %1702 = vmatprep.mubr.f32.mxu0 0.0
      %1703 = vmatmul.mubr.f32.gmra.mrb[0].mxu0 %v641
      %v1704 = vpop.f32.mrb[0].mxu0
      %v1705 = vadd.f32 %v1550, %v1704
      %v1706 = vpop.f32.mrb[0].mxu0
      %1707 = vmatprep.mubr.f32.mxu0 0.0
      %1708 = vmatmul.mubr.f32.gmra.mrb[0].mxu0 %v644
      %v1709 = vpop.f32.mrb[0].mxu0
      %v1710 = vadd.f32 %v1555, %v1709
      %v1711 = vpop.f32.mrb[0].mxu0
      %1712 = vmatprep.mubr.f32.mxu0 0.0
      %1713 = vmatmul.mubr.f32.gmra.mrb[0].mxu0 %v647
      %v1714 = vpop.f32.mrb[0].mxu0
      %v1715 = vadd.f32 %v1560, %v1714
      %v1716 = vpop.f32.mrb[0].mxu0
      %1717 = vmatprep.mubr.f32.mxu0 0.0
      %1718 = vmatmul.mubr.f32.gmra.mrb[0].mxu0 %v650
      %v1719 = vpop.f32.mrb[0].mxu0
      %v1720 = vadd.f32 %v1565, %v1719
      %v1721 = vpop.f32.mrb[0].mxu0
      %1722 = vmatprep.mubr.f32.mxu0 0.0
      %1723 = vmatmul.mubr.f32.gmra.mrb[0].mxu0 %v653
      %v1724 = vpop.f32.mrb[0].mxu0
      %v1725 = vadd.f32 %v1570, %v1724
      %v1726 = vpop.f32.mrb[0].mxu0
      %1727 = vmatprep.mubr.f32.mxu0 0.0
      %1728 = vmatmul.mubr.f32.gmra.mrb[0].mxu0 %v656
      %v1729 = vpop.f32.mrb[0].mxu0
      %v1730 = vadd.f32 %v1575, %v1729
      %v1731 = vpop.f32.mrb[0].mxu0
      %1732 = vmatprep.mubr.f32.mxu0 0.0
      %1733 = vmatmul.mubr.f32.gmra.mrb[0].mxu0 %v659
      %v1734 = vpop.f32.mrb[0].mxu0
      %v1735 = vadd.f32 %v1580, %v1734
      %v1736 = vpop.f32.mrb[0].mxu0
      %1737 = vmatprep.mubr.f32.mxu0 0.0
      %1738 = vmatmul.mubr.f32.gmra.mrb[0].mxu0 %v662
      %v1739 = vpop.f32.mrb[0].mxu0
      %v1740 = vadd.f32 %v1585, %v1739
      %v1741 = vpop.f32.mrb[0].mxu0
      %1742 = vmatprep.mubr.f32.mxu0 0.0
      %1743 = vmatmul.mubr.f32.gmra.mrb[0].mxu0 %v665
      %v1744 = vpop.f32.mrb[0].mxu0
      %v1745 = vadd.f32 %v1590, %v1744
      %v1746 = vpop.f32.mrb[0].mxu0
      %1747 = vmatprep.mubr.f32.mxu0 0.0
      %1748 = vmatmul.mubr.f32.gmra.mrb[0].mxu0 %v668
      %v1749 = vpop.f32.mrb[0].mxu0
      %v1750 = vadd.f32 %v1595, %v1749
      %v1751 = vpop.f32.mrb[0].mxu0
      %1752 = vmatprep.mubr.f32.mxu0 0.0
      %1753 = vmatmul.mubr.f32.gmra.mrb[0].mxu0 %v671
      %v1754 = vpop.f32.mrb[0].mxu0
      %v1755 = vadd.f32 %v1600, %v1754
      %v1756 = vpop.f32.mrb[0].mxu0
      %1757 = vdwg.mxu0
      %v1758 = vmax.f32 %v1670, 0.0
      %v1759 = vmax.f32 %v1675, 0.0
      %v1760 = vmax.f32 %v1680, 0.0
      %v1761 = vmax.f32 %v1685, 0.0
      %v1762 = vmax.f32 %v1690, 0.0
      %v1763 = vmax.f32 %v1695, 0.0
      %v1764 = vmax.f32 %v1700, 0.0
      %v1765 = vmax.f32 %v1705, 0.0
      %v1766 = vmax.f32 %v1710, 0.0
      %v1767 = vmax.f32 %v1715, 0.0
      %v1768 = vmax.f32 %v1720, 0.0
      %v1769 = vmax.f32 %v1725, 0.0
      %v1770 = vmax.f32 %v1730, 0.0
      %v1771 = vmax.f32 %v1735, 0.0
      %v1772 = vmax.f32 %v1740, 0.0
      %v1773 = vmax.f32 %v1745, 0.0
      %v1774 = vmax.f32 %v1750, 0.0
      %v1775 = vmax.f32 %v1755, 0.0
      %1776 = vst [vmem:[%s175] sm:$0xff] %v1758
      %1777 = vst [vmem:[%s175 + $0x8] sm:$0xff] %v1759
      %1778 = vst [vmem:[%s175 + $0x10] sm:$0xff] %v1760
      %1779 = vst [vmem:[%s175 + $0x18] sm:$0xff] %v1761
      %1780 = vst [vmem:[%s175 + $0x20] sm:$0xff] %v1762
      %1781 = vst [vmem:[%s175 + $0x28] sm:$0xff] %v1763
      %1782 = vst [vmem:[%s175 + $0x30] sm:$0xff] %v1764
      %1783 = vst [vmem:[%s175 + $0x38] sm:$0xff] %v1765
      %1784 = vst [vmem:[%s175 + $0x40] sm:$0xff] %v1766
      %1785 = vst [vmem:[%s175 + $0x48] sm:$0xff] %v1767
      %1786 = vst [vmem:[%s175 + $0x50] sm:$0xff] %v1768
      %1787 = vst [vmem:[%s175 + $0x58] sm:$0xff] %v1769
      %1788 = vst [vmem:[%s175 + $0x60] sm:$0xff] %v1770
      %1789 = vst [vmem:[%s175 + $0x68] sm:$0xff] %v1771
      %1790 = vst [vmem:[%s175 + $0x70] sm:$0xff] %v1772
      %1791 = vst [vmem:[%s175 + $0x78] sm:$0xff] %v1773
      %1792 = vst [vmem:[%s175 + $0x80] sm:$0xff] %v1774
      %1793 = vst [vmem:[%s175 + $0x88] sm:$0xff] %v1775
      %s1794 = smul.u32 18, %s14
      %p1795 = scmp.lt.s32.totalorder %s1794, 35
      %s1796 = scalar_select %p1795, %s1794, 35
      %s1797 = smul.addr %s1796, 8
      %s1798 = scalar_lea.vmem %s3, %s1797
      // Predicated region
      $region33: #{dqn_forward.5} parent=31 // pred_check
        %p1799 = pneg %p100
      $region34: #{dqn_forward.5} parent=31 // pred_check_branch
        %1801 = sbr.rel (%p1799) target = $region36
      $region35: #{dqn_forward.5} parent=31 // pred_region
        %s1802 = smul.u32 18, %s14
      $region36: #{dqn_forward.5} parent=31 // pred_fallthru
        _
    $region32: #{dqn_forward.5} parent=5 // pred_fallthru
      _
    %p1803 = scmp.le.s32.totalorder 2, %s9
    // Predicated region
    $region37: #{dqn_forward.5} parent=5 // pred_check
      %p1804 = pneg %p1803
    $region38: #{dqn_forward.5} parent=5 // pred_check_branch
      %1806 = sbr.rel (%p1804) target = $region40
    $region39: #{dqn_forward.5} parent=5 // pred_region
      %s1807 = ssub.s32 %s9, 2
      // Predicated region
      $region41: #{dqn_forward.5} parent=39 // pred_check
        %p1808 = pneg %p106
      $region42: #{dqn_forward.5} parent=39 // pred_check_branch
        %1810 = sbr.rel (%p1808) target = $region44
      $region43: #{dqn_forward.5} parent=39 // pred_region
        %s1811 = smul.u32 18, %s15
        %p1812 = scmp.lt.s32.totalorder %s1811, 35
        %s1813 = scalar_select %p1812, %s1811, 35
        %s1814 = smul.addr %s1813, 8
        %s1815 = scalar_lea.vmem %s3, %s1814
      $region44: #{dqn_forward.5} parent=39 // pred_fallthru
        _
    $region40: #{dqn_forward.5} parent=5 // pred_fallthru
      _
  $region6: #{dqn_forward.5} parent=0 // loop_footer
    %s13 = sadd.s32 1, %s9
  $region7: #{dqn_forward.5} parent=0 // loop_footer_branch
    %8 = sbr.rel target = $region3
  $region8: #{dqn_forward.5} parent=0 // loop_exit
    _

// kernel: dqn_forward.6
$region0: #{dqn_forward.6}
  #allocation0 [shape = 'u32[]', space=smem, size = 0x4, offset = 0x4, fixed_abs, tag = 'smem constant byte address 0x4 - core index']
  #allocation1 [shape = 'u32[144,128]{1,0:T(1,128)}', space=vmem, size = 0x12000, scoped, tag = 'internal scratch']
  %s0 = inlined_call_operand.vmem [shape: f32[288,1152], index: 0, kind: input, shape index: {}]
  %s1 = inlined_call_operand.vmem [shape: f32[1152,128], index: 1, kind: input, shape index: {}]
  %s2 = inlined_call_operand.vmem [shape: f32[1,128], index: 2, kind: input, shape index: {}]
  %s3 = inlined_call_operand.vmem [shape: f32[288,128], index: 3, kind: output, shape index: {}]
  %s4 = sld [smem:[#allocation0]]
  $region45: #{dqn_forward.6} parent=0
    _
  %s6 = ssub.s32 1, %s4
  %s7 = scalar_select 0, %s6, %s4
  loop: start=0, step=1, limit=4
  $region2: #{dqn_forward.6} parent=0 // loop_pre_header
    _
  $region3: #{dqn_forward.6} parent=0 // loop_header
    %s9 = sphi 0, %s13
    %p10 = scmp.ge.s32.totalorder %s9, 4
    %s19 = sphi 0, %s21
    %s22 = sphi 0, %s19
    %s23 = sphi 0, %s22
    %s39 = sphi 0, %s23
    %s43 = sphi 0, %s43
    %s45 = sphi 0, %s43
    %s46 = sphi 0, %s45
    %s60 = sphi 0, %s46
    %s64 = sphi 0, %s64
    %s66 = sphi 0, %s64
    %s67 = sphi 0, %s66
    %s81 = sphi 0, %s67
    %s87 = sphi 0, %s89
    %s90 = sphi 0, %s87
    %s91 = sphi 0, %s90
    %s107 = sphi 0, %s91
  $region4: #{dqn_forward.6} parent=0 // loop_header_branch
    %12 = sbr.rel (%p10) target = $region8
  $region5: #{dqn_forward.6} parent=0 // loop_body
    %s14 = ssub.s32 %s9, 1
    %s15 = ssub.s32 %s9, 2
    %s16 = sadd.s32 %s9, 1
    %s17 = ssub.s32 %s9, %s16
    %p18 = scmp.eq.s32.totalorder %s17, 0
    %s20 = sadd.s32 %s19, 1
    %s21 = scalar_select %p18, %s19, %s20
    %p24 = pneg %p18
    %p25 = scmp.eq.s32.totalorder %s9, 1
    %p26 = por %p24, %p25
    %p27 = scmp.ne.s32.totalorder %s19, %s22
    %p28 = scmp.eq.s32.totalorder %s9, 0
    %p29 = por %p27, %p28
    %p30 = scmp.ne.s32.totalorder %s19, %s22
    %p31 = scmp.eq.s32.totalorder %s14, 1
    %p32 = por %p30, %p31
    %p33 = scmp.ne.s32.totalorder %s22, %s23
    %p34 = scmp.eq.s32.totalorder %s14, 0
    %p35 = por %p33, %p34
    %p36 = scmp.ne.s32.totalorder %s22, %s23
    %p37 = scmp.eq.s32.totalorder %s15, 1
    %p38 = por %p36, %p37
    %p40 = scmp.ne.s32.totalorder %s23, %s39
    %p41 = scmp.eq.s32.totalorder %s15, 0
    %p42 = por %p40, %p41
    %s44 = sadd.s32 %s43, 1
    %p47 = scmp.eq.s32.totalorder %s9, 1
    %p48 = scmp.ne.s32.totalorder %s43, %s45
    %p49 = scmp.eq.s32.totalorder %s9, 0
    %p50 = por %p48, %p49
    %p51 = scmp.ne.s32.totalorder %s43, %s45
    %p52 = scmp.eq.s32.totalorder %s14, 1
    %p53 = por %p51, %p52
    %p54 = scmp.ne.s32.totalorder %s45, %s46
    %p55 = scmp.eq.s32.totalorder %s14, 0
    %p56 = por %p54, %p55
    %p57 = scmp.ne.s32.totalorder %s45, %s46
    %p58 = scmp.eq.s32.totalorder %s15, 1
    %p59 = por %p57, %p58
    %p61 = scmp.ne.s32.totalorder %s46, %s60
    %p62 = scmp.eq.s32.totalorder %s15, 0
    %p63 = por %p61, %p62
    %s65 = sadd.s32 %s64, 1
    %p68 = scmp.eq.s32.totalorder %s9, 1
    %p69 = scmp.ne.s32.totalorder %s64, %s66
    %p70 = scmp.eq.s32.totalorder %s9, 0
    %p71 = por %p69, %p70
    %p72 = scmp.ne.s32.totalorder %s64, %s66
    %p73 = scmp.eq.s32.totalorder %s14, 1
    %p74 = por %p72, %p73
    %p75 = scmp.ne.s32.totalorder %s66, %s67
    %p76 = scmp.eq.s32.totalorder %s14, 0
    %p77 = por %p75, %p76
    %p78 = scmp.ne.s32.totalorder %s66, %s67
    %p79 = scmp.eq.s32.totalorder %s15, 1
    %p80 = por %p78, %p79
    %p82 = scmp.ne.s32.totalorder %s67, %s81
    %p83 = scmp.eq.s32.totalorder %s15, 0
    %p84 = por %p82, %p83
    %s85 = ssub.s32 %s9, %s16
    %p86 = scmp.eq.s32.totalorder %s85, 0
    %s88 = sadd.s32 %s87, 1
    %s89 = scalar_select %p86, %s87, %s88
    %p92 = pneg %p86
    %p93 = scmp.eq.s32.totalorder %s9, 1
    %p94 = por %p92, %p93
    %p95 = scmp.ne.s32.totalorder %s87, %s90
    %p96 = scmp.eq.s32.totalorder %s9, 0
    %p97 = por %p95, %p96
    %p98 = scmp.ne.s32.totalorder %s87, %s90
    %p99 = scmp.eq.s32.totalorder %s14, 1
    %p100 = por %p98, %p99
    %p101 = scmp.ne.s32.totalorder %s90, %s91
    %p102 = scmp.eq.s32.totalorder %s14, 0
    %p103 = por %p101, %p102
    %p104 = scmp.ne.s32.totalorder %s90, %s91
    %p105 = scmp.eq.s32.totalorder %s15, 1
    %p106 = por %p104, %p105
    %p108 = scmp.ne.s32.totalorder %s91, %s107
    %p109 = scmp.eq.s32.totalorder %s15, 0
    %p110 = por %p108, %p109
    %p111 = scmp.le.s32.totalorder 1, %s9
    %p112 = scmp.lt.s32.totalorder %s9, 3
    %p113 = pnand %p111, %p112
    %p114 = pneg %p113
    // Predicated region
    $region9: #{dqn_forward.6} parent=5 // pred_check
      _
    $region10: #{dqn_forward.6} parent=5 // pred_check_branch
      %116 = sbr.rel (%p113) target = $region12
    $region11: #{dqn_forward.6} parent=5 // pred_region
      %s117 = ssub.s32 %s9, 1
      // Predicated region
      $region13: #{dqn_forward.6} parent=11 // pred_check
        %p118 = pneg %p56
      $region14: #{dqn_forward.6} parent=11 // pred_check_branch
        %120 = sbr.rel (%p118) target = $region16
      $region15: #{dqn_forward.6} parent=11 // pred_region
        _
      $region16: #{dqn_forward.6} parent=11 // pred_fallthru
        _
      // Predicated region
      $region17: #{dqn_forward.6} parent=11 // pred_check
        %p121 = pneg %p77
      $region18: #{dqn_forward.6} parent=11 // pred_check_branch
        %123 = sbr.rel (%p121) target = $region20
      $region19: #{dqn_forward.6} parent=11 // pred_region
        _
      $region20: #{dqn_forward.6} parent=11 // pred_fallthru
        _
    $region12: #{dqn_forward.6} parent=5 // pred_fallthru
      _
    %p124 = scmp.lt.s32.totalorder %s9, 2
    // Predicated region
    $region21: #{dqn_forward.6} parent=5 // pred_check
      %p125 = pneg %p124
    $region22: #{dqn_forward.6} parent=5 // pred_check_branch
      %127 = sbr.rel (%p125) target = $region24
    $region23: #{dqn_forward.6} parent=5 // pred_region
      // Predicated region
      $region25: #{dqn_forward.6} parent=23 // pred_check
        %p128 = pneg %p29
      $region26: #{dqn_forward.6} parent=23 // pred_check_branch
        %130 = sbr.rel (%p128) target = $region28
      $region27: #{dqn_forward.6} parent=23 // pred_region
        %s131 = smul.u32 18, %s9
        %p132 = scmp.lt.s32.totalorder %s131, 35
        %s133 = scalar_select %p132, %s131, 35
        %s134 = smul.addr %s133, 9
        %s135 = smul.addr %s134, 8
        %s136 = scalar_lea.vmem %s0, %s135
        %s137 = smul.u32 18, %s9
      $region28: #{dqn_forward.6} parent=23 // pred_fallthru
        _
    $region24: #{dqn_forward.6} parent=5 // pred_fallthru
      _
    %p138 = scmp.le.s32.totalorder 1, %s9
    %p139 = scmp.lt.s32.totalorder %s9, 3
    %p140 = pnand %p138, %p139
    %p141 = pneg %p140
    // Predicated region
    $region29: #{dqn_forward.6} parent=5 // pred_check
      _
    $region30: #{dqn_forward.6} parent=5 // pred_check_branch
      %143 = sbr.rel (%p140) target = $region32
    $region31: #{dqn_forward.6} parent=5 // pred_region
      %s144 = ssub.s32 %s9, 1
      %s145 = smul.u32 18, %s14
      %p146 = scmp.lt.s32.totalorder %s145, 35
      %s147 = scalar_select %p146, %s145, 35
      %s148 = smul.addr %s147, 9
      %s149 = smul.addr %s148, 8
      %s150 = scalar_lea.vmem %s0, %s149
      %p151 = pneg %p35
      %p152 = pneg %p32
      %p153 = pneg %p56
      %p154 = pneg %p53
      %p155 = pneg %p77
      %p156 = pneg %p74
      %p157 = pneg %p103
      %p158 = pneg %p100
      %s159 = smul.u32 18, %s14
      %p160 = scmp.lt.s32.totalorder %s159, 35
      %s161 = scalar_select %p160, %s159, 35
      %s162 = smul.addr %s161, 8
      %s163 = scalar_lea.vmem %s3, %s162
      %s164 = smul.u32 18, %s14
      %p165 = scmp.lt.s32.totalorder %s164, 35
      %s166 = scalar_select %p165, %s164, 35
      %s167 = smul.addr %s166, 9
      %s168 = smul.addr %s167, 8
      %s169 = scalar_lea.vmem %s0, %s168
      %s170 = smul.u32 18, %s14
      %s171 = smul.u32 18, %s14
      %p172 = scmp.lt.s32.totalorder %s171, 35
      %s173 = scalar_select %p172, %s171, 35
      %s174 = smul.addr %s173, 8
      %s175 = scalar_lea.vmem %s3, %s174
      %s176 = smul.u32 18, %s14
      %v177 = vld [vmem:[%s169] sm:$0xff]
      %v178 = vld [vmem:[%s169 + $0x8] sm:$0xff]
      %v179 = vld [vmem:[%s169 + $0x10] sm:$0xff]
      %v180 = vld [vmem:[%s169 + $0x18] sm:$0xff]
      %v181 = vld [vmem:[%s169 + $0x20] sm:$0xff]
      %v182 = vld [vmem:[%s169 + $0x28] sm:$0xff]
      %v183 = vld [vmem:[%s169 + $0x30] sm:$0xff]
      %v184 = vld [vmem:[%s169 + $0x38] sm:$0xff]
      %v185 = vld [vmem:[%s169 + $0x40] sm:$0xff]
      %v186 = vld [vmem:[%s169 + $0x48] sm:$0xff]
      %v187 = vld [vmem:[%s169 + $0x50] sm:$0xff]
      %v188 = vld [vmem:[%s169 + $0x58] sm:$0xff]
      %v189 = vld [vmem:[%s169 + $0x60] sm:$0xff]
      %v190 = vld [vmem:[%s169 + $0x68] sm:$0xff]
      %v191 = vld [vmem:[%s169 + $0x70] sm:$0xff]
      %v192 = vld [vmem:[%s169 + $0x78] sm:$0xff]
      %v193 = vld [vmem:[%s169 + $0x80] sm:$0xff]
      %v194 = vld [vmem:[%s169 + $0x88] sm:$0xff]
      %v195 = vld [vmem:[%s169 + $0x90] sm:$0xff]
      %v196 = vld [vmem:[%s169 + $0x98] sm:$0xff]
      %v197 = vld [vmem:[%s169 + $0xa0] sm:$0xff]
      %v198 = vld [vmem:[%s169 + $0xa8] sm:$0xff]
      %v199 = vld [vmem:[%s169 + $0xb0] sm:$0xff]
      %v200 = vld [vmem:[%s169 + $0xb8] sm:$0xff]
      %v201 = vld [vmem:[%s169 + $0xc0] sm:$0xff]
      %v202 = vld [vmem:[%s169 + $0xc8] sm:$0xff]
      %v203 = vld [vmem:[%s169 + $0xd0] sm:$0xff]
      %v204 = vld [vmem:[%s169 + $0xd8] sm:$0xff]
      %v205 = vld [vmem:[%s169 + $0xe0] sm:$0xff]
      %v206 = vld [vmem:[%s169 + $0xe8] sm:$0xff]
      %v207 = vld [vmem:[%s169 + $0xf0] sm:$0xff]
      %v208 = vld [vmem:[%s169 + $0xf8] sm:$0xff]
      %v209 = vld [vmem:[%s169 + $0x100] sm:$0xff]
      %v210 = vld [vmem:[%s169 + $0x108] sm:$0xff]
      %v211 = vld [vmem:[%s169 + $0x110] sm:$0xff]
      %v212 = vld [vmem:[%s169 + $0x118] sm:$0xff]
      %v213 = vld [vmem:[%s169 + $0x120] sm:$0xff]
      %v214 = vld [vmem:[%s169 + $0x128] sm:$0xff]
      %v215 = vld [vmem:[%s169 + $0x130] sm:$0xff]
      %v216 = vld [vmem:[%s169 + $0x138] sm:$0xff]
      %v217 = vld [vmem:[%s169 + $0x140] sm:$0xff]
      %v218 = vld [vmem:[%s169 + $0x148] sm:$0xff]
      %v219 = vld [vmem:[%s169 + $0x150] sm:$0xff]
      %v220 = vld [vmem:[%s169 + $0x158] sm:$0xff]
      %v221 = vld [vmem:[%s169 + $0x160] sm:$0xff]
      %v222 = vld [vmem:[%s169 + $0x168] sm:$0xff]
      %v223 = vld [vmem:[%s169 + $0x170] sm:$0xff]
      %v224 = vld [vmem:[%s169 + $0x178] sm:$0xff]
      %v225 = vld [vmem:[%s169 + $0x180] sm:$0xff]
      %v226 = vld [vmem:[%s169 + $0x188] sm:$0xff]
      %v227 = vld [vmem:[%s169 + $0x190] sm:$0xff]
      %v228 = vld [vmem:[%s169 + $0x198] sm:$0xff]
      %v229 = vld [vmem:[%s169 + $0x1a0] sm:$0xff]
      %v230 = vld [vmem:[%s169 + $0x1a8] sm:$0xff]
      %v231 = vld [vmem:[%s169 + $0x1b0] sm:$0xff]
      %v232 = vld [vmem:[%s169 + $0x1b8] sm:$0xff]
      %v233 = vld [vmem:[%s169 + $0x1c0] sm:$0xff]
      %v234 = vld [vmem:[%s169 + $0x1c8] sm:$0xff]
      %v235 = vld [vmem:[%s169 + $0x1d0] sm:$0xff]
      %v236 = vld [vmem:[%s169 + $0x1d8] sm:$0xff]
      %v237 = vld [vmem:[%s169 + $0x1e0] sm:$0xff]
      %v238 = vld [vmem:[%s169 + $0x1e8] sm:$0xff]
      %v239 = vld [vmem:[%s169 + $0x1f0] sm:$0xff]
      %v240 = vld [vmem:[%s169 + $0x1f8] sm:$0xff]
      %v241 = vld [vmem:[%s169 + $0x200] sm:$0xff]
      %v242 = vld [vmem:[%s169 + $0x208] sm:$0xff]
      %v243 = vld [vmem:[%s169 + $0x210] sm:$0xff]
      %v244 = vld [vmem:[%s169 + $0x218] sm:$0xff]
      %v245 = vld [vmem:[%s169 + $0x220] sm:$0xff]
      %v246 = vld [vmem:[%s169 + $0x228] sm:$0xff]
      %v247 = vld [vmem:[%s169 + $0x230] sm:$0xff]
      %v248 = vld [vmem:[%s169 + $0x238] sm:$0xff]
      %v249 = vld [vmem:[%s169 + $0x240] sm:$0xff]
      %v250 = vld [vmem:[%s169 + $0x248] sm:$0xff]
      %v251 = vld [vmem:[%s169 + $0x250] sm:$0xff]
      %v252 = vld [vmem:[%s169 + $0x258] sm:$0xff]
      %v253 = vld [vmem:[%s169 + $0x260] sm:$0xff]
      %v254 = vld [vmem:[%s169 + $0x268] sm:$0xff]
      %v255 = vld [vmem:[%s169 + $0x270] sm:$0xff]
      %v256 = vld [vmem:[%s169 + $0x278] sm:$0xff]
      %v257 = vld [vmem:[%s169 + $0x280] sm:$0xff]
      %v258 = vld [vmem:[%s169 + $0x288] sm:$0xff]
      %v259 = vld [vmem:[%s169 + $0x290] sm:$0xff]
      %v260 = vld [vmem:[%s169 + $0x298] sm:$0xff]
      %v261 = vld [vmem:[%s169 + $0x2a0] sm:$0xff]
      %v262 = vld [vmem:[%s169 + $0x2a8] sm:$0xff]
      %v263 = vld [vmem:[%s169 + $0x2b0] sm:$0xff]
      %v264 = vld [vmem:[%s169 + $0x2b8] sm:$0xff]
      %v265 = vld [vmem:[%s169 + $0x2c0] sm:$0xff]
      %v266 = vld [vmem:[%s169 + $0x2c8] sm:$0xff]
      %v267 = vld [vmem:[%s169 + $0x2d0] sm:$0xff]
      %v268 = vld [vmem:[%s169 + $0x2d8] sm:$0xff]
      %v269 = vld [vmem:[%s169 + $0x2e0] sm:$0xff]
      %v270 = vld [vmem:[%s169 + $0x2e8] sm:$0xff]
      %v271 = vld [vmem:[%s169 + $0x2f0] sm:$0xff]
      %v272 = vld [vmem:[%s169 + $0x2f8] sm:$0xff]
      %v273 = vld [vmem:[%s169 + $0x300] sm:$0xff]
      %v274 = vld [vmem:[%s169 + $0x308] sm:$0xff]
      %v275 = vld [vmem:[%s169 + $0x310] sm:$0xff]
      %v276 = vld [vmem:[%s169 + $0x318] sm:$0xff]
      %v277 = vld [vmem:[%s169 + $0x320] sm:$0xff]
      %v278 = vld [vmem:[%s169 + $0x328] sm:$0xff]
      %v279 = vld [vmem:[%s169 + $0x330] sm:$0xff]
      %v280 = vld [vmem:[%s169 + $0x338] sm:$0xff]
      %v281 = vld [vmem:[%s169 + $0x340] sm:$0xff]
      %v282 = vld [vmem:[%s169 + $0x348] sm:$0xff]
      %v283 = vld [vmem:[%s169 + $0x350] sm:$0xff]
      %v284 = vld [vmem:[%s169 + $0x358] sm:$0xff]
      %v285 = vld [vmem:[%s169 + $0x360] sm:$0xff]
      %v286 = vld [vmem:[%s169 + $0x368] sm:$0xff]
      %v287 = vld [vmem:[%s169 + $0x370] sm:$0xff]
      %v288 = vld [vmem:[%s169 + $0x378] sm:$0xff]
      %v289 = vld [vmem:[%s169 + $0x380] sm:$0xff]
      %v290 = vld [vmem:[%s169 + $0x388] sm:$0xff]
      %v291 = vld [vmem:[%s169 + $0x390] sm:$0xff]
      %v292 = vld [vmem:[%s169 + $0x398] sm:$0xff]
      %v293 = vld [vmem:[%s169 + $0x3a0] sm:$0xff]
      %v294 = vld [vmem:[%s169 + $0x3a8] sm:$0xff]
      %v295 = vld [vmem:[%s169 + $0x3b0] sm:$0xff]
      %v296 = vld [vmem:[%s169 + $0x3b8] sm:$0xff]
      %v297 = vld [vmem:[%s169 + $0x3c0] sm:$0xff]
      %v298 = vld [vmem:[%s169 + $0x3c8] sm:$0xff]
      %v299 = vld [vmem:[%s169 + $0x3d0] sm:$0xff]
      %v300 = vld [vmem:[%s169 + $0x3d8] sm:$0xff]
      %v301 = vld [vmem:[%s169 + $0x3e0] sm:$0xff]
      %v302 = vld [vmem:[%s169 + $0x3e8] sm:$0xff]
      %v303 = vld [vmem:[%s169 + $0x3f0] sm:$0xff]
      %v304 = vld [vmem:[%s169 + $0x3f8] sm:$0xff]
      %v305 = vld [vmem:[%s169 + $0x400] sm:$0xff]
      %v306 = vld [vmem:[%s169 + $0x408] sm:$0xff]
      %v307 = vld [vmem:[%s169 + $0x410] sm:$0xff]
      %v308 = vld [vmem:[%s169 + $0x418] sm:$0xff]
      %v309 = vld [vmem:[%s169 + $0x420] sm:$0xff]
      %v310 = vld [vmem:[%s169 + $0x428] sm:$0xff]
      %v311 = vld [vmem:[%s169 + $0x430] sm:$0xff]
      %v312 = vld [vmem:[%s169 + $0x438] sm:$0xff]
      %v313 = vld [vmem:[%s169 + $0x440] sm:$0xff]
      %v314 = vld [vmem:[%s169 + $0x448] sm:$0xff]
      %v315 = vld [vmem:[%s169 + $0x450] sm:$0xff]
      %v316 = vld [vmem:[%s169 + $0x458] sm:$0xff]
      %v317 = vld [vmem:[%s169 + $0x460] sm:$0xff]
      %v318 = vld [vmem:[%s169 + $0x468] sm:$0xff]
      %v319 = vld [vmem:[%s169 + $0x470] sm:$0xff]
      %v320 = vld [vmem:[%s169 + $0x478] sm:$0xff]
      %v321 = vld [vmem:[%s169 + $0x480] sm:$0xff]
      %v322 = vld [vmem:[%s169 + $0x488] sm:$0xff]
      %v323 = vld [vmem:[%s169 + $0x490] sm:$0xff]
      %v324 = vld [vmem:[%s169 + $0x498] sm:$0xff]
      %v325 = vld [vmem:[%s169 + $0x4a0] sm:$0xff]
      %v326 = vld [vmem:[%s169 + $0x4a8] sm:$0xff]
      %v327 = vld [vmem:[%s169 + $0x4b0] sm:$0xff]
      %v328 = vld [vmem:[%s169 + $0x4b8] sm:$0xff]
      %v329 = vld [vmem:[%s169 + $0x4c0] sm:$0xff]
      %v330 = vld [vmem:[%s169 + $0x4c8] sm:$0xff]
      %v331 = vld [vmem:[%s169 + $0x4d0] sm:$0xff]
      %v332 = vld [vmem:[%s169 + $0x4d8] sm:$0xff]
      %v333 = vld [vmem:[%s169 + $0x4e0] sm:$0xff]
      %v334 = vld [vmem:[%s169 + $0x4e8] sm:$0xff]
      %v335 = vld [vmem:[%s169 + $0x4f0] sm:$0xff]
      %v336 = vld [vmem:[%s169 + $0x4f8] sm:$0xff]
      %v337 = vld [vmem:[%s169 + $0x500] sm:$0xff]
      %v338 = vld [vmem:[%s169 + $0x508] sm:$0xff]
      %v339 = vld [vmem:[%s1] sm:$0xff]
      %v340 = vld [vmem:[%s1 + $0x8] sm:$0xff]
      %v341 = vld [vmem:[%s1 + $0x10] sm:$0xff]
      %v342 = vld [vmem:[%s1 + $0x18] sm:$0xff]
      %v343 = vld [vmem:[%s1 + $0x20] sm:$0xff]
      %v344 = vld [vmem:[%s1 + $0x28] sm:$0xff]
      %v345 = vld [vmem:[%s1 + $0x30] sm:$0xff]
      %v346 = vld [vmem:[%s1 + $0x38] sm:$0xff]
      %v347 = vld [vmem:[%s1 + $0x40] sm:$0xff]
      %v348 = vld [vmem:[%s1 + $0x48] sm:$0xff]
      %v349 = vld [vmem:[%s1 + $0x50] sm:$0xff]
      %v350 = vld [vmem:[%s1 + $0x58] sm:$0xff]
      %v351 = vld [vmem:[%s1 + $0x60] sm:$0xff]
      %v352 = vld [vmem:[%s1 + $0x68] sm:$0xff]
      %v353 = vld [vmem:[%s1 + $0x70] sm:$0xff]
      %v354 = vld [vmem:[%s1 + $0x78] sm:$0xff]
      %v355 = vld [vmem:[%s1 + $0x80] sm:$0xff]
      %v356 = vld [vmem:[%s1 + $0x88] sm:$0xff]
      %v357 = vld [vmem:[%s1 + $0x90] sm:$0xff]
      %v358 = vld [vmem:[%s1 + $0x98] sm:$0xff]
      %v359 = vld [vmem:[%s1 + $0xa0] sm:$0xff]
      %v360 = vld [vmem:[%s1 + $0xa8] sm:$0xff]
      %v361 = vld [vmem:[%s1 + $0xb0] sm:$0xff]
      %v362 = vld [vmem:[%s1 + $0xb8] sm:$0xff]
      %v363 = vld [vmem:[%s1 + $0xc0] sm:$0xff]
      %v364 = vld [vmem:[%s1 + $0xc8] sm:$0xff]
      %v365 = vld [vmem:[%s1 + $0xd0] sm:$0xff]
      %v366 = vld [vmem:[%s1 + $0xd8] sm:$0xff]
      %v367 = vld [vmem:[%s1 + $0xe0] sm:$0xff]
      %v368 = vld [vmem:[%s1 + $0xe8] sm:$0xff]
      %v369 = vld [vmem:[%s1 + $0xf0] sm:$0xff]
      %v370 = vld [vmem:[%s1 + $0xf8] sm:$0xff]
      %v371 = vld [vmem:[%s1 + $0x100] sm:$0xff]
      %v372 = vld [vmem:[%s1 + $0x108] sm:$0xff]
      %v373 = vld [vmem:[%s1 + $0x110] sm:$0xff]
      %v374 = vld [vmem:[%s1 + $0x118] sm:$0xff]
      %v375 = vld [vmem:[%s1 + $0x120] sm:$0xff]
      %v376 = vld [vmem:[%s1 + $0x128] sm:$0xff]
      %v377 = vld [vmem:[%s1 + $0x130] sm:$0xff]
      %v378 = vld [vmem:[%s1 + $0x138] sm:$0xff]
      %v379 = vld [vmem:[%s1 + $0x140] sm:$0xff]
      %v380 = vld [vmem:[%s1 + $0x148] sm:$0xff]
      %v381 = vld [vmem:[%s1 + $0x150] sm:$0xff]
      %v382 = vld [vmem:[%s1 + $0x158] sm:$0xff]
      %v383 = vld [vmem:[%s1 + $0x160] sm:$0xff]
      %v384 = vld [vmem:[%s1 + $0x168] sm:$0xff]
      %v385 = vld [vmem:[%s1 + $0x170] sm:$0xff]
      %v386 = vld [vmem:[%s1 + $0x178] sm:$0xff]
      %v387 = vld [vmem:[%s1 + $0x180] sm:$0xff]
      %v388 = vld [vmem:[%s1 + $0x188] sm:$0xff]
      %v389 = vld [vmem:[%s1 + $0x190] sm:$0xff]
      %v390 = vld [vmem:[%s1 + $0x198] sm:$0xff]
      %v391 = vld [vmem:[%s1 + $0x1a0] sm:$0xff]
      %v392 = vld [vmem:[%s1 + $0x1a8] sm:$0xff]
      %v393 = vld [vmem:[%s1 + $0x1b0] sm:$0xff]
      %v394 = vld [vmem:[%s1 + $0x1b8] sm:$0xff]
      %v395 = vld [vmem:[%s1 + $0x1c0] sm:$0xff]
      %v396 = vld [vmem:[%s1 + $0x1c8] sm:$0xff]
      %v397 = vld [vmem:[%s1 + $0x1d0] sm:$0xff]
      %v398 = vld [vmem:[%s1 + $0x1d8] sm:$0xff]
      %v399 = vld [vmem:[%s1 + $0x1e0] sm:$0xff]
      %v400 = vld [vmem:[%s1 + $0x1e8] sm:$0xff]
      %v401 = vld [vmem:[%s1 + $0x1f0] sm:$0xff]
      %v402 = vld [vmem:[%s1 + $0x1f8] sm:$0xff]
      %v403 = vld [vmem:[%s1 + $0x200] sm:$0xff]
      %v404 = vld [vmem:[%s1 + $0x208] sm:$0xff]
      %v405 = vld [vmem:[%s1 + $0x210] sm:$0xff]
      %v406 = vld [vmem:[%s1 + $0x218] sm:$0xff]
      %v407 = vld [vmem:[%s1 + $0x220] sm:$0xff]
      %v408 = vld [vmem:[%s1 + $0x228] sm:$0xff]
      %v409 = vld [vmem:[%s1 + $0x230] sm:$0xff]
      %v410 = vld [vmem:[%s1 + $0x238] sm:$0xff]
      %v411 = vld [vmem:[%s1 + $0x240] sm:$0xff]
      %v412 = vld [vmem:[%s1 + $0x248] sm:$0xff]
      %v413 = vld [vmem:[%s1 + $0x250] sm:$0xff]
      %v414 = vld [vmem:[%s1 + $0x258] sm:$0xff]
      %v415 = vld [vmem:[%s1 + $0x260] sm:$0xff]
      %v416 = vld [vmem:[%s1 + $0x268] sm:$0xff]
      %v417 = vld [vmem:[%s1 + $0x270] sm:$0xff]
      %v418 = vld [vmem:[%s1 + $0x278] sm:$0xff]
      %v419 = vld [vmem:[%s1 + $0x280] sm:$0xff]
      %v420 = vld [vmem:[%s1 + $0x288] sm:$0xff]
      %v421 = vld [vmem:[%s1 + $0x290] sm:$0xff]
      %v422 = vld [vmem:[%s1 + $0x298] sm:$0xff]
      %v423 = vld [vmem:[%s1 + $0x2a0] sm:$0xff]
      %v424 = vld [vmem:[%s1 + $0x2a8] sm:$0xff]
      %v425 = vld [vmem:[%s1 + $0x2b0] sm:$0xff]
      %v426 = vld [vmem:[%s1 + $0x2b8] sm:$0xff]
      %v427 = vld [vmem:[%s1 + $0x2c0] sm:$0xff]
      %v428 = vld [vmem:[%s1 + $0x2c8] sm:$0xff]
      %v429 = vld [vmem:[%s1 + $0x2d0] sm:$0xff]
      %v430 = vld [vmem:[%s1 + $0x2d8] sm:$0xff]
      %v431 = vld [vmem:[%s1 + $0x2e0] sm:$0xff]
      %v432 = vld [vmem:[%s1 + $0x2e8] sm:$0xff]
      %v433 = vld [vmem:[%s1 + $0x2f0] sm:$0xff]
      %v434 = vld [vmem:[%s1 + $0x2f8] sm:$0xff]
      %v435 = vld [vmem:[%s1 + $0x300] sm:$0xff]
      %v436 = vld [vmem:[%s1 + $0x308] sm:$0xff]
      %v437 = vld [vmem:[%s1 + $0x310] sm:$0xff]
      %v438 = vld [vmem:[%s1 + $0x318] sm:$0xff]
      %v439 = vld [vmem:[%s1 + $0x320] sm:$0xff]
      %v440 = vld [vmem:[%s1 + $0x328] sm:$0xff]
      %v441 = vld [vmem:[%s1 + $0x330] sm:$0xff]
      %v442 = vld [vmem:[%s1 + $0x338] sm:$0xff]
      %v443 = vld [vmem:[%s1 + $0x340] sm:$0xff]
      %v444 = vld [vmem:[%s1 + $0x348] sm:$0xff]
      %v445 = vld [vmem:[%s1 + $0x350] sm:$0xff]
      %v446 = vld [vmem:[%s1 + $0x358] sm:$0xff]
      %v447 = vld [vmem:[%s1 + $0x360] sm:$0xff]
      %v448 = vld [vmem:[%s1 + $0x368] sm:$0xff]
      %v449 = vld [vmem:[%s1 + $0x370] sm:$0xff]
      %v450 = vld [vmem:[%s1 + $0x378] sm:$0xff]
      %v451 = vld [vmem:[%s1 + $0x380] sm:$0xff]
      %v452 = vld [vmem:[%s1 + $0x388] sm:$0xff]
      %v453 = vld [vmem:[%s1 + $0x390] sm:$0xff]
      %v454 = vld [vmem:[%s1 + $0x398] sm:$0xff]
      %v455 = vld [vmem:[%s1 + $0x3a0] sm:$0xff]
      %v456 = vld [vmem:[%s1 + $0x3a8] sm:$0xff]
      %v457 = vld [vmem:[%s1 + $0x3b0] sm:$0xff]
      %v458 = vld [vmem:[%s1 + $0x3b8] sm:$0xff]
      %v459 = vld [vmem:[%s1 + $0x3c0] sm:$0xff]
      %v460 = vld [vmem:[%s1 + $0x3c8] sm:$0xff]
      %v461 = vld [vmem:[%s1 + $0x3d0] sm:$0xff]
      %v462 = vld [vmem:[%s1 + $0x3d8] sm:$0xff]
      %v463 = vld [vmem:[%s1 + $0x3e0] sm:$0xff]
      %v464 = vld [vmem:[%s1 + $0x3e8] sm:$0xff]
      %v465 = vld [vmem:[%s1 + $0x3f0] sm:$0xff]
      %v466 = vld [vmem:[%s1 + $0x3f8] sm:$0xff]
      %v467 = vld [vmem:[%s1 + $0x400] sm:$0xff]
      %v468 = vld [vmem:[%s1 + $0x408] sm:$0xff]
      %v469 = vld [vmem:[%s1 + $0x410] sm:$0xff]
      %v470 = vld [vmem:[%s1 + $0x418] sm:$0xff]
      %v471 = vld [vmem:[%s1 + $0x420] sm:$0xff]
      %v472 = vld [vmem:[%s1 + $0x428] sm:$0xff]
      %v473 = vld [vmem:[%s1 + $0x430] sm:$0xff]
      %v474 = vld [vmem:[%s1 + $0x438] sm:$0xff]
      %v475 = vld [vmem:[%s1 + $0x440] sm:$0xff]
      %v476 = vld [vmem:[%s1 + $0x448] sm:$0xff]
      %v477 = vld [vmem:[%s1 + $0x450] sm:$0xff]
      %v478 = vld [vmem:[%s1 + $0x458] sm:$0xff]
      %v479 = vld [vmem:[%s1 + $0x460] sm:$0xff]
      %v480 = vld [vmem:[%s1 + $0x468] sm:$0xff]
      %v481 = vld [vmem:[%s1 + $0x470] sm:$0xff]
      %v482 = vld [vmem:[%s1 + $0x478] sm:$0xff]
      %v483 = vld [vmem:[%s2] sm:$0x1]
      %v485 = vlaneseq
      %v486 = vshrl.u32 %v485, 7
      %v487 = vsub.s32 0, %v486
      %v488 = vrot.slane %v483, %v487
      %490 = vmatprep.subr.mxu0 0.0
      %491 = vmatpush1.msra.mxu0 %v339
      %492 = vmatprep.subr.mxu0 0.0
      %493 = vmatpush1.msra.mxu0 %v340
      %494 = vmatprep.subr.mxu0 0.0
      %495 = vmatpush1.msra.mxu0 %v341
      %496 = vmatprep.subr.mxu0 0.0
      %497 = vmatpush1.msra.mxu0 %v342
      %498 = vmatprep.subr.mxu0 0.0
      %499 = vmatpush1.msra.mxu0 %v343
      %500 = vmatprep.subr.mxu0 0.0
      %501 = vmatpush1.msra.mxu0 %v344
      %502 = vmatprep.subr.mxu0 0.0
      %503 = vmatpush1.msra.mxu0 %v345
      %504 = vmatprep.subr.mxu0 0.0
      %505 = vmatpush1.msra.mxu0 %v346
      %506 = vmatprep.subr.mxu0 0.0
      %507 = vmatpush1.msra.mxu0 %v347
      %508 = vmatprep.subr.mxu0 0.0
      %509 = vmatpush1.msra.mxu0 %v348
      %510 = vmatprep.subr.mxu0 0.0
      %511 = vmatpush1.msra.mxu0 %v349
      %512 = vmatprep.subr.mxu0 0.0
      %513 = vmatpush1.msra.mxu0 %v350
      %514 = vmatprep.subr.mxu0 0.0
      %515 = vmatpush1.msra.mxu0 %v351
      %516 = vmatprep.subr.mxu0 0.0
      %517 = vmatpush1.msra.mxu0 %v352
      %518 = vmatprep.subr.mxu0 0.0
      %519 = vmatpush1.msra.mxu0 %v353
      %520 = vmatprep.subr.mxu0 0.0
      %521 = vmatpush1.msra.mxu0 %v354
      %522 = vmatprep.subr.mxu0 0.0
      %523 = vmatpush1.msra.mxu0 %v355
      %524 = vmatprep.subr.mxu0 0.0
      %525 = vmatpush1.msra.mxu0 %v356
      %526 = vmatprep.subr.mxu0 0.0
      %527 = vmatpush1.msra.mxu0 %v357
      %528 = vmatprep.subr.mxu0 0.0
      %529 = vmatpush1.msra.mxu0 %v358
      %530 = vmatprep.subr.mxu0 0.0
      %531 = vmatpush1.msra.mxu0 %v359
      %532 = vmatprep.subr.mxu0 0.0
      %533 = vmatpush1.msra.mxu0 %v360
      %534 = vmatprep.subr.mxu0 0.0
      %535 = vmatpush1.msra.mxu0 %v361
      %536 = vmatprep.subr.mxu0 0.0
      %537 = vmatpush1.msra.mxu0 %v362
      %538 = vmatprep.subr.mxu0 0.0
      %539 = vmatpush1.msra.mxu0 %v363
      %540 = vmatprep.subr.mxu0 0.0
      %541 = vmatpush1.msra.mxu0 %v364
      %542 = vmatprep.subr.mxu0 0.0
      %543 = vmatpush1.msra.mxu0 %v365
      %544 = vmatprep.subr.mxu0 0.0
      %545 = vmatpush1.msra.mxu0 %v366
      %546 = vmatprep.subr.mxu0 0.0
      %547 = vmatpush1.msra.mxu0 %v367
      %548 = vmatprep.subr.mxu0 0.0
      %549 = vmatpush1.msra.mxu0 %v368
      %550 = vmatprep.subr.mxu0 0.0
      %551 = vmatpush1.msra.mxu0 %v369
      %552 = vmatprep.subr.mxu0 0.0
      %553 = vmatpush1.msra.mxu0 %v370
      %554 = vmatprep.mubr.f32.mxu0 %v178
      %555 = vmatmul.mubr.f32.gmra.mrb[0].mxu0 %v177
      %v556 = vpop.f32.mrb[0].mxu0
      %v557 = vadd.f32 %v488, %v556
      %v558 = vpop.f32.mrb[0].mxu0
      %559 = vmatprep.mubr.f32.mxu0 %v187
      %560 = vmatmul.mubr.f32.gmra.mrb[0].mxu0 %v186
      %v561 = vpop.f32.mrb[0].mxu0
      %v562 = vadd.f32 %v488, %v561
      %v563 = vpop.f32.mrb[0].mxu0
      %564 = vmatprep.mubr.f32.mxu0 %v196
      %565 = vmatmul.mubr.f32.gmra.mrb[0].mxu0 %v195
      %v566 = vpop.f32.mrb[0].mxu0
      %v567 = vadd.f32 %v488, %v566
      %v568 = vpop.f32.mrb[0].mxu0
      %569 = vmatprep.mubr.f32.mxu0 %v205
      %570 = vmatmul.mubr.f32.gmra.mrb[0].mxu0 %v204
      %v571 = vpop.f32.mrb[0].mxu0
      %v572 = vadd.f32 %v488, %v571
      %v573 = vpop.f32.mrb[0].mxu0
      %574 = vmatprep.mubr.f32.mxu0 %v214
      %575 = vmatmul.mubr.f32.gmra.mrb[0].mxu0 %v213
      %v576 = vpop.f32.mrb[0].mxu0
      %v577 = vadd.f32 %v488, %v576
      %v578 = vpop.f32.mrb[0].mxu0
      %579 = vmatprep.mubr.f32.mxu0 %v223
      %580 = vmatmul.mubr.f32.gmra.mrb[0].mxu0 %v222
      %v581 = vpop.f32.mrb[0].mxu0
      %v582 = vadd.f32 %v488, %v581
      %v583 = vpop.f32.mrb[0].mxu0
      %584 = vmatprep.mubr.f32.mxu0 %v232
      %585 = vmatmul.mubr.f32.gmra.mrb[0].mxu0 %v231
      %v586 = vpop.f32.mrb[0].mxu0
      %v587 = vadd.f32 %v488, %v586
      %v588 = vpop.f32.mrb[0].mxu0
      %589 = vmatprep.mubr.f32.mxu0 %v241
      %590 = vmatmul.mubr.f32.gmra.mrb[0].mxu0 %v240
      %v591 = vpop.f32.mrb[0].mxu0
      %v592 = vadd.f32 %v488, %v591
      %v593 = vpop.f32.mrb[0].mxu0
      %594 = vmatprep.mubr.f32.mxu0 %v250
      %595 = vmatmul.mubr.f32.gmra.mrb[0].mxu0 %v249
      %v596 = vpop.f32.mrb[0].mxu0
      %v597 = vadd.f32 %v488, %v596
      %v598 = vpop.f32.mrb[0].mxu0
      %599 = vmatprep.mubr.f32.mxu0 %v259
      %600 = vmatmul.mubr.f32.gmra.mrb[0].mxu0 %v258
      %v601 = vpop.f32.mrb[0].mxu0
      %v602 = vadd.f32 %v488, %v601
      %v603 = vpop.f32.mrb[0].mxu0
      %604 = vmatprep.mubr.f32.mxu0 %v268
      %605 = vmatmul.mubr.f32.gmra.mrb[0].mxu0 %v267
      %v606 = vpop.f32.mrb[0].mxu0
      %v607 = vadd.f32 %v488, %v606
      %v608 = vpop.f32.mrb[0].mxu0
      %609 = vmatprep.mubr.f32.mxu0 %v277
      %610 = vmatmul.mubr.f32.gmra.mrb[0].mxu0 %v276
      %v611 = vpop.f32.mrb[0].mxu0
      %v612 = vadd.f32 %v488, %v611
      %v613 = vpop.f32.mrb[0].mxu0
      %614 = vmatprep.mubr.f32.mxu0 %v286
      %615 = vmatmul.mubr.f32.gmra.mrb[0].mxu0 %v285
      %v616 = vpop.f32.mrb[0].mxu0
      %v617 = vadd.f32 %v488, %v616
      %v618 = vpop.f32.mrb[0].mxu0
      %619 = vmatprep.mubr.f32.mxu0 %v295
      %620 = vmatmul.mubr.f32.gmra.mrb[0].mxu0 %v294
      %v621 = vpop.f32.mrb[0].mxu0
      %v622 = vadd.f32 %v488, %v621
      %v623 = vpop.f32.mrb[0].mxu0
      %624 = vmatprep.mubr.f32.mxu0 %v304
      %625 = vmatmul.mubr.f32.gmra.mrb[0].mxu0 %v303
      %v626 = vpop.f32.mrb[0].mxu0
      %v627 = vadd.f32 %v488, %v626
      %v628 = vpop.f32.mrb[0].mxu0
      %629 = vmatprep.mubr.f32.mxu0 %v313
      %630 = vmatmul.mubr.f32.gmra.mrb[0].mxu0 %v312
      %v631 = vpop.f32.mrb[0].mxu0
      %v632 = vadd.f32 %v488, %v631
      %v633 = vpop.f32.mrb[0].mxu0
      %634 = vmatprep.mubr.f32.mxu0 %v322
      %635 = vmatmul.mubr.f32.gmra.mrb[0].mxu0 %v321
      %v636 = vpop.f32.mrb[0].mxu0
      %v637 = vadd.f32 %v488, %v636
      %v638 = vpop.f32.mrb[0].mxu0
      %639 = vmatprep.mubr.f32.mxu0 %v331
      %640 = vmatmul.mubr.f32.gmra.mrb[0].mxu0 %v330
      %v641 = vpop.f32.mrb[0].mxu0
      %v642 = vadd.f32 %v488, %v641
      %v643 = vpop.f32.mrb[0].mxu0
      %644 = vdwg.mxu0
      %645 = vmatprep.subr.mxu0 0.0
      %646 = vmatpush1.msra.mxu0 %v371
      %647 = vmatprep.subr.mxu0 0.0
      %648 = vmatpush1.msra.mxu0 %v372
      %649 = vmatprep.subr.mxu0 0.0
      %650 = vmatpush1.msra.mxu0 %v373
      %651 = vmatprep.subr.mxu0 0.0
      %652 = vmatpush1.msra.mxu0 %v374
      %653 = vmatprep.subr.mxu0 0.0
      %654 = vmatpush1.msra.mxu0 %v375
      %655 = vmatprep.subr.mxu0 0.0
      %656 = vmatpush1.msra.mxu0 %v376
      %657 = vmatprep.subr.mxu0 0.0
      %658 = vmatpush1.msra.mxu0 %v377
      %659 = vmatprep.subr.mxu0 0.0
      %660 = vmatpush1.msra.mxu0 %v378
      %661 = vmatprep.subr.mxu0 0.0
      %662 = vmatpush1.msra.mxu0 %v379
      %663 = vmatprep.subr.mxu0 0.0
      %664 = vmatpush1.msra.mxu0 %v380
      %665 = vmatprep.subr.mxu0 0.0
      %666 = vmatpush1.msra.mxu0 %v381
      %667 = vmatprep.subr.mxu0 0.0
      %668 = vmatpush1.msra.mxu0 %v382
      %669 = vmatprep.subr.mxu0 0.0
      %670 = vmatpush1.msra.mxu0 %v383
      %671 = vmatprep.subr.mxu0 0.0
      %672 = vmatpush1.msra.mxu0 %v384
      %673 = vmatprep.subr.mxu0 0.0
      %674 = vmatpush1.msra.mxu0 %v385
      %675 = vmatprep.subr.mxu0 0.0
      %676 = vmatpush1.msra.mxu0 %v386
      %677 = vmatprep.subr.mxu0 0.0
      %678 = vmatpush1.msra.mxu0 %v387
      %679 = vmatprep.subr.mxu0 0.0
      %680 = vmatpush1.msra.mxu0 %v388
      %681 = vmatprep.subr.mxu0 0.0
      %682 = vmatpush1.msra.mxu0 %v389
      %683 = vmatprep.subr.mxu0 0.0
      %684 = vmatpush1.msra.mxu0 %v390
      %685 = vmatprep.subr.mxu0 0.0
      %686 = vmatpush1.msra.mxu0 %v391
      %687 = vmatprep.subr.mxu0 0.0
      %688 = vmatpush1.msra.mxu0 %v392
      %689 = vmatprep.subr.mxu0 0.0
      %690 = vmatpush1.msra.mxu0 %v393
      %691 = vmatprep.subr.mxu0 0.0
      %692 = vmatpush1.msra.mxu0 %v394
      %693 = vmatprep.subr.mxu0 0.0
      %694 = vmatpush1.msra.mxu0 %v395
      %695 = vmatprep.subr.mxu0 0.0
      %696 = vmatpush1.msra.mxu0 %v396
      %697 = vmatprep.subr.mxu0 0.0
      %698 = vmatpush1.msra.mxu0 %v397
      %699 = vmatprep.subr.mxu0 0.0
      %700 = vmatpush1.msra.mxu0 %v398
      %701 = vmatprep.subr.mxu0 0.0
      %702 = vmatpush1.msra.mxu0 %v399
      %703 = vmatprep.subr.mxu0 0.0
      %704 = vmatpush1.msra.mxu0 %v400
      %705 = vmatprep.subr.mxu0 0.0
      %706 = vmatpush1.msra.mxu0 %v401
      %707 = vmatprep.subr.mxu0 0.0
      %708 = vmatpush1.msra.mxu0 %v402
      %709 = vmatprep.mubr.f32.mxu0 %v180
      %710 = vmatmul.mubr.f32.gmra.mrb[0].mxu0 %v179
      %v711 = vpop.f32.mrb[0].mxu0
      %v712 = vadd.f32 %v557, %v711
      %v713 = vpop.f32.mrb[0].mxu0
      %714 = vmatprep.mubr.f32.mxu0 %v189
      %715 = vmatmul.mubr.f32.gmra.mrb[0].mxu0 %v188
      %v716 = vpop.f32.mrb[0].mxu0
      %v717 = vadd.f32 %v562, %v716
      %v718 = vpop.f32.mrb[0].mxu0
      %719 = vmatprep.mubr.f32.mxu0 %v198
      %720 = vmatmul.mubr.f32.gmra.mrb[0].mxu0 %v197
      %v721 = vpop.f32.mrb[0].mxu0
      %v722 = vadd.f32 %v567, %v721
      %v723 = vpop.f32.mrb[0].mxu0
      %724 = vmatprep.mubr.f32.mxu0 %v207
      %725 = vmatmul.mubr.f32.gmra.mrb[0].mxu0 %v206
      %v726 = vpop.f32.mrb[0].mxu0
      %v727 = vadd.f32 %v572, %v726
      %v728 = vpop.f32.mrb[0].mxu0
      %729 = vmatprep.mubr.f32.mxu0 %v216
      %730 = vmatmul.mubr.f32.gmra.mrb[0].mxu0 %v215
      %v731 = vpop.f32.mrb[0].mxu0
      %v732 = vadd.f32 %v577, %v731
      %v733 = vpop.f32.mrb[0].mxu0
      %734 = vmatprep.mubr.f32.mxu0 %v225
      %735 = vmatmul.mubr.f32.gmra.mrb[0].mxu0 %v224
      %v736 = vpop.f32.mrb[0].mxu0
      %v737 = vadd.f32 %v582, %v736
      %v738 = vpop.f32.mrb[0].mxu0
      %739 = vmatprep.mubr.f32.mxu0 %v234
      %740 = vmatmul.mubr.f32.gmra.mrb[0].mxu0 %v233
      %v741 = vpop.f32.mrb[0].mxu0
      %v742 = vadd.f32 %v587, %v741
      %v743 = vpop.f32.mrb[0].mxu0
      %744 = vmatprep.mubr.f32.mxu0 %v243
      %745 = vmatmul.mubr.f32.gmra.mrb[0].mxu0 %v242
      %v746 = vpop.f32.mrb[0].mxu0
      %v747 = vadd.f32 %v592, %v746
      %v748 = vpop.f32.mrb[0].mxu0
      %749 = vmatprep.mubr.f32.mxu0 %v252
      %750 = vmatmul.mubr.f32.gmra.mrb[0].mxu0 %v251
      %v751 = vpop.f32.mrb[0].mxu0
      %v752 = vadd.f32 %v597, %v751
      %v753 = vpop.f32.mrb[0].mxu0
      %754 = vmatprep.mubr.f32.mxu0 %v261
      %755 = vmatmul.mubr.f32.gmra.mrb[0].mxu0 %v260
      %v756 = vpop.f32.mrb[0].mxu0
      %v757 = vadd.f32 %v602, %v756
      %v758 = vpop.f32.mrb[0].mxu0
      %759 = vmatprep.mubr.f32.mxu0 %v270
      %760 = vmatmul.mubr.f32.gmra.mrb[0].mxu0 %v269
      %v761 = vpop.f32.mrb[0].mxu0
      %v762 = vadd.f32 %v607, %v761
      %v763 = vpop.f32.mrb[0].mxu0
      %764 = vmatprep.mubr.f32.mxu0 %v279
      %765 = vmatmul.mubr.f32.gmra.mrb[0].mxu0 %v278
      %v766 = vpop.f32.mrb[0].mxu0
      %v767 = vadd.f32 %v612, %v766
      %v768 = vpop.f32.mrb[0].mxu0
      %769 = vmatprep.mubr.f32.mxu0 %v288
      %770 = vmatmul.mubr.f32.gmra.mrb[0].mxu0 %v287
      %v771 = vpop.f32.mrb[0].mxu0
      %v772 = vadd.f32 %v617, %v771
      %v773 = vpop.f32.mrb[0].mxu0
      %774 = vmatprep.mubr.f32.mxu0 %v297
      %775 = vmatmul.mubr.f32.gmra.mrb[0].mxu0 %v296
      %v776 = vpop.f32.mrb[0].mxu0
      %v777 = vadd.f32 %v622, %v776
      %v778 = vpop.f32.mrb[0].mxu0
      %779 = vmatprep.mubr.f32.mxu0 %v306
      %780 = vmatmul.mubr.f32.gmra.mrb[0].mxu0 %v305
      %v781 = vpop.f32.mrb[0].mxu0
      %v782 = vadd.f32 %v627, %v781
      %v783 = vpop.f32.mrb[0].mxu0
      %784 = vmatprep.mubr.f32.mxu0 %v315
      %785 = vmatmul.mubr.f32.gmra.mrb[0].mxu0 %v314
      %v786 = vpop.f32.mrb[0].mxu0
      %v787 = vadd.f32 %v632, %v786
      %v788 = vpop.f32.mrb[0].mxu0
      %789 = vmatprep.mubr.f32.mxu0 %v324
      %790 = vmatmul.mubr.f32.gmra.mrb[0].mxu0 %v323
      %v791 = vpop.f32.mrb[0].mxu0
      %v792 = vadd.f32 %v637, %v791
      %v793 = vpop.f32.mrb[0].mxu0
      %794 = vmatprep.mubr.f32.mxu0 %v333
      %795 = vmatmul.mubr.f32.gmra.mrb[0].mxu0 %v332
      %v796 = vpop.f32.mrb[0].mxu0
      %v797 = vadd.f32 %v642, %v796
      %v798 = vpop.f32.mrb[0].mxu0
      %799 = vdwg.mxu0
      %800 = vmatprep.subr.mxu0 0.0
      %801 = vmatpush1.msra.mxu0 %v403
      %802 = vmatprep.subr.mxu0 0.0
      %803 = vmatpush1.msra.mxu0 %v404
      %804 = vmatprep.subr.mxu0 0.0
      %805 = vmatpush1.msra.mxu0 %v405
      %806 = vmatprep.subr.mxu0 0.0
      %807 = vmatpush1.msra.mxu0 %v406
      %808 = vmatprep.subr.mxu0 0.0
      %809 = vmatpush1.msra.mxu0 %v407
      %810 = vmatprep.subr.mxu0 0.0
      %811 = vmatpush1.msra.mxu0 %v408
      %812 = vmatprep.subr.mxu0 0.0
      %813 = vmatpush1.msra.mxu0 %v409
      %814 = vmatprep.subr.mxu0 0.0
      %815 = vmatpush1.msra.mxu0 %v410
      %816 = vmatprep.subr.mxu0 0.0
      %817 = vmatpush1.msra.mxu0 %v411
      %818 = vmatprep.subr.mxu0 0.0
      %819 = vmatpush1.msra.mxu0 %v412
      %820 = vmatprep.subr.mxu0 0.0
      %821 = vmatpush1.msra.mxu0 %v413
      %822 = vmatprep.subr.mxu0 0.0
      %823 = vmatpush1.msra.mxu0 %v414
      %824 = vmatprep.subr.mxu0 0.0
      %825 = vmatpush1.msra.mxu0 %v415
      %826 = vmatprep.subr.mxu0 0.0
      %827 = vmatpush1.msra.mxu0 %v416
      %828 = vmatprep.subr.mxu0 0.0
      %829 = vmatpush1.msra.mxu0 %v417
      %830 = vmatprep.subr.mxu0 0.0
      %831 = vmatpush1.msra.mxu0 %v418
      %832 = vmatprep.subr.mxu0 0.0
      %833 = vmatpush1.msra.mxu0 %v419
      %834 = vmatprep.subr.mxu0 0.0
      %835 = vmatpush1.msra.mxu0 %v420
      %836 = vmatprep.subr.mxu0 0.0
      %837 = vmatpush1.msra.mxu0 %v421
      %838 = vmatprep.subr.mxu0 0.0
      %839 = vmatpush1.msra.mxu0 %v422
      %840 = vmatprep.subr.mxu0 0.0
      %841 = vmatpush1.msra.mxu0 %v423
      %842 = vmatprep.subr.mxu0 0.0
      %843 = vmatpush1.msra.mxu0 %v424
      %844 = vmatprep.subr.mxu0 0.0
      %845 = vmatpush1.msra.mxu0 %v425
      %846 = vmatprep.subr.mxu0 0.0
      %847 = vmatpush1.msra.mxu0 %v426
      %848 = vmatprep.subr.mxu0 0.0
      %849 = vmatpush1.msra.mxu0 %v427
      %850 = vmatprep.subr.mxu0 0.0
      %851 = vmatpush1.msra.mxu0 %v428
      %852 = vmatprep.subr.mxu0 0.0
      %853 = vmatpush1.msra.mxu0 %v429
      %854 = vmatprep.subr.mxu0 0.0
      %855 = vmatpush1.msra.mxu0 %v430
      %856 = vmatprep.subr.mxu0 0.0
      %857 = vmatpush1.msra.mxu0 %v431
      %858 = vmatprep.subr.mxu0 0.0
      %859 = vmatpush1.msra.mxu0 %v432
      %860 = vmatprep.subr.mxu0 0.0
      %861 = vmatpush1.msra.mxu0 %v433
      %862 = vmatprep.subr.mxu0 0.0
      %863 = vmatpush1.msra.mxu0 %v434
      %864 = vmatprep.mubr.f32.mxu0 %v182
      %865 = vmatmul.mubr.f32.gmra.mrb[0].mxu0 %v181
      %v866 = vpop.f32.mrb[0].mxu0
      %v867 = vadd.f32 %v712, %v866
      %v868 = vpop.f32.mrb[0].mxu0
      %869 = vmatprep.mubr.f32.mxu0 %v191
      %870 = vmatmul.mubr.f32.gmra.mrb[0].mxu0 %v190
      %v871 = vpop.f32.mrb[0].mxu0
      %v872 = vadd.f32 %v717, %v871
      %v873 = vpop.f32.mrb[0].mxu0
      %874 = vmatprep.mubr.f32.mxu0 %v200
      %875 = vmatmul.mubr.f32.gmra.mrb[0].mxu0 %v199
      %v876 = vpop.f32.mrb[0].mxu0
      %v877 = vadd.f32 %v722, %v876
      %v878 = vpop.f32.mrb[0].mxu0
      %879 = vmatprep.mubr.f32.mxu0 %v209
      %880 = vmatmul.mubr.f32.gmra.mrb[0].mxu0 %v208
      %v881 = vpop.f32.mrb[0].mxu0
      %v882 = vadd.f32 %v727, %v881
      %v883 = vpop.f32.mrb[0].mxu0
      %884 = vmatprep.mubr.f32.mxu0 %v218
      %885 = vmatmul.mubr.f32.gmra.mrb[0].mxu0 %v217
      %v886 = vpop.f32.mrb[0].mxu0
      %v887 = vadd.f32 %v732, %v886
      %v888 = vpop.f32.mrb[0].mxu0
      %889 = vmatprep.mubr.f32.mxu0 %v227
      %890 = vmatmul.mubr.f32.gmra.mrb[0].mxu0 %v226
      %v891 = vpop.f32.mrb[0].mxu0
      %v892 = vadd.f32 %v737, %v891
      %v893 = vpop.f32.mrb[0].mxu0
      %894 = vmatprep.mubr.f32.mxu0 %v236
      %895 = vmatmul.mubr.f32.gmra.mrb[0].mxu0 %v235
      %v896 = vpop.f32.mrb[0].mxu0
      %v897 = vadd.f32 %v742, %v896
      %v898 = vpop.f32.mrb[0].mxu0
      %899 = vmatprep.mubr.f32.mxu0 %v245
      %900 = vmatmul.mubr.f32.gmra.mrb[0].mxu0 %v244
      %v901 = vpop.f32.mrb[0].mxu0
      %v902 = vadd.f32 %v747, %v901
      %v903 = vpop.f32.mrb[0].mxu0
      %904 = vmatprep.mubr.f32.mxu0 %v254
      %905 = vmatmul.mubr.f32.gmra.mrb[0].mxu0 %v253
      %v906 = vpop.f32.mrb[0].mxu0
      %v907 = vadd.f32 %v752, %v906
      %v908 = vpop.f32.mrb[0].mxu0
      %909 = vmatprep.mubr.f32.mxu0 %v263
      %910 = vmatmul.mubr.f32.gmra.mrb[0].mxu0 %v262
      %v911 = vpop.f32.mrb[0].mxu0
      %v912 = vadd.f32 %v757, %v911
      %v913 = vpop.f32.mrb[0].mxu0
      %914 = vmatprep.mubr.f32.mxu0 %v272
      %915 = vmatmul.mubr.f32.gmra.mrb[0].mxu0 %v271
      %v916 = vpop.f32.mrb[0].mxu0
      %v917 = vadd.f32 %v762, %v916
      %v918 = vpop.f32.mrb[0].mxu0
      %919 = vmatprep.mubr.f32.mxu0 %v281
      %920 = vmatmul.mubr.f32.gmra.mrb[0].mxu0 %v280
      %v921 = vpop.f32.mrb[0].mxu0
      %v922 = vadd.f32 %v767, %v921
      %v923 = vpop.f32.mrb[0].mxu0
      %924 = vmatprep.mubr.f32.mxu0 %v290
      %925 = vmatmul.mubr.f32.gmra.mrb[0].mxu0 %v289
      %v926 = vpop.f32.mrb[0].mxu0
      %v927 = vadd.f32 %v772, %v926
      %v928 = vpop.f32.mrb[0].mxu0
      %929 = vmatprep.mubr.f32.mxu0 %v299
      %930 = vmatmul.mubr.f32.gmra.mrb[0].mxu0 %v298
      %v931 = vpop.f32.mrb[0].mxu0
      %v932 = vadd.f32 %v777, %v931
      %v933 = vpop.f32.mrb[0].mxu0
      %934 = vmatprep.mubr.f32.mxu0 %v308
      %935 = vmatmul.mubr.f32.gmra.mrb[0].mxu0 %v307
      %v936 = vpop.f32.mrb[0].mxu0
      %v937 = vadd.f32 %v782, %v936
      %v938 = vpop.f32.mrb[0].mxu0
      %939 = vmatprep.mubr.f32.mxu0 %v317
      %940 = vmatmul.mubr.f32.gmra.mrb[0].mxu0 %v316
      %v941 = vpop.f32.mrb[0].mxu0
      %v942 = vadd.f32 %v787, %v941
      %v943 = vpop.f32.mrb[0].mxu0
      %944 = vmatprep.mubr.f32.mxu0 %v326
      %945 = vmatmul.mubr.f32.gmra.mrb[0].mxu0 %v325
      %v946 = vpop.f32.mrb[0].mxu0
      %v947 = vadd.f32 %v792, %v946
      %v948 = vpop.f32.mrb[0].mxu0
      %949 = vmatprep.mubr.f32.mxu0 %v335
      %950 = vmatmul.mubr.f32.gmra.mrb[0].mxu0 %v334
      %v951 = vpop.f32.mrb[0].mxu0
      %v952 = vadd.f32 %v797, %v951
      %v953 = vpop.f32.mrb[0].mxu0
      %954 = vdwg.mxu0
      %955 = vmatprep.subr.mxu0 0.0
      %956 = vmatpush1.msra.mxu0 %v435
      %957 = vmatprep.subr.mxu0 0.0
      %958 = vmatpush1.msra.mxu0 %v436
      %959 = vmatprep.subr.mxu0 0.0
      %960 = vmatpush1.msra.mxu0 %v437
      %961 = vmatprep.subr.mxu0 0.0
      %962 = vmatpush1.msra.mxu0 %v438
      %963 = vmatprep.subr.mxu0 0.0
      %964 = vmatpush1.msra.mxu0 %v439
      %965 = vmatprep.subr.mxu0 0.0
      %966 = vmatpush1.msra.mxu0 %v440
      %967 = vmatprep.subr.mxu0 0.0
      %968 = vmatpush1.msra.mxu0 %v441
      %969 = vmatprep.subr.mxu0 0.0
      %970 = vmatpush1.msra.mxu0 %v442
      %971 = vmatprep.subr.mxu0 0.0
      %972 = vmatpush1.msra.mxu0 %v443
      %973 = vmatprep.subr.mxu0 0.0
      %974 = vmatpush1.msra.mxu0 %v444
      %975 = vmatprep.subr.mxu0 0.0
      %976 = vmatpush1.msra.mxu0 %v445
      %977 = vmatprep.subr.mxu0 0.0
      %978 = vmatpush1.msra.mxu0 %v446
      %979 = vmatprep.subr.mxu0 0.0
      %980 = vmatpush1.msra.mxu0 %v447
      %981 = vmatprep.subr.mxu0 0.0
      %982 = vmatpush1.msra.mxu0 %v448
      %983 = vmatprep.subr.mxu0 0.0
      %984 = vmatpush1.msra.mxu0 %v449
      %985 = vmatprep.subr.mxu0 0.0
      %986 = vmatpush1.msra.mxu0 %v450
      %987 = vmatprep.subr.mxu0 0.0
      %988 = vmatpush1.msra.mxu0 %v451
      %989 = vmatprep.subr.mxu0 0.0
      %990 = vmatpush1.msra.mxu0 %v452
      %991 = vmatprep.subr.mxu0 0.0
      %992 = vmatpush1.msra.mxu0 %v453
      %993 = vmatprep.subr.mxu0 0.0
      %994 = vmatpush1.msra.mxu0 %v454
      %995 = vmatprep.subr.mxu0 0.0
      %996 = vmatpush1.msra.mxu0 %v455
      %997 = vmatprep.subr.mxu0 0.0
      %998 = vmatpush1.msra.mxu0 %v456
      %999 = vmatprep.subr.mxu0 0.0
      %1000 = vmatpush1.msra.mxu0 %v457
      %1001 = vmatprep.subr.mxu0 0.0
      %1002 = vmatpush1.msra.mxu0 %v458
      %1003 = vmatprep.subr.mxu0 0.0
      %1004 = vmatpush1.msra.mxu0 %v459
      %1005 = vmatprep.subr.mxu0 0.0
      %1006 = vmatpush1.msra.mxu0 %v460
      %1007 = vmatprep.subr.mxu0 0.0
      %1008 = vmatpush1.msra.mxu0 %v461
      %1009 = vmatprep.subr.mxu0 0.0
      %1010 = vmatpush1.msra.mxu0 %v462
      %1011 = vmatprep.subr.mxu0 0.0
      %1012 = vmatpush1.msra.mxu0 %v463
      %1013 = vmatprep.subr.mxu0 0.0
      %1014 = vmatpush1.msra.mxu0 %v464
      %1015 = vmatprep.subr.mxu0 0.0
      %1016 = vmatpush1.msra.mxu0 %v465
      %1017 = vmatprep.subr.mxu0 0.0
      %1018 = vmatpush1.msra.mxu0 %v466
      %1019 = vmatprep.mubr.f32.mxu0 %v184
      %1020 = vmatmul.mubr.f32.gmra.mrb[0].mxu0 %v183
      %v1021 = vpop.f32.mrb[0].mxu0
      %v1022 = vadd.f32 %v867, %v1021
      %v1023 = vpop.f32.mrb[0].mxu0
      %1024 = vmatprep.mubr.f32.mxu0 %v193
      %1025 = vmatmul.mubr.f32.gmra.mrb[0].mxu0 %v192
      %v1026 = vpop.f32.mrb[0].mxu0
      %v1027 = vadd.f32 %v872, %v1026
      %v1028 = vpop.f32.mrb[0].mxu0
      %1029 = vmatprep.mubr.f32.mxu0 %v202
      %1030 = vmatmul.mubr.f32.gmra.mrb[0].mxu0 %v201
      %v1031 = vpop.f32.mrb[0].mxu0
      %v1032 = vadd.f32 %v877, %v1031
      %v1033 = vpop.f32.mrb[0].mxu0
      %1034 = vmatprep.mubr.f32.mxu0 %v211
      %1035 = vmatmul.mubr.f32.gmra.mrb[0].mxu0 %v210
      %v1036 = vpop.f32.mrb[0].mxu0
      %v1037 = vadd.f32 %v882, %v1036
      %v1038 = vpop.f32.mrb[0].mxu0
      %1039 = vmatprep.mubr.f32.mxu0 %v220
      %1040 = vmatmul.mubr.f32.gmra.mrb[0].mxu0 %v219
      %v1041 = vpop.f32.mrb[0].mxu0
      %v1042 = vadd.f32 %v887, %v1041
      %v1043 = vpop.f32.mrb[0].mxu0
      %1044 = vmatprep.mubr.f32.mxu0 %v229
      %1045 = vmatmul.mubr.f32.gmra.mrb[0].mxu0 %v228
      %v1046 = vpop.f32.mrb[0].mxu0
      %v1047 = vadd.f32 %v892, %v1046
      %v1048 = vpop.f32.mrb[0].mxu0
      %1049 = vmatprep.mubr.f32.mxu0 %v238
      %1050 = vmatmul.mubr.f32.gmra.mrb[0].mxu0 %v237
      %v1051 = vpop.f32.mrb[0].mxu0
      %v1052 = vadd.f32 %v897, %v1051
      %v1053 = vpop.f32.mrb[0].mxu0
      %1054 = vmatprep.mubr.f32.mxu0 %v247
      %1055 = vmatmul.mubr.f32.gmra.mrb[0].mxu0 %v246
      %v1056 = vpop.f32.mrb[0].mxu0
      %v1057 = vadd.f32 %v902, %v1056
      %v1058 = vpop.f32.mrb[0].mxu0
      %1059 = vmatprep.mubr.f32.mxu0 %v256
      %1060 = vmatmul.mubr.f32.gmra.mrb[0].mxu0 %v255
      %v1061 = vpop.f32.mrb[0].mxu0
      %v1062 = vadd.f32 %v907, %v1061
      %v1063 = vpop.f32.mrb[0].mxu0
      %1064 = vmatprep.mubr.f32.mxu0 %v265
      %1065 = vmatmul.mubr.f32.gmra.mrb[0].mxu0 %v264
      %v1066 = vpop.f32.mrb[0].mxu0
      %v1067 = vadd.f32 %v912, %v1066
      %v1068 = vpop.f32.mrb[0].mxu0
      %1069 = vmatprep.mubr.f32.mxu0 %v274
      %1070 = vmatmul.mubr.f32.gmra.mrb[0].mxu0 %v273
      %v1071 = vpop.f32.mrb[0].mxu0
      %v1072 = vadd.f32 %v917, %v1071
      %v1073 = vpop.f32.mrb[0].mxu0
      %1074 = vmatprep.mubr.f32.mxu0 %v283
      %1075 = vmatmul.mubr.f32.gmra.mrb[0].mxu0 %v282
      %v1076 = vpop.f32.mrb[0].mxu0
      %v1077 = vadd.f32 %v922, %v1076
      %v1078 = vpop.f32.mrb[0].mxu0
      %1079 = vmatprep.mubr.f32.mxu0 %v292
      %1080 = vmatmul.mubr.f32.gmra.mrb[0].mxu0 %v291
      %v1081 = vpop.f32.mrb[0].mxu0
      %v1082 = vadd.f32 %v927, %v1081
      %v1083 = vpop.f32.mrb[0].mxu0
      %1084 = vmatprep.mubr.f32.mxu0 %v301
      %1085 = vmatmul.mubr.f32.gmra.mrb[0].mxu0 %v300
      %v1086 = vpop.f32.mrb[0].mxu0
      %v1087 = vadd.f32 %v932, %v1086
      %v1088 = vpop.f32.mrb[0].mxu0
      %1089 = vmatprep.mubr.f32.mxu0 %v310
      %1090 = vmatmul.mubr.f32.gmra.mrb[0].mxu0 %v309
      %v1091 = vpop.f32.mrb[0].mxu0
      %v1092 = vadd.f32 %v937, %v1091
      %v1093 = vpop.f32.mrb[0].mxu0
      %1094 = vmatprep.mubr.f32.mxu0 %v319
      %1095 = vmatmul.mubr.f32.gmra.mrb[0].mxu0 %v318
      %v1096 = vpop.f32.mrb[0].mxu0
      %v1097 = vadd.f32 %v942, %v1096
      %v1098 = vpop.f32.mrb[0].mxu0
      %1099 = vmatprep.mubr.f32.mxu0 %v328
      %1100 = vmatmul.mubr.f32.gmra.mrb[0].mxu0 %v327
      %v1101 = vpop.f32.mrb[0].mxu0
      %v1102 = vadd.f32 %v947, %v1101
      %v1103 = vpop.f32.mrb[0].mxu0
      %1104 = vmatprep.mubr.f32.mxu0 %v337
      %1105 = vmatmul.mubr.f32.gmra.mrb[0].mxu0 %v336
      %v1106 = vpop.f32.mrb[0].mxu0
      %v1107 = vadd.f32 %v952, %v1106
      %v1108 = vpop.f32.mrb[0].mxu0
      %1109 = vdwg.mxu0
      %1110 = vmatprep.subr.mxu0 0.0
      %1111 = vmatpush1.msra.mxu0 %v467
      %1112 = vmatprep.subr.mxu0 0.0
      %1113 = vmatpush1.msra.mxu0 %v468
      %1114 = vmatprep.subr.mxu0 0.0
      %1115 = vmatpush1.msra.mxu0 %v469
      %1116 = vmatprep.subr.mxu0 0.0
      %1117 = vmatpush1.msra.mxu0 %v470
      %1118 = vmatprep.subr.mxu0 0.0
      %1119 = vmatpush1.msra.mxu0 %v471
      %1120 = vmatprep.subr.mxu0 0.0
      %1121 = vmatpush1.msra.mxu0 %v472
      %1122 = vmatprep.subr.mxu0 0.0
      %1123 = vmatpush1.msra.mxu0 %v473
      %1124 = vmatprep.subr.mxu0 0.0
      %1125 = vmatpush1.msra.mxu0 %v474
      %1126 = vmatprep.subr.mxu0 0.0
      %1127 = vmatpush1.msra.mxu0 %v475
      %1128 = vmatprep.subr.mxu0 0.0
      %1129 = vmatpush1.msra.mxu0 %v476
      %1130 = vmatprep.subr.mxu0 0.0
      %1131 = vmatpush1.msra.mxu0 %v477
      %1132 = vmatprep.subr.mxu0 0.0
      %1133 = vmatpush1.msra.mxu0 %v478
      %1134 = vmatprep.subr.mxu0 0.0
      %1135 = vmatpush1.msra.mxu0 %v479
      %1136 = vmatprep.subr.mxu0 0.0
      %1137 = vmatpush1.msra.mxu0 %v480
      %1138 = vmatprep.subr.mxu0 0.0
      %1139 = vmatpush1.msra.mxu0 %v481
      %1140 = vmatprep.subr.mxu0 0.0
      %1141 = vmatpush1.msra.mxu0 %v482
      %1142 = vmatprep.subr.mxu0 0.0
      %1143 = vmatpush1.msra.mxu0 0.0
      %1144 = vmatprep.subr.mxu0 0.0
      %1145 = vmatpush1.msra.mxu0 0.0
      %1146 = vmatprep.subr.mxu0 0.0
      %1147 = vmatpush1.msra.mxu0 0.0
      %1148 = vmatprep.subr.mxu0 0.0
      %1149 = vmatpush1.msra.mxu0 0.0
      %1150 = vmatprep.subr.mxu0 0.0
      %1151 = vmatpush1.msra.mxu0 0.0
      %1152 = vmatprep.subr.mxu0 0.0
      %1153 = vmatpush1.msra.mxu0 0.0
      %1154 = vmatprep.subr.mxu0 0.0
      %1155 = vmatpush1.msra.mxu0 0.0
      %1156 = vmatprep.subr.mxu0 0.0
      %1157 = vmatpush1.msra.mxu0 0.0
      %1158 = vmatprep.subr.mxu0 0.0
      %1159 = vmatpush1.msra.mxu0 0.0
      %1160 = vmatprep.subr.mxu0 0.0
      %1161 = vmatpush1.msra.mxu0 0.0
      %1162 = vmatprep.subr.mxu0 0.0
      %1163 = vmatpush1.msra.mxu0 0.0
      %1164 = vmatprep.subr.mxu0 0.0
      %1165 = vmatpush1.msra.mxu0 0.0
      %1166 = vmatprep.subr.mxu0 0.0
      %1167 = vmatpush1.msra.mxu0 0.0
      %1168 = vmatprep.subr.mxu0 0.0
      %1169 = vmatpush1.msra.mxu0 0.0
      %1170 = vmatprep.subr.mxu0 0.0
      %1171 = vmatpush1.msra.mxu0 0.0
      %1172 = vmatprep.subr.mxu0 0.0
      %1173 = vmatpush1.msra.mxu0 0.0
      %1174 = vmatprep.mubr.f32.mxu0 0.0
      %1175 = vmatmul.mubr.f32.gmra.mrb[0].mxu0 %v185
      %v1176 = vpop.f32.mrb[0].mxu0
      %v1177 = vadd.f32 %v1022, %v1176
      %v1178 = vpop.f32.mrb[0].mxu0
      %1179 = vmatprep.mubr.f32.mxu0 0.0
      %1180 = vmatmul.mubr.f32.gmra.mrb[0].mxu0 %v194
      %v1181 = vpop.f32.mrb[0].mxu0
      %v1182 = vadd.f32 %v1027, %v1181
      %v1183 = vpop.f32.mrb[0].mxu0
      %1184 = vmatprep.mubr.f32.mxu0 0.0
      %1185 = vmatmul.mubr.f32.gmra.mrb[0].mxu0 %v203
      %v1186 = vpop.f32.mrb[0].mxu0
      %v1187 = vadd.f32 %v1032, %v1186
      %v1188 = vpop.f32.mrb[0].mxu0
      %1189 = vmatprep.mubr.f32.mxu0 0.0
      %1190 = vmatmul.mubr.f32.gmra.mrb[0].mxu0 %v212
      %v1191 = vpop.f32.mrb[0].mxu0
      %v1192 = vadd.f32 %v1037, %v1191
      %v1193 = vpop.f32.mrb[0].mxu0
      %1194 = vmatprep.mubr.f32.mxu0 0.0
      %1195 = vmatmul.mubr.f32.gmra.mrb[0].mxu0 %v221
      %v1196 = vpop.f32.mrb[0].mxu0
      %v1197 = vadd.f32 %v1042, %v1196
      %v1198 = vpop.f32.mrb[0].mxu0
      %1199 = vmatprep.mubr.f32.mxu0 0.0
      %1200 = vmatmul.mubr.f32.gmra.mrb[0].mxu0 %v230
      %v1201 = vpop.f32.mrb[0].mxu0
      %v1202 = vadd.f32 %v1047, %v1201
      %v1203 = vpop.f32.mrb[0].mxu0
      %1204 = vmatprep.mubr.f32.mxu0 0.0
      %1205 = vmatmul.mubr.f32.gmra.mrb[0].mxu0 %v239
      %v1206 = vpop.f32.mrb[0].mxu0
      %v1207 = vadd.f32 %v1052, %v1206
      %v1208 = vpop.f32.mrb[0].mxu0
      %1209 = vmatprep.mubr.f32.mxu0 0.0
      %1210 = vmatmul.mubr.f32.gmra.mrb[0].mxu0 %v248
      %v1211 = vpop.f32.mrb[0].mxu0
      %v1212 = vadd.f32 %v1057, %v1211
      %v1213 = vpop.f32.mrb[0].mxu0
      %1214 = vmatprep.mubr.f32.mxu0 0.0
      %1215 = vmatmul.mubr.f32.gmra.mrb[0].mxu0 %v257
      %v1216 = vpop.f32.mrb[0].mxu0
      %v1217 = vadd.f32 %v1062, %v1216
      %v1218 = vpop.f32.mrb[0].mxu0
      %1219 = vmatprep.mubr.f32.mxu0 0.0
      %1220 = vmatmul.mubr.f32.gmra.mrb[0].mxu0 %v266
      %v1221 = vpop.f32.mrb[0].mxu0
      %v1222 = vadd.f32 %v1067, %v1221
      %v1223 = vpop.f32.mrb[0].mxu0
      %1224 = vmatprep.mubr.f32.mxu0 0.0
      %1225 = vmatmul.mubr.f32.gmra.mrb[0].mxu0 %v275
      %v1226 = vpop.f32.mrb[0].mxu0
      %v1227 = vadd.f32 %v1072, %v1226
      %v1228 = vpop.f32.mrb[0].mxu0
      %1229 = vmatprep.mubr.f32.mxu0 0.0
      %1230 = vmatmul.mubr.f32.gmra.mrb[0].mxu0 %v284
      %v1231 = vpop.f32.mrb[0].mxu0
      %v1232 = vadd.f32 %v1077, %v1231
      %v1233 = vpop.f32.mrb[0].mxu0
      %1234 = vmatprep.mubr.f32.mxu0 0.0
      %1235 = vmatmul.mubr.f32.gmra.mrb[0].mxu0 %v293
      %v1236 = vpop.f32.mrb[0].mxu0
      %v1237 = vadd.f32 %v1082, %v1236
      %v1238 = vpop.f32.mrb[0].mxu0
      %1239 = vmatprep.mubr.f32.mxu0 0.0
      %1240 = vmatmul.mubr.f32.gmra.mrb[0].mxu0 %v302
      %v1241 = vpop.f32.mrb[0].mxu0
      %v1242 = vadd.f32 %v1087, %v1241
      %v1243 = vpop.f32.mrb[0].mxu0
      %1244 = vmatprep.mubr.f32.mxu0 0.0
      %1245 = vmatmul.mubr.f32.gmra.mrb[0].mxu0 %v311
      %v1246 = vpop.f32.mrb[0].mxu0
      %v1247 = vadd.f32 %v1092, %v1246
      %v1248 = vpop.f32.mrb[0].mxu0
      %1249 = vmatprep.mubr.f32.mxu0 0.0
      %1250 = vmatmul.mubr.f32.gmra.mrb[0].mxu0 %v320
      %v1251 = vpop.f32.mrb[0].mxu0
      %v1252 = vadd.f32 %v1097, %v1251
      %v1253 = vpop.f32.mrb[0].mxu0
      %1254 = vmatprep.mubr.f32.mxu0 0.0
      %1255 = vmatmul.mubr.f32.gmra.mrb[0].mxu0 %v329
      %v1256 = vpop.f32.mrb[0].mxu0
      %v1257 = vadd.f32 %v1102, %v1256
      %v1258 = vpop.f32.mrb[0].mxu0
      %1259 = vmatprep.mubr.f32.mxu0 0.0
      %1260 = vmatmul.mubr.f32.gmra.mrb[0].mxu0 %v338
      %v1261 = vpop.f32.mrb[0].mxu0
      %v1262 = vadd.f32 %v1107, %v1261
      %v1263 = vpop.f32.mrb[0].mxu0
      %1264 = vdwg.mxu0
      %v1265 = vmax.f32 %v1177, 0.0
      %v1266 = vmax.f32 %v1182, 0.0
      %v1267 = vmax.f32 %v1187, 0.0
      %v1268 = vmax.f32 %v1192, 0.0
      %v1269 = vmax.f32 %v1197, 0.0
      %v1270 = vmax.f32 %v1202, 0.0
      %v1271 = vmax.f32 %v1207, 0.0
      %v1272 = vmax.f32 %v1212, 0.0
      %v1273 = vmax.f32 %v1217, 0.0
      %v1274 = vmax.f32 %v1222, 0.0
      %v1275 = vmax.f32 %v1227, 0.0
      %v1276 = vmax.f32 %v1232, 0.0
      %v1277 = vmax.f32 %v1237, 0.0
      %v1278 = vmax.f32 %v1242, 0.0
      %v1279 = vmax.f32 %v1247, 0.0
      %v1280 = vmax.f32 %v1252, 0.0
      %v1281 = vmax.f32 %v1257, 0.0
      %v1282 = vmax.f32 %v1262, 0.0
      %1283 = vst [vmem:[%s175] sm:$0xff] %v1265
      %1284 = vst [vmem:[%s175 + $0x8] sm:$0xff] %v1266
      %1285 = vst [vmem:[%s175 + $0x10] sm:$0xff] %v1267
      %1286 = vst [vmem:[%s175 + $0x18] sm:$0xff] %v1268
      %1287 = vst [vmem:[%s175 + $0x20] sm:$0xff] %v1269
      %1288 = vst [vmem:[%s175 + $0x28] sm:$0xff] %v1270
      %1289 = vst [vmem:[%s175 + $0x30] sm:$0xff] %v1271
      %1290 = vst [vmem:[%s175 + $0x38] sm:$0xff] %v1272
      %1291 = vst [vmem:[%s175 + $0x40] sm:$0xff] %v1273
      %1292 = vst [vmem:[%s175 + $0x48] sm:$0xff] %v1274
      %1293 = vst [vmem:[%s175 + $0x50] sm:$0xff] %v1275
      %1294 = vst [vmem:[%s175 + $0x58] sm:$0xff] %v1276
      %1295 = vst [vmem:[%s175 + $0x60] sm:$0xff] %v1277
      %1296 = vst [vmem:[%s175 + $0x68] sm:$0xff] %v1278
      %1297 = vst [vmem:[%s175 + $0x70] sm:$0xff] %v1279
      %1298 = vst [vmem:[%s175 + $0x78] sm:$0xff] %v1280
      %1299 = vst [vmem:[%s175 + $0x80] sm:$0xff] %v1281
      %1300 = vst [vmem:[%s175 + $0x88] sm:$0xff] %v1282
      %s1301 = smul.u32 18, %s14
      %p1302 = scmp.lt.s32.totalorder %s1301, 35
      %s1303 = scalar_select %p1302, %s1301, 35
      %s1304 = smul.addr %s1303, 8
      %s1305 = scalar_lea.vmem %s3, %s1304
      // Predicated region
      $region33: #{dqn_forward.6} parent=31 // pred_check
        %p1306 = pneg %p100
      $region34: #{dqn_forward.6} parent=31 // pred_check_branch
        %1308 = sbr.rel (%p1306) target = $region36
      $region35: #{dqn_forward.6} parent=31 // pred_region
        %s1309 = smul.u32 18, %s14
      $region36: #{dqn_forward.6} parent=31 // pred_fallthru
        _
    $region32: #{dqn_forward.6} parent=5 // pred_fallthru
      _
    %p1310 = scmp.le.s32.totalorder 2, %s9
    // Predicated region
    $region37: #{dqn_forward.6} parent=5 // pred_check
      %p1311 = pneg %p1310
    $region38: #{dqn_forward.6} parent=5 // pred_check_branch
      %1313 = sbr.rel (%p1311) target = $region40
    $region39: #{dqn_forward.6} parent=5 // pred_region
      %s1314 = ssub.s32 %s9, 2
      // Predicated region
      $region41: #{dqn_forward.6} parent=39 // pred_check
        %p1315 = pneg %p106
      $region42: #{dqn_forward.6} parent=39 // pred_check_branch
        %1317 = sbr.rel (%p1315) target = $region44
      $region43: #{dqn_forward.6} parent=39 // pred_region
        %s1318 = smul.u32 18, %s15
        %p1319 = scmp.lt.s32.totalorder %s1318, 35
        %s1320 = scalar_select %p1319, %s1318, 35
        %s1321 = smul.addr %s1320, 8
        %s1322 = scalar_lea.vmem %s3, %s1321
      $region44: #{dqn_forward.6} parent=39 // pred_fallthru
        _
    $region40: #{dqn_forward.6} parent=5 // pred_fallthru
      _
  $region6: #{dqn_forward.6} parent=0 // loop_footer
    %s13 = sadd.s32 1, %s9
  $region7: #{dqn_forward.6} parent=0 // loop_footer_branch
    %8 = sbr.rel target = $region3
  $region8: #{dqn_forward.6} parent=0 // loop_exit
    _

// kernel: dqn_forward.7
$region0: #{dqn_forward.7}
  #allocation0 [shape = 'u32[]', space=smem, size = 0x4, offset = 0x4, fixed_abs, tag = 'smem constant byte address 0x4 - core index']
  #allocation1 [shape = 'u32[144,128]{1,0:T(1,128)}', space=vmem, size = 0x12000, scoped, tag = 'internal scratch']
  #allocation2 [shape = 'f32[2,128]{1,0:T(2,128)}', space=vmem, size = 0x400, scoped, tag = 'scratch operand']
  %s0 = inlined_call_operand.vmem [shape: f32[2,18432], index: 0, kind: input, shape index: {}]
  %s1 = inlined_call_operand.vmem [shape: f32[18432,128], index: 1, kind: input, shape index: {}]
  %s2 = inlined_call_operand.vmem [shape: f32[1,128], index: 2, kind: input, shape index: {}]
  %s3 = inlined_call_operand.vmem [shape: f32[128,9], index: 3, kind: input, shape index: {}]
  %s4 = inlined_call_operand.vmem [shape: f32[1,9], index: 4, kind: input, shape index: {}]
  %s5 = inlined_call_operand.hbm [shape: f32[2,9], index: 5, kind: output, shape index: {}]
  %s6 = sld [smem:[#allocation0]]
  $region61: #{dqn_forward.7} parent=0
    _
  %s8 = ssub.s32 1, %s6
  %s9 = scalar_select 0, %s8, %s6
  $region1: #{dqn_forward.7} parent=0
    #allocation3 [shape = 'u8[1024]{0}', space=vmem, size = 0x400, scoped, tag = 'output window, operand 0, single buffered']
    #allocation4 [shape = 's32[2]{0}', space=sflag, size = 0x8, scoped, tag = 'scoped memory for dqn_forward.7']
    %10 = vsyncpa [#allocation4], 0
    loop: start=0, step=1, limit=5
    $region2: #{dqn_forward.7} parent=1 // loop_pre_header
      _
    $region3: #{dqn_forward.7} parent=1 // loop_header
      %s12 = sphi 0, %s16
      %p13 = scmp.ge.s32.totalorder %s12, 5
      %s22 = sphi 0, %s24
      %s25 = sphi 0, %s22
      %s26 = sphi 0, %s25
      %s42 = sphi 0, %s26
      %s48 = sphi 0, %s50
      %s51 = sphi 0, %s48
      %s52 = sphi 0, %s51
      %s68 = sphi 0, %s52
      %s72 = sphi 0, %s72
      %s74 = sphi 0, %s72
      %s75 = sphi 0, %s74
      %s89 = sphi 0, %s75
      %s93 = sphi 0, %s93
      %s95 = sphi 0, %s93
      %s96 = sphi 0, %s95
      %s110 = sphi 0, %s96
      %s114 = sphi 0, %s114
      %s116 = sphi 0, %s114
      %s117 = sphi 0, %s116
      %s131 = sphi 0, %s117
      %s135 = sphi 0, %s135
      %s137 = sphi 0, %s135
      %s138 = sphi 0, %s137
      %s152 = sphi 0, %s138
    $region4: #{dqn_forward.7} parent=1 // loop_header_branch
      %15 = sbr.rel (%p13) target = $region8
    $region5: #{dqn_forward.7} parent=1 // loop_body
      %s17 = ssub.s32 %s12, 1
      %s18 = ssub.s32 %s12, 2
      %s19 = sadd.s32 %s12, 1
      %s20 = ssub.s32 %s12, %s19
      %p21 = scmp.eq.s32.totalorder %s20, 0
      %s23 = sadd.s32 %s22, 1
      %s24 = scalar_select %p21, %s22, %s23
      %p27 = pneg %p21
      %p28 = scmp.eq.s32.totalorder %s12, 2
      %p29 = por %p27, %p28
      %p30 = scmp.ne.s32.totalorder %s22, %s25
      %p31 = scmp.eq.s32.totalorder %s12, 0
      %p32 = por %p30, %p31
      %p33 = scmp.ne.s32.totalorder %s22, %s25
      %p34 = scmp.eq.s32.totalorder %s17, 2
      %p35 = por %p33, %p34
      %p36 = scmp.ne.s32.totalorder %s25, %s26
      %p37 = scmp.eq.s32.totalorder %s17, 0
      %p38 = por %p36, %p37
      %p39 = scmp.ne.s32.totalorder %s25, %s26
      %p40 = scmp.eq.s32.totalorder %s18, 2
      %p41 = por %p39, %p40
      %p43 = scmp.ne.s32.totalorder %s26, %s42
      %p44 = scmp.eq.s32.totalorder %s18, 0
      %p45 = por %p43, %p44
      %s46 = ssub.s32 %s12, %s19
      %p47 = scmp.eq.s32.totalorder %s46, 0
      %s49 = sadd.s32 %s48, 1
      %s50 = scalar_select %p47, %s48, %s49
      %p53 = pneg %p47
      %p54 = scmp.eq.s32.totalorder %s12, 2
      %p55 = por %p53, %p54
      %p56 = scmp.ne.s32.totalorder %s48, %s51
      %p57 = scmp.eq.s32.totalorder %s12, 0
      %p58 = por %p56, %p57
      %p59 = scmp.ne.s32.totalorder %s48, %s51
      %p60 = scmp.eq.s32.totalorder %s17, 2
      %p61 = por %p59, %p60
      %p62 = scmp.ne.s32.totalorder %s51, %s52
      %p63 = scmp.eq.s32.totalorder %s17, 0
      %p64 = por %p62, %p63
      %p65 = scmp.ne.s32.totalorder %s51, %s52
      %p66 = scmp.eq.s32.totalorder %s18, 2
      %p67 = por %p65, %p66
      %p69 = scmp.ne.s32.totalorder %s52, %s68
      %p70 = scmp.eq.s32.totalorder %s18, 0
      %p71 = por %p69, %p70
      %s73 = sadd.s32 %s72, 1
      %p76 = scmp.eq.s32.totalorder %s12, 2
      %p77 = scmp.ne.s32.totalorder %s72, %s74
      %p78 = scmp.eq.s32.totalorder %s12, 0
      %p79 = por %p77, %p78
      %p80 = scmp.ne.s32.totalorder %s72, %s74
      %p81 = scmp.eq.s32.totalorder %s17, 2
      %p82 = por %p80, %p81
      %p83 = scmp.ne.s32.totalorder %s74, %s75
      %p84 = scmp.eq.s32.totalorder %s17, 0
      %p85 = por %p83, %p84
      %p86 = scmp.ne.s32.totalorder %s74, %s75
      %p87 = scmp.eq.s32.totalorder %s18, 2
      %p88 = por %p86, %p87
      %p90 = scmp.ne.s32.totalorder %s75, %s89
      %p91 = scmp.eq.s32.totalorder %s18, 0
      %p92 = por %p90, %p91
      %s94 = sadd.s32 %s93, 1
      %p97 = scmp.eq.s32.totalorder %s12, 2
      %p98 = scmp.ne.s32.totalorder %s93, %s95
      %p99 = scmp.eq.s32.totalorder %s12, 0
      %p100 = por %p98, %p99
      %p101 = scmp.ne.s32.totalorder %s93, %s95
      %p102 = scmp.eq.s32.totalorder %s17, 2
      %p103 = por %p101, %p102
      %p104 = scmp.ne.s32.totalorder %s95, %s96
      %p105 = scmp.eq.s32.totalorder %s17, 0
      %p106 = por %p104, %p105
      %p107 = scmp.ne.s32.totalorder %s95, %s96
      %p108 = scmp.eq.s32.totalorder %s18, 2
      %p109 = por %p107, %p108
      %p111 = scmp.ne.s32.totalorder %s96, %s110
      %p112 = scmp.eq.s32.totalorder %s18, 0
      %p113 = por %p111, %p112
      %s115 = sadd.s32 %s114, 1
      %p118 = scmp.eq.s32.totalorder %s12, 2
      %p119 = scmp.ne.s32.totalorder %s114, %s116
      %p120 = scmp.eq.s32.totalorder %s12, 0
      %p121 = por %p119, %p120
      %p122 = scmp.ne.s32.totalorder %s114, %s116
      %p123 = scmp.eq.s32.totalorder %s17, 2
      %p124 = por %p122, %p123
      %p125 = scmp.ne.s32.totalorder %s116, %s117
      %p126 = scmp.eq.s32.totalorder %s17, 0
      %p127 = por %p125, %p126
      %p128 = scmp.ne.s32.totalorder %s116, %s117
      %p129 = scmp.eq.s32.totalorder %s18, 2
      %p130 = por %p128, %p129
      %p132 = scmp.ne.s32.totalorder %s117, %s131
      %p133 = scmp.eq.s32.totalorder %s18, 0
      %p134 = por %p132, %p133
      %s136 = sadd.s32 %s135, 1
      %p139 = scmp.eq.s32.totalorder %s12, 2
      %p140 = scmp.ne.s32.totalorder %s135, %s137
      %p141 = scmp.eq.s32.totalorder %s12, 0
      %p142 = por %p140, %p141
      %p143 = scmp.ne.s32.totalorder %s135, %s137
      %p144 = scmp.eq.s32.totalorder %s17, 2
      %p145 = por %p143, %p144
      %p146 = scmp.ne.s32.totalorder %s137, %s138
      %p147 = scmp.eq.s32.totalorder %s17, 0
      %p148 = por %p146, %p147
      %p149 = scmp.ne.s32.totalorder %s137, %s138
      %p150 = scmp.eq.s32.totalorder %s18, 2
      %p151 = por %p149, %p150
      %p153 = scmp.ne.s32.totalorder %s138, %s152
      %p154 = scmp.eq.s32.totalorder %s18, 0
      %p155 = por %p153, %p154
      %p156 = scmp.le.s32.totalorder 1, %s12
      %p157 = scmp.lt.s32.totalorder %s12, 4
      %p158 = pnand %p156, %p157
      %p159 = pneg %p158
      // Predicated region
      $region9: #{dqn_forward.7} parent=5 // pred_check
        _
      $region10: #{dqn_forward.7} parent=5 // pred_check_branch
        %161 = sbr.rel (%p158) target = $region12
      $region11: #{dqn_forward.7} parent=5 // pred_region
        %s162 = ssub.s32 %s12, 1
        // Predicated region
        $region13: #{dqn_forward.7} parent=11 // pred_check
          %p163 = pneg %p85
        $region14: #{dqn_forward.7} parent=11 // pred_check_branch
          %165 = sbr.rel (%p163) target = $region16
        $region15: #{dqn_forward.7} parent=11 // pred_region
          _
        $region16: #{dqn_forward.7} parent=11 // pred_fallthru
          _
        // Predicated region
        $region17: #{dqn_forward.7} parent=11 // pred_check
          %p166 = pneg %p106
        $region18: #{dqn_forward.7} parent=11 // pred_check_branch
          %168 = sbr.rel (%p166) target = $region20
        $region19: #{dqn_forward.7} parent=11 // pred_region
          _
        $region20: #{dqn_forward.7} parent=11 // pred_fallthru
          _
        // Predicated region
        $region21: #{dqn_forward.7} parent=11 // pred_check
          %p169 = pneg %p127
        $region22: #{dqn_forward.7} parent=11 // pred_check_branch
          %171 = sbr.rel (%p169) target = $region24
        $region23: #{dqn_forward.7} parent=11 // pred_region
          _
        $region24: #{dqn_forward.7} parent=11 // pred_fallthru
          _
      $region12: #{dqn_forward.7} parent=5 // pred_fallthru
        _
      %p172 = scmp.lt.s32.totalorder %s12, 3
      // Predicated region
      $region25: #{dqn_forward.7} parent=5 // pred_check
        %p173 = pneg %p172
      $region26: #{dqn_forward.7} parent=5 // pred_check_branch
        %175 = sbr.rel (%p173) target = $region28
      $region27: #{dqn_forward.7} parent=5 // pred_region
        // Predicated region
        $region29: #{dqn_forward.7} parent=27 // pred_check
          %p176 = pneg %p32
        $region30: #{dqn_forward.7} parent=27 // pred_check_branch
          %178 = sbr.rel (%p176) target = $region32
        $region31: #{dqn_forward.7} parent=27 // pred_region
          %s179 = smul.u32 48, %s12
          %p180 = scmp.lt.s32.totalorder %s179, 143
          %s181 = scalar_select %p180, %s179, 143
          %s182 = smul.addr %s181, 2
          %s183 = scalar_lea.vmem %s0, %s182
          %s184 = smul.u32 48, %s12
        $region32: #{dqn_forward.7} parent=27 // pred_fallthru
          _
        // Predicated region
        $region33: #{dqn_forward.7} parent=27 // pred_check
          %p185 = pneg %p58
        $region34: #{dqn_forward.7} parent=27 // pred_check_branch
          %187 = sbr.rel (%p185) target = $region36
        $region35: #{dqn_forward.7} parent=27 // pred_region
          %s188 = smul.u32 768, %s12
          %p189 = scmp.lt.s32.totalorder %s188, 2303
          %s190 = scalar_select %p189, %s188, 2303
          %s191 = smul.addr %s190, 8
          %s192 = scalar_lea.vmem %s1, %s191
          %s193 = smul.u32 768, %s12
        $region36: #{dqn_forward.7} parent=27 // pred_fallthru
          _
      $region28: #{dqn_forward.7} parent=5 // pred_fallthru
        _
      %p194 = scmp.le.s32.totalorder 1, %s12
      %p195 = scmp.lt.s32.totalorder %s12, 4
      %p196 = pnand %p194, %p195
      %p197 = pneg %p196
      // Predicated region
      $region37: #{dqn_forward.7} parent=5 // pred_check
        _
      $region38: #{dqn_forward.7} parent=5 // pred_check_branch
        %199 = sbr.rel (%p196) target = $region40
      $region39: #{dqn_forward.7} parent=5 // pred_region
        %s200 = ssub.s32 %s12, 1
        %s201 = smul.u32 48, %s17
        %p202 = scmp.lt.s32.totalorder %s201, 143
        %s203 = scalar_select %p202, %s201, 143
        %s204 = smul.addr %s203, 2
        %s205 = scalar_lea.vmem %s0, %s204
        %p206 = pneg %p38
        %p207 = pneg %p35
        %s208 = smul.u32 768, %s17
        %p209 = scmp.lt.s32.totalorder %s208, 2303
        %s210 = scalar_select %p209, %s208, 2303
        %s211 = smul.addr %s210, 8
        %s212 = scalar_lea.vmem %s1, %s211
        %p213 = pneg %p64
        %p214 = pneg %p61
        %p215 = pneg %p85
        %p216 = pneg %p82
        %p217 = pneg %p106
        %p218 = pneg %p103
        %p219 = pneg %p127
        %p220 = pneg %p124
        %p221 = pneg %p148
        %p222 = pneg %p145
        %s223 = smul.u32 48, %s17
        %p224 = scmp.lt.s32.totalorder %s223, 143
        %s225 = scalar_select %p224, %s223, 143
        %s226 = smul.addr %s225, 2
        %s227 = scalar_lea.vmem %s0, %s226
        %s228 = smul.u32 48, %s17
        %s229 = smul.u32 768, %s17
        %p230 = scmp.lt.s32.totalorder %s229, 2303
        %s231 = scalar_select %p230, %s229, 2303
        %s232 = smul.addr %s231, 8
        %s233 = scalar_lea.vmem %s1, %s232
        %s234 = smul.u32 768, %s17
        %p235 = scmp.eq.s32.totalorder %s17, 0
        // Predicated region
        $region41: #{dqn_forward.7} parent=39 // pred_check
          %p236 = pneg %p235
        $region42: #{dqn_forward.7} parent=39 // pred_check_branch
          %238 = sbr.rel (%p236) target = $region44
        $region43: #{dqn_forward.7} parent=39 // pred_region
          %239 = vst [vmem:[#allocation2] sm:$0x3] 0.0
        $region44: #{dqn_forward.7} parent=39 // pred_fallthru
          _
        %v240 = vld [vmem:[#allocation2] sm:$0x3]
        %v241 = vld [vmem:[%s227] sm:$0xff]
        %v242 = vld [vmem:[%s227 + $0x8] sm:$0xff]
        %v243 = vld [vmem:[%s227 + $0x10] sm:$0xff]
        %v244 = vld [vmem:[%s227 + $0x18] sm:$0xff]
        %v245 = vld [vmem:[%s227 + $0x20] sm:$0xff]
        %v246 = vld [vmem:[%s227 + $0x28] sm:$0xff]
        %v247 = vld [vmem:[%s227 + $0x30] sm:$0xff]
        %v248 = vld [vmem:[%s227 + $0x38] sm:$0xff]
        %v249 = vld [vmem:[%s227 + $0x40] sm:$0xff]
        %v250 = vld [vmem:[%s227 + $0x48] sm:$0xff]
        %v251 = vld [vmem:[%s227 + $0x50] sm:$0xff]
        %v252 = vld [vmem:[%s227 + $0x58] sm:$0xff]
        %v253 = vld [vmem:[%s233] sm:$0xff]
        %v254 = vld [vmem:[%s233 + $0x8] sm:$0xff]
        %v255 = vld [vmem:[%s233 + $0x10] sm:$0xff]
        %v256 = vld [vmem:[%s233 + $0x18] sm:$0xff]
        %v257 = vld [vmem:[%s233 + $0x20] sm:$0xff]
        %v258 = vld [vmem:[%s233 + $0x28] sm:$0xff]
        %v259 = vld [vmem:[%s233 + $0x30] sm:$0xff]
        %v260 = vld [vmem:[%s233 + $0x38] sm:$0xff]
        %v261 = vld [vmem:[%s233 + $0x40] sm:$0xff]
        %v262 = vld [vmem:[%s233 + $0x48] sm:$0xff]
        %v263 = vld [vmem:[%s233 + $0x50] sm:$0xff]
        %v264 = vld [vmem:[%s233 + $0x58] sm:$0xff]
        %v265 = vld [vmem:[%s233 + $0x60] sm:$0xff]
        %v266 = vld [vmem:[%s233 + $0x68] sm:$0xff]
        %v267 = vld [vmem:[%s233 + $0x70] sm:$0xff]
        %v268 = vld [vmem:[%s233 + $0x78] sm:$0xff]
        %v269 = vld [vmem:[%s233 + $0x80] sm:$0xff]
        %v270 = vld [vmem:[%s233 + $0x88] sm:$0xff]
        %v271 = vld [vmem:[%s233 + $0x90] sm:$0xff]
        %v272 = vld [vmem:[%s233 + $0x98] sm:$0xff]
        %v273 = vld [vmem:[%s233 + $0xa0] sm:$0xff]
        %v274 = vld [vmem:[%s233 + $0xa8] sm:$0xff]
        %v275 = vld [vmem:[%s233 + $0xb0] sm:$0xff]
        %v276 = vld [vmem:[%s233 + $0xb8] sm:$0xff]
        %v277 = vld [vmem:[%s233 + $0xc0] sm:$0xff]
        %v278 = vld [vmem:[%s233 + $0xc8] sm:$0xff]
        %v279 = vld [vmem:[%s233 + $0xd0] sm:$0xff]
        %v280 = vld [vmem:[%s233 + $0xd8] sm:$0xff]
        %v281 = vld [vmem:[%s233 + $0xe0] sm:$0xff]
        %v282 = vld [vmem:[%s233 + $0xe8] sm:$0xff]
        %v283 = vld [vmem:[%s233 + $0xf0] sm:$0xff]
        %v284 = vld [vmem:[%s233 + $0xf8] sm:$0xff]
        %v285 = vld [vmem:[%s233 + $0x100] sm:$0xff]
        %v286 = vld [vmem:[%s233 + $0x108] sm:$0xff]
        %v287 = vld [vmem:[%s233 + $0x110] sm:$0xff]
        %v288 = vld [vmem:[%s233 + $0x118] sm:$0xff]
        %v289 = vld [vmem:[%s233 + $0x120] sm:$0xff]
        %v290 = vld [vmem:[%s233 + $0x128] sm:$0xff]
        %v291 = vld [vmem:[%s233 + $0x130] sm:$0xff]
        %v292 = vld [vmem:[%s233 + $0x138] sm:$0xff]
        %v293 = vld [vmem:[%s233 + $0x140] sm:$0xff]
        %v294 = vld [vmem:[%s233 + $0x148] sm:$0xff]
        %v295 = vld [vmem:[%s233 + $0x150] sm:$0xff]
        %v296 = vld [vmem:[%s233 + $0x158] sm:$0xff]
        %v297 = vld [vmem:[%s233 + $0x160] sm:$0xff]
        %v298 = vld [vmem:[%s233 + $0x168] sm:$0xff]
        %v299 = vld [vmem:[%s233 + $0x170] sm:$0xff]
        %v300 = vld [vmem:[%s233 + $0x178] sm:$0xff]
        %v301 = vld [vmem:[%s233 + $0x180] sm:$0xff]
        %v302 = vld [vmem:[%s233 + $0x188] sm:$0xff]
        %v303 = vld [vmem:[%s233 + $0x190] sm:$0xff]
        %v304 = vld [vmem:[%s233 + $0x198] sm:$0xff]
        %v305 = vld [vmem:[%s233 + $0x1a0] sm:$0xff]
        %v306 = vld [vmem:[%s233 + $0x1a8] sm:$0xff]
        %v307 = vld [vmem:[%s233 + $0x1b0] sm:$0xff]
        %v308 = vld [vmem:[%s233 + $0x1b8] sm:$0xff]
        %v309 = vld [vmem:[%s233 + $0x1c0] sm:$0xff]
        %v310 = vld [vmem:[%s233 + $0x1c8] sm:$0xff]
        %v311 = vld [vmem:[%s233 + $0x1d0] sm:$0xff]
        %v312 = vld [vmem:[%s233 + $0x1d8] sm:$0xff]
        %v313 = vld [vmem:[%s233 + $0x1e0] sm:$0xff]
        %v314 = vld [vmem:[%s233 + $0x1e8] sm:$0xff]
        %v315 = vld [vmem:[%s233 + $0x1f0] sm:$0xff]
        %v316 = vld [vmem:[%s233 + $0x1f8] sm:$0xff]
        %v317 = vld [vmem:[%s233 + $0x200] sm:$0xff]
        %v318 = vld [vmem:[%s233 + $0x208] sm:$0xff]
        %v319 = vld [vmem:[%s233 + $0x210] sm:$0xff]
        %v320 = vld [vmem:[%s233 + $0x218] sm:$0xff]
        %v321 = vld [vmem:[%s233 + $0x220] sm:$0xff]
        %v322 = vld [vmem:[%s233 + $0x228] sm:$0xff]
        %v323 = vld [vmem:[%s233 + $0x230] sm:$0xff]
        %v324 = vld [vmem:[%s233 + $0x238] sm:$0xff]
        %v325 = vld [vmem:[%s233 + $0x240] sm:$0xff]
        %v326 = vld [vmem:[%s233 + $0x248] sm:$0xff]
        %v327 = vld [vmem:[%s233 + $0x250] sm:$0xff]
        %v328 = vld [vmem:[%s233 + $0x258] sm:$0xff]
        %v329 = vld [vmem:[%s233 + $0x260] sm:$0xff]
        %v330 = vld [vmem:[%s233 + $0x268] sm:$0xff]
        %v331 = vld [vmem:[%s233 + $0x270] sm:$0xff]
        %v332 = vld [vmem:[%s233 + $0x278] sm:$0xff]
        %v333 = vld [vmem:[%s233 + $0x280] sm:$0xff]
        %v334 = vld [vmem:[%s233 + $0x288] sm:$0xff]
        %v335 = vld [vmem:[%s233 + $0x290] sm:$0xff]
        %v336 = vld [vmem:[%s233 + $0x298] sm:$0xff]
        %v337 = vld [vmem:[%s233 + $0x2a0] sm:$0xff]
        %v338 = vld [vmem:[%s233 + $0x2a8] sm:$0xff]
        %v339 = vld [vmem:[%s233 + $0x2b0] sm:$0xff]
        %v340 = vld [vmem:[%s233 + $0x2b8] sm:$0xff]
        %v341 = vld [vmem:[%s233 + $0x2c0] sm:$0xff]
        %v342 = vld [vmem:[%s233 + $0x2c8] sm:$0xff]
        %v343 = vld [vmem:[%s233 + $0x2d0] sm:$0xff]
        %v344 = vld [vmem:[%s233 + $0x2d8] sm:$0xff]
        %v345 = vld [vmem:[%s233 + $0x2e0] sm:$0xff]
        %v346 = vld [vmem:[%s233 + $0x2e8] sm:$0xff]
        %v347 = vld [vmem:[%s233 + $0x2f0] sm:$0xff]
        %v348 = vld [vmem:[%s233 + $0x2f8] sm:$0xff]
        %v349 = vld [vmem:[%s233 + $0x300] sm:$0xff]
        %v350 = vld [vmem:[%s233 + $0x308] sm:$0xff]
        %v351 = vld [vmem:[%s233 + $0x310] sm:$0xff]
        %v352 = vld [vmem:[%s233 + $0x318] sm:$0xff]
        %v353 = vld [vmem:[%s233 + $0x320] sm:$0xff]
        %v354 = vld [vmem:[%s233 + $0x328] sm:$0xff]
        %v355 = vld [vmem:[%s233 + $0x330] sm:$0xff]
        %v356 = vld [vmem:[%s233 + $0x338] sm:$0xff]
        %v357 = vld [vmem:[%s233 + $0x340] sm:$0xff]
        %v358 = vld [vmem:[%s233 + $0x348] sm:$0xff]
        %v359 = vld [vmem:[%s233 + $0x350] sm:$0xff]
        %v360 = vld [vmem:[%s233 + $0x358] sm:$0xff]
        %v361 = vld [vmem:[%s233 + $0x360] sm:$0xff]
        %v362 = vld [vmem:[%s233 + $0x368] sm:$0xff]
        %v363 = vld [vmem:[%s233 + $0x370] sm:$0xff]
        %v364 = vld [vmem:[%s233 + $0x378] sm:$0xff]
        %v365 = vld [vmem:[%s233 + $0x380] sm:$0xff]
        %v366 = vld [vmem:[%s233 + $0x388] sm:$0xff]
        %v367 = vld [vmem:[%s233 + $0x390] sm:$0xff]
        %v368 = vld [vmem:[%s233 + $0x398] sm:$0xff]
        %v369 = vld [vmem:[%s233 + $0x3a0] sm:$0xff]
        %v370 = vld [vmem:[%s233 + $0x3a8] sm:$0xff]
        %v371 = vld [vmem:[%s233 + $0x3b0] sm:$0xff]
        %v372 = vld [vmem:[%s233 + $0x3b8] sm:$0xff]
        %v373 = vld [vmem:[%s233 + $0x3c0] sm:$0xff]
        %v374 = vld [vmem:[%s233 + $0x3c8] sm:$0xff]
        %v375 = vld [vmem:[%s233 + $0x3d0] sm:$0xff]
        %v376 = vld [vmem:[%s233 + $0x3d8] sm:$0xff]
        %v377 = vld [vmem:[%s233 + $0x3e0] sm:$0xff]
        %v378 = vld [vmem:[%s233 + $0x3e8] sm:$0xff]
        %v379 = vld [vmem:[%s233 + $0x3f0] sm:$0xff]
        %v380 = vld [vmem:[%s233 + $0x3f8] sm:$0xff]
        %v381 = vld [vmem:[%s233 + $0x400] sm:$0xff]
        %v382 = vld [vmem:[%s233 + $0x408] sm:$0xff]
        %v383 = vld [vmem:[%s233 + $0x410] sm:$0xff]
        %v384 = vld [vmem:[%s233 + $0x418] sm:$0xff]
        %v385 = vld [vmem:[%s233 + $0x420] sm:$0xff]
        %v386 = vld [vmem:[%s233 + $0x428] sm:$0xff]
        %v387 = vld [vmem:[%s233 + $0x430] sm:$0xff]
        %v388 = vld [vmem:[%s233 + $0x438] sm:$0xff]
        %v389 = vld [vmem:[%s233 + $0x440] sm:$0xff]
        %v390 = vld [vmem:[%s233 + $0x448] sm:$0xff]
        %v391 = vld [vmem:[%s233 + $0x450] sm:$0xff]
        %v392 = vld [vmem:[%s233 + $0x458] sm:$0xff]
        %v393 = vld [vmem:[%s233 + $0x460] sm:$0xff]
        %v394 = vld [vmem:[%s233 + $0x468] sm:$0xff]
        %v395 = vld [vmem:[%s233 + $0x470] sm:$0xff]
        %v396 = vld [vmem:[%s233 + $0x478] sm:$0xff]
        %v397 = vld [vmem:[%s233 + $0x480] sm:$0xff]
        %v398 = vld [vmem:[%s233 + $0x488] sm:$0xff]
        %v399 = vld [vmem:[%s233 + $0x490] sm:$0xff]
        %v400 = vld [vmem:[%s233 + $0x498] sm:$0xff]
        %v401 = vld [vmem:[%s233 + $0x4a0] sm:$0xff]
        %v402 = vld [vmem:[%s233 + $0x4a8] sm:$0xff]
        %v403 = vld [vmem:[%s233 + $0x4b0] sm:$0xff]
        %v404 = vld [vmem:[%s233 + $0x4b8] sm:$0xff]
        %v405 = vld [vmem:[%s233 + $0x4c0] sm:$0xff]
        %v406 = vld [vmem:[%s233 + $0x4c8] sm:$0xff]
        %v407 = vld [vmem:[%s233 + $0x4d0] sm:$0xff]
        %v408 = vld [vmem:[%s233 + $0x4d8] sm:$0xff]
        %v409 = vld [vmem:[%s233 + $0x4e0] sm:$0xff]
        %v410 = vld [vmem:[%s233 + $0x4e8] sm:$0xff]
        %v411 = vld [vmem:[%s233 + $0x4f0] sm:$0xff]
        %v412 = vld [vmem:[%s233 + $0x4f8] sm:$0xff]
        %v413 = vld [vmem:[%s233 + $0x500] sm:$0xff]
        %v414 = vld [vmem:[%s233 + $0x508] sm:$0xff]
        %v415 = vld [vmem:[%s233 + $0x510] sm:$0xff]
        %v416 = vld [vmem:[%s233 + $0x518] sm:$0xff]
        %v417 = vld [vmem:[%s233 + $0x520] sm:$0xff]
        %v418 = vld [vmem:[%s233 + $0x528] sm:$0xff]
        %v419 = vld [vmem:[%s233 + $0x530] sm:$0xff]
        %v420 = vld [vmem:[%s233 + $0x538] sm:$0xff]
        %v421 = vld [vmem:[%s233 + $0x540] sm:$0xff]
        %v422 = vld [vmem:[%s233 + $0x548] sm:$0xff]
        %v423 = vld [vmem:[%s233 + $0x550] sm:$0xff]
        %v424 = vld [vmem:[%s233 + $0x558] sm:$0xff]
        %v425 = vld [vmem:[%s233 + $0x560] sm:$0xff]
        %v426 = vld [vmem:[%s233 + $0x568] sm:$0xff]
        %v427 = vld [vmem:[%s233 + $0x570] sm:$0xff]
        %v428 = vld [vmem:[%s233 + $0x578] sm:$0xff]
        %v429 = vld [vmem:[%s233 + $0x580] sm:$0xff]
        %v430 = vld [vmem:[%s233 + $0x588] sm:$0xff]
        %v431 = vld [vmem:[%s233 + $0x590] sm:$0xff]
        %v432 = vld [vmem:[%s233 + $0x598] sm:$0xff]
        %v433 = vld [vmem:[%s233 + $0x5a0] sm:$0xff]
        %v434 = vld [vmem:[%s233 + $0x5a8] sm:$0xff]
        %v435 = vld [vmem:[%s233 + $0x5b0] sm:$0xff]
        %v436 = vld [vmem:[%s233 + $0x5b8] sm:$0xff]
        %v437 = vld [vmem:[%s233 + $0x5c0] sm:$0xff]
        %v438 = vld [vmem:[%s233 + $0x5c8] sm:$0xff]
        %v439 = vld [vmem:[%s233 + $0x5d0] sm:$0xff]
        %v440 = vld [vmem:[%s233 + $0x5d8] sm:$0xff]
        %v441 = vld [vmem:[%s233 + $0x5e0] sm:$0xff]
        %v442 = vld [vmem:[%s233 + $0x5e8] sm:$0xff]
        %v443 = vld [vmem:[%s233 + $0x5f0] sm:$0xff]
        %v444 = vld [vmem:[%s233 + $0x5f8] sm:$0xff]
        %v445 = vld [vmem:[%s233 + $0x600] sm:$0xff]
        %v446 = vld [vmem:[%s233 + $0x608] sm:$0xff]
        %v447 = vld [vmem:[%s233 + $0x610] sm:$0xff]
        %v448 = vld [vmem:[%s233 + $0x618] sm:$0xff]
        %v449 = vld [vmem:[%s233 + $0x620] sm:$0xff]
        %v450 = vld [vmem:[%s233 + $0x628] sm:$0xff]
        %v451 = vld [vmem:[%s233 + $0x630] sm:$0xff]
        %v452 = vld [vmem:[%s233 + $0x638] sm:$0xff]
        %v453 = vld [vmem:[%s233 + $0x640] sm:$0xff]
        %v454 = vld [vmem:[%s233 + $0x648] sm:$0xff]
        %v455 = vld [vmem:[%s233 + $0x650] sm:$0xff]
        %v456 = vld [vmem:[%s233 + $0x658] sm:$0xff]
        %v457 = vld [vmem:[%s233 + $0x660] sm:$0xff]
        %v458 = vld [vmem:[%s233 + $0x668] sm:$0xff]
        %v459 = vld [vmem:[%s233 + $0x670] sm:$0xff]
        %v460 = vld [vmem:[%s233 + $0x678] sm:$0xff]
        %v461 = vld [vmem:[%s233 + $0x680] sm:$0xff]
        %v462 = vld [vmem:[%s233 + $0x688] sm:$0xff]
        %v463 = vld [vmem:[%s233 + $0x690] sm:$0xff]
        %v464 = vld [vmem:[%s233 + $0x698] sm:$0xff]
        %v465 = vld [vmem:[%s233 + $0x6a0] sm:$0xff]
        %v466 = vld [vmem:[%s233 + $0x6a8] sm:$0xff]
        %v467 = vld [vmem:[%s233 + $0x6b0] sm:$0xff]
        %v468 = vld [vmem:[%s233 + $0x6b8] sm:$0xff]
        %v469 = vld [vmem:[%s233 + $0x6c0] sm:$0xff]
        %v470 = vld [vmem:[%s233 + $0x6c8] sm:$0xff]
        %v471 = vld [vmem:[%s233 + $0x6d0] sm:$0xff]
        %v472 = vld [vmem:[%s233 + $0x6d8] sm:$0xff]
        %v473 = vld [vmem:[%s233 + $0x6e0] sm:$0xff]
        %v474 = vld [vmem:[%s233 + $0x6e8] sm:$0xff]
        %v475 = vld [vmem:[%s233 + $0x6f0] sm:$0xff]
        %v476 = vld [vmem:[%s233 + $0x6f8] sm:$0xff]
        %v477 = vld [vmem:[%s233 + $0x700] sm:$0xff]
        %v478 = vld [vmem:[%s233 + $0x708] sm:$0xff]
        %v479 = vld [vmem:[%s233 + $0x710] sm:$0xff]
        %v480 = vld [vmem:[%s233 + $0x718] sm:$0xff]
        %v481 = vld [vmem:[%s233 + $0x720] sm:$0xff]
        %v482 = vld [vmem:[%s233 + $0x728] sm:$0xff]
        %v483 = vld [vmem:[%s233 + $0x730] sm:$0xff]
        %v484 = vld [vmem:[%s233 + $0x738] sm:$0xff]
        %v485 = vld [vmem:[%s233 + $0x740] sm:$0xff]
        %v486 = vld [vmem:[%s233 + $0x748] sm:$0xff]
        %v487 = vld [vmem:[%s233 + $0x750] sm:$0xff]
        %v488 = vld [vmem:[%s233 + $0x758] sm:$0xff]
        %v489 = vld [vmem:[%s233 + $0x760] sm:$0xff]
        %v490 = vld [vmem:[%s233 + $0x768] sm:$0xff]
        %v491 = vld [vmem:[%s233 + $0x770] sm:$0xff]
        %v492 = vld [vmem:[%s233 + $0x778] sm:$0xff]
        %v493 = vld [vmem:[%s233 + $0x780] sm:$0xff]
        %v494 = vld [vmem:[%s233 + $0x788] sm:$0xff]
        %v495 = vld [vmem:[%s233 + $0x790] sm:$0xff]
        %v496 = vld [vmem:[%s233 + $0x798] sm:$0xff]
        %v497 = vld [vmem:[%s233 + $0x7a0] sm:$0xff]
        %v498 = vld [vmem:[%s233 + $0x7a8] sm:$0xff]
        %v499 = vld [vmem:[%s233 + $0x7b0] sm:$0xff]
        %v500 = vld [vmem:[%s233 + $0x7b8] sm:$0xff]
        %v501 = vld [vmem:[%s233 + $0x7c0] sm:$0xff]
        %v502 = vld [vmem:[%s233 + $0x7c8] sm:$0xff]
        %v503 = vld [vmem:[%s233 + $0x7d0] sm:$0xff]
        %v504 = vld [vmem:[%s233 + $0x7d8] sm:$0xff]
        %v505 = vld [vmem:[%s233 + $0x7e0] sm:$0xff]
        %v506 = vld [vmem:[%s233 + $0x7e8] sm:$0xff]
        %v507 = vld [vmem:[%s233 + $0x7f0] sm:$0xff]
        %v508 = vld [vmem:[%s233 + $0x7f8] sm:$0xff]
        %v509 = vld [vmem:[%s233 + $0x800] sm:$0xff]
        %v510 = vld [vmem:[%s233 + $0x808] sm:$0xff]
        %v511 = vld [vmem:[%s233 + $0x810] sm:$0xff]
        %v512 = vld [vmem:[%s233 + $0x818] sm:$0xff]
        %v513 = vld [vmem:[%s233 + $0x820] sm:$0xff]
        %v514 = vld [vmem:[%s233 + $0x828] sm:$0xff]
        %v515 = vld [vmem:[%s233 + $0x830] sm:$0xff]
        %v516 = vld [vmem:[%s233 + $0x838] sm:$0xff]
        %v517 = vld [vmem:[%s233 + $0x840] sm:$0xff]
        %v518 = vld [vmem:[%s233 + $0x848] sm:$0xff]
        %v519 = vld [vmem:[%s233 + $0x850] sm:$0xff]
        %v520 = vld [vmem:[%s233 + $0x858] sm:$0xff]
        %v521 = vld [vmem:[%s233 + $0x860] sm:$0xff]
        %v522 = vld [vmem:[%s233 + $0x868] sm:$0xff]
        %v523 = vld [vmem:[%s233 + $0x870] sm:$0xff]
        %v524 = vld [vmem:[%s233 + $0x878] sm:$0xff]
        %v525 = vld [vmem:[%s233 + $0x880] sm:$0xff]
        %v526 = vld [vmem:[%s233 + $0x888] sm:$0xff]
        %v527 = vld [vmem:[%s233 + $0x890] sm:$0xff]
        %v528 = vld [vmem:[%s233 + $0x898] sm:$0xff]
        %v529 = vld [vmem:[%s233 + $0x8a0] sm:$0xff]
        %v530 = vld [vmem:[%s233 + $0x8a8] sm:$0xff]
        %v531 = vld [vmem:[%s233 + $0x8b0] sm:$0xff]
        %v532 = vld [vmem:[%s233 + $0x8b8] sm:$0xff]
        %v533 = vld [vmem:[%s233 + $0x8c0] sm:$0xff]
        %v534 = vld [vmem:[%s233 + $0x8c8] sm:$0xff]
        %v535 = vld [vmem:[%s233 + $0x8d0] sm:$0xff]
        %v536 = vld [vmem:[%s233 + $0x8d8] sm:$0xff]
        %v537 = vld [vmem:[%s233 + $0x8e0] sm:$0xff]
        %v538 = vld [vmem:[%s233 + $0x8e8] sm:$0xff]
        %v539 = vld [vmem:[%s233 + $0x8f0] sm:$0xff]
        %v540 = vld [vmem:[%s233 + $0x8f8] sm:$0xff]
        %v541 = vld [vmem:[%s233 + $0x900] sm:$0xff]
        %v542 = vld [vmem:[%s233 + $0x908] sm:$0xff]
        %v543 = vld [vmem:[%s233 + $0x910] sm:$0xff]
        %v544 = vld [vmem:[%s233 + $0x918] sm:$0xff]
        %v545 = vld [vmem:[%s233 + $0x920] sm:$0xff]
        %v546 = vld [vmem:[%s233 + $0x928] sm:$0xff]
        %v547 = vld [vmem:[%s233 + $0x930] sm:$0xff]
        %v548 = vld [vmem:[%s233 + $0x938] sm:$0xff]
        %v549 = vld [vmem:[%s233 + $0x940] sm:$0xff]
        %v550 = vld [vmem:[%s233 + $0x948] sm:$0xff]
        %v551 = vld [vmem:[%s233 + $0x950] sm:$0xff]
        %v552 = vld [vmem:[%s233 + $0x958] sm:$0xff]
        %v553 = vld [vmem:[%s233 + $0x960] sm:$0xff]
        %v554 = vld [vmem:[%s233 + $0x968] sm:$0xff]
        %v555 = vld [vmem:[%s233 + $0x970] sm:$0xff]
        %v556 = vld [vmem:[%s233 + $0x978] sm:$0xff]
        %v557 = vld [vmem:[%s233 + $0x980] sm:$0xff]
        %v558 = vld [vmem:[%s233 + $0x988] sm:$0xff]
        %v559 = vld [vmem:[%s233 + $0x990] sm:$0xff]
        %v560 = vld [vmem:[%s233 + $0x998] sm:$0xff]
        %v561 = vld [vmem:[%s233 + $0x9a0] sm:$0xff]
        %v562 = vld [vmem:[%s233 + $0x9a8] sm:$0xff]
        %v563 = vld [vmem:[%s233 + $0x9b0] sm:$0xff]
        %v564 = vld [vmem:[%s233 + $0x9b8] sm:$0xff]
        %v565 = vld [vmem:[%s233 + $0x9c0] sm:$0xff]
        %v566 = vld [vmem:[%s233 + $0x9c8] sm:$0xff]
        %v567 = vld [vmem:[%s233 + $0x9d0] sm:$0xff]
        %v568 = vld [vmem:[%s233 + $0x9d8] sm:$0xff]
        %v569 = vld [vmem:[%s233 + $0x9e0] sm:$0xff]
        %v570 = vld [vmem:[%s233 + $0x9e8] sm:$0xff]
        %v571 = vld [vmem:[%s233 + $0x9f0] sm:$0xff]
        %v572 = vld [vmem:[%s233 + $0x9f8] sm:$0xff]
        %v573 = vld [vmem:[%s233 + $0xa00] sm:$0xff]
        %v574 = vld [vmem:[%s233 + $0xa08] sm:$0xff]
        %v575 = vld [vmem:[%s233 + $0xa10] sm:$0xff]
        %v576 = vld [vmem:[%s233 + $0xa18] sm:$0xff]
        %v577 = vld [vmem:[%s233 + $0xa20] sm:$0xff]
        %v578 = vld [vmem:[%s233 + $0xa28] sm:$0xff]
        %v579 = vld [vmem:[%s233 + $0xa30] sm:$0xff]
        %v580 = vld [vmem:[%s233 + $0xa38] sm:$0xff]
        %v581 = vld [vmem:[%s233 + $0xa40] sm:$0xff]
        %v582 = vld [vmem:[%s233 + $0xa48] sm:$0xff]
        %v583 = vld [vmem:[%s233 + $0xa50] sm:$0xff]
        %v584 = vld [vmem:[%s233 + $0xa58] sm:$0xff]
        %v585 = vld [vmem:[%s233 + $0xa60] sm:$0xff]
        %v586 = vld [vmem:[%s233 + $0xa68] sm:$0xff]
        %v587 = vld [vmem:[%s233 + $0xa70] sm:$0xff]
        %v588 = vld [vmem:[%s233 + $0xa78] sm:$0xff]
        %v589 = vld [vmem:[%s233 + $0xa80] sm:$0xff]
        %v590 = vld [vmem:[%s233 + $0xa88] sm:$0xff]
        %v591 = vld [vmem:[%s233 + $0xa90] sm:$0xff]
        %v592 = vld [vmem:[%s233 + $0xa98] sm:$0xff]
        %v593 = vld [vmem:[%s233 + $0xaa0] sm:$0xff]
        %v594 = vld [vmem:[%s233 + $0xaa8] sm:$0xff]
        %v595 = vld [vmem:[%s233 + $0xab0] sm:$0xff]
        %v596 = vld [vmem:[%s233 + $0xab8] sm:$0xff]
        %v597 = vld [vmem:[%s233 + $0xac0] sm:$0xff]
        %v598 = vld [vmem:[%s233 + $0xac8] sm:$0xff]
        %v599 = vld [vmem:[%s233 + $0xad0] sm:$0xff]
        %v600 = vld [vmem:[%s233 + $0xad8] sm:$0xff]
        %v601 = vld [vmem:[%s233 + $0xae0] sm:$0xff]
        %v602 = vld [vmem:[%s233 + $0xae8] sm:$0xff]
        %v603 = vld [vmem:[%s233 + $0xaf0] sm:$0xff]
        %v604 = vld [vmem:[%s233 + $0xaf8] sm:$0xff]
        %v605 = vld [vmem:[%s233 + $0xb00] sm:$0xff]
        %v606 = vld [vmem:[%s233 + $0xb08] sm:$0xff]
        %v607 = vld [vmem:[%s233 + $0xb10] sm:$0xff]
        %v608 = vld [vmem:[%s233 + $0xb18] sm:$0xff]
        %v609 = vld [vmem:[%s233 + $0xb20] sm:$0xff]
        %v610 = vld [vmem:[%s233 + $0xb28] sm:$0xff]
        %v611 = vld [vmem:[%s233 + $0xb30] sm:$0xff]
        %v612 = vld [vmem:[%s233 + $0xb38] sm:$0xff]
        %v613 = vld [vmem:[%s233 + $0xb40] sm:$0xff]
        %v614 = vld [vmem:[%s233 + $0xb48] sm:$0xff]
        %v615 = vld [vmem:[%s233 + $0xb50] sm:$0xff]
        %v616 = vld [vmem:[%s233 + $0xb58] sm:$0xff]
        %v617 = vld [vmem:[%s233 + $0xb60] sm:$0xff]
        %v618 = vld [vmem:[%s233 + $0xb68] sm:$0xff]
        %v619 = vld [vmem:[%s233 + $0xb70] sm:$0xff]
        %v620 = vld [vmem:[%s233 + $0xb78] sm:$0xff]
        %v621 = vld [vmem:[%s233 + $0xb80] sm:$0xff]
        %v622 = vld [vmem:[%s233 + $0xb88] sm:$0xff]
        %v623 = vld [vmem:[%s233 + $0xb90] sm:$0xff]
        %v624 = vld [vmem:[%s233 + $0xb98] sm:$0xff]
        %v625 = vld [vmem:[%s233 + $0xba0] sm:$0xff]
        %v626 = vld [vmem:[%s233 + $0xba8] sm:$0xff]
        %v627 = vld [vmem:[%s233 + $0xbb0] sm:$0xff]
        %v628 = vld [vmem:[%s233 + $0xbb8] sm:$0xff]
        %v629 = vld [vmem:[%s233 + $0xbc0] sm:$0xff]
        %v630 = vld [vmem:[%s233 + $0xbc8] sm:$0xff]
        %v631 = vld [vmem:[%s233 + $0xbd0] sm:$0xff]
        %v632 = vld [vmem:[%s233 + $0xbd8] sm:$0xff]
        %v633 = vld [vmem:[%s233 + $0xbe0] sm:$0xff]
        %v634 = vld [vmem:[%s233 + $0xbe8] sm:$0xff]
        %v635 = vld [vmem:[%s233 + $0xbf0] sm:$0xff]
        %v636 = vld [vmem:[%s233 + $0xbf8] sm:$0xff]
        %v637 = vld [vmem:[%s233 + $0xc00] sm:$0xff]
        %v638 = vld [vmem:[%s233 + $0xc08] sm:$0xff]
        %v639 = vld [vmem:[%s233 + $0xc10] sm:$0xff]
        %v640 = vld [vmem:[%s233 + $0xc18] sm:$0xff]
        %v641 = vld [vmem:[%s233 + $0xc20] sm:$0xff]
        %v642 = vld [vmem:[%s233 + $0xc28] sm:$0xff]
        %v643 = vld [vmem:[%s233 + $0xc30] sm:$0xff]
        %v644 = vld [vmem:[%s233 + $0xc38] sm:$0xff]
        %v645 = vld [vmem:[%s233 + $0xc40] sm:$0xff]
        %v646 = vld [vmem:[%s233 + $0xc48] sm:$0xff]
        %v647 = vld [vmem:[%s233 + $0xc50] sm:$0xff]
        %v648 = vld [vmem:[%s233 + $0xc58] sm:$0xff]
        %v649 = vld [vmem:[%s233 + $0xc60] sm:$0xff]
        %v650 = vld [vmem:[%s233 + $0xc68] sm:$0xff]
        %v651 = vld [vmem:[%s233 + $0xc70] sm:$0xff]
        %v652 = vld [vmem:[%s233 + $0xc78] sm:$0xff]
        %v653 = vld [vmem:[%s233 + $0xc80] sm:$0xff]
        %v654 = vld [vmem:[%s233 + $0xc88] sm:$0xff]
        %v655 = vld [vmem:[%s233 + $0xc90] sm:$0xff]
        %v656 = vld [vmem:[%s233 + $0xc98] sm:$0xff]
        %v657 = vld [vmem:[%s233 + $0xca0] sm:$0xff]
        %v658 = vld [vmem:[%s233 + $0xca8] sm:$0xff]
        %v659 = vld [vmem:[%s233 + $0xcb0] sm:$0xff]
        %v660 = vld [vmem:[%s233 + $0xcb8] sm:$0xff]
        %v661 = vld [vmem:[%s233 + $0xcc0] sm:$0xff]
        %v662 = vld [vmem:[%s233 + $0xcc8] sm:$0xff]
        %v663 = vld [vmem:[%s233 + $0xcd0] sm:$0xff]
        %v664 = vld [vmem:[%s233 + $0xcd8] sm:$0xff]
        %v665 = vld [vmem:[%s233 + $0xce0] sm:$0xff]
        %v666 = vld [vmem:[%s233 + $0xce8] sm:$0xff]
        %v667 = vld [vmem:[%s233 + $0xcf0] sm:$0xff]
        %v668 = vld [vmem:[%s233 + $0xcf8] sm:$0xff]
        %v669 = vld [vmem:[%s233 + $0xd00] sm:$0xff]
        %v670 = vld [vmem:[%s233 + $0xd08] sm:$0xff]
        %v671 = vld [vmem:[%s233 + $0xd10] sm:$0xff]
        %v672 = vld [vmem:[%s233 + $0xd18] sm:$0xff]
        %v673 = vld [vmem:[%s233 + $0xd20] sm:$0xff]
        %v674 = vld [vmem:[%s233 + $0xd28] sm:$0xff]
        %v675 = vld [vmem:[%s233 + $0xd30] sm:$0xff]
        %v676 = vld [vmem:[%s233 + $0xd38] sm:$0xff]
        %v677 = vld [vmem:[%s233 + $0xd40] sm:$0xff]
        %v678 = vld [vmem:[%s233 + $0xd48] sm:$0xff]
        %v679 = vld [vmem:[%s233 + $0xd50] sm:$0xff]
        %v680 = vld [vmem:[%s233 + $0xd58] sm:$0xff]
        %v681 = vld [vmem:[%s233 + $0xd60] sm:$0xff]
        %v682 = vld [vmem:[%s233 + $0xd68] sm:$0xff]
        %v683 = vld [vmem:[%s233 + $0xd70] sm:$0xff]
        %v684 = vld [vmem:[%s233 + $0xd78] sm:$0xff]
        %v685 = vld [vmem:[%s233 + $0xd80] sm:$0xff]
        %v686 = vld [vmem:[%s233 + $0xd88] sm:$0xff]
        %v687 = vld [vmem:[%s233 + $0xd90] sm:$0xff]
        %v688 = vld [vmem:[%s233 + $0xd98] sm:$0xff]
        %v689 = vld [vmem:[%s233 + $0xda0] sm:$0xff]
        %v690 = vld [vmem:[%s233 + $0xda8] sm:$0xff]
        %v691 = vld [vmem:[%s233 + $0xdb0] sm:$0xff]
        %v692 = vld [vmem:[%s233 + $0xdb8] sm:$0xff]
        %v693 = vld [vmem:[%s233 + $0xdc0] sm:$0xff]
        %v694 = vld [vmem:[%s233 + $0xdc8] sm:$0xff]
        %v695 = vld [vmem:[%s233 + $0xdd0] sm:$0xff]
        %v696 = vld [vmem:[%s233 + $0xdd8] sm:$0xff]
        %v697 = vld [vmem:[%s233 + $0xde0] sm:$0xff]
        %v698 = vld [vmem:[%s233 + $0xde8] sm:$0xff]
        %v699 = vld [vmem:[%s233 + $0xdf0] sm:$0xff]
        %v700 = vld [vmem:[%s233 + $0xdf8] sm:$0xff]
        %v701 = vld [vmem:[%s233 + $0xe00] sm:$0xff]
        %v702 = vld [vmem:[%s233 + $0xe08] sm:$0xff]
        %v703 = vld [vmem:[%s233 + $0xe10] sm:$0xff]
        %v704 = vld [vmem:[%s233 + $0xe18] sm:$0xff]
        %v705 = vld [vmem:[%s233 + $0xe20] sm:$0xff]
        %v706 = vld [vmem:[%s233 + $0xe28] sm:$0xff]
        %v707 = vld [vmem:[%s233 + $0xe30] sm:$0xff]
        %v708 = vld [vmem:[%s233 + $0xe38] sm:$0xff]
        %v709 = vld [vmem:[%s233 + $0xe40] sm:$0xff]
        %v710 = vld [vmem:[%s233 + $0xe48] sm:$0xff]
        %v711 = vld [vmem:[%s233 + $0xe50] sm:$0xff]
        %v712 = vld [vmem:[%s233 + $0xe58] sm:$0xff]
        %v713 = vld [vmem:[%s233 + $0xe60] sm:$0xff]
        %v714 = vld [vmem:[%s233 + $0xe68] sm:$0xff]
        %v715 = vld [vmem:[%s233 + $0xe70] sm:$0xff]
        %v716 = vld [vmem:[%s233 + $0xe78] sm:$0xff]
        %v717 = vld [vmem:[%s233 + $0xe80] sm:$0xff]
        %v718 = vld [vmem:[%s233 + $0xe88] sm:$0xff]
        %v719 = vld [vmem:[%s233 + $0xe90] sm:$0xff]
        %v720 = vld [vmem:[%s233 + $0xe98] sm:$0xff]
        %v721 = vld [vmem:[%s233 + $0xea0] sm:$0xff]
        %v722 = vld [vmem:[%s233 + $0xea8] sm:$0xff]
        %v723 = vld [vmem:[%s233 + $0xeb0] sm:$0xff]
        %v724 = vld [vmem:[%s233 + $0xeb8] sm:$0xff]
        %v725 = vld [vmem:[%s233 + $0xec0] sm:$0xff]
        %v726 = vld [vmem:[%s233 + $0xec8] sm:$0xff]
        %v727 = vld [vmem:[%s233 + $0xed0] sm:$0xff]
        %v728 = vld [vmem:[%s233 + $0xed8] sm:$0xff]
        %v729 = vld [vmem:[%s233 + $0xee0] sm:$0xff]
        %v730 = vld [vmem:[%s233 + $0xee8] sm:$0xff]
        %v731 = vld [vmem:[%s233 + $0xef0] sm:$0xff]
        %v732 = vld [vmem:[%s233 + $0xef8] sm:$0xff]
        %v733 = vld [vmem:[%s233 + $0xf00] sm:$0xff]
        %v734 = vld [vmem:[%s233 + $0xf08] sm:$0xff]
        %v735 = vld [vmem:[%s233 + $0xf10] sm:$0xff]
        %v736 = vld [vmem:[%s233 + $0xf18] sm:$0xff]
        %v737 = vld [vmem:[%s233 + $0xf20] sm:$0xff]
        %v738 = vld [vmem:[%s233 + $0xf28] sm:$0xff]
        %v739 = vld [vmem:[%s233 + $0xf30] sm:$0xff]
        %v740 = vld [vmem:[%s233 + $0xf38] sm:$0xff]
        %v741 = vld [vmem:[%s233 + $0xf40] sm:$0xff]
        %v742 = vld [vmem:[%s233 + $0xf48] sm:$0xff]
        %v743 = vld [vmem:[%s233 + $0xf50] sm:$0xff]
        %v744 = vld [vmem:[%s233 + $0xf58] sm:$0xff]
        %v745 = vld [vmem:[%s233 + $0xf60] sm:$0xff]
        %v746 = vld [vmem:[%s233 + $0xf68] sm:$0xff]
        %v747 = vld [vmem:[%s233 + $0xf70] sm:$0xff]
        %v748 = vld [vmem:[%s233 + $0xf78] sm:$0xff]
        %v749 = vld [vmem:[%s233 + $0xf80] sm:$0xff]
        %v750 = vld [vmem:[%s233 + $0xf88] sm:$0xff]
        %v751 = vld [vmem:[%s233 + $0xf90] sm:$0xff]
        %v752 = vld [vmem:[%s233 + $0xf98] sm:$0xff]
        %v753 = vld [vmem:[%s233 + $0xfa0] sm:$0xff]
        %v754 = vld [vmem:[%s233 + $0xfa8] sm:$0xff]
        %v755 = vld [vmem:[%s233 + $0xfb0] sm:$0xff]
        %v756 = vld [vmem:[%s233 + $0xfb8] sm:$0xff]
        %v757 = vld [vmem:[%s233 + $0xfc0] sm:$0xff]
        %v758 = vld [vmem:[%s233 + $0xfc8] sm:$0xff]
        %v759 = vld [vmem:[%s233 + $0xfd0] sm:$0xff]
        %v760 = vld [vmem:[%s233 + $0xfd8] sm:$0xff]
        %v761 = vld [vmem:[%s233 + $0xfe0] sm:$0xff]
        %v762 = vld [vmem:[%s233 + $0xfe8] sm:$0xff]
        %v763 = vld [vmem:[%s233 + $0xff0] sm:$0xff]
        %v764 = vld [vmem:[%s233 + $0xff8] sm:$0xff]
        %v765 = vld [vmem:[%s233 + $0x1000] sm:$0xff]
        %v766 = vld [vmem:[%s233 + $0x1008] sm:$0xff]
        %v767 = vld [vmem:[%s233 + $0x1010] sm:$0xff]
        %v768 = vld [vmem:[%s233 + $0x1018] sm:$0xff]
        %v769 = vld [vmem:[%s233 + $0x1020] sm:$0xff]
        %v770 = vld [vmem:[%s233 + $0x1028] sm:$0xff]
        %v771 = vld [vmem:[%s233 + $0x1030] sm:$0xff]
        %v772 = vld [vmem:[%s233 + $0x1038] sm:$0xff]
        %v773 = vld [vmem:[%s233 + $0x1040] sm:$0xff]
        %v774 = vld [vmem:[%s233 + $0x1048] sm:$0xff]
        %v775 = vld [vmem:[%s233 + $0x1050] sm:$0xff]
        %v776 = vld [vmem:[%s233 + $0x1058] sm:$0xff]
        %v777 = vld [vmem:[%s233 + $0x1060] sm:$0xff]
        %v778 = vld [vmem:[%s233 + $0x1068] sm:$0xff]
        %v779 = vld [vmem:[%s233 + $0x1070] sm:$0xff]
        %v780 = vld [vmem:[%s233 + $0x1078] sm:$0xff]
        %v781 = vld [vmem:[%s233 + $0x1080] sm:$0xff]
        %v782 = vld [vmem:[%s233 + $0x1088] sm:$0xff]
        %v783 = vld [vmem:[%s233 + $0x1090] sm:$0xff]
        %v784 = vld [vmem:[%s233 + $0x1098] sm:$0xff]
        %v785 = vld [vmem:[%s233 + $0x10a0] sm:$0xff]
        %v786 = vld [vmem:[%s233 + $0x10a8] sm:$0xff]
        %v787 = vld [vmem:[%s233 + $0x10b0] sm:$0xff]
        %v788 = vld [vmem:[%s233 + $0x10b8] sm:$0xff]
        %v789 = vld [vmem:[%s233 + $0x10c0] sm:$0xff]
        %v790 = vld [vmem:[%s233 + $0x10c8] sm:$0xff]
        %v791 = vld [vmem:[%s233 + $0x10d0] sm:$0xff]
        %v792 = vld [vmem:[%s233 + $0x10d8] sm:$0xff]
        %v793 = vld [vmem:[%s233 + $0x10e0] sm:$0xff]
        %v794 = vld [vmem:[%s233 + $0x10e8] sm:$0xff]
        %v795 = vld [vmem:[%s233 + $0x10f0] sm:$0xff]
        %v796 = vld [vmem:[%s233 + $0x10f8] sm:$0xff]
        %v797 = vld [vmem:[%s233 + $0x1100] sm:$0xff]
        %v798 = vld [vmem:[%s233 + $0x1108] sm:$0xff]
        %v799 = vld [vmem:[%s233 + $0x1110] sm:$0xff]
        %v800 = vld [vmem:[%s233 + $0x1118] sm:$0xff]
        %v801 = vld [vmem:[%s233 + $0x1120] sm:$0xff]
        %v802 = vld [vmem:[%s233 + $0x1128] sm:$0xff]
        %v803 = vld [vmem:[%s233 + $0x1130] sm:$0xff]
        %v804 = vld [vmem:[%s233 + $0x1138] sm:$0xff]
        %v805 = vld [vmem:[%s233 + $0x1140] sm:$0xff]
        %v806 = vld [vmem:[%s233 + $0x1148] sm:$0xff]
        %v807 = vld [vmem:[%s233 + $0x1150] sm:$0xff]
        %v808 = vld [vmem:[%s233 + $0x1158] sm:$0xff]
        %v809 = vld [vmem:[%s233 + $0x1160] sm:$0xff]
        %v810 = vld [vmem:[%s233 + $0x1168] sm:$0xff]
        %v811 = vld [vmem:[%s233 + $0x1170] sm:$0xff]
        %v812 = vld [vmem:[%s233 + $0x1178] sm:$0xff]
        %v813 = vld [vmem:[%s233 + $0x1180] sm:$0xff]
        %v814 = vld [vmem:[%s233 + $0x1188] sm:$0xff]
        %v815 = vld [vmem:[%s233 + $0x1190] sm:$0xff]
        %v816 = vld [vmem:[%s233 + $0x1198] sm:$0xff]
        %v817 = vld [vmem:[%s233 + $0x11a0] sm:$0xff]
        %v818 = vld [vmem:[%s233 + $0x11a8] sm:$0xff]
        %v819 = vld [vmem:[%s233 + $0x11b0] sm:$0xff]
        %v820 = vld [vmem:[%s233 + $0x11b8] sm:$0xff]
        %v821 = vld [vmem:[%s233 + $0x11c0] sm:$0xff]
        %v822 = vld [vmem:[%s233 + $0x11c8] sm:$0xff]
        %v823 = vld [vmem:[%s233 + $0x11d0] sm:$0xff]
        %v824 = vld [vmem:[%s233 + $0x11d8] sm:$0xff]
        %v825 = vld [vmem:[%s233 + $0x11e0] sm:$0xff]
        %v826 = vld [vmem:[%s233 + $0x11e8] sm:$0xff]
        %v827 = vld [vmem:[%s233 + $0x11f0] sm:$0xff]
        %v828 = vld [vmem:[%s233 + $0x11f8] sm:$0xff]
        %v829 = vld [vmem:[%s233 + $0x1200] sm:$0xff]
        %v830 = vld [vmem:[%s233 + $0x1208] sm:$0xff]
        %v831 = vld [vmem:[%s233 + $0x1210] sm:$0xff]
        %v832 = vld [vmem:[%s233 + $0x1218] sm:$0xff]
        %v833 = vld [vmem:[%s233 + $0x1220] sm:$0xff]
        %v834 = vld [vmem:[%s233 + $0x1228] sm:$0xff]
        %v835 = vld [vmem:[%s233 + $0x1230] sm:$0xff]
        %v836 = vld [vmem:[%s233 + $0x1238] sm:$0xff]
        %v837 = vld [vmem:[%s233 + $0x1240] sm:$0xff]
        %v838 = vld [vmem:[%s233 + $0x1248] sm:$0xff]
        %v839 = vld [vmem:[%s233 + $0x1250] sm:$0xff]
        %v840 = vld [vmem:[%s233 + $0x1258] sm:$0xff]
        %v841 = vld [vmem:[%s233 + $0x1260] sm:$0xff]
        %v842 = vld [vmem:[%s233 + $0x1268] sm:$0xff]
        %v843 = vld [vmem:[%s233 + $0x1270] sm:$0xff]
        %v844 = vld [vmem:[%s233 + $0x1278] sm:$0xff]
        %v845 = vld [vmem:[%s233 + $0x1280] sm:$0xff]
        %v846 = vld [vmem:[%s233 + $0x1288] sm:$0xff]
        %v847 = vld [vmem:[%s233 + $0x1290] sm:$0xff]
        %v848 = vld [vmem:[%s233 + $0x1298] sm:$0xff]
        %v849 = vld [vmem:[%s233 + $0x12a0] sm:$0xff]
        %v850 = vld [vmem:[%s233 + $0x12a8] sm:$0xff]
        %v851 = vld [vmem:[%s233 + $0x12b0] sm:$0xff]
        %v852 = vld [vmem:[%s233 + $0x12b8] sm:$0xff]
        %v853 = vld [vmem:[%s233 + $0x12c0] sm:$0xff]
        %v854 = vld [vmem:[%s233 + $0x12c8] sm:$0xff]
        %v855 = vld [vmem:[%s233 + $0x12d0] sm:$0xff]
        %v856 = vld [vmem:[%s233 + $0x12d8] sm:$0xff]
        %v857 = vld [vmem:[%s233 + $0x12e0] sm:$0xff]
        %v858 = vld [vmem:[%s233 + $0x12e8] sm:$0xff]
        %v859 = vld [vmem:[%s233 + $0x12f0] sm:$0xff]
        %v860 = vld [vmem:[%s233 + $0x12f8] sm:$0xff]
        %v861 = vld [vmem:[%s233 + $0x1300] sm:$0xff]
        %v862 = vld [vmem:[%s233 + $0x1308] sm:$0xff]
        %v863 = vld [vmem:[%s233 + $0x1310] sm:$0xff]
        %v864 = vld [vmem:[%s233 + $0x1318] sm:$0xff]
        %v865 = vld [vmem:[%s233 + $0x1320] sm:$0xff]
        %v866 = vld [vmem:[%s233 + $0x1328] sm:$0xff]
        %v867 = vld [vmem:[%s233 + $0x1330] sm:$0xff]
        %v868 = vld [vmem:[%s233 + $0x1338] sm:$0xff]
        %v869 = vld [vmem:[%s233 + $0x1340] sm:$0xff]
        %v870 = vld [vmem:[%s233 + $0x1348] sm:$0xff]
        %v871 = vld [vmem:[%s233 + $0x1350] sm:$0xff]
        %v872 = vld [vmem:[%s233 + $0x1358] sm:$0xff]
        %v873 = vld [vmem:[%s233 + $0x1360] sm:$0xff]
        %v874 = vld [vmem:[%s233 + $0x1368] sm:$0xff]
        %v875 = vld [vmem:[%s233 + $0x1370] sm:$0xff]
        %v876 = vld [vmem:[%s233 + $0x1378] sm:$0xff]
        %v877 = vld [vmem:[%s233 + $0x1380] sm:$0xff]
        %v878 = vld [vmem:[%s233 + $0x1388] sm:$0xff]
        %v879 = vld [vmem:[%s233 + $0x1390] sm:$0xff]
        %v880 = vld [vmem:[%s233 + $0x1398] sm:$0xff]
        %v881 = vld [vmem:[%s233 + $0x13a0] sm:$0xff]
        %v882 = vld [vmem:[%s233 + $0x13a8] sm:$0xff]
        %v883 = vld [vmem:[%s233 + $0x13b0] sm:$0xff]
        %v884 = vld [vmem:[%s233 + $0x13b8] sm:$0xff]
        %v885 = vld [vmem:[%s233 + $0x13c0] sm:$0xff]
        %v886 = vld [vmem:[%s233 + $0x13c8] sm:$0xff]
        %v887 = vld [vmem:[%s233 + $0x13d0] sm:$0xff]
        %v888 = vld [vmem:[%s233 + $0x13d8] sm:$0xff]
        %v889 = vld [vmem:[%s233 + $0x13e0] sm:$0xff]
        %v890 = vld [vmem:[%s233 + $0x13e8] sm:$0xff]
        %v891 = vld [vmem:[%s233 + $0x13f0] sm:$0xff]
        %v892 = vld [vmem:[%s233 + $0x13f8] sm:$0xff]
        %v893 = vld [vmem:[%s233 + $0x1400] sm:$0xff]
        %v894 = vld [vmem:[%s233 + $0x1408] sm:$0xff]
        %v895 = vld [vmem:[%s233 + $0x1410] sm:$0xff]
        %v896 = vld [vmem:[%s233 + $0x1418] sm:$0xff]
        %v897 = vld [vmem:[%s233 + $0x1420] sm:$0xff]
        %v898 = vld [vmem:[%s233 + $0x1428] sm:$0xff]
        %v899 = vld [vmem:[%s233 + $0x1430] sm:$0xff]
        %v900 = vld [vmem:[%s233 + $0x1438] sm:$0xff]
        %v901 = vld [vmem:[%s233 + $0x1440] sm:$0xff]
        %v902 = vld [vmem:[%s233 + $0x1448] sm:$0xff]
        %v903 = vld [vmem:[%s233 + $0x1450] sm:$0xff]
        %v904 = vld [vmem:[%s233 + $0x1458] sm:$0xff]
        %v905 = vld [vmem:[%s233 + $0x1460] sm:$0xff]
        %v906 = vld [vmem:[%s233 + $0x1468] sm:$0xff]
        %v907 = vld [vmem:[%s233 + $0x1470] sm:$0xff]
        %v908 = vld [vmem:[%s233 + $0x1478] sm:$0xff]
        %v909 = vld [vmem:[%s233 + $0x1480] sm:$0xff]
        %v910 = vld [vmem:[%s233 + $0x1488] sm:$0xff]
        %v911 = vld [vmem:[%s233 + $0x1490] sm:$0xff]
        %v912 = vld [vmem:[%s233 + $0x1498] sm:$0xff]
        %v913 = vld [vmem:[%s233 + $0x14a0] sm:$0xff]
        %v914 = vld [vmem:[%s233 + $0x14a8] sm:$0xff]
        %v915 = vld [vmem:[%s233 + $0x14b0] sm:$0xff]
        %v916 = vld [vmem:[%s233 + $0x14b8] sm:$0xff]
        %v917 = vld [vmem:[%s233 + $0x14c0] sm:$0xff]
        %v918 = vld [vmem:[%s233 + $0x14c8] sm:$0xff]
        %v919 = vld [vmem:[%s233 + $0x14d0] sm:$0xff]
        %v920 = vld [vmem:[%s233 + $0x14d8] sm:$0xff]
        %v921 = vld [vmem:[%s233 + $0x14e0] sm:$0xff]
        %v922 = vld [vmem:[%s233 + $0x14e8] sm:$0xff]
        %v923 = vld [vmem:[%s233 + $0x14f0] sm:$0xff]
        %v924 = vld [vmem:[%s233 + $0x14f8] sm:$0xff]
        %v925 = vld [vmem:[%s233 + $0x1500] sm:$0xff]
        %v926 = vld [vmem:[%s233 + $0x1508] sm:$0xff]
        %v927 = vld [vmem:[%s233 + $0x1510] sm:$0xff]
        %v928 = vld [vmem:[%s233 + $0x1518] sm:$0xff]
        %v929 = vld [vmem:[%s233 + $0x1520] sm:$0xff]
        %v930 = vld [vmem:[%s233 + $0x1528] sm:$0xff]
        %v931 = vld [vmem:[%s233 + $0x1530] sm:$0xff]
        %v932 = vld [vmem:[%s233 + $0x1538] sm:$0xff]
        %v933 = vld [vmem:[%s233 + $0x1540] sm:$0xff]
        %v934 = vld [vmem:[%s233 + $0x1548] sm:$0xff]
        %v935 = vld [vmem:[%s233 + $0x1550] sm:$0xff]
        %v936 = vld [vmem:[%s233 + $0x1558] sm:$0xff]
        %v937 = vld [vmem:[%s233 + $0x1560] sm:$0xff]
        %v938 = vld [vmem:[%s233 + $0x1568] sm:$0xff]
        %v939 = vld [vmem:[%s233 + $0x1570] sm:$0xff]
        %v940 = vld [vmem:[%s233 + $0x1578] sm:$0xff]
        %v941 = vld [vmem:[%s233 + $0x1580] sm:$0xff]
        %v942 = vld [vmem:[%s233 + $0x1588] sm:$0xff]
        %v943 = vld [vmem:[%s233 + $0x1590] sm:$0xff]
        %v944 = vld [vmem:[%s233 + $0x1598] sm:$0xff]
        %v945 = vld [vmem:[%s233 + $0x15a0] sm:$0xff]
        %v946 = vld [vmem:[%s233 + $0x15a8] sm:$0xff]
        %v947 = vld [vmem:[%s233 + $0x15b0] sm:$0xff]
        %v948 = vld [vmem:[%s233 + $0x15b8] sm:$0xff]
        %v949 = vld [vmem:[%s233 + $0x15c0] sm:$0xff]
        %v950 = vld [vmem:[%s233 + $0x15c8] sm:$0xff]
        %v951 = vld [vmem:[%s233 + $0x15d0] sm:$0xff]
        %v952 = vld [vmem:[%s233 + $0x15d8] sm:$0xff]
        %v953 = vld [vmem:[%s233 + $0x15e0] sm:$0xff]
        %v954 = vld [vmem:[%s233 + $0x15e8] sm:$0xff]
        %v955 = vld [vmem:[%s233 + $0x15f0] sm:$0xff]
        %v956 = vld [vmem:[%s233 + $0x15f8] sm:$0xff]
        %v957 = vld [vmem:[%s233 + $0x1600] sm:$0xff]
        %v958 = vld [vmem:[%s233 + $0x1608] sm:$0xff]
        %v959 = vld [vmem:[%s233 + $0x1610] sm:$0xff]
        %v960 = vld [vmem:[%s233 + $0x1618] sm:$0xff]
        %v961 = vld [vmem:[%s233 + $0x1620] sm:$0xff]
        %v962 = vld [vmem:[%s233 + $0x1628] sm:$0xff]
        %v963 = vld [vmem:[%s233 + $0x1630] sm:$0xff]
        %v964 = vld [vmem:[%s233 + $0x1638] sm:$0xff]
        %v965 = vld [vmem:[%s233 + $0x1640] sm:$0xff]
        %v966 = vld [vmem:[%s233 + $0x1648] sm:$0xff]
        %v967 = vld [vmem:[%s233 + $0x1650] sm:$0xff]
        %v968 = vld [vmem:[%s233 + $0x1658] sm:$0xff]
        %v969 = vld [vmem:[%s233 + $0x1660] sm:$0xff]
        %v970 = vld [vmem:[%s233 + $0x1668] sm:$0xff]
        %v971 = vld [vmem:[%s233 + $0x1670] sm:$0xff]
        %v972 = vld [vmem:[%s233 + $0x1678] sm:$0xff]
        %v973 = vld [vmem:[%s233 + $0x1680] sm:$0xff]
        %v974 = vld [vmem:[%s233 + $0x1688] sm:$0xff]
        %v975 = vld [vmem:[%s233 + $0x1690] sm:$0xff]
        %v976 = vld [vmem:[%s233 + $0x1698] sm:$0xff]
        %v977 = vld [vmem:[%s233 + $0x16a0] sm:$0xff]
        %v978 = vld [vmem:[%s233 + $0x16a8] sm:$0xff]
        %v979 = vld [vmem:[%s233 + $0x16b0] sm:$0xff]
        %v980 = vld [vmem:[%s233 + $0x16b8] sm:$0xff]
        %v981 = vld [vmem:[%s233 + $0x16c0] sm:$0xff]
        %v982 = vld [vmem:[%s233 + $0x16c8] sm:$0xff]
        %v983 = vld [vmem:[%s233 + $0x16d0] sm:$0xff]
        %v984 = vld [vmem:[%s233 + $0x16d8] sm:$0xff]
        %v985 = vld [vmem:[%s233 + $0x16e0] sm:$0xff]
        %v986 = vld [vmem:[%s233 + $0x16e8] sm:$0xff]
        %v987 = vld [vmem:[%s233 + $0x16f0] sm:$0xff]
        %v988 = vld [vmem:[%s233 + $0x16f8] sm:$0xff]
        %v989 = vld [vmem:[%s233 + $0x1700] sm:$0xff]
        %v990 = vld [vmem:[%s233 + $0x1708] sm:$0xff]
        %v991 = vld [vmem:[%s233 + $0x1710] sm:$0xff]
        %v992 = vld [vmem:[%s233 + $0x1718] sm:$0xff]
        %v993 = vld [vmem:[%s233 + $0x1720] sm:$0xff]
        %v994 = vld [vmem:[%s233 + $0x1728] sm:$0xff]
        %v995 = vld [vmem:[%s233 + $0x1730] sm:$0xff]
        %v996 = vld [vmem:[%s233 + $0x1738] sm:$0xff]
        %v997 = vld [vmem:[%s233 + $0x1740] sm:$0xff]
        %v998 = vld [vmem:[%s233 + $0x1748] sm:$0xff]
        %v999 = vld [vmem:[%s233 + $0x1750] sm:$0xff]
        %v1000 = vld [vmem:[%s233 + $0x1758] sm:$0xff]
        %v1001 = vld [vmem:[%s233 + $0x1760] sm:$0xff]
        %v1002 = vld [vmem:[%s233 + $0x1768] sm:$0xff]
        %v1003 = vld [vmem:[%s233 + $0x1770] sm:$0xff]
        %v1004 = vld [vmem:[%s233 + $0x1778] sm:$0xff]
        %v1005 = vld [vmem:[%s233 + $0x1780] sm:$0xff]
        %v1006 = vld [vmem:[%s233 + $0x1788] sm:$0xff]
        %v1007 = vld [vmem:[%s233 + $0x1790] sm:$0xff]
        %v1008 = vld [vmem:[%s233 + $0x1798] sm:$0xff]
        %v1009 = vld [vmem:[%s233 + $0x17a0] sm:$0xff]
        %v1010 = vld [vmem:[%s233 + $0x17a8] sm:$0xff]
        %v1011 = vld [vmem:[%s233 + $0x17b0] sm:$0xff]
        %v1012 = vld [vmem:[%s233 + $0x17b8] sm:$0xff]
        %v1013 = vld [vmem:[%s233 + $0x17c0] sm:$0xff]
        %v1014 = vld [vmem:[%s233 + $0x17c8] sm:$0xff]
        %v1015 = vld [vmem:[%s233 + $0x17d0] sm:$0xff]
        %v1016 = vld [vmem:[%s233 + $0x17d8] sm:$0xff]
        %v1017 = vld [vmem:[%s233 + $0x17e0] sm:$0xff]
        %v1018 = vld [vmem:[%s233 + $0x17e8] sm:$0xff]
        %v1019 = vld [vmem:[%s233 + $0x17f0] sm:$0xff]
        %v1020 = vld [vmem:[%s233 + $0x17f8] sm:$0xff]
        %v1033 = vcombine.high %v241, %v241
        %v1035 = vunpack.c.l.s4 1983009808
        %v1036 = vunpack.c.0.s8 %v1035
        %v1037 = vlaneseq
        %v1038 = vshrl.u32 %v1037, 7
        %v1039 = vsub.s32 %v1036, %v1038
        %v1040 = vrot.slane %v241, %v1039
        %v1042 = vunpack.c.l.s4 1983009808
        %v1043 = vunpack.c.0.s8 %v1042
        %v1044 = vlaneseq
        %v1045 = vshrl.u32 %v1044, 7
        %v1046 = vsub.s32 %v1043, %v1045
        %v1047 = vrot.slane %v1033, %v1046
        %v1048 = vcombine.high %v1040, %v1040
        %v1049 = vcombine.high %v1047, %v1047
        %v1050 = vcombine.high %v242, %v242
        %v1052 = vunpack.c.l.s4 1983009808
        %v1053 = vunpack.c.0.s8 %v1052
        %v1054 = vlaneseq
        %v1055 = vshrl.u32 %v1054, 7
        %v1056 = vsub.s32 %v1053, %v1055
        %v1057 = vrot.slane %v242, %v1056
        %v1059 = vunpack.c.l.s4 1983009808
        %v1060 = vunpack.c.0.s8 %v1059
        %v1061 = vlaneseq
        %v1062 = vshrl.u32 %v1061, 7
        %v1063 = vsub.s32 %v1060, %v1062
        %v1064 = vrot.slane %v1050, %v1063
        %v1065 = vcombine.high %v1057, %v1057
        %v1066 = vcombine.high %v1064, %v1064
        %v1067 = vcombine.high %v243, %v243
        %v1069 = vunpack.c.l.s4 1983009808
        %v1070 = vunpack.c.0.s8 %v1069
        %v1071 = vlaneseq
        %v1072 = vshrl.u32 %v1071, 7
        %v1073 = vsub.s32 %v1070, %v1072
        %v1074 = vrot.slane %v243, %v1073
        %v1076 = vunpack.c.l.s4 1983009808
        %v1077 = vunpack.c.0.s8 %v1076
        %v1078 = vlaneseq
        %v1079 = vshrl.u32 %v1078, 7
        %v1080 = vsub.s32 %v1077, %v1079
        %v1081 = vrot.slane %v1067, %v1080
        %v1082 = vcombine.high %v1074, %v1074
        %v1083 = vcombine.high %v1081, %v1081
        %v1084 = vcombine.high %v244, %v244
        %v1086 = vunpack.c.l.s4 1983009808
        %v1087 = vunpack.c.0.s8 %v1086
        %v1088 = vlaneseq
        %v1089 = vshrl.u32 %v1088, 7
        %v1090 = vsub.s32 %v1087, %v1089
        %v1091 = vrot.slane %v244, %v1090
        %v1093 = vunpack.c.l.s4 1983009808
        %v1094 = vunpack.c.0.s8 %v1093
        %v1095 = vlaneseq
        %v1096 = vshrl.u32 %v1095, 7
        %v1097 = vsub.s32 %v1094, %v1096
        %v1098 = vrot.slane %v1084, %v1097
        %v1099 = vcombine.high %v1091, %v1091
        %v1100 = vcombine.high %v1098, %v1098
        %v1101 = vcombine.high %v245, %v245
        %v1103 = vunpack.c.l.s4 1983009808
        %v1104 = vunpack.c.0.s8 %v1103
        %v1105 = vlaneseq
        %v1106 = vshrl.u32 %v1105, 7
        %v1107 = vsub.s32 %v1104, %v1106
        %v1108 = vrot.slane %v245, %v1107
        %v1110 = vunpack.c.l.s4 1983009808
        %v1111 = vunpack.c.0.s8 %v1110
        %v1112 = vlaneseq
        %v1113 = vshrl.u32 %v1112, 7
        %v1114 = vsub.s32 %v1111, %v1113
        %v1115 = vrot.slane %v1101, %v1114
        %v1116 = vcombine.high %v1108, %v1108
        %v1117 = vcombine.high %v1115, %v1115
        %v1118 = vcombine.high %v246, %v246
        %v1120 = vunpack.c.l.s4 1983009808
        %v1121 = vunpack.c.0.s8 %v1120
        %v1122 = vlaneseq
        %v1123 = vshrl.u32 %v1122, 7
        %v1124 = vsub.s32 %v1121, %v1123
        %v1125 = vrot.slane %v246, %v1124
        %v1127 = vunpack.c.l.s4 1983009808
        %v1128 = vunpack.c.0.s8 %v1127
        %v1129 = vlaneseq
        %v1130 = vshrl.u32 %v1129, 7
        %v1131 = vsub.s32 %v1128, %v1130
        %v1132 = vrot.slane %v1118, %v1131
        %v1133 = vcombine.high %v1125, %v1125
        %v1134 = vcombine.high %v1132, %v1132
        %v1135 = vcombine.high %v247, %v247
        %v1137 = vunpack.c.l.s4 1983009808
        %v1138 = vunpack.c.0.s8 %v1137
        %v1139 = vlaneseq
        %v1140 = vshrl.u32 %v1139, 7
        %v1141 = vsub.s32 %v1138, %v1140
        %v1142 = vrot.slane %v247, %v1141
        %v1144 = vunpack.c.l.s4 1983009808
        %v1145 = vunpack.c.0.s8 %v1144
        %v1146 = vlaneseq
        %v1147 = vshrl.u32 %v1146, 7
        %v1148 = vsub.s32 %v1145, %v1147
        %v1149 = vrot.slane %v1135, %v1148
        %v1150 = vcombine.high %v1142, %v1142
        %v1151 = vcombine.high %v1149, %v1149
        %v1152 = vcombine.high %v248, %v248
        %v1154 = vunpack.c.l.s4 1983009808
        %v1155 = vunpack.c.0.s8 %v1154
        %v1156 = vlaneseq
        %v1157 = vshrl.u32 %v1156, 7
        %v1158 = vsub.s32 %v1155, %v1157
        %v1159 = vrot.slane %v248, %v1158
        %v1161 = vunpack.c.l.s4 1983009808
        %v1162 = vunpack.c.0.s8 %v1161
        %v1163 = vlaneseq
        %v1164 = vshrl.u32 %v1163, 7
        %v1165 = vsub.s32 %v1162, %v1164
        %v1166 = vrot.slane %v1152, %v1165
        %v1167 = vcombine.high %v1159, %v1159
        %v1168 = vcombine.high %v1166, %v1166
        %v1169 = vcombine.high %v249, %v249
        %v1171 = vunpack.c.l.s4 1983009808
        %v1172 = vunpack.c.0.s8 %v1171
        %v1173 = vlaneseq
        %v1174 = vshrl.u32 %v1173, 7
        %v1175 = vsub.s32 %v1172, %v1174
        %v1176 = vrot.slane %v249, %v1175
        %v1178 = vunpack.c.l.s4 1983009808
        %v1179 = vunpack.c.0.s8 %v1178
        %v1180 = vlaneseq
        %v1181 = vshrl.u32 %v1180, 7
        %v1182 = vsub.s32 %v1179, %v1181
        %v1183 = vrot.slane %v1169, %v1182
        %v1184 = vcombine.high %v1176, %v1176
        %v1185 = vcombine.high %v1183, %v1183
        %v1186 = vcombine.high %v250, %v250
        %v1188 = vunpack.c.l.s4 1983009808
        %v1189 = vunpack.c.0.s8 %v1188
        %v1190 = vlaneseq
        %v1191 = vshrl.u32 %v1190, 7
        %v1192 = vsub.s32 %v1189, %v1191
        %v1193 = vrot.slane %v250, %v1192
        %v1195 = vunpack.c.l.s4 1983009808
        %v1196 = vunpack.c.0.s8 %v1195
        %v1197 = vlaneseq
        %v1198 = vshrl.u32 %v1197, 7
        %v1199 = vsub.s32 %v1196, %v1198
        %v1200 = vrot.slane %v1186, %v1199
        %v1201 = vcombine.high %v1193, %v1193
        %v1202 = vcombine.high %v1200, %v1200
        %v1203 = vcombine.high %v251, %v251
        %v1205 = vunpack.c.l.s4 1983009808
        %v1206 = vunpack.c.0.s8 %v1205
        %v1207 = vlaneseq
        %v1208 = vshrl.u32 %v1207, 7
        %v1209 = vsub.s32 %v1206, %v1208
        %v1210 = vrot.slane %v251, %v1209
        %v1212 = vunpack.c.l.s4 1983009808
        %v1213 = vunpack.c.0.s8 %v1212
        %v1214 = vlaneseq
        %v1215 = vshrl.u32 %v1214, 7
        %v1216 = vsub.s32 %v1213, %v1215
        %v1217 = vrot.slane %v1203, %v1216
        %v1218 = vcombine.high %v1210, %v1210
        %v1219 = vcombine.high %v1217, %v1217
        %v1220 = vcombine.high %v252, %v252
        %v1222 = vunpack.c.l.s4 1983009808
        %v1223 = vunpack.c.0.s8 %v1222
        %v1224 = vlaneseq
        %v1225 = vshrl.u32 %v1224, 7
        %v1226 = vsub.s32 %v1223, %v1225
        %v1227 = vrot.slane %v252, %v1226
        %v1229 = vunpack.c.l.s4 1983009808
        %v1230 = vunpack.c.0.s8 %v1229
        %v1231 = vlaneseq
        %v1232 = vshrl.u32 %v1231, 7
        %v1233 = vsub.s32 %v1230, %v1232
        %v1234 = vrot.slane %v1220, %v1233
        %v1235 = vcombine.high %v1227, %v1227
        %v1236 = vcombine.high %v1234, %v1234
        %1285 = vmatprep.subr.mxu0 0.0
        %1286 = vmatpush1.msra.mxu0 %v253
        %1287 = vmatprep.subr.mxu0 0.0
        %1288 = vmatpush1.msra.mxu0 %v254
        %1289 = vmatprep.subr.mxu0 0.0
        %1290 = vmatpush1.msra.mxu0 %v255
        %1291 = vmatprep.subr.mxu0 0.0
        %1292 = vmatpush1.msra.mxu0 %v256
        %1293 = vmatprep.subr.mxu0 0.0
        %1294 = vmatpush1.msra.mxu0 %v257
        %1295 = vmatprep.subr.mxu0 0.0
        %1296 = vmatpush1.msra.mxu0 %v258
        %1297 = vmatprep.subr.mxu0 0.0
        %1298 = vmatpush1.msra.mxu0 %v259
        %1299 = vmatprep.subr.mxu0 0.0
        %1300 = vmatpush1.msra.mxu0 %v260
        %1301 = vmatprep.subr.mxu0 0.0
        %1302 = vmatpush1.msra.mxu0 %v261
        %1303 = vmatprep.subr.mxu0 0.0
        %1304 = vmatpush1.msra.mxu0 %v262
        %1305 = vmatprep.subr.mxu0 0.0
        %1306 = vmatpush1.msra.mxu0 %v263
        %1307 = vmatprep.subr.mxu0 0.0
        %1308 = vmatpush1.msra.mxu0 %v264
        %1309 = vmatprep.subr.mxu0 0.0
        %1310 = vmatpush1.msra.mxu0 %v265
        %1311 = vmatprep.subr.mxu0 0.0
        %1312 = vmatpush1.msra.mxu0 %v266
        %1313 = vmatprep.subr.mxu0 0.0
        %1314 = vmatpush1.msra.mxu0 %v267
        %1315 = vmatprep.subr.mxu0 0.0
        %1316 = vmatpush1.msra.mxu0 %v268
        %1317 = vmatprep.subr.mxu0 0.0
        %1318 = vmatpush1.msra.mxu0 %v269
        %1319 = vmatprep.subr.mxu0 0.0
        %1320 = vmatpush1.msra.mxu0 %v270
        %1321 = vmatprep.subr.mxu0 0.0
        %1322 = vmatpush1.msra.mxu0 %v271
        %1323 = vmatprep.subr.mxu0 0.0
        %1324 = vmatpush1.msra.mxu0 %v272
        %1325 = vmatprep.subr.mxu0 0.0
        %1326 = vmatpush1.msra.mxu0 %v273
        %1327 = vmatprep.subr.mxu0 0.0
        %1328 = vmatpush1.msra.mxu0 %v274
        %1329 = vmatprep.subr.mxu0 0.0
        %1330 = vmatpush1.msra.mxu0 %v275
        %1331 = vmatprep.subr.mxu0 0.0
        %1332 = vmatpush1.msra.mxu0 %v276
        %1333 = vmatprep.subr.mxu0 0.0
        %1334 = vmatpush1.msra.mxu0 %v277
        %1335 = vmatprep.subr.mxu0 0.0
        %1336 = vmatpush1.msra.mxu0 %v278
        %1337 = vmatprep.subr.mxu0 0.0
        %1338 = vmatpush1.msra.mxu0 %v279
        %1339 = vmatprep.subr.mxu0 0.0
        %1340 = vmatpush1.msra.mxu0 %v280
        %1341 = vmatprep.subr.mxu0 0.0
        %1342 = vmatpush1.msra.mxu0 %v281
        %1343 = vmatprep.subr.mxu0 0.0
        %1344 = vmatpush1.msra.mxu0 %v282
        %1345 = vmatprep.subr.mxu0 0.0
        %1346 = vmatpush1.msra.mxu0 %v283
        %1347 = vmatprep.subr.mxu0 0.0
        %1348 = vmatpush1.msra.mxu0 %v284
        %1349 = vmatprep.mubr.f32.mxu0 %v1048
        %1350 = vmatmul.mubr.f32.gmra.mrb[0].mxu0 %v1040
        %v1351 = vpop.f32.mrb[0].mxu0
        %v1352 = vadd.f32 0.0, %v1351
        %v1353 = vpop.f32.mrb[0].mxu0
        %1354 = vdwg.mxu0
        %1355 = vmatprep.subr.mxu0 0.0
        %1356 = vmatpush1.msra.mxu0 %v285
        %1357 = vmatprep.subr.mxu0 0.0
        %1358 = vmatpush1.msra.mxu0 %v286
        %1359 = vmatprep.subr.mxu0 0.0
        %1360 = vmatpush1.msra.mxu0 %v287
        %1361 = vmatprep.subr.mxu0 0.0
        %1362 = vmatpush1.msra.mxu0 %v288
        %1363 = vmatprep.subr.mxu0 0.0
        %1364 = vmatpush1.msra.mxu0 %v289
        %1365 = vmatprep.subr.mxu0 0.0
        %1366 = vmatpush1.msra.mxu0 %v290
        %1367 = vmatprep.subr.mxu0 0.0
        %1368 = vmatpush1.msra.mxu0 %v291
        %1369 = vmatprep.subr.mxu0 0.0
        %1370 = vmatpush1.msra.mxu0 %v292
        %1371 = vmatprep.subr.mxu0 0.0
        %1372 = vmatpush1.msra.mxu0 %v293
        %1373 = vmatprep.subr.mxu0 0.0
        %1374 = vmatpush1.msra.mxu0 %v294
        %1375 = vmatprep.subr.mxu0 0.0
        %1376 = vmatpush1.msra.mxu0 %v295
        %1377 = vmatprep.subr.mxu0 0.0
        %1378 = vmatpush1.msra.mxu0 %v296
        %1379 = vmatprep.subr.mxu0 0.0
        %1380 = vmatpush1.msra.mxu0 %v297
        %1381 = vmatprep.subr.mxu0 0.0
        %1382 = vmatpush1.msra.mxu0 %v298
        %1383 = vmatprep.subr.mxu0 0.0
        %1384 = vmatpush1.msra.mxu0 %v299
        %1385 = vmatprep.subr.mxu0 0.0
        %1386 = vmatpush1.msra.mxu0 %v300
        %1387 = vmatprep.subr.mxu0 0.0
        %1388 = vmatpush1.msra.mxu0 %v301
        %1389 = vmatprep.subr.mxu0 0.0
        %1390 = vmatpush1.msra.mxu0 %v302
        %1391 = vmatprep.subr.mxu0 0.0
        %1392 = vmatpush1.msra.mxu0 %v303
        %1393 = vmatprep.subr.mxu0 0.0
        %1394 = vmatpush1.msra.mxu0 %v304
        %1395 = vmatprep.subr.mxu0 0.0
        %1396 = vmatpush1.msra.mxu0 %v305
        %1397 = vmatprep.subr.mxu0 0.0
        %1398 = vmatpush1.msra.mxu0 %v306
        %1399 = vmatprep.subr.mxu0 0.0
        %1400 = vmatpush1.msra.mxu0 %v307
        %1401 = vmatprep.subr.mxu0 0.0
        %1402 = vmatpush1.msra.mxu0 %v308
        %1403 = vmatprep.subr.mxu0 0.0
        %1404 = vmatpush1.msra.mxu0 %v309
        %1405 = vmatprep.subr.mxu0 0.0
        %1406 = vmatpush1.msra.mxu0 %v310
        %1407 = vmatprep.subr.mxu0 0.0
        %1408 = vmatpush1.msra.mxu0 %v311
        %1409 = vmatprep.subr.mxu0 0.0
        %1410 = vmatpush1.msra.mxu0 %v312
        %1411 = vmatprep.subr.mxu0 0.0
        %1412 = vmatpush1.msra.mxu0 %v313
        %1413 = vmatprep.subr.mxu0 0.0
        %1414 = vmatpush1.msra.mxu0 %v314
        %1415 = vmatprep.subr.mxu0 0.0
        %1416 = vmatpush1.msra.mxu0 %v315
        %1417 = vmatprep.subr.mxu0 0.0
        %1418 = vmatpush1.msra.mxu0 %v316
        %1419 = vmatprep.mubr.f32.mxu0 %v1049
        %1420 = vmatmul.mubr.f32.gmra.mrb[0].mxu0 %v1047
        %v1421 = vpop.f32.mrb[0].mxu0
        %v1422 = vadd.f32 %v1352, %v1421
        %v1423 = vpop.f32.mrb[0].mxu0
        %1424 = vdwg.mxu0
        %1425 = vmatprep.subr.mxu0 0.0
        %1426 = vmatpush1.msra.mxu0 %v317
        %1427 = vmatprep.subr.mxu0 0.0
        %1428 = vmatpush1.msra.mxu0 %v318
        %1429 = vmatprep.subr.mxu0 0.0
        %1430 = vmatpush1.msra.mxu0 %v319
        %1431 = vmatprep.subr.mxu0 0.0
        %1432 = vmatpush1.msra.mxu0 %v320
        %1433 = vmatprep.subr.mxu0 0.0
        %1434 = vmatpush1.msra.mxu0 %v321
        %1435 = vmatprep.subr.mxu0 0.0
        %1436 = vmatpush1.msra.mxu0 %v322
        %1437 = vmatprep.subr.mxu0 0.0
        %1438 = vmatpush1.msra.mxu0 %v323
        %1439 = vmatprep.subr.mxu0 0.0
        %1440 = vmatpush1.msra.mxu0 %v324
        %1441 = vmatprep.subr.mxu0 0.0
        %1442 = vmatpush1.msra.mxu0 %v325
        %1443 = vmatprep.subr.mxu0 0.0
        %1444 = vmatpush1.msra.mxu0 %v326
        %1445 = vmatprep.subr.mxu0 0.0
        %1446 = vmatpush1.msra.mxu0 %v327
        %1447 = vmatprep.subr.mxu0 0.0
        %1448 = vmatpush1.msra.mxu0 %v328
        %1449 = vmatprep.subr.mxu0 0.0
        %1450 = vmatpush1.msra.mxu0 %v329
        %1451 = vmatprep.subr.mxu0 0.0
        %1452 = vmatpush1.msra.mxu0 %v330
        %1453 = vmatprep.subr.mxu0 0.0
        %1454 = vmatpush1.msra.mxu0 %v331
        %1455 = vmatprep.subr.mxu0 0.0
        %1456 = vmatpush1.msra.mxu0 %v332
        %1457 = vmatprep.subr.mxu0 0.0
        %1458 = vmatpush1.msra.mxu0 %v333
        %1459 = vmatprep.subr.mxu0 0.0
        %1460 = vmatpush1.msra.mxu0 %v334
        %1461 = vmatprep.subr.mxu0 0.0
        %1462 = vmatpush1.msra.mxu0 %v335
        %1463 = vmatprep.subr.mxu0 0.0
        %1464 = vmatpush1.msra.mxu0 %v336
        %1465 = vmatprep.subr.mxu0 0.0
        %1466 = vmatpush1.msra.mxu0 %v337
        %1467 = vmatprep.subr.mxu0 0.0
        %1468 = vmatpush1.msra.mxu0 %v338
        %1469 = vmatprep.subr.mxu0 0.0
        %1470 = vmatpush1.msra.mxu0 %v339
        %1471 = vmatprep.subr.mxu0 0.0
        %1472 = vmatpush1.msra.mxu0 %v340
        %1473 = vmatprep.subr.mxu0 0.0
        %1474 = vmatpush1.msra.mxu0 %v341
        %1475 = vmatprep.subr.mxu0 0.0
        %1476 = vmatpush1.msra.mxu0 %v342
        %1477 = vmatprep.subr.mxu0 0.0
        %1478 = vmatpush1.msra.mxu0 %v343
        %1479 = vmatprep.subr.mxu0 0.0
        %1480 = vmatpush1.msra.mxu0 %v344
        %1481 = vmatprep.subr.mxu0 0.0
        %1482 = vmatpush1.msra.mxu0 %v345
        %1483 = vmatprep.subr.mxu0 0.0
        %1484 = vmatpush1.msra.mxu0 %v346
        %1485 = vmatprep.subr.mxu0 0.0
        %1486 = vmatpush1.msra.mxu0 %v347
        %1487 = vmatprep.subr.mxu0 0.0
        %1488 = vmatpush1.msra.mxu0 %v348
        %1489 = vmatprep.mubr.f32.mxu0 %v1065
        %1490 = vmatmul.mubr.f32.gmra.mrb[0].mxu0 %v1057
        %v1491 = vpop.f32.mrb[0].mxu0
        %v1492 = vadd.f32 %v1422, %v1491
        %v1493 = vpop.f32.mrb[0].mxu0
        %1494 = vdwg.mxu0
        %1495 = vmatprep.subr.mxu0 0.0
        %1496 = vmatpush1.msra.mxu0 %v349
        %1497 = vmatprep.subr.mxu0 0.0
        %1498 = vmatpush1.msra.mxu0 %v350
        %1499 = vmatprep.subr.mxu0 0.0
        %1500 = vmatpush1.msra.mxu0 %v351
        %1501 = vmatprep.subr.mxu0 0.0
        %1502 = vmatpush1.msra.mxu0 %v352
        %1503 = vmatprep.subr.mxu0 0.0
        %1504 = vmatpush1.msra.mxu0 %v353
        %1505 = vmatprep.subr.mxu0 0.0
        %1506 = vmatpush1.msra.mxu0 %v354
        %1507 = vmatprep.subr.mxu0 0.0
        %1508 = vmatpush1.msra.mxu0 %v355
        %1509 = vmatprep.subr.mxu0 0.0
        %1510 = vmatpush1.msra.mxu0 %v356
        %1511 = vmatprep.subr.mxu0 0.0
        %1512 = vmatpush1.msra.mxu0 %v357
        %1513 = vmatprep.subr.mxu0 0.0
        %1514 = vmatpush1.msra.mxu0 %v358
        %1515 = vmatprep.subr.mxu0 0.0
        %1516 = vmatpush1.msra.mxu0 %v359
        %1517 = vmatprep.subr.mxu0 0.0
        %1518 = vmatpush1.msra.mxu0 %v360
        %1519 = vmatprep.subr.mxu0 0.0
        %1520 = vmatpush1.msra.mxu0 %v361
        %1521 = vmatprep.subr.mxu0 0.0
        %1522 = vmatpush1.msra.mxu0 %v362
        %1523 = vmatprep.subr.mxu0 0.0
        %1524 = vmatpush1.msra.mxu0 %v363
        %1525 = vmatprep.subr.mxu0 0.0
        %1526 = vmatpush1.msra.mxu0 %v364
        %1527 = vmatprep.subr.mxu0 0.0
        %1528 = vmatpush1.msra.mxu0 %v365
        %1529 = vmatprep.subr.mxu0 0.0
        %1530 = vmatpush1.msra.mxu0 %v366
        %1531 = vmatprep.subr.mxu0 0.0
        %1532 = vmatpush1.msra.mxu0 %v367
        %1533 = vmatprep.subr.mxu0 0.0
        %1534 = vmatpush1.msra.mxu0 %v368
        %1535 = vmatprep.subr.mxu0 0.0
        %1536 = vmatpush1.msra.mxu0 %v369
        %1537 = vmatprep.subr.mxu0 0.0
        %1538 = vmatpush1.msra.mxu0 %v370
        %1539 = vmatprep.subr.mxu0 0.0
        %1540 = vmatpush1.msra.mxu0 %v371
        %1541 = vmatprep.subr.mxu0 0.0
        %1542 = vmatpush1.msra.mxu0 %v372
        %1543 = vmatprep.subr.mxu0 0.0
        %1544 = vmatpush1.msra.mxu0 %v373
        %1545 = vmatprep.subr.mxu0 0.0
        %1546 = vmatpush1.msra.mxu0 %v374
        %1547 = vmatprep.subr.mxu0 0.0
        %1548 = vmatpush1.msra.mxu0 %v375
        %1549 = vmatprep.subr.mxu0 0.0
        %1550 = vmatpush1.msra.mxu0 %v376
        %1551 = vmatprep.subr.mxu0 0.0
        %1552 = vmatpush1.msra.mxu0 %v377
        %1553 = vmatprep.subr.mxu0 0.0
        %1554 = vmatpush1.msra.mxu0 %v378
        %1555 = vmatprep.subr.mxu0 0.0
        %1556 = vmatpush1.msra.mxu0 %v379
        %1557 = vmatprep.subr.mxu0 0.0
        %1558 = vmatpush1.msra.mxu0 %v380
        %1559 = vmatprep.mubr.f32.mxu0 %v1066
        %1560 = vmatmul.mubr.f32.gmra.mrb[0].mxu0 %v1064
        %v1561 = vpop.f32.mrb[0].mxu0
        %v1562 = vadd.f32 %v1492, %v1561
        %v1563 = vpop.f32.mrb[0].mxu0
        %1564 = vdwg.mxu0
        %1565 = vmatprep.subr.mxu0 0.0
        %1566 = vmatpush1.msra.mxu0 %v381
        %1567 = vmatprep.subr.mxu0 0.0
        %1568 = vmatpush1.msra.mxu0 %v382
        %1569 = vmatprep.subr.mxu0 0.0
        %1570 = vmatpush1.msra.mxu0 %v383
        %1571 = vmatprep.subr.mxu0 0.0
        %1572 = vmatpush1.msra.mxu0 %v384
        %1573 = vmatprep.subr.mxu0 0.0
        %1574 = vmatpush1.msra.mxu0 %v385
        %1575 = vmatprep.subr.mxu0 0.0
        %1576 = vmatpush1.msra.mxu0 %v386
        %1577 = vmatprep.subr.mxu0 0.0
        %1578 = vmatpush1.msra.mxu0 %v387
        %1579 = vmatprep.subr.mxu0 0.0
        %1580 = vmatpush1.msra.mxu0 %v388
        %1581 = vmatprep.subr.mxu0 0.0
        %1582 = vmatpush1.msra.mxu0 %v389
        %1583 = vmatprep.subr.mxu0 0.0
        %1584 = vmatpush1.msra.mxu0 %v390
        %1585 = vmatprep.subr.mxu0 0.0
        %1586 = vmatpush1.msra.mxu0 %v391
        %1587 = vmatprep.subr.mxu0 0.0
        %1588 = vmatpush1.msra.mxu0 %v392
        %1589 = vmatprep.subr.mxu0 0.0
        %1590 = vmatpush1.msra.mxu0 %v393
        %1591 = vmatprep.subr.mxu0 0.0
        %1592 = vmatpush1.msra.mxu0 %v394
        %1593 = vmatprep.subr.mxu0 0.0
        %1594 = vmatpush1.msra.mxu0 %v395
        %1595 = vmatprep.subr.mxu0 0.0
        %1596 = vmatpush1.msra.mxu0 %v396
        %1597 = vmatprep.subr.mxu0 0.0
        %1598 = vmatpush1.msra.mxu0 %v397
        %1599 = vmatprep.subr.mxu0 0.0
        %1600 = vmatpush1.msra.mxu0 %v398
        %1601 = vmatprep.subr.mxu0 0.0
        %1602 = vmatpush1.msra.mxu0 %v399
        %1603 = vmatprep.subr.mxu0 0.0
        %1604 = vmatpush1.msra.mxu0 %v400
        %1605 = vmatprep.subr.mxu0 0.0
        %1606 = vmatpush1.msra.mxu0 %v401
        %1607 = vmatprep.subr.mxu0 0.0
        %1608 = vmatpush1.msra.mxu0 %v402
        %1609 = vmatprep.subr.mxu0 0.0
        %1610 = vmatpush1.msra.mxu0 %v403
        %1611 = vmatprep.subr.mxu0 0.0
        %1612 = vmatpush1.msra.mxu0 %v404
        %1613 = vmatprep.subr.mxu0 0.0
        %1614 = vmatpush1.msra.mxu0 %v405
        %1615 = vmatprep.subr.mxu0 0.0
        %1616 = vmatpush1.msra.mxu0 %v406
        %1617 = vmatprep.subr.mxu0 0.0
        %1618 = vmatpush1.msra.mxu0 %v407
        %1619 = vmatprep.subr.mxu0 0.0
        %1620 = vmatpush1.msra.mxu0 %v408
        %1621 = vmatprep.subr.mxu0 0.0
        %1622 = vmatpush1.msra.mxu0 %v409
        %1623 = vmatprep.subr.mxu0 0.0
        %1624 = vmatpush1.msra.mxu0 %v410
        %1625 = vmatprep.subr.mxu0 0.0
        %1626 = vmatpush1.msra.mxu0 %v411
        %1627 = vmatprep.subr.mxu0 0.0
        %1628 = vmatpush1.msra.mxu0 %v412
        %1629 = vmatprep.mubr.f32.mxu0 %v1082
        %1630 = vmatmul.mubr.f32.gmra.mrb[0].mxu0 %v1074
        %v1631 = vpop.f32.mrb[0].mxu0
        %v1632 = vadd.f32 %v1562, %v1631
        %v1633 = vpop.f32.mrb[0].mxu0
        %1634 = vdwg.mxu0
        %1635 = vmatprep.subr.mxu0 0.0
        %1636 = vmatpush1.msra.mxu0 %v413
        %1637 = vmatprep.subr.mxu0 0.0
        %1638 = vmatpush1.msra.mxu0 %v414
        %1639 = vmatprep.subr.mxu0 0.0
        %1640 = vmatpush1.msra.mxu0 %v415
        %1641 = vmatprep.subr.mxu0 0.0
        %1642 = vmatpush1.msra.mxu0 %v416
        %1643 = vmatprep.subr.mxu0 0.0
        %1644 = vmatpush1.msra.mxu0 %v417
        %1645 = vmatprep.subr.mxu0 0.0
        %1646 = vmatpush1.msra.mxu0 %v418
        %1647 = vmatprep.subr.mxu0 0.0
        %1648 = vmatpush1.msra.mxu0 %v419
        %1649 = vmatprep.subr.mxu0 0.0
        %1650 = vmatpush1.msra.mxu0 %v420
        %1651 = vmatprep.subr.mxu0 0.0
        %1652 = vmatpush1.msra.mxu0 %v421
        %1653 = vmatprep.subr.mxu0 0.0
        %1654 = vmatpush1.msra.mxu0 %v422
        %1655 = vmatprep.subr.mxu0 0.0
        %1656 = vmatpush1.msra.mxu0 %v423
        %1657 = vmatprep.subr.mxu0 0.0
        %1658 = vmatpush1.msra.mxu0 %v424
        %1659 = vmatprep.subr.mxu0 0.0
        %1660 = vmatpush1.msra.mxu0 %v425
        %1661 = vmatprep.subr.mxu0 0.0
        %1662 = vmatpush1.msra.mxu0 %v426
        %1663 = vmatprep.subr.mxu0 0.0
        %1664 = vmatpush1.msra.mxu0 %v427
        %1665 = vmatprep.subr.mxu0 0.0
        %1666 = vmatpush1.msra.mxu0 %v428
        %1667 = vmatprep.subr.mxu0 0.0
        %1668 = vmatpush1.msra.mxu0 %v429
        %1669 = vmatprep.subr.mxu0 0.0
        %1670 = vmatpush1.msra.mxu0 %v430
        %1671 = vmatprep.subr.mxu0 0.0
        %1672 = vmatpush1.msra.mxu0 %v431
        %1673 = vmatprep.subr.mxu0 0.0
        %1674 = vmatpush1.msra.mxu0 %v432
        %1675 = vmatprep.subr.mxu0 0.0
        %1676 = vmatpush1.msra.mxu0 %v433
        %1677 = vmatprep.subr.mxu0 0.0
        %1678 = vmatpush1.msra.mxu0 %v434
        %1679 = vmatprep.subr.mxu0 0.0
        %1680 = vmatpush1.msra.mxu0 %v435
        %1681 = vmatprep.subr.mxu0 0.0
        %1682 = vmatpush1.msra.mxu0 %v436
        %1683 = vmatprep.subr.mxu0 0.0
        %1684 = vmatpush1.msra.mxu0 %v437
        %1685 = vmatprep.subr.mxu0 0.0
        %1686 = vmatpush1.msra.mxu0 %v438
        %1687 = vmatprep.subr.mxu0 0.0
        %1688 = vmatpush1.msra.mxu0 %v439
        %1689 = vmatprep.subr.mxu0 0.0
        %1690 = vmatpush1.msra.mxu0 %v440
        %1691 = vmatprep.subr.mxu0 0.0
        %1692 = vmatpush1.msra.mxu0 %v441
        %1693 = vmatprep.subr.mxu0 0.0
        %1694 = vmatpush1.msra.mxu0 %v442
        %1695 = vmatprep.subr.mxu0 0.0
        %1696 = vmatpush1.msra.mxu0 %v443
        %1697 = vmatprep.subr.mxu0 0.0
        %1698 = vmatpush1.msra.mxu0 %v444
        %1699 = vmatprep.mubr.f32.mxu0 %v1083
        %1700 = vmatmul.mubr.f32.gmra.mrb[0].mxu0 %v1081
        %v1701 = vpop.f32.mrb[0].mxu0
        %v1702 = vadd.f32 %v1632, %v1701
        %v1703 = vpop.f32.mrb[0].mxu0
        %1704 = vdwg.mxu0
        %1705 = vmatprep.subr.mxu0 0.0
        %1706 = vmatpush1.msra.mxu0 %v445
        %1707 = vmatprep.subr.mxu0 0.0
        %1708 = vmatpush1.msra.mxu0 %v446
        %1709 = vmatprep.subr.mxu0 0.0
        %1710 = vmatpush1.msra.mxu0 %v447
        %1711 = vmatprep.subr.mxu0 0.0
        %1712 = vmatpush1.msra.mxu0 %v448
        %1713 = vmatprep.subr.mxu0 0.0
        %1714 = vmatpush1.msra.mxu0 %v449
        %1715 = vmatprep.subr.mxu0 0.0
        %1716 = vmatpush1.msra.mxu0 %v450
        %1717 = vmatprep.subr.mxu0 0.0
        %1718 = vmatpush1.msra.mxu0 %v451
        %1719 = vmatprep.subr.mxu0 0.0
        %1720 = vmatpush1.msra.mxu0 %v452
        %1721 = vmatprep.subr.mxu0 0.0
        %1722 = vmatpush1.msra.mxu0 %v453
        %1723 = vmatprep.subr.mxu0 0.0
        %1724 = vmatpush1.msra.mxu0 %v454
        %1725 = vmatprep.subr.mxu0 0.0
        %1726 = vmatpush1.msra.mxu0 %v455
        %1727 = vmatprep.subr.mxu0 0.0
        %1728 = vmatpush1.msra.mxu0 %v456
        %1729 = vmatprep.subr.mxu0 0.0
        %1730 = vmatpush1.msra.mxu0 %v457
        %1731 = vmatprep.subr.mxu0 0.0
        %1732 = vmatpush1.msra.mxu0 %v458
        %1733 = vmatprep.subr.mxu0 0.0
        %1734 = vmatpush1.msra.mxu0 %v459
        %1735 = vmatprep.subr.mxu0 0.0
        %1736 = vmatpush1.msra.mxu0 %v460
        %1737 = vmatprep.subr.mxu0 0.0
        %1738 = vmatpush1.msra.mxu0 %v461
        %1739 = vmatprep.subr.mxu0 0.0
        %1740 = vmatpush1.msra.mxu0 %v462
        %1741 = vmatprep.subr.mxu0 0.0
        %1742 = vmatpush1.msra.mxu0 %v463
        %1743 = vmatprep.subr.mxu0 0.0
        %1744 = vmatpush1.msra.mxu0 %v464
        %1745 = vmatprep.subr.mxu0 0.0
        %1746 = vmatpush1.msra.mxu0 %v465
        %1747 = vmatprep.subr.mxu0 0.0
        %1748 = vmatpush1.msra.mxu0 %v466
        %1749 = vmatprep.subr.mxu0 0.0
        %1750 = vmatpush1.msra.mxu0 %v467
        %1751 = vmatprep.subr.mxu0 0.0
        %1752 = vmatpush1.msra.mxu0 %v468
        %1753 = vmatprep.subr.mxu0 0.0
        %1754 = vmatpush1.msra.mxu0 %v469
        %1755 = vmatprep.subr.mxu0 0.0
        %1756 = vmatpush1.msra.mxu0 %v470
        %1757 = vmatprep.subr.mxu0 0.0
        %1758 = vmatpush1.msra.mxu0 %v471
        %1759 = vmatprep.subr.mxu0 0.0
        %1760 = vmatpush1.msra.mxu0 %v472
        %1761 = vmatprep.subr.mxu0 0.0
        %1762 = vmatpush1.msra.mxu0 %v473
        %1763 = vmatprep.subr.mxu0 0.0
        %1764 = vmatpush1.msra.mxu0 %v474
        %1765 = vmatprep.subr.mxu0 0.0
        %1766 = vmatpush1.msra.mxu0 %v475
        %1767 = vmatprep.subr.mxu0 0.0
        %1768 = vmatpush1.msra.mxu0 %v476
        %1769 = vmatprep.mubr.f32.mxu0 %v1099
        %1770 = vmatmul.mubr.f32.gmra.mrb[0].mxu0 %v1091
        %v1771 = vpop.f32.mrb[0].mxu0
        %v1772 = vadd.f32 %v1702, %v1771
        %v1773 = vpop.f32.mrb[0].mxu0
        %1774 = vdwg.mxu0
        %1775 = vmatprep.subr.mxu0 0.0
        %1776 = vmatpush1.msra.mxu0 %v477
        %1777 = vmatprep.subr.mxu0 0.0
        %1778 = vmatpush1.msra.mxu0 %v478
        %1779 = vmatprep.subr.mxu0 0.0
        %1780 = vmatpush1.msra.mxu0 %v479
        %1781 = vmatprep.subr.mxu0 0.0
        %1782 = vmatpush1.msra.mxu0 %v480
        %1783 = vmatprep.subr.mxu0 0.0
        %1784 = vmatpush1.msra.mxu0 %v481
        %1785 = vmatprep.subr.mxu0 0.0
        %1786 = vmatpush1.msra.mxu0 %v482
        %1787 = vmatprep.subr.mxu0 0.0
        %1788 = vmatpush1.msra.mxu0 %v483
        %1789 = vmatprep.subr.mxu0 0.0
        %1790 = vmatpush1.msra.mxu0 %v484
        %1791 = vmatprep.subr.mxu0 0.0
        %1792 = vmatpush1.msra.mxu0 %v485
        %1793 = vmatprep.subr.mxu0 0.0
        %1794 = vmatpush1.msra.mxu0 %v486
        %1795 = vmatprep.subr.mxu0 0.0
        %1796 = vmatpush1.msra.mxu0 %v487
        %1797 = vmatprep.subr.mxu0 0.0
        %1798 = vmatpush1.msra.mxu0 %v488
        %1799 = vmatprep.subr.mxu0 0.0
        %1800 = vmatpush1.msra.mxu0 %v489
        %1801 = vmatprep.subr.mxu0 0.0
        %1802 = vmatpush1.msra.mxu0 %v490
        %1803 = vmatprep.subr.mxu0 0.0
        %1804 = vmatpush1.msra.mxu0 %v491
        %1805 = vmatprep.subr.mxu0 0.0
        %1806 = vmatpush1.msra.mxu0 %v492
        %1807 = vmatprep.subr.mxu0 0.0
        %1808 = vmatpush1.msra.mxu0 %v493
        %1809 = vmatprep.subr.mxu0 0.0
        %1810 = vmatpush1.msra.mxu0 %v494
        %1811 = vmatprep.subr.mxu0 0.0
        %1812 = vmatpush1.msra.mxu0 %v495
        %1813 = vmatprep.subr.mxu0 0.0
        %1814 = vmatpush1.msra.mxu0 %v496
        %1815 = vmatprep.subr.mxu0 0.0
        %1816 = vmatpush1.msra.mxu0 %v497
        %1817 = vmatprep.subr.mxu0 0.0
        %1818 = vmatpush1.msra.mxu0 %v498
        %1819 = vmatprep.subr.mxu0 0.0
        %1820 = vmatpush1.msra.mxu0 %v499
        %1821 = vmatprep.subr.mxu0 0.0
        %1822 = vmatpush1.msra.mxu0 %v500
        %1823 = vmatprep.subr.mxu0 0.0
        %1824 = vmatpush1.msra.mxu0 %v501
        %1825 = vmatprep.subr.mxu0 0.0
        %1826 = vmatpush1.msra.mxu0 %v502
        %1827 = vmatprep.subr.mxu0 0.0
        %1828 = vmatpush1.msra.mxu0 %v503
        %1829 = vmatprep.subr.mxu0 0.0
        %1830 = vmatpush1.msra.mxu0 %v504
        %1831 = vmatprep.subr.mxu0 0.0
        %1832 = vmatpush1.msra.mxu0 %v505
        %1833 = vmatprep.subr.mxu0 0.0
        %1834 = vmatpush1.msra.mxu0 %v506
        %1835 = vmatprep.subr.mxu0 0.0
        %1836 = vmatpush1.msra.mxu0 %v507
        %1837 = vmatprep.subr.mxu0 0.0
        %1838 = vmatpush1.msra.mxu0 %v508
        %1839 = vmatprep.mubr.f32.mxu0 %v1100
        %1840 = vmatmul.mubr.f32.gmra.mrb[0].mxu0 %v1098
        %v1841 = vpop.f32.mrb[0].mxu0
        %v1842 = vadd.f32 %v1772, %v1841
        %v1843 = vpop.f32.mrb[0].mxu0
        %1844 = vdwg.mxu0
        %1845 = vmatprep.subr.mxu0 0.0
        %1846 = vmatpush1.msra.mxu0 %v509
        %1847 = vmatprep.subr.mxu0 0.0
        %1848 = vmatpush1.msra.mxu0 %v510
        %1849 = vmatprep.subr.mxu0 0.0
        %1850 = vmatpush1.msra.mxu0 %v511
        %1851 = vmatprep.subr.mxu0 0.0
        %1852 = vmatpush1.msra.mxu0 %v512
        %1853 = vmatprep.subr.mxu0 0.0
        %1854 = vmatpush1.msra.mxu0 %v513
        %1855 = vmatprep.subr.mxu0 0.0
        %1856 = vmatpush1.msra.mxu0 %v514
        %1857 = vmatprep.subr.mxu0 0.0
        %1858 = vmatpush1.msra.mxu0 %v515
        %1859 = vmatprep.subr.mxu0 0.0
        %1860 = vmatpush1.msra.mxu0 %v516
        %1861 = vmatprep.subr.mxu0 0.0
        %1862 = vmatpush1.msra.mxu0 %v517
        %1863 = vmatprep.subr.mxu0 0.0
        %1864 = vmatpush1.msra.mxu0 %v518
        %1865 = vmatprep.subr.mxu0 0.0
        %1866 = vmatpush1.msra.mxu0 %v519
        %1867 = vmatprep.subr.mxu0 0.0
        %1868 = vmatpush1.msra.mxu0 %v520
        %1869 = vmatprep.subr.mxu0 0.0
        %1870 = vmatpush1.msra.mxu0 %v521
        %1871 = vmatprep.subr.mxu0 0.0
        %1872 = vmatpush1.msra.mxu0 %v522
        %1873 = vmatprep.subr.mxu0 0.0
        %1874 = vmatpush1.msra.mxu0 %v523
        %1875 = vmatprep.subr.mxu0 0.0
        %1876 = vmatpush1.msra.mxu0 %v524
        %1877 = vmatprep.subr.mxu0 0.0
        %1878 = vmatpush1.msra.mxu0 %v525
        %1879 = vmatprep.subr.mxu0 0.0
        %1880 = vmatpush1.msra.mxu0 %v526
        %1881 = vmatprep.subr.mxu0 0.0
        %1882 = vmatpush1.msra.mxu0 %v527
        %1883 = vmatprep.subr.mxu0 0.0
        %1884 = vmatpush1.msra.mxu0 %v528
        %1885 = vmatprep.subr.mxu0 0.0
        %1886 = vmatpush1.msra.mxu0 %v529
        %1887 = vmatprep.subr.mxu0 0.0
        %1888 = vmatpush1.msra.mxu0 %v530
        %1889 = vmatprep.subr.mxu0 0.0
        %1890 = vmatpush1.msra.mxu0 %v531
        %1891 = vmatprep.subr.mxu0 0.0
        %1892 = vmatpush1.msra.mxu0 %v532
        %1893 = vmatprep.subr.mxu0 0.0
        %1894 = vmatpush1.msra.mxu0 %v533
        %1895 = vmatprep.subr.mxu0 0.0
        %1896 = vmatpush1.msra.mxu0 %v534
        %1897 = vmatprep.subr.mxu0 0.0
        %1898 = vmatpush1.msra.mxu0 %v535
        %1899 = vmatprep.subr.mxu0 0.0
        %1900 = vmatpush1.msra.mxu0 %v536
        %1901 = vmatprep.subr.mxu0 0.0
        %1902 = vmatpush1.msra.mxu0 %v537
        %1903 = vmatprep.subr.mxu0 0.0
        %1904 = vmatpush1.msra.mxu0 %v538
        %1905 = vmatprep.subr.mxu0 0.0
        %1906 = vmatpush1.msra.mxu0 %v539
        %1907 = vmatprep.subr.mxu0 0.0
        %1908 = vmatpush1.msra.mxu0 %v540
        %1909 = vmatprep.mubr.f32.mxu0 %v1116
        %1910 = vmatmul.mubr.f32.gmra.mrb[0].mxu0 %v1108
        %v1911 = vpop.f32.mrb[0].mxu0
        %v1912 = vadd.f32 %v1842, %v1911
        %v1913 = vpop.f32.mrb[0].mxu0
        %1914 = vdwg.mxu0
        %1915 = vmatprep.subr.mxu0 0.0
        %1916 = vmatpush1.msra.mxu0 %v541
        %1917 = vmatprep.subr.mxu0 0.0
        %1918 = vmatpush1.msra.mxu0 %v542
        %1919 = vmatprep.subr.mxu0 0.0
        %1920 = vmatpush1.msra.mxu0 %v543
        %1921 = vmatprep.subr.mxu0 0.0
        %1922 = vmatpush1.msra.mxu0 %v544
        %1923 = vmatprep.subr.mxu0 0.0
        %1924 = vmatpush1.msra.mxu0 %v545
        %1925 = vmatprep.subr.mxu0 0.0
        %1926 = vmatpush1.msra.mxu0 %v546
        %1927 = vmatprep.subr.mxu0 0.0
        %1928 = vmatpush1.msra.mxu0 %v547
        %1929 = vmatprep.subr.mxu0 0.0
        %1930 = vmatpush1.msra.mxu0 %v548
        %1931 = vmatprep.subr.mxu0 0.0
        %1932 = vmatpush1.msra.mxu0 %v549
        %1933 = vmatprep.subr.mxu0 0.0
        %1934 = vmatpush1.msra.mxu0 %v550
        %1935 = vmatprep.subr.mxu0 0.0
        %1936 = vmatpush1.msra.mxu0 %v551
        %1937 = vmatprep.subr.mxu0 0.0
        %1938 = vmatpush1.msra.mxu0 %v552
        %1939 = vmatprep.subr.mxu0 0.0
        %1940 = vmatpush1.msra.mxu0 %v553
        %1941 = vmatprep.subr.mxu0 0.0
        %1942 = vmatpush1.msra.mxu0 %v554
        %1943 = vmatprep.subr.mxu0 0.0
        %1944 = vmatpush1.msra.mxu0 %v555
        %1945 = vmatprep.subr.mxu0 0.0
        %1946 = vmatpush1.msra.mxu0 %v556
        %1947 = vmatprep.subr.mxu0 0.0
        %1948 = vmatpush1.msra.mxu0 %v557
        %1949 = vmatprep.subr.mxu0 0.0
        %1950 = vmatpush1.msra.mxu0 %v558
        %1951 = vmatprep.subr.mxu0 0.0
        %1952 = vmatpush1.msra.mxu0 %v559
        %1953 = vmatprep.subr.mxu0 0.0
        %1954 = vmatpush1.msra.mxu0 %v560
        %1955 = vmatprep.subr.mxu0 0.0
        %1956 = vmatpush1.msra.mxu0 %v561
        %1957 = vmatprep.subr.mxu0 0.0
        %1958 = vmatpush1.msra.mxu0 %v562
        %1959 = vmatprep.subr.mxu0 0.0
        %1960 = vmatpush1.msra.mxu0 %v563
        %1961 = vmatprep.subr.mxu0 0.0
        %1962 = vmatpush1.msra.mxu0 %v564
        %1963 = vmatprep.subr.mxu0 0.0
        %1964 = vmatpush1.msra.mxu0 %v565
        %1965 = vmatprep.subr.mxu0 0.0
        %1966 = vmatpush1.msra.mxu0 %v566
        %1967 = vmatprep.subr.mxu0 0.0
        %1968 = vmatpush1.msra.mxu0 %v567
        %1969 = vmatprep.subr.mxu0 0.0
        %1970 = vmatpush1.msra.mxu0 %v568
        %1971 = vmatprep.subr.mxu0 0.0
        %1972 = vmatpush1.msra.mxu0 %v569
        %1973 = vmatprep.subr.mxu0 0.0
        %1974 = vmatpush1.msra.mxu0 %v570
        %1975 = vmatprep.subr.mxu0 0.0
        %1976 = vmatpush1.msra.mxu0 %v571
        %1977 = vmatprep.subr.mxu0 0.0
        %1978 = vmatpush1.msra.mxu0 %v572
        %1979 = vmatprep.mubr.f32.mxu0 %v1117
        %1980 = vmatmul.mubr.f32.gmra.mrb[0].mxu0 %v1115
        %v1981 = vpop.f32.mrb[0].mxu0
        %v1982 = vadd.f32 %v1912, %v1981
        %v1983 = vpop.f32.mrb[0].mxu0
        %1984 = vdwg.mxu0
        %1985 = vmatprep.subr.mxu0 0.0
        %1986 = vmatpush1.msra.mxu0 %v573
        %1987 = vmatprep.subr.mxu0 0.0
        %1988 = vmatpush1.msra.mxu0 %v574
        %1989 = vmatprep.subr.mxu0 0.0
        %1990 = vmatpush1.msra.mxu0 %v575
        %1991 = vmatprep.subr.mxu0 0.0
        %1992 = vmatpush1.msra.mxu0 %v576
        %1993 = vmatprep.subr.mxu0 0.0
        %1994 = vmatpush1.msra.mxu0 %v577
        %1995 = vmatprep.subr.mxu0 0.0
        %1996 = vmatpush1.msra.mxu0 %v578
        %1997 = vmatprep.subr.mxu0 0.0
        %1998 = vmatpush1.msra.mxu0 %v579
        %1999 = vmatprep.subr.mxu0 0.0
        %2000 = vmatpush1.msra.mxu0 %v580
        %2001 = vmatprep.subr.mxu0 0.0
        %2002 = vmatpush1.msra.mxu0 %v581
        %2003 = vmatprep.subr.mxu0 0.0
        %2004 = vmatpush1.msra.mxu0 %v582
        %2005 = vmatprep.subr.mxu0 0.0
        %2006 = vmatpush1.msra.mxu0 %v583
        %2007 = vmatprep.subr.mxu0 0.0
        %2008 = vmatpush1.msra.mxu0 %v584
        %2009 = vmatprep.subr.mxu0 0.0
        %2010 = vmatpush1.msra.mxu0 %v585
        %2011 = vmatprep.subr.mxu0 0.0
        %2012 = vmatpush1.msra.mxu0 %v586
        %2013 = vmatprep.subr.mxu0 0.0
        %2014 = vmatpush1.msra.mxu0 %v587
        %2015 = vmatprep.subr.mxu0 0.0
        %2016 = vmatpush1.msra.mxu0 %v588
        %2017 = vmatprep.subr.mxu0 0.0
        %2018 = vmatpush1.msra.mxu0 %v589
        %2019 = vmatprep.subr.mxu0 0.0
        %2020 = vmatpush1.msra.mxu0 %v590
        %2021 = vmatprep.subr.mxu0 0.0
        %2022 = vmatpush1.msra.mxu0 %v591
        %2023 = vmatprep.subr.mxu0 0.0
        %2024 = vmatpush1.msra.mxu0 %v592
        %2025 = vmatprep.subr.mxu0 0.0
        %2026 = vmatpush1.msra.mxu0 %v593
        %2027 = vmatprep.subr.mxu0 0.0
        %2028 = vmatpush1.msra.mxu0 %v594
        %2029 = vmatprep.subr.mxu0 0.0
        %2030 = vmatpush1.msra.mxu0 %v595
        %2031 = vmatprep.subr.mxu0 0.0
        %2032 = vmatpush1.msra.mxu0 %v596
        %2033 = vmatprep.subr.mxu0 0.0
        %2034 = vmatpush1.msra.mxu0 %v597
        %2035 = vmatprep.subr.mxu0 0.0
        %2036 = vmatpush1.msra.mxu0 %v598
        %2037 = vmatprep.subr.mxu0 0.0
        %2038 = vmatpush1.msra.mxu0 %v599
        %2039 = vmatprep.subr.mxu0 0.0
        %2040 = vmatpush1.msra.mxu0 %v600
        %2041 = vmatprep.subr.mxu0 0.0
        %2042 = vmatpush1.msra.mxu0 %v601
        %2043 = vmatprep.subr.mxu0 0.0
        %2044 = vmatpush1.msra.mxu0 %v602
        %2045 = vmatprep.subr.mxu0 0.0
        %2046 = vmatpush1.msra.mxu0 %v603
        %2047 = vmatprep.subr.mxu0 0.0
        %2048 = vmatpush1.msra.mxu0 %v604
        %2049 = vmatprep.mubr.f32.mxu0 %v1133
        %2050 = vmatmul.mubr.f32.gmra.mrb[0].mxu0 %v1125
        %v2051 = vpop.f32.mrb[0].mxu0
        %v2052 = vadd.f32 %v1982, %v2051
        %v2053 = vpop.f32.mrb[0].mxu0
        %2054 = vdwg.mxu0
        %2055 = vmatprep.subr.mxu0 0.0
        %2056 = vmatpush1.msra.mxu0 %v605
        %2057 = vmatprep.subr.mxu0 0.0
        %2058 = vmatpush1.msra.mxu0 %v606
        %2059 = vmatprep.subr.mxu0 0.0
        %2060 = vmatpush1.msra.mxu0 %v607
        %2061 = vmatprep.subr.mxu0 0.0
        %2062 = vmatpush1.msra.mxu0 %v608
        %2063 = vmatprep.subr.mxu0 0.0
        %2064 = vmatpush1.msra.mxu0 %v609
        %2065 = vmatprep.subr.mxu0 0.0
        %2066 = vmatpush1.msra.mxu0 %v610
        %2067 = vmatprep.subr.mxu0 0.0
        %2068 = vmatpush1.msra.mxu0 %v611
        %2069 = vmatprep.subr.mxu0 0.0
        %2070 = vmatpush1.msra.mxu0 %v612
        %2071 = vmatprep.subr.mxu0 0.0
        %2072 = vmatpush1.msra.mxu0 %v613
        %2073 = vmatprep.subr.mxu0 0.0
        %2074 = vmatpush1.msra.mxu0 %v614
        %2075 = vmatprep.subr.mxu0 0.0
        %2076 = vmatpush1.msra.mxu0 %v615
        %2077 = vmatprep.subr.mxu0 0.0
        %2078 = vmatpush1.msra.mxu0 %v616
        %2079 = vmatprep.subr.mxu0 0.0
        %2080 = vmatpush1.msra.mxu0 %v617
        %2081 = vmatprep.subr.mxu0 0.0
        %2082 = vmatpush1.msra.mxu0 %v618
        %2083 = vmatprep.subr.mxu0 0.0
        %2084 = vmatpush1.msra.mxu0 %v619
        %2085 = vmatprep.subr.mxu0 0.0
        %2086 = vmatpush1.msra.mxu0 %v620
        %2087 = vmatprep.subr.mxu0 0.0
        %2088 = vmatpush1.msra.mxu0 %v621
        %2089 = vmatprep.subr.mxu0 0.0
        %2090 = vmatpush1.msra.mxu0 %v622
        %2091 = vmatprep.subr.mxu0 0.0
        %2092 = vmatpush1.msra.mxu0 %v623
        %2093 = vmatprep.subr.mxu0 0.0
        %2094 = vmatpush1.msra.mxu0 %v624
        %2095 = vmatprep.subr.mxu0 0.0
        %2096 = vmatpush1.msra.mxu0 %v625
        %2097 = vmatprep.subr.mxu0 0.0
        %2098 = vmatpush1.msra.mxu0 %v626
        %2099 = vmatprep.subr.mxu0 0.0
        %2100 = vmatpush1.msra.mxu0 %v627
        %2101 = vmatprep.subr.mxu0 0.0
        %2102 = vmatpush1.msra.mxu0 %v628
        %2103 = vmatprep.subr.mxu0 0.0
        %2104 = vmatpush1.msra.mxu0 %v629
        %2105 = vmatprep.subr.mxu0 0.0
        %2106 = vmatpush1.msra.mxu0 %v630
        %2107 = vmatprep.subr.mxu0 0.0
        %2108 = vmatpush1.msra.mxu0 %v631
        %2109 = vmatprep.subr.mxu0 0.0
        %2110 = vmatpush1.msra.mxu0 %v632
        %2111 = vmatprep.subr.mxu0 0.0
        %2112 = vmatpush1.msra.mxu0 %v633
        %2113 = vmatprep.subr.mxu0 0.0
        %2114 = vmatpush1.msra.mxu0 %v634
        %2115 = vmatprep.subr.mxu0 0.0
        %2116 = vmatpush1.msra.mxu0 %v635
        %2117 = vmatprep.subr.mxu0 0.0
        %2118 = vmatpush1.msra.mxu0 %v636
        %2119 = vmatprep.mubr.f32.mxu0 %v1134
        %2120 = vmatmul.mubr.f32.gmra.mrb[0].mxu0 %v1132
        %v2121 = vpop.f32.mrb[0].mxu0
        %v2122 = vadd.f32 %v2052, %v2121
        %v2123 = vpop.f32.mrb[0].mxu0
        %2124 = vdwg.mxu0
        %2125 = vmatprep.subr.mxu0 0.0
        %2126 = vmatpush1.msra.mxu0 %v637
        %2127 = vmatprep.subr.mxu0 0.0
        %2128 = vmatpush1.msra.mxu0 %v638
        %2129 = vmatprep.subr.mxu0 0.0
        %2130 = vmatpush1.msra.mxu0 %v639
        %2131 = vmatprep.subr.mxu0 0.0
        %2132 = vmatpush1.msra.mxu0 %v640
        %2133 = vmatprep.subr.mxu0 0.0
        %2134 = vmatpush1.msra.mxu0 %v641
        %2135 = vmatprep.subr.mxu0 0.0
        %2136 = vmatpush1.msra.mxu0 %v642
        %2137 = vmatprep.subr.mxu0 0.0
        %2138 = vmatpush1.msra.mxu0 %v643
        %2139 = vmatprep.subr.mxu0 0.0
        %2140 = vmatpush1.msra.mxu0 %v644
        %2141 = vmatprep.subr.mxu0 0.0
        %2142 = vmatpush1.msra.mxu0 %v645
        %2143 = vmatprep.subr.mxu0 0.0
        %2144 = vmatpush1.msra.mxu0 %v646
        %2145 = vmatprep.subr.mxu0 0.0
        %2146 = vmatpush1.msra.mxu0 %v647
        %2147 = vmatprep.subr.mxu0 0.0
        %2148 = vmatpush1.msra.mxu0 %v648
        %2149 = vmatprep.subr.mxu0 0.0
        %2150 = vmatpush1.msra.mxu0 %v649
        %2151 = vmatprep.subr.mxu0 0.0
        %2152 = vmatpush1.msra.mxu0 %v650
        %2153 = vmatprep.subr.mxu0 0.0
        %2154 = vmatpush1.msra.mxu0 %v651
        %2155 = vmatprep.subr.mxu0 0.0
        %2156 = vmatpush1.msra.mxu0 %v652
        %2157 = vmatprep.subr.mxu0 0.0
        %2158 = vmatpush1.msra.mxu0 %v653
        %2159 = vmatprep.subr.mxu0 0.0
        %2160 = vmatpush1.msra.mxu0 %v654
        %2161 = vmatprep.subr.mxu0 0.0
        %2162 = vmatpush1.msra.mxu0 %v655
        %2163 = vmatprep.subr.mxu0 0.0
        %2164 = vmatpush1.msra.mxu0 %v656
        %2165 = vmatprep.subr.mxu0 0.0
        %2166 = vmatpush1.msra.mxu0 %v657
        %2167 = vmatprep.subr.mxu0 0.0
        %2168 = vmatpush1.msra.mxu0 %v658
        %2169 = vmatprep.subr.mxu0 0.0
        %2170 = vmatpush1.msra.mxu0 %v659
        %2171 = vmatprep.subr.mxu0 0.0
        %2172 = vmatpush1.msra.mxu0 %v660
        %2173 = vmatprep.subr.mxu0 0.0
        %2174 = vmatpush1.msra.mxu0 %v661
        %2175 = vmatprep.subr.mxu0 0.0
        %2176 = vmatpush1.msra.mxu0 %v662
        %2177 = vmatprep.subr.mxu0 0.0
        %2178 = vmatpush1.msra.mxu0 %v663
        %2179 = vmatprep.subr.mxu0 0.0
        %2180 = vmatpush1.msra.mxu0 %v664
        %2181 = vmatprep.subr.mxu0 0.0
        %2182 = vmatpush1.msra.mxu0 %v665
        %2183 = vmatprep.subr.mxu0 0.0
        %2184 = vmatpush1.msra.mxu0 %v666
        %2185 = vmatprep.subr.mxu0 0.0
        %2186 = vmatpush1.msra.mxu0 %v667
        %2187 = vmatprep.subr.mxu0 0.0
        %2188 = vmatpush1.msra.mxu0 %v668
        %2189 = vmatprep.mubr.f32.mxu0 %v1150
        %2190 = vmatmul.mubr.f32.gmra.mrb[0].mxu0 %v1142
        %v2191 = vpop.f32.mrb[0].mxu0
        %v2192 = vadd.f32 %v2122, %v2191
        %v2193 = vpop.f32.mrb[0].mxu0
        %2194 = vdwg.mxu0
        %2195 = vmatprep.subr.mxu0 0.0
        %2196 = vmatpush1.msra.mxu0 %v669
        %2197 = vmatprep.subr.mxu0 0.0
        %2198 = vmatpush1.msra.mxu0 %v670
        %2199 = vmatprep.subr.mxu0 0.0
        %2200 = vmatpush1.msra.mxu0 %v671
        %2201 = vmatprep.subr.mxu0 0.0
        %2202 = vmatpush1.msra.mxu0 %v672
        %2203 = vmatprep.subr.mxu0 0.0
        %2204 = vmatpush1.msra.mxu0 %v673
        %2205 = vmatprep.subr.mxu0 0.0
        %2206 = vmatpush1.msra.mxu0 %v674
        %2207 = vmatprep.subr.mxu0 0.0
        %2208 = vmatpush1.msra.mxu0 %v675
        %2209 = vmatprep.subr.mxu0 0.0
        %2210 = vmatpush1.msra.mxu0 %v676
        %2211 = vmatprep.subr.mxu0 0.0
        %2212 = vmatpush1.msra.mxu0 %v677
        %2213 = vmatprep.subr.mxu0 0.0
        %2214 = vmatpush1.msra.mxu0 %v678
        %2215 = vmatprep.subr.mxu0 0.0
        %2216 = vmatpush1.msra.mxu0 %v679
        %2217 = vmatprep.subr.mxu0 0.0
        %2218 = vmatpush1.msra.mxu0 %v680
        %2219 = vmatprep.subr.mxu0 0.0
        %2220 = vmatpush1.msra.mxu0 %v681
        %2221 = vmatprep.subr.mxu0 0.0
        %2222 = vmatpush1.msra.mxu0 %v682
        %2223 = vmatprep.subr.mxu0 0.0
        %2224 = vmatpush1.msra.mxu0 %v683
        %2225 = vmatprep.subr.mxu0 0.0
        %2226 = vmatpush1.msra.mxu0 %v684
        %2227 = vmatprep.subr.mxu0 0.0
        %2228 = vmatpush1.msra.mxu0 %v685
        %2229 = vmatprep.subr.mxu0 0.0
        %2230 = vmatpush1.msra.mxu0 %v686
        %2231 = vmatprep.subr.mxu0 0.0
        %2232 = vmatpush1.msra.mxu0 %v687
        %2233 = vmatprep.subr.mxu0 0.0
        %2234 = vmatpush1.msra.mxu0 %v688
        %2235 = vmatprep.subr.mxu0 0.0
        %2236 = vmatpush1.msra.mxu0 %v689
        %2237 = vmatprep.subr.mxu0 0.0
        %2238 = vmatpush1.msra.mxu0 %v690
        %2239 = vmatprep.subr.mxu0 0.0
        %2240 = vmatpush1.msra.mxu0 %v691
        %2241 = vmatprep.subr.mxu0 0.0
        %2242 = vmatpush1.msra.mxu0 %v692
        %2243 = vmatprep.subr.mxu0 0.0
        %2244 = vmatpush1.msra.mxu0 %v693
        %2245 = vmatprep.subr.mxu0 0.0
        %2246 = vmatpush1.msra.mxu0 %v694
        %2247 = vmatprep.subr.mxu0 0.0
        %2248 = vmatpush1.msra.mxu0 %v695
        %2249 = vmatprep.subr.mxu0 0.0
        %2250 = vmatpush1.msra.mxu0 %v696
        %2251 = vmatprep.subr.mxu0 0.0
        %2252 = vmatpush1.msra.mxu0 %v697
        %2253 = vmatprep.subr.mxu0 0.0
        %2254 = vmatpush1.msra.mxu0 %v698
        %2255 = vmatprep.subr.mxu0 0.0
        %2256 = vmatpush1.msra.mxu0 %v699
        %2257 = vmatprep.subr.mxu0 0.0
        %2258 = vmatpush1.msra.mxu0 %v700
        %2259 = vmatprep.mubr.f32.mxu0 %v1151
        %2260 = vmatmul.mubr.f32.gmra.mrb[0].mxu0 %v1149
        %v2261 = vpop.f32.mrb[0].mxu0
        %v2262 = vadd.f32 %v2192, %v2261
        %v2263 = vpop.f32.mrb[0].mxu0
        %2264 = vdwg.mxu0
        %2265 = vmatprep.subr.mxu0 0.0
        %2266 = vmatpush1.msra.mxu0 %v701
        %2267 = vmatprep.subr.mxu0 0.0
        %2268 = vmatpush1.msra.mxu0 %v702
        %2269 = vmatprep.subr.mxu0 0.0
        %2270 = vmatpush1.msra.mxu0 %v703
        %2271 = vmatprep.subr.mxu0 0.0
        %2272 = vmatpush1.msra.mxu0 %v704
        %2273 = vmatprep.subr.mxu0 0.0
        %2274 = vmatpush1.msra.mxu0 %v705
        %2275 = vmatprep.subr.mxu0 0.0
        %2276 = vmatpush1.msra.mxu0 %v706
        %2277 = vmatprep.subr.mxu0 0.0
        %2278 = vmatpush1.msra.mxu0 %v707
        %2279 = vmatprep.subr.mxu0 0.0
        %2280 = vmatpush1.msra.mxu0 %v708
        %2281 = vmatprep.subr.mxu0 0.0
        %2282 = vmatpush1.msra.mxu0 %v709
        %2283 = vmatprep.subr.mxu0 0.0
        %2284 = vmatpush1.msra.mxu0 %v710
        %2285 = vmatprep.subr.mxu0 0.0
        %2286 = vmatpush1.msra.mxu0 %v711
        %2287 = vmatprep.subr.mxu0 0.0
        %2288 = vmatpush1.msra.mxu0 %v712
        %2289 = vmatprep.subr.mxu0 0.0
        %2290 = vmatpush1.msra.mxu0 %v713
        %2291 = vmatprep.subr.mxu0 0.0
        %2292 = vmatpush1.msra.mxu0 %v714
        %2293 = vmatprep.subr.mxu0 0.0
        %2294 = vmatpush1.msra.mxu0 %v715
        %2295 = vmatprep.subr.mxu0 0.0
        %2296 = vmatpush1.msra.mxu0 %v716
        %2297 = vmatprep.subr.mxu0 0.0
        %2298 = vmatpush1.msra.mxu0 %v717
        %2299 = vmatprep.subr.mxu0 0.0
        %2300 = vmatpush1.msra.mxu0 %v718
        %2301 = vmatprep.subr.mxu0 0.0
        %2302 = vmatpush1.msra.mxu0 %v719
        %2303 = vmatprep.subr.mxu0 0.0
        %2304 = vmatpush1.msra.mxu0 %v720
        %2305 = vmatprep.subr.mxu0 0.0
        %2306 = vmatpush1.msra.mxu0 %v721
        %2307 = vmatprep.subr.mxu0 0.0
        %2308 = vmatpush1.msra.mxu0 %v722
        %2309 = vmatprep.subr.mxu0 0.0
        %2310 = vmatpush1.msra.mxu0 %v723
        %2311 = vmatprep.subr.mxu0 0.0
        %2312 = vmatpush1.msra.mxu0 %v724
        %2313 = vmatprep.subr.mxu0 0.0
        %2314 = vmatpush1.msra.mxu0 %v725
        %2315 = vmatprep.subr.mxu0 0.0
        %2316 = vmatpush1.msra.mxu0 %v726
        %2317 = vmatprep.subr.mxu0 0.0
        %2318 = vmatpush1.msra.mxu0 %v727
        %2319 = vmatprep.subr.mxu0 0.0
        %2320 = vmatpush1.msra.mxu0 %v728
        %2321 = vmatprep.subr.mxu0 0.0
        %2322 = vmatpush1.msra.mxu0 %v729
        %2323 = vmatprep.subr.mxu0 0.0
        %2324 = vmatpush1.msra.mxu0 %v730
        %2325 = vmatprep.subr.mxu0 0.0
        %2326 = vmatpush1.msra.mxu0 %v731
        %2327 = vmatprep.subr.mxu0 0.0
        %2328 = vmatpush1.msra.mxu0 %v732
        %2329 = vmatprep.mubr.f32.mxu0 %v1167
        %2330 = vmatmul.mubr.f32.gmra.mrb[0].mxu0 %v1159
        %v2331 = vpop.f32.mrb[0].mxu0
        %v2332 = vadd.f32 %v2262, %v2331
        %v2333 = vpop.f32.mrb[0].mxu0
        %2334 = vdwg.mxu0
        %2335 = vmatprep.subr.mxu0 0.0
        %2336 = vmatpush1.msra.mxu0 %v733
        %2337 = vmatprep.subr.mxu0 0.0
        %2338 = vmatpush1.msra.mxu0 %v734
        %2339 = vmatprep.subr.mxu0 0.0
        %2340 = vmatpush1.msra.mxu0 %v735
        %2341 = vmatprep.subr.mxu0 0.0
        %2342 = vmatpush1.msra.mxu0 %v736
        %2343 = vmatprep.subr.mxu0 0.0
        %2344 = vmatpush1.msra.mxu0 %v737
        %2345 = vmatprep.subr.mxu0 0.0
        %2346 = vmatpush1.msra.mxu0 %v738
        %2347 = vmatprep.subr.mxu0 0.0
        %2348 = vmatpush1.msra.mxu0 %v739
        %2349 = vmatprep.subr.mxu0 0.0
        %2350 = vmatpush1.msra.mxu0 %v740
        %2351 = vmatprep.subr.mxu0 0.0
        %2352 = vmatpush1.msra.mxu0 %v741
        %2353 = vmatprep.subr.mxu0 0.0
        %2354 = vmatpush1.msra.mxu0 %v742
        %2355 = vmatprep.subr.mxu0 0.0
        %2356 = vmatpush1.msra.mxu0 %v743
        %2357 = vmatprep.subr.mxu0 0.0
        %2358 = vmatpush1.msra.mxu0 %v744
        %2359 = vmatprep.subr.mxu0 0.0
        %2360 = vmatpush1.msra.mxu0 %v745
        %2361 = vmatprep.subr.mxu0 0.0
        %2362 = vmatpush1.msra.mxu0 %v746
        %2363 = vmatprep.subr.mxu0 0.0
        %2364 = vmatpush1.msra.mxu0 %v747
        %2365 = vmatprep.subr.mxu0 0.0
        %2366 = vmatpush1.msra.mxu0 %v748
        %2367 = vmatprep.subr.mxu0 0.0
        %2368 = vmatpush1.msra.mxu0 %v749
        %2369 = vmatprep.subr.mxu0 0.0
        %2370 = vmatpush1.msra.mxu0 %v750
        %2371 = vmatprep.subr.mxu0 0.0
        %2372 = vmatpush1.msra.mxu0 %v751
        %2373 = vmatprep.subr.mxu0 0.0
        %2374 = vmatpush1.msra.mxu0 %v752
        %2375 = vmatprep.subr.mxu0 0.0
        %2376 = vmatpush1.msra.mxu0 %v753
        %2377 = vmatprep.subr.mxu0 0.0
        %2378 = vmatpush1.msra.mxu0 %v754
        %2379 = vmatprep.subr.mxu0 0.0
        %2380 = vmatpush1.msra.mxu0 %v755
        %2381 = vmatprep.subr.mxu0 0.0
        %2382 = vmatpush1.msra.mxu0 %v756
        %2383 = vmatprep.subr.mxu0 0.0
        %2384 = vmatpush1.msra.mxu0 %v757
        %2385 = vmatprep.subr.mxu0 0.0
        %2386 = vmatpush1.msra.mxu0 %v758
        %2387 = vmatprep.subr.mxu0 0.0
        %2388 = vmatpush1.msra.mxu0 %v759
        %2389 = vmatprep.subr.mxu0 0.0
        %2390 = vmatpush1.msra.mxu0 %v760
        %2391 = vmatprep.subr.mxu0 0.0
        %2392 = vmatpush1.msra.mxu0 %v761
        %2393 = vmatprep.subr.mxu0 0.0
        %2394 = vmatpush1.msra.mxu0 %v762
        %2395 = vmatprep.subr.mxu0 0.0
        %2396 = vmatpush1.msra.mxu0 %v763
        %2397 = vmatprep.subr.mxu0 0.0
        %2398 = vmatpush1.msra.mxu0 %v764
        %2399 = vmatprep.mubr.f32.mxu0 %v1168
        %2400 = vmatmul.mubr.f32.gmra.mrb[0].mxu0 %v1166
        %v2401 = vpop.f32.mrb[0].mxu0
        %v2402 = vadd.f32 %v2332, %v2401
        %v2403 = vpop.f32.mrb[0].mxu0
        %2404 = vdwg.mxu0
        %2405 = vmatprep.subr.mxu0 0.0
        %2406 = vmatpush1.msra.mxu0 %v765
        %2407 = vmatprep.subr.mxu0 0.0
        %2408 = vmatpush1.msra.mxu0 %v766
        %2409 = vmatprep.subr.mxu0 0.0
        %2410 = vmatpush1.msra.mxu0 %v767
        %2411 = vmatprep.subr.mxu0 0.0
        %2412 = vmatpush1.msra.mxu0 %v768
        %2413 = vmatprep.subr.mxu0 0.0
        %2414 = vmatpush1.msra.mxu0 %v769
        %2415 = vmatprep.subr.mxu0 0.0
        %2416 = vmatpush1.msra.mxu0 %v770
        %2417 = vmatprep.subr.mxu0 0.0
        %2418 = vmatpush1.msra.mxu0 %v771
        %2419 = vmatprep.subr.mxu0 0.0
        %2420 = vmatpush1.msra.mxu0 %v772
        %2421 = vmatprep.subr.mxu0 0.0
        %2422 = vmatpush1.msra.mxu0 %v773
        %2423 = vmatprep.subr.mxu0 0.0
        %2424 = vmatpush1.msra.mxu0 %v774
        %2425 = vmatprep.subr.mxu0 0.0
        %2426 = vmatpush1.msra.mxu0 %v775
        %2427 = vmatprep.subr.mxu0 0.0
        %2428 = vmatpush1.msra.mxu0 %v776
        %2429 = vmatprep.subr.mxu0 0.0
        %2430 = vmatpush1.msra.mxu0 %v777
        %2431 = vmatprep.subr.mxu0 0.0
        %2432 = vmatpush1.msra.mxu0 %v778
        %2433 = vmatprep.subr.mxu0 0.0
        %2434 = vmatpush1.msra.mxu0 %v779
        %2435 = vmatprep.subr.mxu0 0.0
        %2436 = vmatpush1.msra.mxu0 %v780
        %2437 = vmatprep.subr.mxu0 0.0
        %2438 = vmatpush1.msra.mxu0 %v781
        %2439 = vmatprep.subr.mxu0 0.0
        %2440 = vmatpush1.msra.mxu0 %v782
        %2441 = vmatprep.subr.mxu0 0.0
        %2442 = vmatpush1.msra.mxu0 %v783
        %2443 = vmatprep.subr.mxu0 0.0
        %2444 = vmatpush1.msra.mxu0 %v784
        %2445 = vmatprep.subr.mxu0 0.0
        %2446 = vmatpush1.msra.mxu0 %v785
        %2447 = vmatprep.subr.mxu0 0.0
        %2448 = vmatpush1.msra.mxu0 %v786
        %2449 = vmatprep.subr.mxu0 0.0
        %2450 = vmatpush1.msra.mxu0 %v787
        %2451 = vmatprep.subr.mxu0 0.0
        %2452 = vmatpush1.msra.mxu0 %v788
        %2453 = vmatprep.subr.mxu0 0.0
        %2454 = vmatpush1.msra.mxu0 %v789
        %2455 = vmatprep.subr.mxu0 0.0
        %2456 = vmatpush1.msra.mxu0 %v790
        %2457 = vmatprep.subr.mxu0 0.0
        %2458 = vmatpush1.msra.mxu0 %v791
        %2459 = vmatprep.subr.mxu0 0.0
        %2460 = vmatpush1.msra.mxu0 %v792
        %2461 = vmatprep.subr.mxu0 0.0
        %2462 = vmatpush1.msra.mxu0 %v793
        %2463 = vmatprep.subr.mxu0 0.0
        %2464 = vmatpush1.msra.mxu0 %v794
        %2465 = vmatprep.subr.mxu0 0.0
        %2466 = vmatpush1.msra.mxu0 %v795
        %2467 = vmatprep.subr.mxu0 0.0
        %2468 = vmatpush1.msra.mxu0 %v796
        %2469 = vmatprep.mubr.f32.mxu0 %v1184
        %2470 = vmatmul.mubr.f32.gmra.mrb[0].mxu0 %v1176
        %v2471 = vpop.f32.mrb[0].mxu0
        %v2472 = vadd.f32 %v2402, %v2471
        %v2473 = vpop.f32.mrb[0].mxu0
        %2474 = vdwg.mxu0
        %2475 = vmatprep.subr.mxu0 0.0
        %2476 = vmatpush1.msra.mxu0 %v797
        %2477 = vmatprep.subr.mxu0 0.0
        %2478 = vmatpush1.msra.mxu0 %v798
        %2479 = vmatprep.subr.mxu0 0.0
        %2480 = vmatpush1.msra.mxu0 %v799
        %2481 = vmatprep.subr.mxu0 0.0
        %2482 = vmatpush1.msra.mxu0 %v800
        %2483 = vmatprep.subr.mxu0 0.0
        %2484 = vmatpush1.msra.mxu0 %v801
        %2485 = vmatprep.subr.mxu0 0.0
        %2486 = vmatpush1.msra.mxu0 %v802
        %2487 = vmatprep.subr.mxu0 0.0
        %2488 = vmatpush1.msra.mxu0 %v803
        %2489 = vmatprep.subr.mxu0 0.0
        %2490 = vmatpush1.msra.mxu0 %v804
        %2491 = vmatprep.subr.mxu0 0.0
        %2492 = vmatpush1.msra.mxu0 %v805
        %2493 = vmatprep.subr.mxu0 0.0
        %2494 = vmatpush1.msra.mxu0 %v806
        %2495 = vmatprep.subr.mxu0 0.0
        %2496 = vmatpush1.msra.mxu0 %v807
        %2497 = vmatprep.subr.mxu0 0.0
        %2498 = vmatpush1.msra.mxu0 %v808
        %2499 = vmatprep.subr.mxu0 0.0
        %2500 = vmatpush1.msra.mxu0 %v809
        %2501 = vmatprep.subr.mxu0 0.0
        %2502 = vmatpush1.msra.mxu0 %v810
        %2503 = vmatprep.subr.mxu0 0.0
        %2504 = vmatpush1.msra.mxu0 %v811
        %2505 = vmatprep.subr.mxu0 0.0
        %2506 = vmatpush1.msra.mxu0 %v812
        %2507 = vmatprep.subr.mxu0 0.0
        %2508 = vmatpush1.msra.mxu0 %v813
        %2509 = vmatprep.subr.mxu0 0.0
        %2510 = vmatpush1.msra.mxu0 %v814
        %2511 = vmatprep.subr.mxu0 0.0
        %2512 = vmatpush1.msra.mxu0 %v815
        %2513 = vmatprep.subr.mxu0 0.0
        %2514 = vmatpush1.msra.mxu0 %v816
        %2515 = vmatprep.subr.mxu0 0.0
        %2516 = vmatpush1.msra.mxu0 %v817
        %2517 = vmatprep.subr.mxu0 0.0
        %2518 = vmatpush1.msra.mxu0 %v818
        %2519 = vmatprep.subr.mxu0 0.0
        %2520 = vmatpush1.msra.mxu0 %v819
        %2521 = vmatprep.subr.mxu0 0.0
        %2522 = vmatpush1.msra.mxu0 %v820
        %2523 = vmatprep.subr.mxu0 0.0
        %2524 = vmatpush1.msra.mxu0 %v821
        %2525 = vmatprep.subr.mxu0 0.0
        %2526 = vmatpush1.msra.mxu0 %v822
        %2527 = vmatprep.subr.mxu0 0.0
        %2528 = vmatpush1.msra.mxu0 %v823
        %2529 = vmatprep.subr.mxu0 0.0
        %2530 = vmatpush1.msra.mxu0 %v824
        %2531 = vmatprep.subr.mxu0 0.0
        %2532 = vmatpush1.msra.mxu0 %v825
        %2533 = vmatprep.subr.mxu0 0.0
        %2534 = vmatpush1.msra.mxu0 %v826
        %2535 = vmatprep.subr.mxu0 0.0
        %2536 = vmatpush1.msra.mxu0 %v827
        %2537 = vmatprep.subr.mxu0 0.0
        %2538 = vmatpush1.msra.mxu0 %v828
        %2539 = vmatprep.mubr.f32.mxu0 %v1185
        %2540 = vmatmul.mubr.f32.gmra.mrb[0].mxu0 %v1183
        %v2541 = vpop.f32.mrb[0].mxu0
        %v2542 = vadd.f32 %v2472, %v2541
        %v2543 = vpop.f32.mrb[0].mxu0
        %2544 = vdwg.mxu0
        %2545 = vmatprep.subr.mxu0 0.0
        %2546 = vmatpush1.msra.mxu0 %v829
        %2547 = vmatprep.subr.mxu0 0.0
        %2548 = vmatpush1.msra.mxu0 %v830
        %2549 = vmatprep.subr.mxu0 0.0
        %2550 = vmatpush1.msra.mxu0 %v831
        %2551 = vmatprep.subr.mxu0 0.0
        %2552 = vmatpush1.msra.mxu0 %v832
        %2553 = vmatprep.subr.mxu0 0.0
        %2554 = vmatpush1.msra.mxu0 %v833
        %2555 = vmatprep.subr.mxu0 0.0
        %2556 = vmatpush1.msra.mxu0 %v834
        %2557 = vmatprep.subr.mxu0 0.0
        %2558 = vmatpush1.msra.mxu0 %v835
        %2559 = vmatprep.subr.mxu0 0.0
        %2560 = vmatpush1.msra.mxu0 %v836
        %2561 = vmatprep.subr.mxu0 0.0
        %2562 = vmatpush1.msra.mxu0 %v837
        %2563 = vmatprep.subr.mxu0 0.0
        %2564 = vmatpush1.msra.mxu0 %v838
        %2565 = vmatprep.subr.mxu0 0.0
        %2566 = vmatpush1.msra.mxu0 %v839
        %2567 = vmatprep.subr.mxu0 0.0
        %2568 = vmatpush1.msra.mxu0 %v840
        %2569 = vmatprep.subr.mxu0 0.0
        %2570 = vmatpush1.msra.mxu0 %v841
        %2571 = vmatprep.subr.mxu0 0.0
        %2572 = vmatpush1.msra.mxu0 %v842
        %2573 = vmatprep.subr.mxu0 0.0
        %2574 = vmatpush1.msra.mxu0 %v843
        %2575 = vmatprep.subr.mxu0 0.0
        %2576 = vmatpush1.msra.mxu0 %v844
        %2577 = vmatprep.subr.mxu0 0.0
        %2578 = vmatpush1.msra.mxu0 %v845
        %2579 = vmatprep.subr.mxu0 0.0
        %2580 = vmatpush1.msra.mxu0 %v846
        %2581 = vmatprep.subr.mxu0 0.0
        %2582 = vmatpush1.msra.mxu0 %v847
        %2583 = vmatprep.subr.mxu0 0.0
        %2584 = vmatpush1.msra.mxu0 %v848
        %2585 = vmatprep.subr.mxu0 0.0
        %2586 = vmatpush1.msra.mxu0 %v849
        %2587 = vmatprep.subr.mxu0 0.0
        %2588 = vmatpush1.msra.mxu0 %v850
        %2589 = vmatprep.subr.mxu0 0.0
        %2590 = vmatpush1.msra.mxu0 %v851
        %2591 = vmatprep.subr.mxu0 0.0
        %2592 = vmatpush1.msra.mxu0 %v852
        %2593 = vmatprep.subr.mxu0 0.0
        %2594 = vmatpush1.msra.mxu0 %v853
        %2595 = vmatprep.subr.mxu0 0.0
        %2596 = vmatpush1.msra.mxu0 %v854
        %2597 = vmatprep.subr.mxu0 0.0
        %2598 = vmatpush1.msra.mxu0 %v855
        %2599 = vmatprep.subr.mxu0 0.0
        %2600 = vmatpush1.msra.mxu0 %v856
        %2601 = vmatprep.subr.mxu0 0.0
        %2602 = vmatpush1.msra.mxu0 %v857
        %2603 = vmatprep.subr.mxu0 0.0
        %2604 = vmatpush1.msra.mxu0 %v858
        %2605 = vmatprep.subr.mxu0 0.0
        %2606 = vmatpush1.msra.mxu0 %v859
        %2607 = vmatprep.subr.mxu0 0.0
        %2608 = vmatpush1.msra.mxu0 %v860
        %2609 = vmatprep.mubr.f32.mxu0 %v1201
        %2610 = vmatmul.mubr.f32.gmra.mrb[0].mxu0 %v1193
        %v2611 = vpop.f32.mrb[0].mxu0
        %v2612 = vadd.f32 %v2542, %v2611
        %v2613 = vpop.f32.mrb[0].mxu0
        %2614 = vdwg.mxu0
        %2615 = vmatprep.subr.mxu0 0.0
        %2616 = vmatpush1.msra.mxu0 %v861
        %2617 = vmatprep.subr.mxu0 0.0
        %2618 = vmatpush1.msra.mxu0 %v862
        %2619 = vmatprep.subr.mxu0 0.0
        %2620 = vmatpush1.msra.mxu0 %v863
        %2621 = vmatprep.subr.mxu0 0.0
        %2622 = vmatpush1.msra.mxu0 %v864
        %2623 = vmatprep.subr.mxu0 0.0
        %2624 = vmatpush1.msra.mxu0 %v865
        %2625 = vmatprep.subr.mxu0 0.0
        %2626 = vmatpush1.msra.mxu0 %v866
        %2627 = vmatprep.subr.mxu0 0.0
        %2628 = vmatpush1.msra.mxu0 %v867
        %2629 = vmatprep.subr.mxu0 0.0
        %2630 = vmatpush1.msra.mxu0 %v868
        %2631 = vmatprep.subr.mxu0 0.0
        %2632 = vmatpush1.msra.mxu0 %v869
        %2633 = vmatprep.subr.mxu0 0.0
        %2634 = vmatpush1.msra.mxu0 %v870
        %2635 = vmatprep.subr.mxu0 0.0
        %2636 = vmatpush1.msra.mxu0 %v871
        %2637 = vmatprep.subr.mxu0 0.0
        %2638 = vmatpush1.msra.mxu0 %v872
        %2639 = vmatprep.subr.mxu0 0.0
        %2640 = vmatpush1.msra.mxu0 %v873
        %2641 = vmatprep.subr.mxu0 0.0
        %2642 = vmatpush1.msra.mxu0 %v874
        %2643 = vmatprep.subr.mxu0 0.0
        %2644 = vmatpush1.msra.mxu0 %v875
        %2645 = vmatprep.subr.mxu0 0.0
        %2646 = vmatpush1.msra.mxu0 %v876
        %2647 = vmatprep.subr.mxu0 0.0
        %2648 = vmatpush1.msra.mxu0 %v877
        %2649 = vmatprep.subr.mxu0 0.0
        %2650 = vmatpush1.msra.mxu0 %v878
        %2651 = vmatprep.subr.mxu0 0.0
        %2652 = vmatpush1.msra.mxu0 %v879
        %2653 = vmatprep.subr.mxu0 0.0
        %2654 = vmatpush1.msra.mxu0 %v880
        %2655 = vmatprep.subr.mxu0 0.0
        %2656 = vmatpush1.msra.mxu0 %v881
        %2657 = vmatprep.subr.mxu0 0.0
        %2658 = vmatpush1.msra.mxu0 %v882
        %2659 = vmatprep.subr.mxu0 0.0
        %2660 = vmatpush1.msra.mxu0 %v883
        %2661 = vmatprep.subr.mxu0 0.0
        %2662 = vmatpush1.msra.mxu0 %v884
        %2663 = vmatprep.subr.mxu0 0.0
        %2664 = vmatpush1.msra.mxu0 %v885
        %2665 = vmatprep.subr.mxu0 0.0
        %2666 = vmatpush1.msra.mxu0 %v886
        %2667 = vmatprep.subr.mxu0 0.0
        %2668 = vmatpush1.msra.mxu0 %v887
        %2669 = vmatprep.subr.mxu0 0.0
        %2670 = vmatpush1.msra.mxu0 %v888
        %2671 = vmatprep.subr.mxu0 0.0
        %2672 = vmatpush1.msra.mxu0 %v889
        %2673 = vmatprep.subr.mxu0 0.0
        %2674 = vmatpush1.msra.mxu0 %v890
        %2675 = vmatprep.subr.mxu0 0.0
        %2676 = vmatpush1.msra.mxu0 %v891
        %2677 = vmatprep.subr.mxu0 0.0
        %2678 = vmatpush1.msra.mxu0 %v892
        %2679 = vmatprep.mubr.f32.mxu0 %v1202
        %2680 = vmatmul.mubr.f32.gmra.mrb[0].mxu0 %v1200
        %v2681 = vpop.f32.mrb[0].mxu0
        %v2682 = vadd.f32 %v2612, %v2681
        %v2683 = vpop.f32.mrb[0].mxu0
        %2684 = vdwg.mxu0
        %2685 = vmatprep.subr.mxu0 0.0
        %2686 = vmatpush1.msra.mxu0 %v893
        %2687 = vmatprep.subr.mxu0 0.0
        %2688 = vmatpush1.msra.mxu0 %v894
        %2689 = vmatprep.subr.mxu0 0.0
        %2690 = vmatpush1.msra.mxu0 %v895
        %2691 = vmatprep.subr.mxu0 0.0
        %2692 = vmatpush1.msra.mxu0 %v896
        %2693 = vmatprep.subr.mxu0 0.0
        %2694 = vmatpush1.msra.mxu0 %v897
        %2695 = vmatprep.subr.mxu0 0.0
        %2696 = vmatpush1.msra.mxu0 %v898
        %2697 = vmatprep.subr.mxu0 0.0
        %2698 = vmatpush1.msra.mxu0 %v899
        %2699 = vmatprep.subr.mxu0 0.0
        %2700 = vmatpush1.msra.mxu0 %v900
        %2701 = vmatprep.subr.mxu0 0.0
        %2702 = vmatpush1.msra.mxu0 %v901
        %2703 = vmatprep.subr.mxu0 0.0
        %2704 = vmatpush1.msra.mxu0 %v902
        %2705 = vmatprep.subr.mxu0 0.0
        %2706 = vmatpush1.msra.mxu0 %v903
        %2707 = vmatprep.subr.mxu0 0.0
        %2708 = vmatpush1.msra.mxu0 %v904
        %2709 = vmatprep.subr.mxu0 0.0
        %2710 = vmatpush1.msra.mxu0 %v905
        %2711 = vmatprep.subr.mxu0 0.0
        %2712 = vmatpush1.msra.mxu0 %v906
        %2713 = vmatprep.subr.mxu0 0.0
        %2714 = vmatpush1.msra.mxu0 %v907
        %2715 = vmatprep.subr.mxu0 0.0
        %2716 = vmatpush1.msra.mxu0 %v908
        %2717 = vmatprep.subr.mxu0 0.0
        %2718 = vmatpush1.msra.mxu0 %v909
        %2719 = vmatprep.subr.mxu0 0.0
        %2720 = vmatpush1.msra.mxu0 %v910
        %2721 = vmatprep.subr.mxu0 0.0
        %2722 = vmatpush1.msra.mxu0 %v911
        %2723 = vmatprep.subr.mxu0 0.0
        %2724 = vmatpush1.msra.mxu0 %v912
        %2725 = vmatprep.subr.mxu0 0.0
        %2726 = vmatpush1.msra.mxu0 %v913
        %2727 = vmatprep.subr.mxu0 0.0
        %2728 = vmatpush1.msra.mxu0 %v914
        %2729 = vmatprep.subr.mxu0 0.0
        %2730 = vmatpush1.msra.mxu0 %v915
        %2731 = vmatprep.subr.mxu0 0.0
        %2732 = vmatpush1.msra.mxu0 %v916
        %2733 = vmatprep.subr.mxu0 0.0
        %2734 = vmatpush1.msra.mxu0 %v917
        %2735 = vmatprep.subr.mxu0 0.0
        %2736 = vmatpush1.msra.mxu0 %v918
        %2737 = vmatprep.subr.mxu0 0.0
        %2738 = vmatpush1.msra.mxu0 %v919
        %2739 = vmatprep.subr.mxu0 0.0
        %2740 = vmatpush1.msra.mxu0 %v920
        %2741 = vmatprep.subr.mxu0 0.0
        %2742 = vmatpush1.msra.mxu0 %v921
        %2743 = vmatprep.subr.mxu0 0.0
        %2744 = vmatpush1.msra.mxu0 %v922
        %2745 = vmatprep.subr.mxu0 0.0
        %2746 = vmatpush1.msra.mxu0 %v923
        %2747 = vmatprep.subr.mxu0 0.0
        %2748 = vmatpush1.msra.mxu0 %v924
        %2749 = vmatprep.mubr.f32.mxu0 %v1218
        %2750 = vmatmul.mubr.f32.gmra.mrb[0].mxu0 %v1210
        %v2751 = vpop.f32.mrb[0].mxu0
        %v2752 = vadd.f32 %v2682, %v2751
        %v2753 = vpop.f32.mrb[0].mxu0
        %2754 = vdwg.mxu0
        %2755 = vmatprep.subr.mxu0 0.0
        %2756 = vmatpush1.msra.mxu0 %v925
        %2757 = vmatprep.subr.mxu0 0.0
        %2758 = vmatpush1.msra.mxu0 %v926
        %2759 = vmatprep.subr.mxu0 0.0
        %2760 = vmatpush1.msra.mxu0 %v927
        %2761 = vmatprep.subr.mxu0 0.0
        %2762 = vmatpush1.msra.mxu0 %v928
        %2763 = vmatprep.subr.mxu0 0.0
        %2764 = vmatpush1.msra.mxu0 %v929
        %2765 = vmatprep.subr.mxu0 0.0
        %2766 = vmatpush1.msra.mxu0 %v930
        %2767 = vmatprep.subr.mxu0 0.0
        %2768 = vmatpush1.msra.mxu0 %v931
        %2769 = vmatprep.subr.mxu0 0.0
        %2770 = vmatpush1.msra.mxu0 %v932
        %2771 = vmatprep.subr.mxu0 0.0
        %2772 = vmatpush1.msra.mxu0 %v933
        %2773 = vmatprep.subr.mxu0 0.0
        %2774 = vmatpush1.msra.mxu0 %v934
        %2775 = vmatprep.subr.mxu0 0.0
        %2776 = vmatpush1.msra.mxu0 %v935
        %2777 = vmatprep.subr.mxu0 0.0
        %2778 = vmatpush1.msra.mxu0 %v936
        %2779 = vmatprep.subr.mxu0 0.0
        %2780 = vmatpush1.msra.mxu0 %v937
        %2781 = vmatprep.subr.mxu0 0.0
        %2782 = vmatpush1.msra.mxu0 %v938
        %2783 = vmatprep.subr.mxu0 0.0
        %2784 = vmatpush1.msra.mxu0 %v939
        %2785 = vmatprep.subr.mxu0 0.0
        %2786 = vmatpush1.msra.mxu0 %v940
        %2787 = vmatprep.subr.mxu0 0.0
        %2788 = vmatpush1.msra.mxu0 %v941
        %2789 = vmatprep.subr.mxu0 0.0
        %2790 = vmatpush1.msra.mxu0 %v942
        %2791 = vmatprep.subr.mxu0 0.0
        %2792 = vmatpush1.msra.mxu0 %v943
        %2793 = vmatprep.subr.mxu0 0.0
        %2794 = vmatpush1.msra.mxu0 %v944
        %2795 = vmatprep.subr.mxu0 0.0
        %2796 = vmatpush1.msra.mxu0 %v945
        %2797 = vmatprep.subr.mxu0 0.0
        %2798 = vmatpush1.msra.mxu0 %v946
        %2799 = vmatprep.subr.mxu0 0.0
        %2800 = vmatpush1.msra.mxu0 %v947
        %2801 = vmatprep.subr.mxu0 0.0
        %2802 = vmatpush1.msra.mxu0 %v948
        %2803 = vmatprep.subr.mxu0 0.0
        %2804 = vmatpush1.msra.mxu0 %v949
        %2805 = vmatprep.subr.mxu0 0.0
        %2806 = vmatpush1.msra.mxu0 %v950
        %2807 = vmatprep.subr.mxu0 0.0
        %2808 = vmatpush1.msra.mxu0 %v951
        %2809 = vmatprep.subr.mxu0 0.0
        %2810 = vmatpush1.msra.mxu0 %v952
        %2811 = vmatprep.subr.mxu0 0.0
        %2812 = vmatpush1.msra.mxu0 %v953
        %2813 = vmatprep.subr.mxu0 0.0
        %2814 = vmatpush1.msra.mxu0 %v954
        %2815 = vmatprep.subr.mxu0 0.0
        %2816 = vmatpush1.msra.mxu0 %v955
        %2817 = vmatprep.subr.mxu0 0.0
        %2818 = vmatpush1.msra.mxu0 %v956
        %2819 = vmatprep.mubr.f32.mxu0 %v1219
        %2820 = vmatmul.mubr.f32.gmra.mrb[0].mxu0 %v1217
        %v2821 = vpop.f32.mrb[0].mxu0
        %v2822 = vadd.f32 %v2752, %v2821
        %v2823 = vpop.f32.mrb[0].mxu0
        %2824 = vdwg.mxu0
        %2825 = vmatprep.subr.mxu0 0.0
        %2826 = vmatpush1.msra.mxu0 %v957
        %2827 = vmatprep.subr.mxu0 0.0
        %2828 = vmatpush1.msra.mxu0 %v958
        %2829 = vmatprep.subr.mxu0 0.0
        %2830 = vmatpush1.msra.mxu0 %v959
        %2831 = vmatprep.subr.mxu0 0.0
        %2832 = vmatpush1.msra.mxu0 %v960
        %2833 = vmatprep.subr.mxu0 0.0
        %2834 = vmatpush1.msra.mxu0 %v961
        %2835 = vmatprep.subr.mxu0 0.0
        %2836 = vmatpush1.msra.mxu0 %v962
        %2837 = vmatprep.subr.mxu0 0.0
        %2838 = vmatpush1.msra.mxu0 %v963
        %2839 = vmatprep.subr.mxu0 0.0
        %2840 = vmatpush1.msra.mxu0 %v964
        %2841 = vmatprep.subr.mxu0 0.0
        %2842 = vmatpush1.msra.mxu0 %v965
        %2843 = vmatprep.subr.mxu0 0.0
        %2844 = vmatpush1.msra.mxu0 %v966
        %2845 = vmatprep.subr.mxu0 0.0
        %2846 = vmatpush1.msra.mxu0 %v967
        %2847 = vmatprep.subr.mxu0 0.0
        %2848 = vmatpush1.msra.mxu0 %v968
        %2849 = vmatprep.subr.mxu0 0.0
        %2850 = vmatpush1.msra.mxu0 %v969
        %2851 = vmatprep.subr.mxu0 0.0
        %2852 = vmatpush1.msra.mxu0 %v970
        %2853 = vmatprep.subr.mxu0 0.0
        %2854 = vmatpush1.msra.mxu0 %v971
        %2855 = vmatprep.subr.mxu0 0.0
        %2856 = vmatpush1.msra.mxu0 %v972
        %2857 = vmatprep.subr.mxu0 0.0
        %2858 = vmatpush1.msra.mxu0 %v973
        %2859 = vmatprep.subr.mxu0 0.0
        %2860 = vmatpush1.msra.mxu0 %v974
        %2861 = vmatprep.subr.mxu0 0.0
        %2862 = vmatpush1.msra.mxu0 %v975
        %2863 = vmatprep.subr.mxu0 0.0
        %2864 = vmatpush1.msra.mxu0 %v976
        %2865 = vmatprep.subr.mxu0 0.0
        %2866 = vmatpush1.msra.mxu0 %v977
        %2867 = vmatprep.subr.mxu0 0.0
        %2868 = vmatpush1.msra.mxu0 %v978
        %2869 = vmatprep.subr.mxu0 0.0
        %2870 = vmatpush1.msra.mxu0 %v979
        %2871 = vmatprep.subr.mxu0 0.0
        %2872 = vmatpush1.msra.mxu0 %v980
        %2873 = vmatprep.subr.mxu0 0.0
        %2874 = vmatpush1.msra.mxu0 %v981
        %2875 = vmatprep.subr.mxu0 0.0
        %2876 = vmatpush1.msra.mxu0 %v982
        %2877 = vmatprep.subr.mxu0 0.0
        %2878 = vmatpush1.msra.mxu0 %v983
        %2879 = vmatprep.subr.mxu0 0.0
        %2880 = vmatpush1.msra.mxu0 %v984
        %2881 = vmatprep.subr.mxu0 0.0
        %2882 = vmatpush1.msra.mxu0 %v985
        %2883 = vmatprep.subr.mxu0 0.0
        %2884 = vmatpush1.msra.mxu0 %v986
        %2885 = vmatprep.subr.mxu0 0.0
        %2886 = vmatpush1.msra.mxu0 %v987
        %2887 = vmatprep.subr.mxu0 0.0
        %2888 = vmatpush1.msra.mxu0 %v988
        %2889 = vmatprep.mubr.f32.mxu0 %v1235
        %2890 = vmatmul.mubr.f32.gmra.mrb[0].mxu0 %v1227
        %v2891 = vpop.f32.mrb[0].mxu0
        %v2892 = vadd.f32 %v2822, %v2891
        %v2893 = vpop.f32.mrb[0].mxu0
        %2894 = vdwg.mxu0
        %2895 = vmatprep.subr.mxu0 0.0
        %2896 = vmatpush1.msra.mxu0 %v989
        %2897 = vmatprep.subr.mxu0 0.0
        %2898 = vmatpush1.msra.mxu0 %v990
        %2899 = vmatprep.subr.mxu0 0.0
        %2900 = vmatpush1.msra.mxu0 %v991
        %2901 = vmatprep.subr.mxu0 0.0
        %2902 = vmatpush1.msra.mxu0 %v992
        %2903 = vmatprep.subr.mxu0 0.0
        %2904 = vmatpush1.msra.mxu0 %v993
        %2905 = vmatprep.subr.mxu0 0.0
        %2906 = vmatpush1.msra.mxu0 %v994
        %2907 = vmatprep.subr.mxu0 0.0
        %2908 = vmatpush1.msra.mxu0 %v995
        %2909 = vmatprep.subr.mxu0 0.0
        %2910 = vmatpush1.msra.mxu0 %v996
        %2911 = vmatprep.subr.mxu0 0.0
        %2912 = vmatpush1.msra.mxu0 %v997
        %2913 = vmatprep.subr.mxu0 0.0
        %2914 = vmatpush1.msra.mxu0 %v998
        %2915 = vmatprep.subr.mxu0 0.0
        %2916 = vmatpush1.msra.mxu0 %v999
        %2917 = vmatprep.subr.mxu0 0.0
        %2918 = vmatpush1.msra.mxu0 %v1000
        %2919 = vmatprep.subr.mxu0 0.0
        %2920 = vmatpush1.msra.mxu0 %v1001
        %2921 = vmatprep.subr.mxu0 0.0
        %2922 = vmatpush1.msra.mxu0 %v1002
        %2923 = vmatprep.subr.mxu0 0.0
        %2924 = vmatpush1.msra.mxu0 %v1003
        %2925 = vmatprep.subr.mxu0 0.0
        %2926 = vmatpush1.msra.mxu0 %v1004
        %2927 = vmatprep.subr.mxu0 0.0
        %2928 = vmatpush1.msra.mxu0 %v1005
        %2929 = vmatprep.subr.mxu0 0.0
        %2930 = vmatpush1.msra.mxu0 %v1006
        %2931 = vmatprep.subr.mxu0 0.0
        %2932 = vmatpush1.msra.mxu0 %v1007
        %2933 = vmatprep.subr.mxu0 0.0
        %2934 = vmatpush1.msra.mxu0 %v1008
        %2935 = vmatprep.subr.mxu0 0.0
        %2936 = vmatpush1.msra.mxu0 %v1009
        %2937 = vmatprep.subr.mxu0 0.0
        %2938 = vmatpush1.msra.mxu0 %v1010
        %2939 = vmatprep.subr.mxu0 0.0
        %2940 = vmatpush1.msra.mxu0 %v1011
        %2941 = vmatprep.subr.mxu0 0.0
        %2942 = vmatpush1.msra.mxu0 %v1012
        %2943 = vmatprep.subr.mxu0 0.0
        %2944 = vmatpush1.msra.mxu0 %v1013
        %2945 = vmatprep.subr.mxu0 0.0
        %2946 = vmatpush1.msra.mxu0 %v1014
        %2947 = vmatprep.subr.mxu0 0.0
        %2948 = vmatpush1.msra.mxu0 %v1015
        %2949 = vmatprep.subr.mxu0 0.0
        %2950 = vmatpush1.msra.mxu0 %v1016
        %2951 = vmatprep.subr.mxu0 0.0
        %2952 = vmatpush1.msra.mxu0 %v1017
        %2953 = vmatprep.subr.mxu0 0.0
        %2954 = vmatpush1.msra.mxu0 %v1018
        %2955 = vmatprep.subr.mxu0 0.0
        %2956 = vmatpush1.msra.mxu0 %v1019
        %2957 = vmatprep.subr.mxu0 0.0
        %2958 = vmatpush1.msra.mxu0 %v1020
        %2959 = vmatprep.mubr.f32.mxu0 %v1236
        %2960 = vmatmul.mubr.f32.gmra.mrb[0].mxu0 %v1234
        %v2961 = vpop.f32.mrb[0].mxu0
        %v2962 = vadd.f32 %v2892, %v2961
        %v2963 = vpop.f32.mrb[0].mxu0
        %2964 = vdwg.mxu0
        %v2965 = vadd.f32 %v240, %v2962
        %2966 = vst [vmem:[#allocation2] sm:$0x3] %v2965
        %p2967 = scmp.eq.s32.totalorder %s17, 2
        // Predicated region
        $region45: #{dqn_forward.7} parent=39 // pred_check
          %p2968 = pneg %p2967
        $region46: #{dqn_forward.7} parent=39 // pred_check_branch
          %2970 = sbr.rel (%p2968) target = $region48
        $region47: #{dqn_forward.7} parent=39 // pred_region
          %v2971 = vld [vmem:[#allocation2] sm:$0x3]
          %v2972 = vld [vmem:[%s2] sm:$0x1]
          %v2974 = vlaneseq
          %v2975 = vshrl.u32 %v2974, 7
          %v2976 = vsub.s32 0, %v2975
          %v2977 = vrot.slane %v2972, %v2976
          %v2979 = vadd.f32 %v2971, %v2977
          %v2980 = vmax.f32 %v2979, 0.0
          %v2981 = vld [vmem:[%s3] sm:$0xff]
          %v2982 = vld [vmem:[%s3 + $0x8] sm:$0xff]
          %v2983 = vld [vmem:[%s3 + $0x10] sm:$0xff]
          %v2984 = vld [vmem:[%s3 + $0x18] sm:$0xff]
          %v2985 = vld [vmem:[%s3 + $0x20] sm:$0xff]
          %v2986 = vld [vmem:[%s3 + $0x28] sm:$0xff]
          %v2987 = vld [vmem:[%s3 + $0x30] sm:$0xff]
          %v2988 = vld [vmem:[%s3 + $0x38] sm:$0xff]
          %v2989 = vld [vmem:[%s3 + $0x40] sm:$0xff]
          %v2990 = vld [vmem:[%s3 + $0x48] sm:$0xff]
          %v2991 = vld [vmem:[%s3 + $0x50] sm:$0xff]
          %v2992 = vld [vmem:[%s3 + $0x58] sm:$0xff]
          %v2993 = vld [vmem:[%s3 + $0x60] sm:$0xff]
          %v2994 = vld [vmem:[%s3 + $0x68] sm:$0xff]
          %v2995 = vld [vmem:[%s3 + $0x70] sm:$0xff]
          %v2996 = vld [vmem:[%s3 + $0x78] sm:$0xff]
          %v2997 = vld [vmem:[%s4] sm:$0x1]
          %v2999 = vlaneseq
          %v3000 = vshrl.u32 %v2999, 7
          %v3001 = vsub.s32 0, %v3000
          %v3002 = vrot.slane %v2997, %v3001
          %3004 = vmatprep.subr.mxu0 0.0
          %3005 = vmatpush1.msra.mxu0 %v2981
          %3006 = vmatprep.subr.mxu0 0.0
          %3007 = vmatpush1.msra.mxu0 %v2982
          %3008 = vmatprep.subr.mxu0 0.0
          %3009 = vmatpush1.msra.mxu0 %v2983
          %3010 = vmatprep.subr.mxu0 0.0
          %3011 = vmatpush1.msra.mxu0 %v2984
          %3012 = vmatprep.subr.mxu0 0.0
          %3013 = vmatpush1.msra.mxu0 %v2985
          %3014 = vmatprep.subr.mxu0 0.0
          %3015 = vmatpush1.msra.mxu0 %v2986
          %3016 = vmatprep.subr.mxu0 0.0
          %3017 = vmatpush1.msra.mxu0 %v2987
          %3018 = vmatprep.subr.mxu0 0.0
          %3019 = vmatpush1.msra.mxu0 %v2988
          %3020 = vmatprep.subr.mxu0 0.0
          %3021 = vmatpush1.msra.mxu0 %v2989
          %3022 = vmatprep.subr.mxu0 0.0
          %3023 = vmatpush1.msra.mxu0 %v2990
          %3024 = vmatprep.subr.mxu0 0.0
          %3025 = vmatpush1.msra.mxu0 %v2991
          %3026 = vmatprep.subr.mxu0 0.0
          %3027 = vmatpush1.msra.mxu0 %v2992
          %3028 = vmatprep.subr.mxu0 0.0
          %3029 = vmatpush1.msra.mxu0 %v2993
          %3030 = vmatprep.subr.mxu0 0.0
          %3031 = vmatpush1.msra.mxu0 %v2994
          %3032 = vmatprep.subr.mxu0 0.0
          %3033 = vmatpush1.msra.mxu0 %v2995
          %3034 = vmatprep.subr.mxu0 0.0
          %3035 = vmatpush1.msra.mxu0 %v2996
          %3036 = vmatprep.subr.mxu0 0.0
          %3037 = vmatpush1.msra.mxu0 0.0
          %3038 = vmatprep.subr.mxu0 0.0
          %3039 = vmatpush1.msra.mxu0 0.0
          %3040 = vmatprep.subr.mxu0 0.0
          %3041 = vmatpush1.msra.mxu0 0.0
          %3042 = vmatprep.subr.mxu0 0.0
          %3043 = vmatpush1.msra.mxu0 0.0
          %3044 = vmatprep.subr.mxu0 0.0
          %3045 = vmatpush1.msra.mxu0 0.0
          %3046 = vmatprep.subr.mxu0 0.0
          %3047 = vmatpush1.msra.mxu0 0.0
          %3048 = vmatprep.subr.mxu0 0.0
          %3049 = vmatpush1.msra.mxu0 0.0
          %3050 = vmatprep.subr.mxu0 0.0
          %3051 = vmatpush1.msra.mxu0 0.0
          %3052 = vmatprep.subr.mxu0 0.0
          %3053 = vmatpush1.msra.mxu0 0.0
          %3054 = vmatprep.subr.mxu0 0.0
          %3055 = vmatpush1.msra.mxu0 0.0
          %3056 = vmatprep.subr.mxu0 0.0
          %3057 = vmatpush1.msra.mxu0 0.0
          %3058 = vmatprep.subr.mxu0 0.0
          %3059 = vmatpush1.msra.mxu0 0.0
          %3060 = vmatprep.subr.mxu0 0.0
          %3061 = vmatpush1.msra.mxu0 0.0
          %3062 = vmatprep.subr.mxu0 0.0
          %3063 = vmatpush1.msra.mxu0 0.0
          %3064 = vmatprep.subr.mxu0 0.0
          %3065 = vmatpush1.msra.mxu0 0.0
          %3066 = vmatprep.subr.mxu0 0.0
          %3067 = vmatpush1.msra.mxu0 0.0
          %3068 = vmatprep.mubr.f32.mxu0 0.0
          %3069 = vmatmul.mubr.f32.gmra.mrb[0].mxu0 %v2980
          %v3070 = vpop.f32.mrb[0].mxu0
          %v3071 = vadd.f32 %v3002, %v3070
          %v3072 = vpop.f32.mrb[0].mxu0
          %3073 = vdwg.mxu0
          %vm3074 = vcmask 66560
          %3075 = vst.msk [vmem:[#allocation3] sm:$0x3] %vm3074, %v3071
        $region48: #{dqn_forward.7} parent=39 // pred_fallthru
          _
        // Predicated region
        $region49: #{dqn_forward.7} parent=39 // pred_check
          %p3076 = pneg %p145
        $region50: #{dqn_forward.7} parent=39 // pred_check_branch
          %3078 = sbr.rel (%p3076) target = $region52
        $region51: #{dqn_forward.7} parent=39 // pred_region
          %s3080 = ssub.s32 32, 32
          %3081 = vsyncadd [#allocation4], %s3080
          %s3083 = sshll.u32 [#allocation3], 4
          %s3084 = int_to_ptr.vmem [resolvable:$true] %s3083
          %3086 = dma.vmem_to_hbm [thread:$0]  %s3084, 32, %s5, [#allocation4]
        $region52: #{dqn_forward.7} parent=39 // pred_fallthru
          _
        // Predicated region
        $region53: #{dqn_forward.7} parent=39 // pred_check
          %p3087 = pneg %p145
        $region54: #{dqn_forward.7} parent=39 // pred_check_branch
          %3089 = sbr.rel (%p3087) target = $region56
        $region55: #{dqn_forward.7} parent=39 // pred_region
          %3090 = dma.done [#allocation4], 32
        $region56: #{dqn_forward.7} parent=39 // pred_fallthru
          _
      $region40: #{dqn_forward.7} parent=5 // pred_fallthru
        _
      %p3091 = scmp.le.s32.totalorder 2, %s12
      // Predicated region
      $region57: #{dqn_forward.7} parent=5 // pred_check
        %p3092 = pneg %p3091
      $region58: #{dqn_forward.7} parent=5 // pred_check_branch
        %3094 = sbr.rel (%p3092) target = $region60
      $region59: #{dqn_forward.7} parent=5 // pred_region
        %s3095 = ssub.s32 %s12, 2
      $region60: #{dqn_forward.7} parent=5 // pred_fallthru
        _
    $region6: #{dqn_forward.7} parent=1 // loop_footer
      %s16 = sadd.s32 1, %s12
    $region7: #{dqn_forward.7} parent=1 // loop_footer_branch
      %11 = sbr.rel target = $region3
    $region8: #{dqn_forward.7} parent=1 // loop_exit
      _
    %3096 = vsyncpa [#allocation4], 1
    %s3097 = scalar_lea.sflag [#allocation4], 1
    %3098 = vsyncpa %s3097, 1

</llo_original>
